<compile_context>
chip_gen: v7x
topology: tpu7x:2x2x1
jax: 0.10.0
libtpu: 0.0.40
codegen_flags: <defaults>
</compile_context>

<pallas_src>
import jax
import jax.numpy as jnp
from jax import lax
from jax.experimental import pallas as pl
from jax.experimental.pallas import tpu as pltpu

NUM_CLASSES = 22
FC_OUT_PAD = 128  # lane-dense padded width for the fc2 output


# ----------------------------------------------------------------------------
# small helpers
# ----------------------------------------------------------------------------
def _cdiv(a, b):
    return (a + b - 1) // b


def _round_up(x, m):
    return _cdiv(x, m) * m


def _choose_rows(m, gran, tile, min_split):
    """Pick (row_tile, padded_rows, n_programs).

    Minimal padding (< gran per program) and >= 2 grid programs whenever there
    is enough work, so v7x's two TensorCores are both busy (no-op on v5e/v6e).
    """
    nsteps = _cdiv(m, tile)
    if nsteps == 1 and m >= min_split:
        nsteps = 2
    tm = _round_up(_cdiv(m, nsteps), gran)
    return tm, tm * nsteps, nsteps


# ----------------------------------------------------------------------------
# Pallas kernels
# ----------------------------------------------------------------------------
def _conv_relu_pool_kernel(p_ref, w_ref, b_ref, o_ref):
    # p_ref: (4, t, r*K) bf16 patches; each row packs r pooled pixels.
    # w_ref: (r*K, r*Cout) bf16 block-diagonal weight (resident).
    # b_ref: (1, r*Cout) f32 (bias tiled r times).
    # o_ref: (t, r*Cout) bf16, r*Cout == 128 -> unmasked lane-dense stores.
    _, t, kk = p_ref.shape
    p = p_ref[...].reshape(4 * t, kk)                      # leading-dim merge: free
    s = jnp.dot(p, w_ref[...], preferred_element_type=jnp.float32)  # one MXU call
    y = jnp.max(s.reshape(4, t, s.shape[-1]), axis=0)      # 2x2 max pool (VPU)
    y = jnp.maximum(y + b_ref[...], 0.0)                   # shared bias + ReLU (f32)
    o_ref[...] = y.astype(o_ref.dtype)                     # cast to bf16 at store


def _mlp_kernel(x_ref, w1_ref, b1_ref, w2_ref, b2_ref, o_ref):
    # x: (nb, 2304) bf16, w1: (2304, 64) bf16, b1: (1, 64) f32,
    # w2: (64, 128) bf16 (padded), b2: (1, 128) f32, o: (nb, 128) f32
    h = jnp.dot(x_ref[...], w1_ref[...], preferred_element_type=jnp.float32)
    h = jnp.maximum(h + b1_ref[...], 0.0)
    o = jnp.dot(h.astype(w2_ref.dtype), w2_ref[...],
                preferred_element_type=jnp.float32) + b2_ref[...]
    o_ref[...] = o.astype(o_ref.dtype)


# ----------------------------------------------------------------------------
# Glue (plain JAX): im2col arranged so the pool window is the leading axis
# ----------------------------------------------------------------------------
def _im2col_pool(x_nhwc):
    x = x_nhwc.astype(jnp.bfloat16)   # cast BEFORE the stack/transpose (halves bytes)
    N, H, W, Cin = x.shape
    Hc, Wc = H - 2, W - 2             # valid 3x3 conv output
    Hp, Wp = Hc // 2, Wc // 2         # after 2x2 max pool
    K = 9 * Cin
    patches = jnp.stack(
        [jnp.stack([x[:, kh:kh + Hc, kw:kw + Wc, :] for kw in range(3)], axis=3)
         for kh in range(3)],
        axis=3)                                            # (N, Hc, Wc, 3, 3, Cin)
    patches = patches.reshape(N, Hc, Wc, K).reshape(N, Hp, 2, Wp, 2, K)
    # (pool_row, pool_col, N, Hp, Wp, K) -> (4, M, K), K-order = (kh, kw, cin)
    patches = patches.transpose(2, 4, 0, 1, 3, 5).reshape(4, N * Hp * Wp, K)
    return patches, (N, Hp, Wp)


def conv_relu_pool(x_nhwc, w_bd, b_row, r):
    # w_bd: (r*K, r*Cout) bf16 block-diagonal, b_row: (1, r*Cout) f32.
    rK, rC = w_bd.shape
    K, C = rK // r, rC // r
    patches, (N, Hp, Wp) = _im2col_pool(x_nhwc)            # (4, M, K) bf16
    M = N * Hp * Wp
    tm, M_pad, nsteps = _choose_rows(M, gran=16 * r, tile=1024, min_split=256)
    if M_pad != M:
        patches = jnp.pad(patches, ((0, 0), (0, M_pad - M), (0, 0)))
    pv = patches.reshape(4, M_pad // r, rK)                # free row-major view

    cost = pl.CostEstimate(
        flops=2 * 4 * (M_pad // r) * rK * rC,
        transcendentals=0,
        bytes_accessed=4 * M_pad * K * 2 + rK * rC * 2 + rC * 4 + M_pad * C * 2,
    )
    out = pl.pallas_call(
        _conv_relu_pool_kernel,
        out_shape=jax.ShapeDtypeStruct((M_pad // r, rC), jnp.bfloat16),
        grid=(nsteps,),
        in_specs=[
            pl.BlockSpec((4, tm // r, rK), lambda i: (0, i, 0)),  # streamed patches
            pl.BlockSpec((rK, rC), lambda i: (0, 0)),             # resident weight
            pl.BlockSpec((1, rC), lambda i: (0, 0)),              # resident bias
        ],
        out_specs=pl.BlockSpec((tm // r, rC), lambda i: (i, 0)),
        compiler_params=pltpu.CompilerParams(
            dimension_semantics=("parallel",)),
        cost_estimate=cost,
    )(pv, w_bd, b_row)
    # (M_pad//r, r*C) -> (M_pad, C) is a free row-major reinterpretation.
    return out.reshape(M_pad, C)[:M].reshape(N, Hp, Wp, C)


def mlp(x_flat, w1, b1, w2, b2, n_out=NUM_CLASSES):
    N, F = x_flat.shape
    H1 = w1.shape[1]
    P = w2.shape[1]
    nb, N_pad, nsteps = _choose_rows(N, gran=16, tile=256, min_split=64)
    x = x_flat.astype(jnp.bfloat16)
    if N_pad != N:
        x = jnp.pad(x, ((0, N_pad - N), (0, 0)))

    cost = pl.CostEstimate(
        flops=2 * N_pad * F * H1 + 2 * N_pad * H1 * P,
        transcendentals=0,
        bytes_accessed=N_pad * F * 2 + F * H1 * 2 + H1 * P * 2 + N_pad * P * 4,
    )
    out = pl.pallas_call(
        _mlp_kernel,
        out_shape=jax.ShapeDtypeStruct((N_pad, P), jnp.float32),
        grid=(nsteps,),
        in_specs=[
            pl.BlockSpec((nb, F), lambda i: (i, 0)),
            pl.BlockSpec((F, H1), lambda i: (0, 0)),
            pl.BlockSpec((1, H1), lambda i: (0, 0)),
            pl.BlockSpec((H1, P), lambda i: (0, 0)),
            pl.BlockSpec((1, P), lambda i: (0, 0)),
        ],
        out_specs=pl.BlockSpec((nb, P), lambda i: (i, 0)),
        compiler_params=pltpu.CompilerParams(
            dimension_semantics=("parallel",)),
        cost_estimate=cost,
    )(x, w1, b1, w2, b2)
    return out[:N, :n_out]


# ----------------------------------------------------------------------------
# One-time weight packing (outside the hot path)
# ----------------------------------------------------------------------------
def pack_params(params):
    def conv_w(w, r):
        # (Cout, Cin, 3, 3) -> (9*Cin, Cout) in (kh, kw, cin) order, then
        # block-diagonal replicate r times -> (r*K, r*Cout) bf16 so the kernel
        # packs r pooled pixels per output row (128-lane-dense stores) using
        # only free leading-dim reshapes.  Extra MXU zeros are hidden under DMA.
        Cout, Cin, _, _ = w.shape
        w_kc = jnp.transpose(w, (2, 3, 1, 0)).reshape(9 * Cin, Cout)
        return jnp.kron(jnp.eye(r, dtype=w_kc.dtype), w_kc).astype(jnp.bfloat16)

    def conv_b(b, r):
        return jnp.tile(b, r).reshape(1, -1).astype(jnp.float32)

    # fc1: PyTorch flatten order is (c, h, w); our conv3 output flattens as
    # (h, w, c) -> permute fc1's input columns so no activation transpose needed.
    w1 = params["w_f1"].reshape(64, 64, 6, 6)                      # (out, c, h, w)
    w1 = jnp.transpose(w1, (2, 3, 1, 0)).reshape(6 * 6 * 64, 64)   # ((h,w,c), out)

    w2 = params["w_f2"]                                            # (22, 64)
    w2 = jnp.pad(w2.T, ((0, 0), (0, FC_OUT_PAD - w2.shape[0])))    # (64, 128)
    b2 = jnp.pad(params["b_f2"], (0, FC_OUT_PAD - NUM_CLASSES)).reshape(1, -1)

    return {
        "w_c1": conv_w(params["w_c1"], 4), "b_c1": conv_b(params["b_c1"], 4),
        "w_c2": conv_w(params["w_c2"], 2), "b_c2": conv_b(params["b_c2"], 2),
        "w_c3": conv_w(params["w_c3"], 2), "b_c3": conv_b(params["b_c3"], 2),
        "w_f1": w1.astype(jnp.bfloat16), "b_f1": params["b_f1"].reshape(1, -1),
        "w_f2": w2.astype(jnp.bfloat16), "b_f2": b2.astype(jnp.float32),
    }


def cnn_forward(x_nchw, pp):
    # x_nchw: (N, 3, 62, 62) float32 (PyTorch convention)
    x = jnp.transpose(x_nchw, (0, 2, 3, 1))                # NCHW -> NHWC (once)
    x = conv_relu_pool(x, pp["w_c1"], pp["b_c1"], r=4)     # (N, 30, 30, 32) bf16
    x = conv_relu_pool(x, pp["w_c2"], pp["b_c2"], r=2)     # (N, 14, 14, 64) bf16
    x = conv_relu_pool(x, pp["w_c3"], pp["b_c3"], r=2)     # (N,  6,  6, 64) bf16
    x = x.reshape(x.shape[0], 6 * 6 * 64)                  # (h,w,c) flatten (free)
    return mlp(x, pp["w_f1"], pp["b_f1"], pp["w_f2"], pp["b_f2"])


# ----------------------------------------------------------------------------
# Pure-JAX reference (raw PyTorch-layout params) for a correctness check
# ----------------------------------------------------------------------------
def cnn_reference(x_nchw, params):
    y = x_nchw
    for wk, bk in (("w_c1", "b_c1"), ("w_c2", "b_c2"), ("w_c3", "b_c3")):
        y = lax.conv_general_dilated(
            y, params[wk], window_strides=(1, 1), padding="VALID",
            dimension_numbers=("NCHW", "OIHW", "NCHW"))
        y = jnp.maximum(y + params[bk][None, :, None, None], 0.0)
        y = lax.reduce_window(y, -jnp.inf, lax.max,
                              (1, 1, 2, 2), (1, 1, 2, 2), "VALID")
    y = y.reshape(y.shape[0], -1)
    y = jnp.maximum(y @ params["w_f1"].T + params["b_f1"], 0.0)
    return y @ params["w_f2"].T + params["b_f2"]


# ----------------------------------------------------------------------------
def init_params(key):
    ks = jax.random.split(key, 10)

    def w(k, shape, scale=0.05):
        return (scale * jax.random.normal(k, shape)).astype(jnp.float32)

    return {
        "w_c1": w(ks[0], (32, 3, 3, 3)),    "b_c1": w(ks[1], (32,)),
        "w_c2": w(ks[2], (64, 32, 3, 3)),   "b_c2": w(ks[3], (64,)),
        "w_c3": w(ks[4], (64, 64, 3, 3)),   "b_c3": w(ks[5], (64,)),
        "w_f1": w(ks[6], (64, 64 * 6 * 6)), "b_f1": w(ks[7], (64,)),
        "w_f2": w(ks[8], (22, 64)),         "b_f2": w(ks[9], (22,)),
    }


if __name__ == "__main__":
    key = jax.random.PRNGKey(0)
    k_x, k_p = jax.random.split(key)
    # spatial size 62 is forced by fc1 expecting 64*6*6 after three conv+pool
    x = jax.random.normal(k_x, (2, 3, 62, 62), dtype=jnp.float32)
    params = init_params(k_p)
    packed = jax.block_until_ready(pack_params(params))    # one-time repack

    fwd = jax.jit(cnn_forward)
    out = jax.block_until_ready(fwd(x, packed))
    ref = jax.block_until_ready(cnn_reference(x, params))

    assert out.shape == (2, NUM_CLASSES), out.shape
    assert jnp.allclose(out, ref, rtol=2e-2, atol=2e-2), \
        float(jnp.max(jnp.abs(out - ref)))
    print("KERNEL_OK")
</pallas_src>

<mosaic_0001>
module attributes {stable_mosaic.version = 11 : i64} {
  func.func @_conv_relu_pool_kernel(%arg0: i32, %arg1: memref<4x240x108xbf16, #tpu.memory_space<vmem>>, %arg2: memref<108x128xbf16, #tpu.memory_space<vmem>>, %arg3: memref<1x128xf32, #tpu.memory_space<vmem>>, %arg4: memref<240x128xbf16, #tpu.memory_space<vmem>>) attributes {dimension_semantics = [#tpu.dimension_semantics<parallel>], iteration_bounds = array<i64: 2>, scalar_prefetch = 0 : i64, scratch_operands = 0 : i64, tpu.core_type = #tpu.core_type<tc>, window_params = [{transform_indices = @transform_0, window_bounds = array<i64: 4, 240, 108>}, {pipeline_mode = #tpu.pipeline_mode<synchronous>, transform_indices = @transform_1, window_bounds = array<i64: 108, 128>}, {pipeline_mode = #tpu.pipeline_mode<synchronous>, transform_indices = @transform_2, window_bounds = array<i64: 1, 128>}, {transform_indices = @transform_3, window_bounds = array<i64: 240, 128>}]} {
    %c0 = arith.constant 0 : index
    %c0_0 = arith.constant 0 : index
    %c0_1 = arith.constant 0 : index
    %0 = vector.load %arg1[%c0, %c0_0, %c0_1] : memref<4x240x108xbf16, #tpu.memory_space<vmem>>, vector<4x240x108xbf16>
    %1 = vector.shape_cast %0 : vector<4x240x108xbf16> to vector<960x108xbf16>
    %c0_2 = arith.constant 0 : index
    %c0_3 = arith.constant 0 : index
    %2 = vector.load %arg2[%c0_2, %c0_3] : memref<108x128xbf16, #tpu.memory_space<vmem>>, vector<108x128xbf16>
    %cst = arith.constant dense<0.000000e+00> : vector<960x128xf32>
    %3 = tpu.matmul %1, %2, %cst {dimension_numbers = #tpu.dot_dimension_numbers<[1], [0], [0], [1], [0, 0, 1, 1], [], []>} : vector<960x108xbf16>, vector<108x128xbf16>, vector<960x128xf32> -> vector<960x128xf32>
    %4 = vector.shape_cast %3 : vector<960x128xf32> to vector<4x240x128xf32>
    %cst_4 = arith.constant dense<0xFF800000> : vector<240x128xf32>
    %5 = vector.multi_reduction <maximumf>, %4, %cst_4 [0] : vector<4x240x128xf32> to vector<240x128xf32>
    %c0_5 = arith.constant 0 : index
    %c0_6 = arith.constant 0 : index
    %6 = vector.load %arg3[%c0_5, %c0_6] : memref<1x128xf32, #tpu.memory_space<vmem>>, vector<1x128xf32>
    %7 = vector.broadcast %6 : vector<1x128xf32> to vector<240x128xf32>
    %8 = arith.addf %5, %7 : vector<240x128xf32>
    %cst_7 = arith.constant 0.000000e+00 : f32
    %9 = vector.broadcast %cst_7 : f32 to vector<240x128xf32>
    %10 = arith.maximumf %8, %9 : vector<240x128xf32>
    %11 = arith.truncf %10 : vector<240x128xf32> to vector<240x128xbf16>
    %c0_8 = arith.constant 0 : index
    %c0_9 = arith.constant 0 : index
    %12 = vector.load %arg4[%c0_8, %c0_9] : memref<240x128xbf16, #tpu.memory_space<vmem>>, vector<240x128xbf16>
    tpu.vector_store %arg4[%c0_8, %c0_9], %11 {strides = array<i32>} : memref<240x128xbf16, #tpu.memory_space<vmem>>, vector<240x128xbf16>,
    return
  }
  func.func @transform_0(%arg0: i32) -> (i32, i32, i32) {
    %c0_i32 = arith.constant 0 : i32
    %c0_i32_0 = arith.constant 0 : i32
    %c0_i32_1 = arith.constant 0 : i32
    return %c0_i32, %arg0, %c0_i32_0 : i32, i32, i32
  }
  func.func @transform_1(%arg0: i32) -> (i32, i32) {
    %c0_i32 = arith.constant 0 : i32
    %c0_i32_0 = arith.constant 0 : i32
    %c0_i32_1 = arith.constant 0 : i32
    return %c0_i32, %c0_i32_0 : i32, i32
  }
  func.func @transform_2(%arg0: i32) -> (i32, i32) {
    %c0_i32 = arith.constant 0 : i32
    %c0_i32_0 = arith.constant 0 : i32
    %c0_i32_1 = arith.constant 0 : i32
    return %c0_i32, %c0_i32_0 : i32, i32
  }
  func.func @transform_3(%arg0: i32) -> (i32, i32) {
    %c0_i32 = arith.constant 0 : i32
    %c0_i32_0 = arith.constant 0 : i32
    return %arg0, %c0_i32 : i32, i32
  }
}

module attributes {stable_mosaic.version = 11 : i64} {
  func.func @_conv_relu_pool_kernel(%arg0: i32, %arg1: memref<4x112x576xbf16, #tpu.memory_space<vmem>>, %arg2: memref<576x128xbf16, #tpu.memory_space<vmem>>, %arg3: memref<1x128xf32, #tpu.memory_space<vmem>>, %arg4: memref<112x128xbf16, #tpu.memory_space<vmem>>) attributes {dimension_semantics = [#tpu.dimension_semantics<parallel>], iteration_bounds = array<i64: 2>, scalar_prefetch = 0 : i64, scratch_operands = 0 : i64, tpu.core_type = #tpu.core_type<tc>, window_params = [{transform_indices = @transform_0, window_bounds = array<i64: 4, 112, 576>}, {pipeline_mode = #tpu.pipeline_mode<synchronous>, transform_indices = @transform_1, window_bounds = array<i64: 576, 128>}, {pipeline_mode = #tpu.pipeline_mode<synchronous>, transform_indices = @transform_2, window_bounds = array<i64: 1, 128>}, {transform_indices = @transform_3, window_bounds = array<i64: 112, 128>}]} {
    %c0 = arith.constant 0 : index
    %c0_0 = arith.constant 0 : index
    %c0_1 = arith.constant 0 : index
    %0 = vector.load %arg1[%c0, %c0_0, %c0_1] : memref<4x112x576xbf16, #tpu.memory_space<vmem>>, vector<4x112x576xbf16>
    %1 = vector.shape_cast %0 : vector<4x112x576xbf16> to vector<448x576xbf16>
    %c0_2 = arith.constant 0 : index
    %c0_3 = arith.constant 0 : index
    %2 = vector.load %arg2[%c0_2, %c0_3] : memref<576x128xbf16, #tpu.memory_space<vmem>>, vector<576x128xbf16>
    %cst = arith.constant dense<0.000000e+00> : vector<448x128xf32>
    %3 = tpu.matmul %1, %2, %cst {dimension_numbers = #tpu.dot_dimension_numbers<[1], [0], [0], [1], [0, 0, 1, 1], [], []>} : vector<448x576xbf16>, vector<576x128xbf16>, vector<448x128xf32> -> vector<448x128xf32>
    %4 = vector.shape_cast %3 : vector<448x128xf32> to vector<4x112x128xf32>
    %cst_4 = arith.constant dense<0xFF800000> : vector<112x128xf32>
    %5 = vector.multi_reduction <maximumf>, %4, %cst_4 [0] : vector<4x112x128xf32> to vector<112x128xf32>
    %c0_5 = arith.constant 0 : index
    %c0_6 = arith.constant 0 : index
    %6 = vector.load %arg3[%c0_5, %c0_6] : memref<1x128xf32, #tpu.memory_space<vmem>>, vector<1x128xf32>
    %7 = vector.broadcast %6 : vector<1x128xf32> to vector<112x128xf32>
    %8 = arith.addf %5, %7 : vector<112x128xf32>
    %cst_7 = arith.constant 0.000000e+00 : f32
    %9 = vector.broadcast %cst_7 : f32 to vector<112x128xf32>
    %10 = arith.maximumf %8, %9 : vector<112x128xf32>
    %11 = arith.truncf %10 : vector<112x128xf32> to vector<112x128xbf16>
    %c0_8 = arith.constant 0 : index
    %c0_9 = arith.constant 0 : index
    %12 = vector.load %arg4[%c0_8, %c0_9] : memref<112x128xbf16, #tpu.memory_space<vmem>>, vector<112x128xbf16>
    tpu.vector_store %arg4[%c0_8, %c0_9], %11 {strides = array<i32>} : memref<112x128xbf16, #tpu.memory_space<vmem>>, vector<112x128xbf16>,
    return
  }
  func.func @transform_0(%arg0: i32) -> (i32, i32, i32) {
    %c0_i32 = arith.constant 0 : i32
    %c0_i32_0 = arith.constant 0 : i32
    %c0_i32_1 = arith.constant 0 : i32
    return %c0_i32, %arg0, %c0_i32_0 : i32, i32, i32
  }
  func.func @transform_1(%arg0: i32) -> (i32, i32) {
    %c0_i32 = arith.constant 0 : i32
    %c0_i32_0 = arith.constant 0 : i32
    %c0_i32_1 = arith.constant 0 : i32
    return %c0_i32, %c0_i32_0 : i32, i32
  }
  func.func @transform_2(%arg0: i32) -> (i32, i32) {
    %c0_i32 = arith.constant 0 : i32
    %c0_i32_0 = arith.constant 0 : i32
    %c0_i32_1 = arith.constant 0 : i32
    return %c0_i32, %c0_i32_0 : i32, i32
  }
  func.func @transform_3(%arg0: i32) -> (i32, i32) {
    %c0_i32 = arith.constant 0 : i32
    %c0_i32_0 = arith.constant 0 : i32
    return %arg0, %c0_i32 : i32, i32
  }
}

module attributes {stable_mosaic.version = 11 : i64} {
  func.func @_conv_relu_pool_kernel(%arg0: i32, %arg1: memref<4x48x1152xbf16, #tpu.memory_space<vmem>>, %arg2: memref<1152x128xbf16, #tpu.memory_space<vmem>>, %arg3: memref<1x128xf32, #tpu.memory_space<vmem>>, %arg4: memref<48x128xbf16, #tpu.memory_space<vmem>>) attributes {dimension_semantics = [#tpu.dimension_semantics<parallel>], iteration_bounds = array<i64: 1>, scalar_prefetch = 0 : i64, scratch_operands = 0 : i64, tpu.core_type = #tpu.core_type<tc>, window_params = [{transform_indices = @transform_0, window_bounds = array<i64: 4, 48, 1152>}, {pipeline_mode = #tpu.pipeline_mode<synchronous>, transform_indices = @transform_1, window_bounds = array<i64: 1152, 128>}, {pipeline_mode = #tpu.pipeline_mode<synchronous>, transform_indices = @transform_2, window_bounds = array<i64: 1, 128>}, {transform_indices = @transform_3, window_bounds = array<i64: 48, 128>}]} {
    %c0 = arith.constant 0 : index
    %c0_0 = arith.constant 0 : index
    %c0_1 = arith.constant 0 : index
    %0 = vector.load %arg1[%c0, %c0_0, %c0_1] : memref<4x48x1152xbf16, #tpu.memory_space<vmem>>, vector<4x48x1152xbf16>
    %1 = vector.shape_cast %0 : vector<4x48x1152xbf16> to vector<192x1152xbf16>
    %c0_2 = arith.constant 0 : index
    %c0_3 = arith.constant 0 : index
    %2 = vector.load %arg2[%c0_2, %c0_3] : memref<1152x128xbf16, #tpu.memory_space<vmem>>, vector<1152x128xbf16>
    %cst = arith.constant dense<0.000000e+00> : vector<192x128xf32>
    %3 = tpu.matmul %1, %2, %cst {dimension_numbers = #tpu.dot_dimension_numbers<[1], [0], [0], [1], [0, 0, 1, 1], [], []>} : vector<192x1152xbf16>, vector<1152x128xbf16>, vector<192x128xf32> -> vector<192x128xf32>
    %4 = vector.shape_cast %3 : vector<192x128xf32> to vector<4x48x128xf32>
    %cst_4 = arith.constant dense<0xFF800000> : vector<48x128xf32>
    %5 = vector.multi_reduction <maximumf>, %4, %cst_4 [0] : vector<4x48x128xf32> to vector<48x128xf32>
    %c0_5 = arith.constant 0 : index
    %c0_6 = arith.constant 0 : index
    %6 = vector.load %arg3[%c0_5, %c0_6] : memref<1x128xf32, #tpu.memory_space<vmem>>, vector<1x128xf32>
    %7 = vector.broadcast %6 : vector<1x128xf32> to vector<48x128xf32>
    %8 = arith.addf %5, %7 : vector<48x128xf32>
    %cst_7 = arith.constant 0.000000e+00 : f32
    %9 = vector.broadcast %cst_7 : f32 to vector<48x128xf32>
    %10 = arith.maximumf %8, %9 : vector<48x128xf32>
    %11 = arith.truncf %10 : vector<48x128xf32> to vector<48x128xbf16>
    %c0_8 = arith.constant 0 : index
    %c0_9 = arith.constant 0 : index
    %12 = vector.load %arg4[%c0_8, %c0_9] : memref<48x128xbf16, #tpu.memory_space<vmem>>, vector<48x128xbf16>
    tpu.vector_store %arg4[%c0_8, %c0_9], %11 {strides = array<i32>} : memref<48x128xbf16, #tpu.memory_space<vmem>>, vector<48x128xbf16>,
    return
  }
  func.func @transform_0(%arg0: i32) -> (i32, i32, i32) {
    %c0_i32 = arith.constant 0 : i32
    %c0_i32_0 = arith.constant 0 : i32
    %c0_i32_1 = arith.constant 0 : i32
    return %c0_i32, %arg0, %c0_i32_0 : i32, i32, i32
  }
  func.func @transform_1(%arg0: i32) -> (i32, i32) {
    %c0_i32 = arith.constant 0 : i32
    %c0_i32_0 = arith.constant 0 : i32
    %c0_i32_1 = arith.constant 0 : i32
    return %c0_i32, %c0_i32_0 : i32, i32
  }
  func.func @transform_2(%arg0: i32) -> (i32, i32) {
    %c0_i32 = arith.constant 0 : i32
    %c0_i32_0 = arith.constant 0 : i32
    %c0_i32_1 = arith.constant 0 : i32
    return %c0_i32, %c0_i32_0 : i32, i32
  }
  func.func @transform_3(%arg0: i32) -> (i32, i32) {
    %c0_i32 = arith.constant 0 : i32
    %c0_i32_0 = arith.constant 0 : i32
    return %arg0, %c0_i32 : i32, i32
  }
}

module attributes {stable_mosaic.version = 11 : i64} {
  func.func @_mlp_kernel(%arg0: i32, %arg1: memref<16x2304xbf16, #tpu.memory_space<vmem>>, %arg2: memref<2304x64xbf16, #tpu.memory_space<vmem>>, %arg3: memref<1x64xf32, #tpu.memory_space<vmem>>, %arg4: memref<64x128xbf16, #tpu.memory_space<vmem>>, %arg5: memref<1x128xf32, #tpu.memory_space<vmem>>, %arg6: memref<16x128xf32, #tpu.memory_space<vmem>>) attributes {dimension_semantics = [#tpu.dimension_semantics<parallel>], iteration_bounds = array<i64: 1>, scalar_prefetch = 0 : i64, scratch_operands = 0 : i64, tpu.core_type = #tpu.core_type<tc>, window_params = [{transform_indices = @transform_0, window_bounds = array<i64: 16, 2304>}, {pipeline_mode = #tpu.pipeline_mode<synchronous>, transform_indices = @transform_1, window_bounds = array<i64: 2304, 64>}, {pipeline_mode = #tpu.pipeline_mode<synchronous>, transform_indices = @transform_2, window_bounds = array<i64: 1, 64>}, {pipeline_mode = #tpu.pipeline_mode<synchronous>, transform_indices = @transform_3, window_bounds = array<i64: 64, 128>}, {pipeline_mode = #tpu.pipeline_mode<synchronous>, transform_indices = @transform_4, window_bounds = array<i64: 1, 128>}, {transform_indices = @transform_5, window_bounds = array<i64: 16, 128>}]} {
    %c0 = arith.constant 0 : index
    %c0_0 = arith.constant 0 : index
    %0 = vector.load %arg1[%c0, %c0_0] : memref<16x2304xbf16, #tpu.memory_space<vmem>>, vector<16x2304xbf16>
    %c0_1 = arith.constant 0 : index
    %c0_2 = arith.constant 0 : index
    %1 = vector.load %arg2[%c0_1, %c0_2] : memref<2304x64xbf16, #tpu.memory_space<vmem>>, vector<2304x64xbf16>
    %cst = arith.constant dense<0.000000e+00> : vector<16x64xf32>
    %2 = tpu.matmul %0, %1, %cst {dimension_numbers = #tpu.dot_dimension_numbers<[1], [0], [0], [1], [0, 0, 1, 1], [], []>} : vector<16x2304xbf16>, vector<2304x64xbf16>, vector<16x64xf32> -> vector<16x64xf32>
    %c0_3 = arith.constant 0 : index
    %c0_4 = arith.constant 0 : index
    %3 = vector.load %arg3[%c0_3, %c0_4] : memref<1x64xf32, #tpu.memory_space<vmem>>, vector<1x64xf32>
    %4 = vector.broadcast %3 : vector<1x64xf32> to vector<16x64xf32>
    %5 = arith.addf %2, %4 : vector<16x64xf32>
    %cst_5 = arith.constant 0.000000e+00 : f32
    %6 = vector.broadcast %cst_5 : f32 to vector<16x64xf32>
    %7 = arith.maximumf %5, %6 : vector<16x64xf32>
    %8 = arith.truncf %7 : vector<16x64xf32> to vector<16x64xbf16>
    %c0_6 = arith.constant 0 : index
    %c0_7 = arith.constant 0 : index
    %9 = vector.load %arg4[%c0_6, %c0_7] : memref<64x128xbf16, #tpu.memory_space<vmem>>, vector<64x128xbf16>
    %cst_8 = arith.constant dense<0.000000e+00> : vector<16x128xf32>
    %10 = tpu.matmul %8, %9, %cst_8 {dimension_numbers = #tpu.dot_dimension_numbers<[1], [0], [0], [1], [0, 0, 1, 1], [], []>} : vector<16x64xbf16>, vector<64x128xbf16>, vector<16x128xf32> -> vector<16x128xf32>
    %c0_9 = arith.constant 0 : index
    %c0_10 = arith.constant 0 : index
    %11 = vector.load %arg5[%c0_9, %c0_10] : memref<1x128xf32, #tpu.memory_space<vmem>>, vector<1x128xf32>
    %12 = vector.broadcast %11 : vector<1x128xf32> to vector<16x128xf32>
    %13 = arith.addf %10, %12 : vector<16x128xf32>
    %c0_11 = arith.constant 0 : index
    %c0_12 = arith.constant 0 : index
    %14 = vector.load %arg6[%c0_11, %c0_12] : memref<16x128xf32, #tpu.memory_space<vmem>>, vector<16x128xf32>
    tpu.vector_store %arg6[%c0_11, %c0_12], %13 {strides = array<i32>} : memref<16x128xf32, #tpu.memory_space<vmem>>, vector<16x128xf32>,
    return
  }
  func.func @transform_0(%arg0: i32) -> (i32, i32) {
    %c0_i32 = arith.constant 0 : i32
    %c0_i32_0 = arith.constant 0 : i32
    return %arg0, %c0_i32 : i32, i32
  }
  func.func @transform_1(%arg0: i32) -> (i32, i32) {
    %c0_i32 = arith.constant 0 : i32
    %c0_i32_0 = arith.constant 0 : i32
    %c0_i32_1 = arith.constant 0 : i32
    return %c0_i32, %c0_i32_0 : i32, i32
  }
  func.func @transform_2(%arg0: i32) -> (i32, i32) {
    %c0_i32 = arith.constant 0 : i32
    %c0_i32_0 = arith.constant 0 : i32
    %c0_i32_1 = arith.constant 0 : i32
    return %c0_i32, %c0_i32_0 : i32, i32
  }
  func.func @transform_3(%arg0: i32) -> (i32, i32) {
    %c0_i32 = arith.constant 0 : i32
    %c0_i32_0 = arith.constant 0 : i32
    %c0_i32_1 = arith.constant 0 : i32
    return %c0_i32, %c0_i32_0 : i32, i32
  }
  func.func @transform_4(%arg0: i32) -> (i32, i32) {
    %c0_i32 = arith.constant 0 : i32
    %c0_i32_0 = arith.constant 0 : i32
    %c0_i32_1 = arith.constant 0 : i32
    return %c0_i32, %c0_i32_0 : i32, i32
  }
  func.func @transform_5(%arg0: i32) -> (i32, i32) {
    %c0_i32 = arith.constant 0 : i32
    %c0_i32_0 = arith.constant 0 : i32
    return %arg0, %c0_i32 : i32, i32
  }
}

</mosaic_0001>

<llo_original>
// kernel: cnn_forward.4
$region0: #{cnn_forward.4}
  #allocation0 [shape = 'u32[]', space=smem, size = 0x4, offset = 0x4, fixed_abs, tag = 'smem constant byte address 0x4 - core index']
  #allocation1 [shape = 'u32[144,128]{1,0:T(1,128)}', space=vmem, size = 0x12000, scoped, tag = 'internal scratch']
  %s0 = inlined_call_operand.vmem [shape: bf16[4,480,108], index: 0, kind: input, shape index: {}]
  %s1 = inlined_call_operand.vmem [shape: bf16[108,128], index: 1, kind: input, shape index: {}]
  %s2 = inlined_call_operand.vmem [shape: f32[1,128], index: 2, kind: input, shape index: {}]
  %s3 = inlined_call_operand.vmem [shape: bf16[480,128], index: 3, kind: output, shape index: {}]
  %s4 = sld [smem:[#allocation0]]
  $region86: #{cnn_forward.4} parent=0
    _
  %s6 = ssub.s32 1, %s4
  %s7 = scalar_select 0, %s6, %s4
  $region1: #{cnn_forward.4} parent=0
    #allocation2 [shape = 'u8[491520]{0}', space=vmem, size = 0x78000, scoped, tag = 'input window, operand 0']
    loop: start=0, step=1, limit=4
    $region2: #{cnn_forward.4} parent=1 // loop_pre_header
      _
    $region3: #{cnn_forward.4} parent=1 // loop_header
      %s9 = sphi 0, %s13
      %p10 = scmp.ge.s32.totalorder %s9, 4
      %s19 = sphi 0, %s21
      %s22 = sphi 0, %s19
      %s23 = sphi 0, %s22
      %s39 = sphi 0, %s23
      %s43 = sphi 0, %s43
      %s45 = sphi 0, %s43
      %s46 = sphi 0, %s45
      %s60 = sphi 0, %s46
      %s64 = sphi 0, %s64
      %s66 = sphi 0, %s64
      %s67 = sphi 0, %s66
      %s81 = sphi 0, %s67
      %s87 = sphi 0, %s89
      %s90 = sphi 0, %s87
      %s91 = sphi 0, %s90
      %s107 = sphi 0, %s91
    $region4: #{cnn_forward.4} parent=1 // loop_header_branch
      %12 = sbr.rel (%p10) target = $region8
    $region5: #{cnn_forward.4} parent=1 // loop_body
      %s14 = ssub.s32 %s9, 1
      %s15 = ssub.s32 %s9, 2
      %s16 = sadd.s32 %s9, 1
      %s17 = ssub.s32 %s9, %s16
      %p18 = scmp.eq.s32.totalorder %s17, 0
      %s20 = sadd.s32 %s19, 1
      %s21 = scalar_select %p18, %s19, %s20
      %p24 = pneg %p18
      %p25 = scmp.eq.s32.totalorder %s9, 1
      %p26 = por %p24, %p25
      %p27 = scmp.ne.s32.totalorder %s19, %s22
      %p28 = scmp.eq.s32.totalorder %s9, 0
      %p29 = por %p27, %p28
      %p30 = scmp.ne.s32.totalorder %s19, %s22
      %p31 = scmp.eq.s32.totalorder %s14, 1
      %p32 = por %p30, %p31
      %p33 = scmp.ne.s32.totalorder %s22, %s23
      %p34 = scmp.eq.s32.totalorder %s14, 0
      %p35 = por %p33, %p34
      %p36 = scmp.ne.s32.totalorder %s22, %s23
      %p37 = scmp.eq.s32.totalorder %s15, 1
      %p38 = por %p36, %p37
      %p40 = scmp.ne.s32.totalorder %s23, %s39
      %p41 = scmp.eq.s32.totalorder %s15, 0
      %p42 = por %p40, %p41
      %s44 = sadd.s32 %s43, 1
      %p47 = scmp.eq.s32.totalorder %s9, 1
      %p48 = scmp.ne.s32.totalorder %s43, %s45
      %p49 = scmp.eq.s32.totalorder %s9, 0
      %p50 = por %p48, %p49
      %p51 = scmp.ne.s32.totalorder %s43, %s45
      %p52 = scmp.eq.s32.totalorder %s14, 1
      %p53 = por %p51, %p52
      %p54 = scmp.ne.s32.totalorder %s45, %s46
      %p55 = scmp.eq.s32.totalorder %s14, 0
      %p56 = por %p54, %p55
      %p57 = scmp.ne.s32.totalorder %s45, %s46
      %p58 = scmp.eq.s32.totalorder %s15, 1
      %p59 = por %p57, %p58
      %p61 = scmp.ne.s32.totalorder %s46, %s60
      %p62 = scmp.eq.s32.totalorder %s15, 0
      %p63 = por %p61, %p62
      %s65 = sadd.s32 %s64, 1
      %p68 = scmp.eq.s32.totalorder %s9, 1
      %p69 = scmp.ne.s32.totalorder %s64, %s66
      %p70 = scmp.eq.s32.totalorder %s9, 0
      %p71 = por %p69, %p70
      %p72 = scmp.ne.s32.totalorder %s64, %s66
      %p73 = scmp.eq.s32.totalorder %s14, 1
      %p74 = por %p72, %p73
      %p75 = scmp.ne.s32.totalorder %s66, %s67
      %p76 = scmp.eq.s32.totalorder %s14, 0
      %p77 = por %p75, %p76
      %p78 = scmp.ne.s32.totalorder %s66, %s67
      %p79 = scmp.eq.s32.totalorder %s15, 1
      %p80 = por %p78, %p79
      %p82 = scmp.ne.s32.totalorder %s67, %s81
      %p83 = scmp.eq.s32.totalorder %s15, 0
      %p84 = por %p82, %p83
      %s85 = ssub.s32 %s9, %s16
      %p86 = scmp.eq.s32.totalorder %s85, 0
      %s88 = sadd.s32 %s87, 1
      %s89 = scalar_select %p86, %s87, %s88
      %p92 = pneg %p86
      %p93 = scmp.eq.s32.totalorder %s9, 1
      %p94 = por %p92, %p93
      %p95 = scmp.ne.s32.totalorder %s87, %s90
      %p96 = scmp.eq.s32.totalorder %s9, 0
      %p97 = por %p95, %p96
      %p98 = scmp.ne.s32.totalorder %s87, %s90
      %p99 = scmp.eq.s32.totalorder %s14, 1
      %p100 = por %p98, %p99
      %p101 = scmp.ne.s32.totalorder %s90, %s91
      %p102 = scmp.eq.s32.totalorder %s14, 0
      %p103 = por %p101, %p102
      %p104 = scmp.ne.s32.totalorder %s90, %s91
      %p105 = scmp.eq.s32.totalorder %s15, 1
      %p106 = por %p104, %p105
      %p108 = scmp.ne.s32.totalorder %s91, %s107
      %p109 = scmp.eq.s32.totalorder %s15, 0
      %p110 = por %p108, %p109
      %p111 = scmp.le.s32.totalorder 1, %s9
      %p112 = scmp.lt.s32.totalorder %s9, 3
      %p113 = pnand %p111, %p112
      %p114 = pneg %p113
      // Predicated region
      $region9: #{cnn_forward.4} parent=5 // pred_check
        _
      $region10: #{cnn_forward.4} parent=5 // pred_check_branch
        %116 = sbr.rel (%p113) target = $region12
      $region11: #{cnn_forward.4} parent=5 // pred_region
        %s117 = ssub.s32 %s9, 1
        // Predicated region
        $region13: #{cnn_forward.4} parent=11 // pred_check
          %p118 = pneg %p56
        $region14: #{cnn_forward.4} parent=11 // pred_check_branch
          %120 = sbr.rel (%p118) target = $region16
        $region15: #{cnn_forward.4} parent=11 // pred_region
          _
        $region16: #{cnn_forward.4} parent=11 // pred_fallthru
          _
        // Predicated region
        $region17: #{cnn_forward.4} parent=11 // pred_check
          %p121 = pneg %p77
        $region18: #{cnn_forward.4} parent=11 // pred_check_branch
          %123 = sbr.rel (%p121) target = $region20
        $region19: #{cnn_forward.4} parent=11 // pred_region
          _
        $region20: #{cnn_forward.4} parent=11 // pred_fallthru
          _
      $region12: #{cnn_forward.4} parent=5 // pred_fallthru
        _
      %p124 = scmp.lt.s32.totalorder %s9, 2
      // Predicated region
      $region21: #{cnn_forward.4} parent=5 // pred_check
        %p125 = pneg %p124
      $region22: #{cnn_forward.4} parent=5 // pred_check_branch
        %127 = sbr.rel (%p125) target = $region24
      $region23: #{cnn_forward.4} parent=5 // pred_region
        // Predicated region
        $region25: #{cnn_forward.4} parent=23 // pred_check
          %p128 = pneg %p29
        $region26: #{cnn_forward.4} parent=23 // pred_check_branch
          %130 = sbr.rel (%p128) target = $region28
        $region27: #{cnn_forward.4} parent=23 // pred_region
          %s131 = sand.u32 %s19, 1
          %s132 = sand.u32 %s19, 1
          %s133 = smul.addr %s132, 480
          %s134 = scalar_lea.vmem [#allocation2], %s133
          %s135 = smul.u32 30, %s9
          %s136 = smul.addr %s135, 4
          %s137 = scalar_lea.vmem %s0, %s136
          // Predicated region
          $region29: #{cnn_forward.4} parent=27 // pred_check
            _
          $region30: #{cnn_forward.4} parent=27 // pred_check_branch
            %139 = sbr.rel (0) target = $region32
          $region31: #{cnn_forward.4} parent=27 // pred_region
            // Predicated region
            $region33: #{cnn_forward.4} parent=31 // pred_check
              _
            $region34: #{cnn_forward.4} parent=31 // pred_check_branch
              %141 = sbr.rel target = $region36
            $region35: #{cnn_forward.4} parent=31 // pred_region
              // Predicated region
              $region48: #{cnn_forward.4} parent=35 // pred_check
                _
              $region49: #{cnn_forward.4} parent=35 // pred_check_branch
                %394 = sbr.rel (0) target = $region51
              $region50: #{cnn_forward.4} parent=35 // pred_region
                loop: start=0, step=1, limit=1
                $region52: #{cnn_forward.4} parent=50 // loop_pre_header
                  _
                $region53: #{cnn_forward.4} parent=50 // loop_header
                  %s396 = sphi 0, %s400
                  %p397 = scmp.ge.s32.totalorder %s396, 1
                  %s401 = sphi %s137, %s137
                  %s402 = sphi %s134, %s134
                $region54: #{cnn_forward.4} parent=50 // loop_header_branch
                  %399 = sbr.rel (%p397) target = $region58
                $region55: #{cnn_forward.4} parent=50 // loop_body
                  _
                $region56: #{cnn_forward.4} parent=50 // loop_footer
                  %s400 = sadd.s32 1, %s396
                $region57: #{cnn_forward.4} parent=50 // loop_footer_branch
                  %395 = sbr.rel target = $region53
                $region58: #{cnn_forward.4} parent=50 // loop_exit
                  _
                loop: start=0, step=1, limit=1
                $region59: #{cnn_forward.4} parent=50 // loop_pre_header
                  _
                $region60: #{cnn_forward.4} parent=50 // loop_header
                  %s405 = sphi 0, %s409
                  %p406 = scmp.ge.s32.totalorder %s405, 1
                  %s410 = sphi %s137, %s137
                  %s411 = sphi %s134, %s134
                $region61: #{cnn_forward.4} parent=50 // loop_header_branch
                  %408 = sbr.rel (%p406) target = $region65
                $region62: #{cnn_forward.4} parent=50 // loop_body
                  %v412 = vld [vmem:[%s410] sm:$0xf]
                  %413 = vst [vmem:[%s411] sm:$0xf] %v412
                  %v414 = vld [vmem:[%s410 + $0x4] sm:$0xf]
                  %415 = vst [vmem:[%s411 + $0x4] sm:$0xf] %v414
                  %v416 = vld [vmem:[%s410 + $0x8] sm:$0xf]
                  %417 = vst [vmem:[%s411 + $0x8] sm:$0xf] %v416
                  %v418 = vld [vmem:[%s410 + $0xc] sm:$0xf]
                  %419 = vst [vmem:[%s411 + $0xc] sm:$0xf] %v418
                  %v420 = vld [vmem:[%s410 + $0x10] sm:$0xf]
                  %421 = vst [vmem:[%s411 + $0x10] sm:$0xf] %v420
                  %v422 = vld [vmem:[%s410 + $0x14] sm:$0xf]
                  %423 = vst [vmem:[%s411 + $0x14] sm:$0xf] %v422
                  %v424 = vld [vmem:[%s410 + $0x18] sm:$0xf]
                  %425 = vst [vmem:[%s411 + $0x18] sm:$0xf] %v424
                  %v426 = vld [vmem:[%s410 + $0x1c] sm:$0xf]
                  %427 = vst [vmem:[%s411 + $0x1c] sm:$0xf] %v426
                  %v428 = vld [vmem:[%s410 + $0x20] sm:$0xf]
                  %429 = vst [vmem:[%s411 + $0x20] sm:$0xf] %v428
                  %v430 = vld [vmem:[%s410 + $0x24] sm:$0xf]
                  %431 = vst [vmem:[%s411 + $0x24] sm:$0xf] %v430
                  %v432 = vld [vmem:[%s410 + $0x28] sm:$0xf]
                  %433 = vst [vmem:[%s411 + $0x28] sm:$0xf] %v432
                  %v434 = vld [vmem:[%s410 + $0x2c] sm:$0xf]
                  %435 = vst [vmem:[%s411 + $0x2c] sm:$0xf] %v434
                  %v436 = vld [vmem:[%s410 + $0x30] sm:$0xf]
                  %437 = vst [vmem:[%s411 + $0x30] sm:$0xf] %v436
                  %v438 = vld [vmem:[%s410 + $0x34] sm:$0xf]
                  %439 = vst [vmem:[%s411 + $0x34] sm:$0xf] %v438
                  %v440 = vld [vmem:[%s410 + $0x38] sm:$0xf]
                  %441 = vst [vmem:[%s411 + $0x38] sm:$0xf] %v440
                  %v442 = vld [vmem:[%s410 + $0x3c] sm:$0xf]
                  %443 = vst [vmem:[%s411 + $0x3c] sm:$0xf] %v442
                  %v444 = vld [vmem:[%s410 + $0x40] sm:$0xf]
                  %445 = vst [vmem:[%s411 + $0x40] sm:$0xf] %v444
                  %v446 = vld [vmem:[%s410 + $0x44] sm:$0xf]
                  %447 = vst [vmem:[%s411 + $0x44] sm:$0xf] %v446
                  %v448 = vld [vmem:[%s410 + $0x48] sm:$0xf]
                  %449 = vst [vmem:[%s411 + $0x48] sm:$0xf] %v448
                  %v450 = vld [vmem:[%s410 + $0x4c] sm:$0xf]
                  %451 = vst [vmem:[%s411 + $0x4c] sm:$0xf] %v450
                  %v452 = vld [vmem:[%s410 + $0x50] sm:$0xf]
                  %453 = vst [vmem:[%s411 + $0x50] sm:$0xf] %v452
                  %v454 = vld [vmem:[%s410 + $0x54] sm:$0xf]
                  %455 = vst [vmem:[%s411 + $0x54] sm:$0xf] %v454
                  %v456 = vld [vmem:[%s410 + $0x58] sm:$0xf]
                  %457 = vst [vmem:[%s411 + $0x58] sm:$0xf] %v456
                  %v458 = vld [vmem:[%s410 + $0x5c] sm:$0xf]
                  %459 = vst [vmem:[%s411 + $0x5c] sm:$0xf] %v458
                  %v460 = vld [vmem:[%s410 + $0x60] sm:$0xf]
                  %461 = vst [vmem:[%s411 + $0x60] sm:$0xf] %v460
                  %v462 = vld [vmem:[%s410 + $0x64] sm:$0xf]
                  %463 = vst [vmem:[%s411 + $0x64] sm:$0xf] %v462
                  %v464 = vld [vmem:[%s410 + $0x68] sm:$0xf]
                  %465 = vst [vmem:[%s411 + $0x68] sm:$0xf] %v464
                  %v466 = vld [vmem:[%s410 + $0x6c] sm:$0xf]
                  %467 = vst [vmem:[%s411 + $0x6c] sm:$0xf] %v466
                  %v468 = vld [vmem:[%s410 + $0x70] sm:$0xf]
                  %469 = vst [vmem:[%s411 + $0x70] sm:$0xf] %v468
                  %v470 = vld [vmem:[%s410 + $0x74] sm:$0xf]
                  %471 = vst [vmem:[%s411 + $0x74] sm:$0xf] %v470
                  %v472 = vld [vmem:[%s410 + $0xf0] sm:$0xf]
                  %473 = vst [vmem:[%s411 + $0x78] sm:$0xf] %v472
                  %v474 = vld [vmem:[%s410 + $0xf4] sm:$0xf]
                  %475 = vst [vmem:[%s411 + $0x7c] sm:$0xf] %v474
                  %v476 = vld [vmem:[%s410 + $0xf8] sm:$0xf]
                  %477 = vst [vmem:[%s411 + $0x80] sm:$0xf] %v476
                  %v478 = vld [vmem:[%s410 + $0xfc] sm:$0xf]
                  %479 = vst [vmem:[%s411 + $0x84] sm:$0xf] %v478
                  %v480 = vld [vmem:[%s410 + $0x100] sm:$0xf]
                  %481 = vst [vmem:[%s411 + $0x88] sm:$0xf] %v480
                  %v482 = vld [vmem:[%s410 + $0x104] sm:$0xf]
                  %483 = vst [vmem:[%s411 + $0x8c] sm:$0xf] %v482
                  %v484 = vld [vmem:[%s410 + $0x108] sm:$0xf]
                  %485 = vst [vmem:[%s411 + $0x90] sm:$0xf] %v484
                  %v486 = vld [vmem:[%s410 + $0x10c] sm:$0xf]
                  %487 = vst [vmem:[%s411 + $0x94] sm:$0xf] %v486
                  %v488 = vld [vmem:[%s410 + $0x110] sm:$0xf]
                  %489 = vst [vmem:[%s411 + $0x98] sm:$0xf] %v488
                  %v490 = vld [vmem:[%s410 + $0x114] sm:$0xf]
                  %491 = vst [vmem:[%s411 + $0x9c] sm:$0xf] %v490
                  %v492 = vld [vmem:[%s410 + $0x118] sm:$0xf]
                  %493 = vst [vmem:[%s411 + $0xa0] sm:$0xf] %v492
                  %v494 = vld [vmem:[%s410 + $0x11c] sm:$0xf]
                  %495 = vst [vmem:[%s411 + $0xa4] sm:$0xf] %v494
                  %v496 = vld [vmem:[%s410 + $0x120] sm:$0xf]
                  %497 = vst [vmem:[%s411 + $0xa8] sm:$0xf] %v496
                  %v498 = vld [vmem:[%s410 + $0x124] sm:$0xf]
                  %499 = vst [vmem:[%s411 + $0xac] sm:$0xf] %v498
                  %v500 = vld [vmem:[%s410 + $0x128] sm:$0xf]
                  %501 = vst [vmem:[%s411 + $0xb0] sm:$0xf] %v500
                  %v502 = vld [vmem:[%s410 + $0x12c] sm:$0xf]
                  %503 = vst [vmem:[%s411 + $0xb4] sm:$0xf] %v502
                  %v504 = vld [vmem:[%s410 + $0x130] sm:$0xf]
                  %505 = vst [vmem:[%s411 + $0xb8] sm:$0xf] %v504
                  %v506 = vld [vmem:[%s410 + $0x134] sm:$0xf]
                  %507 = vst [vmem:[%s411 + $0xbc] sm:$0xf] %v506
                  %v508 = vld [vmem:[%s410 + $0x138] sm:$0xf]
                  %509 = vst [vmem:[%s411 + $0xc0] sm:$0xf] %v508
                  %v510 = vld [vmem:[%s410 + $0x13c] sm:$0xf]
                  %511 = vst [vmem:[%s411 + $0xc4] sm:$0xf] %v510
                  %v512 = vld [vmem:[%s410 + $0x140] sm:$0xf]
                  %513 = vst [vmem:[%s411 + $0xc8] sm:$0xf] %v512
                  %v514 = vld [vmem:[%s410 + $0x144] sm:$0xf]
                  %515 = vst [vmem:[%s411 + $0xcc] sm:$0xf] %v514
                  %v516 = vld [vmem:[%s410 + $0x148] sm:$0xf]
                  %517 = vst [vmem:[%s411 + $0xd0] sm:$0xf] %v516
                  %v518 = vld [vmem:[%s410 + $0x14c] sm:$0xf]
                  %519 = vst [vmem:[%s411 + $0xd4] sm:$0xf] %v518
                  %v520 = vld [vmem:[%s410 + $0x150] sm:$0xf]
                  %521 = vst [vmem:[%s411 + $0xd8] sm:$0xf] %v520
                  %v522 = vld [vmem:[%s410 + $0x154] sm:$0xf]
                  %523 = vst [vmem:[%s411 + $0xdc] sm:$0xf] %v522
                  %v524 = vld [vmem:[%s410 + $0x158] sm:$0xf]
                  %525 = vst [vmem:[%s411 + $0xe0] sm:$0xf] %v524
                  %v526 = vld [vmem:[%s410 + $0x15c] sm:$0xf]
                  %527 = vst [vmem:[%s411 + $0xe4] sm:$0xf] %v526
                  %v528 = vld [vmem:[%s410 + $0x160] sm:$0xf]
                  %529 = vst [vmem:[%s411 + $0xe8] sm:$0xf] %v528
                  %v530 = vld [vmem:[%s410 + $0x164] sm:$0xf]
                  %531 = vst [vmem:[%s411 + $0xec] sm:$0xf] %v530
                  %v532 = vld [vmem:[%s410 + $0x1e0] sm:$0xf]
                  %533 = vst [vmem:[%s411 + $0xf0] sm:$0xf] %v532
                  %v534 = vld [vmem:[%s410 + $0x1e4] sm:$0xf]
                  %535 = vst [vmem:[%s411 + $0xf4] sm:$0xf] %v534
                  %v536 = vld [vmem:[%s410 + $0x1e8] sm:$0xf]
                  %537 = vst [vmem:[%s411 + $0xf8] sm:$0xf] %v536
                  %v538 = vld [vmem:[%s410 + $0x1ec] sm:$0xf]
                  %539 = vst [vmem:[%s411 + $0xfc] sm:$0xf] %v538
                  %v540 = vld [vmem:[%s410 + $0x1f0] sm:$0xf]
                  %541 = vst [vmem:[%s411 + $0x100] sm:$0xf] %v540
                  %v542 = vld [vmem:[%s410 + $0x1f4] sm:$0xf]
                  %543 = vst [vmem:[%s411 + $0x104] sm:$0xf] %v542
                  %v544 = vld [vmem:[%s410 + $0x1f8] sm:$0xf]
                  %545 = vst [vmem:[%s411 + $0x108] sm:$0xf] %v544
                  %v546 = vld [vmem:[%s410 + $0x1fc] sm:$0xf]
                  %547 = vst [vmem:[%s411 + $0x10c] sm:$0xf] %v546
                  %v548 = vld [vmem:[%s410 + $0x200] sm:$0xf]
                  %549 = vst [vmem:[%s411 + $0x110] sm:$0xf] %v548
                  %v550 = vld [vmem:[%s410 + $0x204] sm:$0xf]
                  %551 = vst [vmem:[%s411 + $0x114] sm:$0xf] %v550
                  %v552 = vld [vmem:[%s410 + $0x208] sm:$0xf]
                  %553 = vst [vmem:[%s411 + $0x118] sm:$0xf] %v552
                  %v554 = vld [vmem:[%s410 + $0x20c] sm:$0xf]
                  %555 = vst [vmem:[%s411 + $0x11c] sm:$0xf] %v554
                  %v556 = vld [vmem:[%s410 + $0x210] sm:$0xf]
                  %557 = vst [vmem:[%s411 + $0x120] sm:$0xf] %v556
                  %v558 = vld [vmem:[%s410 + $0x214] sm:$0xf]
                  %559 = vst [vmem:[%s411 + $0x124] sm:$0xf] %v558
                  %v560 = vld [vmem:[%s410 + $0x218] sm:$0xf]
                  %561 = vst [vmem:[%s411 + $0x128] sm:$0xf] %v560
                  %v562 = vld [vmem:[%s410 + $0x21c] sm:$0xf]
                  %563 = vst [vmem:[%s411 + $0x12c] sm:$0xf] %v562
                  %v564 = vld [vmem:[%s410 + $0x220] sm:$0xf]
                  %565 = vst [vmem:[%s411 + $0x130] sm:$0xf] %v564
                  %v566 = vld [vmem:[%s410 + $0x224] sm:$0xf]
                  %567 = vst [vmem:[%s411 + $0x134] sm:$0xf] %v566
                  %v568 = vld [vmem:[%s410 + $0x228] sm:$0xf]
                  %569 = vst [vmem:[%s411 + $0x138] sm:$0xf] %v568
                  %v570 = vld [vmem:[%s410 + $0x22c] sm:$0xf]
                  %571 = vst [vmem:[%s411 + $0x13c] sm:$0xf] %v570
                  %v572 = vld [vmem:[%s410 + $0x230] sm:$0xf]
                  %573 = vst [vmem:[%s411 + $0x140] sm:$0xf] %v572
                  %v574 = vld [vmem:[%s410 + $0x234] sm:$0xf]
                  %575 = vst [vmem:[%s411 + $0x144] sm:$0xf] %v574
                  %v576 = vld [vmem:[%s410 + $0x238] sm:$0xf]
                  %577 = vst [vmem:[%s411 + $0x148] sm:$0xf] %v576
                  %v578 = vld [vmem:[%s410 + $0x23c] sm:$0xf]
                  %579 = vst [vmem:[%s411 + $0x14c] sm:$0xf] %v578
                  %v580 = vld [vmem:[%s410 + $0x240] sm:$0xf]
                  %581 = vst [vmem:[%s411 + $0x150] sm:$0xf] %v580
                  %v582 = vld [vmem:[%s410 + $0x244] sm:$0xf]
                  %583 = vst [vmem:[%s411 + $0x154] sm:$0xf] %v582
                  %v584 = vld [vmem:[%s410 + $0x248] sm:$0xf]
                  %585 = vst [vmem:[%s411 + $0x158] sm:$0xf] %v584
                  %v586 = vld [vmem:[%s410 + $0x24c] sm:$0xf]
                  %587 = vst [vmem:[%s411 + $0x15c] sm:$0xf] %v586
                  %v588 = vld [vmem:[%s410 + $0x250] sm:$0xf]
                  %589 = vst [vmem:[%s411 + $0x160] sm:$0xf] %v588
                  %v590 = vld [vmem:[%s410 + $0x254] sm:$0xf]
                  %591 = vst [vmem:[%s411 + $0x164] sm:$0xf] %v590
                  %v592 = vld [vmem:[%s410 + $0x2d0] sm:$0xf]
                  %593 = vst [vmem:[%s411 + $0x168] sm:$0xf] %v592
                  %v594 = vld [vmem:[%s410 + $0x2d4] sm:$0xf]
                  %595 = vst [vmem:[%s411 + $0x16c] sm:$0xf] %v594
                  %v596 = vld [vmem:[%s410 + $0x2d8] sm:$0xf]
                  %597 = vst [vmem:[%s411 + $0x170] sm:$0xf] %v596
                  %v598 = vld [vmem:[%s410 + $0x2dc] sm:$0xf]
                  %599 = vst [vmem:[%s411 + $0x174] sm:$0xf] %v598
                  %v600 = vld [vmem:[%s410 + $0x2e0] sm:$0xf]
                  %601 = vst [vmem:[%s411 + $0x178] sm:$0xf] %v600
                  %v602 = vld [vmem:[%s410 + $0x2e4] sm:$0xf]
                  %603 = vst [vmem:[%s411 + $0x17c] sm:$0xf] %v602
                  %v604 = vld [vmem:[%s410 + $0x2e8] sm:$0xf]
                  %605 = vst [vmem:[%s411 + $0x180] sm:$0xf] %v604
                  %v606 = vld [vmem:[%s410 + $0x2ec] sm:$0xf]
                  %607 = vst [vmem:[%s411 + $0x184] sm:$0xf] %v606
                  %v608 = vld [vmem:[%s410 + $0x2f0] sm:$0xf]
                  %609 = vst [vmem:[%s411 + $0x188] sm:$0xf] %v608
                  %v610 = vld [vmem:[%s410 + $0x2f4] sm:$0xf]
                  %611 = vst [vmem:[%s411 + $0x18c] sm:$0xf] %v610
                  %v612 = vld [vmem:[%s410 + $0x2f8] sm:$0xf]
                  %613 = vst [vmem:[%s411 + $0x190] sm:$0xf] %v612
                  %v614 = vld [vmem:[%s410 + $0x2fc] sm:$0xf]
                  %615 = vst [vmem:[%s411 + $0x194] sm:$0xf] %v614
                  %v616 = vld [vmem:[%s410 + $0x300] sm:$0xf]
                  %617 = vst [vmem:[%s411 + $0x198] sm:$0xf] %v616
                  %v618 = vld [vmem:[%s410 + $0x304] sm:$0xf]
                  %619 = vst [vmem:[%s411 + $0x19c] sm:$0xf] %v618
                  %v620 = vld [vmem:[%s410 + $0x308] sm:$0xf]
                  %621 = vst [vmem:[%s411 + $0x1a0] sm:$0xf] %v620
                  %v622 = vld [vmem:[%s410 + $0x30c] sm:$0xf]
                  %623 = vst [vmem:[%s411 + $0x1a4] sm:$0xf] %v622
                  %v624 = vld [vmem:[%s410 + $0x310] sm:$0xf]
                  %625 = vst [vmem:[%s411 + $0x1a8] sm:$0xf] %v624
                  %v626 = vld [vmem:[%s410 + $0x314] sm:$0xf]
                  %627 = vst [vmem:[%s411 + $0x1ac] sm:$0xf] %v626
                  %v628 = vld [vmem:[%s410 + $0x318] sm:$0xf]
                  %629 = vst [vmem:[%s411 + $0x1b0] sm:$0xf] %v628
                  %v630 = vld [vmem:[%s410 + $0x31c] sm:$0xf]
                  %631 = vst [vmem:[%s411 + $0x1b4] sm:$0xf] %v630
                  %v632 = vld [vmem:[%s410 + $0x320] sm:$0xf]
                  %633 = vst [vmem:[%s411 + $0x1b8] sm:$0xf] %v632
                  %v634 = vld [vmem:[%s410 + $0x324] sm:$0xf]
                  %635 = vst [vmem:[%s411 + $0x1bc] sm:$0xf] %v634
                  %v636 = vld [vmem:[%s410 + $0x328] sm:$0xf]
                  %637 = vst [vmem:[%s411 + $0x1c0] sm:$0xf] %v636
                  %v638 = vld [vmem:[%s410 + $0x32c] sm:$0xf]
                  %639 = vst [vmem:[%s411 + $0x1c4] sm:$0xf] %v638
                  %v640 = vld [vmem:[%s410 + $0x330] sm:$0xf]
                  %641 = vst [vmem:[%s411 + $0x1c8] sm:$0xf] %v640
                  %v642 = vld [vmem:[%s410 + $0x334] sm:$0xf]
                  %643 = vst [vmem:[%s411 + $0x1cc] sm:$0xf] %v642
                  %v644 = vld [vmem:[%s410 + $0x338] sm:$0xf]
                  %645 = vst [vmem:[%s411 + $0x1d0] sm:$0xf] %v644
                  %v646 = vld [vmem:[%s410 + $0x33c] sm:$0xf]
                  %647 = vst [vmem:[%s411 + $0x1d4] sm:$0xf] %v646
                  %v648 = vld [vmem:[%s410 + $0x340] sm:$0xf]
                  %649 = vst [vmem:[%s411 + $0x1d8] sm:$0xf] %v648
                  %v650 = vld [vmem:[%s410 + $0x344] sm:$0xf]
                  %651 = vst [vmem:[%s411 + $0x1dc] sm:$0xf] %v650
                $region63: #{cnn_forward.4} parent=50 // loop_footer
                  %s409 = sadd.s32 1, %s405
                $region64: #{cnn_forward.4} parent=50 // loop_footer_branch
                  %404 = sbr.rel target = $region60
                $region65: #{cnn_forward.4} parent=50 // loop_exit
                  _
              $region51: #{cnn_forward.4} parent=35 // pred_fallthru
                _
            $region36: #{cnn_forward.4} parent=31 // pred_fallthru
              _
            // Predicated region
            $region37: #{cnn_forward.4} parent=31 // pred_check
              _
            $region38: #{cnn_forward.4} parent=31 // pred_check_branch
              %143 = sbr.rel (0) target = $region40
            $region39: #{cnn_forward.4} parent=31 // pred_region
              loop: start=0, step=1, limit=1
              $region41: #{cnn_forward.4} parent=39 // loop_pre_header
                _
              $region42: #{cnn_forward.4} parent=39 // loop_header
                %s146 = sphi 0, %s150
                %p147 = scmp.ge.s32.totalorder %s146, 1
                %s151 = sphi %s137, %s137
                %s152 = sphi %s134, %s134
              $region43: #{cnn_forward.4} parent=39 // loop_header_branch
                %149 = sbr.rel (%p147) target = $region47
              $region44: #{cnn_forward.4} parent=39 // loop_body
                %v153 = vld [vmem:[%s151] sm:$0xf]
                %154 = vst [vmem:[%s152] sm:$0xf] %v153
                %v155 = vld [vmem:[%s151 + $0x4] sm:$0xf]
                %156 = vst [vmem:[%s152 + $0x4] sm:$0xf] %v155
                %v157 = vld [vmem:[%s151 + $0x8] sm:$0xf]
                %158 = vst [vmem:[%s152 + $0x8] sm:$0xf] %v157
                %v159 = vld [vmem:[%s151 + $0xc] sm:$0xf]
                %160 = vst [vmem:[%s152 + $0xc] sm:$0xf] %v159
                %v161 = vld [vmem:[%s151 + $0x10] sm:$0xf]
                %162 = vst [vmem:[%s152 + $0x10] sm:$0xf] %v161
                %v163 = vld [vmem:[%s151 + $0x14] sm:$0xf]
                %164 = vst [vmem:[%s152 + $0x14] sm:$0xf] %v163
                %v165 = vld [vmem:[%s151 + $0x18] sm:$0xf]
                %166 = vst [vmem:[%s152 + $0x18] sm:$0xf] %v165
                %v167 = vld [vmem:[%s151 + $0x1c] sm:$0xf]
                %168 = vst [vmem:[%s152 + $0x1c] sm:$0xf] %v167
                %v169 = vld [vmem:[%s151 + $0x20] sm:$0xf]
                %170 = vst [vmem:[%s152 + $0x20] sm:$0xf] %v169
                %v171 = vld [vmem:[%s151 + $0x24] sm:$0xf]
                %172 = vst [vmem:[%s152 + $0x24] sm:$0xf] %v171
                %v173 = vld [vmem:[%s151 + $0x28] sm:$0xf]
                %174 = vst [vmem:[%s152 + $0x28] sm:$0xf] %v173
                %v175 = vld [vmem:[%s151 + $0x2c] sm:$0xf]
                %176 = vst [vmem:[%s152 + $0x2c] sm:$0xf] %v175
                %v177 = vld [vmem:[%s151 + $0x30] sm:$0xf]
                %178 = vst [vmem:[%s152 + $0x30] sm:$0xf] %v177
                %v179 = vld [vmem:[%s151 + $0x34] sm:$0xf]
                %180 = vst [vmem:[%s152 + $0x34] sm:$0xf] %v179
                %v181 = vld [vmem:[%s151 + $0x38] sm:$0xf]
                %182 = vst [vmem:[%s152 + $0x38] sm:$0xf] %v181
                %v183 = vld [vmem:[%s151 + $0x3c] sm:$0xf]
                %184 = vst [vmem:[%s152 + $0x3c] sm:$0xf] %v183
                %v185 = vld [vmem:[%s151 + $0x40] sm:$0xf]
                %186 = vst [vmem:[%s152 + $0x40] sm:$0xf] %v185
                %v187 = vld [vmem:[%s151 + $0x44] sm:$0xf]
                %188 = vst [vmem:[%s152 + $0x44] sm:$0xf] %v187
                %v189 = vld [vmem:[%s151 + $0x48] sm:$0xf]
                %190 = vst [vmem:[%s152 + $0x48] sm:$0xf] %v189
                %v191 = vld [vmem:[%s151 + $0x4c] sm:$0xf]
                %192 = vst [vmem:[%s152 + $0x4c] sm:$0xf] %v191
                %v193 = vld [vmem:[%s151 + $0x50] sm:$0xf]
                %194 = vst [vmem:[%s152 + $0x50] sm:$0xf] %v193
                %v195 = vld [vmem:[%s151 + $0x54] sm:$0xf]
                %196 = vst [vmem:[%s152 + $0x54] sm:$0xf] %v195
                %v197 = vld [vmem:[%s151 + $0x58] sm:$0xf]
                %198 = vst [vmem:[%s152 + $0x58] sm:$0xf] %v197
                %v199 = vld [vmem:[%s151 + $0x5c] sm:$0xf]
                %200 = vst [vmem:[%s152 + $0x5c] sm:$0xf] %v199
                %v201 = vld [vmem:[%s151 + $0x60] sm:$0xf]
                %202 = vst [vmem:[%s152 + $0x60] sm:$0xf] %v201
                %v203 = vld [vmem:[%s151 + $0x64] sm:$0xf]
                %204 = vst [vmem:[%s152 + $0x64] sm:$0xf] %v203
                %v205 = vld [vmem:[%s151 + $0x68] sm:$0xf]
                %206 = vst [vmem:[%s152 + $0x68] sm:$0xf] %v205
                %v207 = vld [vmem:[%s151 + $0x6c] sm:$0xf]
                %208 = vst [vmem:[%s152 + $0x6c] sm:$0xf] %v207
                %v209 = vld [vmem:[%s151 + $0x70] sm:$0xf]
                %210 = vst [vmem:[%s152 + $0x70] sm:$0xf] %v209
                %v211 = vld [vmem:[%s151 + $0x74] sm:$0xf]
                %212 = vst [vmem:[%s152 + $0x74] sm:$0xf] %v211
                %v213 = vld [vmem:[%s151 + $0xf0] sm:$0xf]
                %214 = vst [vmem:[%s152 + $0x78] sm:$0xf] %v213
                %v215 = vld [vmem:[%s151 + $0xf4] sm:$0xf]
                %216 = vst [vmem:[%s152 + $0x7c] sm:$0xf] %v215
                %v217 = vld [vmem:[%s151 + $0xf8] sm:$0xf]
                %218 = vst [vmem:[%s152 + $0x80] sm:$0xf] %v217
                %v219 = vld [vmem:[%s151 + $0xfc] sm:$0xf]
                %220 = vst [vmem:[%s152 + $0x84] sm:$0xf] %v219
                %v221 = vld [vmem:[%s151 + $0x100] sm:$0xf]
                %222 = vst [vmem:[%s152 + $0x88] sm:$0xf] %v221
                %v223 = vld [vmem:[%s151 + $0x104] sm:$0xf]
                %224 = vst [vmem:[%s152 + $0x8c] sm:$0xf] %v223
                %v225 = vld [vmem:[%s151 + $0x108] sm:$0xf]
                %226 = vst [vmem:[%s152 + $0x90] sm:$0xf] %v225
                %v227 = vld [vmem:[%s151 + $0x10c] sm:$0xf]
                %228 = vst [vmem:[%s152 + $0x94] sm:$0xf] %v227
                %v229 = vld [vmem:[%s151 + $0x110] sm:$0xf]
                %230 = vst [vmem:[%s152 + $0x98] sm:$0xf] %v229
                %v231 = vld [vmem:[%s151 + $0x114] sm:$0xf]
                %232 = vst [vmem:[%s152 + $0x9c] sm:$0xf] %v231
                %v233 = vld [vmem:[%s151 + $0x118] sm:$0xf]
                %234 = vst [vmem:[%s152 + $0xa0] sm:$0xf] %v233
                %v235 = vld [vmem:[%s151 + $0x11c] sm:$0xf]
                %236 = vst [vmem:[%s152 + $0xa4] sm:$0xf] %v235
                %v237 = vld [vmem:[%s151 + $0x120] sm:$0xf]
                %238 = vst [vmem:[%s152 + $0xa8] sm:$0xf] %v237
                %v239 = vld [vmem:[%s151 + $0x124] sm:$0xf]
                %240 = vst [vmem:[%s152 + $0xac] sm:$0xf] %v239
                %v241 = vld [vmem:[%s151 + $0x128] sm:$0xf]
                %242 = vst [vmem:[%s152 + $0xb0] sm:$0xf] %v241
                %v243 = vld [vmem:[%s151 + $0x12c] sm:$0xf]
                %244 = vst [vmem:[%s152 + $0xb4] sm:$0xf] %v243
                %v245 = vld [vmem:[%s151 + $0x130] sm:$0xf]
                %246 = vst [vmem:[%s152 + $0xb8] sm:$0xf] %v245
                %v247 = vld [vmem:[%s151 + $0x134] sm:$0xf]
                %248 = vst [vmem:[%s152 + $0xbc] sm:$0xf] %v247
                %v249 = vld [vmem:[%s151 + $0x138] sm:$0xf]
                %250 = vst [vmem:[%s152 + $0xc0] sm:$0xf] %v249
                %v251 = vld [vmem:[%s151 + $0x13c] sm:$0xf]
                %252 = vst [vmem:[%s152 + $0xc4] sm:$0xf] %v251
                %v253 = vld [vmem:[%s151 + $0x140] sm:$0xf]
                %254 = vst [vmem:[%s152 + $0xc8] sm:$0xf] %v253
                %v255 = vld [vmem:[%s151 + $0x144] sm:$0xf]
                %256 = vst [vmem:[%s152 + $0xcc] sm:$0xf] %v255
                %v257 = vld [vmem:[%s151 + $0x148] sm:$0xf]
                %258 = vst [vmem:[%s152 + $0xd0] sm:$0xf] %v257
                %v259 = vld [vmem:[%s151 + $0x14c] sm:$0xf]
                %260 = vst [vmem:[%s152 + $0xd4] sm:$0xf] %v259
                %v261 = vld [vmem:[%s151 + $0x150] sm:$0xf]
                %262 = vst [vmem:[%s152 + $0xd8] sm:$0xf] %v261
                %v263 = vld [vmem:[%s151 + $0x154] sm:$0xf]
                %264 = vst [vmem:[%s152 + $0xdc] sm:$0xf] %v263
                %v265 = vld [vmem:[%s151 + $0x158] sm:$0xf]
                %266 = vst [vmem:[%s152 + $0xe0] sm:$0xf] %v265
                %v267 = vld [vmem:[%s151 + $0x15c] sm:$0xf]
                %268 = vst [vmem:[%s152 + $0xe4] sm:$0xf] %v267
                %v269 = vld [vmem:[%s151 + $0x160] sm:$0xf]
                %270 = vst [vmem:[%s152 + $0xe8] sm:$0xf] %v269
                %v271 = vld [vmem:[%s151 + $0x164] sm:$0xf]
                %272 = vst [vmem:[%s152 + $0xec] sm:$0xf] %v271
                %v273 = vld [vmem:[%s151 + $0x1e0] sm:$0xf]
                %274 = vst [vmem:[%s152 + $0xf0] sm:$0xf] %v273
                %v275 = vld [vmem:[%s151 + $0x1e4] sm:$0xf]
                %276 = vst [vmem:[%s152 + $0xf4] sm:$0xf] %v275
                %v277 = vld [vmem:[%s151 + $0x1e8] sm:$0xf]
                %278 = vst [vmem:[%s152 + $0xf8] sm:$0xf] %v277
                %v279 = vld [vmem:[%s151 + $0x1ec] sm:$0xf]
                %280 = vst [vmem:[%s152 + $0xfc] sm:$0xf] %v279
                %v281 = vld [vmem:[%s151 + $0x1f0] sm:$0xf]
                %282 = vst [vmem:[%s152 + $0x100] sm:$0xf] %v281
                %v283 = vld [vmem:[%s151 + $0x1f4] sm:$0xf]
                %284 = vst [vmem:[%s152 + $0x104] sm:$0xf] %v283
                %v285 = vld [vmem:[%s151 + $0x1f8] sm:$0xf]
                %286 = vst [vmem:[%s152 + $0x108] sm:$0xf] %v285
                %v287 = vld [vmem:[%s151 + $0x1fc] sm:$0xf]
                %288 = vst [vmem:[%s152 + $0x10c] sm:$0xf] %v287
                %v289 = vld [vmem:[%s151 + $0x200] sm:$0xf]
                %290 = vst [vmem:[%s152 + $0x110] sm:$0xf] %v289
                %v291 = vld [vmem:[%s151 + $0x204] sm:$0xf]
                %292 = vst [vmem:[%s152 + $0x114] sm:$0xf] %v291
                %v293 = vld [vmem:[%s151 + $0x208] sm:$0xf]
                %294 = vst [vmem:[%s152 + $0x118] sm:$0xf] %v293
                %v295 = vld [vmem:[%s151 + $0x20c] sm:$0xf]
                %296 = vst [vmem:[%s152 + $0x11c] sm:$0xf] %v295
                %v297 = vld [vmem:[%s151 + $0x210] sm:$0xf]
                %298 = vst [vmem:[%s152 + $0x120] sm:$0xf] %v297
                %v299 = vld [vmem:[%s151 + $0x214] sm:$0xf]
                %300 = vst [vmem:[%s152 + $0x124] sm:$0xf] %v299
                %v301 = vld [vmem:[%s151 + $0x218] sm:$0xf]
                %302 = vst [vmem:[%s152 + $0x128] sm:$0xf] %v301
                %v303 = vld [vmem:[%s151 + $0x21c] sm:$0xf]
                %304 = vst [vmem:[%s152 + $0x12c] sm:$0xf] %v303
                %v305 = vld [vmem:[%s151 + $0x220] sm:$0xf]
                %306 = vst [vmem:[%s152 + $0x130] sm:$0xf] %v305
                %v307 = vld [vmem:[%s151 + $0x224] sm:$0xf]
                %308 = vst [vmem:[%s152 + $0x134] sm:$0xf] %v307
                %v309 = vld [vmem:[%s151 + $0x228] sm:$0xf]
                %310 = vst [vmem:[%s152 + $0x138] sm:$0xf] %v309
                %v311 = vld [vmem:[%s151 + $0x22c] sm:$0xf]
                %312 = vst [vmem:[%s152 + $0x13c] sm:$0xf] %v311
                %v313 = vld [vmem:[%s151 + $0x230] sm:$0xf]
                %314 = vst [vmem:[%s152 + $0x140] sm:$0xf] %v313
                %v315 = vld [vmem:[%s151 + $0x234] sm:$0xf]
                %316 = vst [vmem:[%s152 + $0x144] sm:$0xf] %v315
                %v317 = vld [vmem:[%s151 + $0x238] sm:$0xf]
                %318 = vst [vmem:[%s152 + $0x148] sm:$0xf] %v317
                %v319 = vld [vmem:[%s151 + $0x23c] sm:$0xf]
                %320 = vst [vmem:[%s152 + $0x14c] sm:$0xf] %v319
                %v321 = vld [vmem:[%s151 + $0x240] sm:$0xf]
                %322 = vst [vmem:[%s152 + $0x150] sm:$0xf] %v321
                %v323 = vld [vmem:[%s151 + $0x244] sm:$0xf]
                %324 = vst [vmem:[%s152 + $0x154] sm:$0xf] %v323
                %v325 = vld [vmem:[%s151 + $0x248] sm:$0xf]
                %326 = vst [vmem:[%s152 + $0x158] sm:$0xf] %v325
                %v327 = vld [vmem:[%s151 + $0x24c] sm:$0xf]
                %328 = vst [vmem:[%s152 + $0x15c] sm:$0xf] %v327
                %v329 = vld [vmem:[%s151 + $0x250] sm:$0xf]
                %330 = vst [vmem:[%s152 + $0x160] sm:$0xf] %v329
                %v331 = vld [vmem:[%s151 + $0x254] sm:$0xf]
                %332 = vst [vmem:[%s152 + $0x164] sm:$0xf] %v331
                %v333 = vld [vmem:[%s151 + $0x2d0] sm:$0xf]
                %334 = vst [vmem:[%s152 + $0x168] sm:$0xf] %v333
                %v335 = vld [vmem:[%s151 + $0x2d4] sm:$0xf]
                %336 = vst [vmem:[%s152 + $0x16c] sm:$0xf] %v335
                %v337 = vld [vmem:[%s151 + $0x2d8] sm:$0xf]
                %338 = vst [vmem:[%s152 + $0x170] sm:$0xf] %v337
                %v339 = vld [vmem:[%s151 + $0x2dc] sm:$0xf]
                %340 = vst [vmem:[%s152 + $0x174] sm:$0xf] %v339
                %v341 = vld [vmem:[%s151 + $0x2e0] sm:$0xf]
                %342 = vst [vmem:[%s152 + $0x178] sm:$0xf] %v341
                %v343 = vld [vmem:[%s151 + $0x2e4] sm:$0xf]
                %344 = vst [vmem:[%s152 + $0x17c] sm:$0xf] %v343
                %v345 = vld [vmem:[%s151 + $0x2e8] sm:$0xf]
                %346 = vst [vmem:[%s152 + $0x180] sm:$0xf] %v345
                %v347 = vld [vmem:[%s151 + $0x2ec] sm:$0xf]
                %348 = vst [vmem:[%s152 + $0x184] sm:$0xf] %v347
                %v349 = vld [vmem:[%s151 + $0x2f0] sm:$0xf]
                %350 = vst [vmem:[%s152 + $0x188] sm:$0xf] %v349
                %v351 = vld [vmem:[%s151 + $0x2f4] sm:$0xf]
                %352 = vst [vmem:[%s152 + $0x18c] sm:$0xf] %v351
                %v353 = vld [vmem:[%s151 + $0x2f8] sm:$0xf]
                %354 = vst [vmem:[%s152 + $0x190] sm:$0xf] %v353
                %v355 = vld [vmem:[%s151 + $0x2fc] sm:$0xf]
                %356 = vst [vmem:[%s152 + $0x194] sm:$0xf] %v355
                %v357 = vld [vmem:[%s151 + $0x300] sm:$0xf]
                %358 = vst [vmem:[%s152 + $0x198] sm:$0xf] %v357
                %v359 = vld [vmem:[%s151 + $0x304] sm:$0xf]
                %360 = vst [vmem:[%s152 + $0x19c] sm:$0xf] %v359
                %v361 = vld [vmem:[%s151 + $0x308] sm:$0xf]
                %362 = vst [vmem:[%s152 + $0x1a0] sm:$0xf] %v361
                %v363 = vld [vmem:[%s151 + $0x30c] sm:$0xf]
                %364 = vst [vmem:[%s152 + $0x1a4] sm:$0xf] %v363
                %v365 = vld [vmem:[%s151 + $0x310] sm:$0xf]
                %366 = vst [vmem:[%s152 + $0x1a8] sm:$0xf] %v365
                %v367 = vld [vmem:[%s151 + $0x314] sm:$0xf]
                %368 = vst [vmem:[%s152 + $0x1ac] sm:$0xf] %v367
                %v369 = vld [vmem:[%s151 + $0x318] sm:$0xf]
                %370 = vst [vmem:[%s152 + $0x1b0] sm:$0xf] %v369
                %v371 = vld [vmem:[%s151 + $0x31c] sm:$0xf]
                %372 = vst [vmem:[%s152 + $0x1b4] sm:$0xf] %v371
                %v373 = vld [vmem:[%s151 + $0x320] sm:$0xf]
                %374 = vst [vmem:[%s152 + $0x1b8] sm:$0xf] %v373
                %v375 = vld [vmem:[%s151 + $0x324] sm:$0xf]
                %376 = vst [vmem:[%s152 + $0x1bc] sm:$0xf] %v375
                %v377 = vld [vmem:[%s151 + $0x328] sm:$0xf]
                %378 = vst [vmem:[%s152 + $0x1c0] sm:$0xf] %v377
                %v379 = vld [vmem:[%s151 + $0x32c] sm:$0xf]
                %380 = vst [vmem:[%s152 + $0x1c4] sm:$0xf] %v379
                %v381 = vld [vmem:[%s151 + $0x330] sm:$0xf]
                %382 = vst [vmem:[%s152 + $0x1c8] sm:$0xf] %v381
                %v383 = vld [vmem:[%s151 + $0x334] sm:$0xf]
                %384 = vst [vmem:[%s152 + $0x1cc] sm:$0xf] %v383
                %v385 = vld [vmem:[%s151 + $0x338] sm:$0xf]
                %386 = vst [vmem:[%s152 + $0x1d0] sm:$0xf] %v385
                %v387 = vld [vmem:[%s151 + $0x33c] sm:$0xf]
                %388 = vst [vmem:[%s152 + $0x1d4] sm:$0xf] %v387
                %v389 = vld [vmem:[%s151 + $0x340] sm:$0xf]
                %390 = vst [vmem:[%s152 + $0x1d8] sm:$0xf] %v389
                %v391 = vld [vmem:[%s151 + $0x344] sm:$0xf]
                %392 = vst [vmem:[%s152 + $0x1dc] sm:$0xf] %v391
              $region45: #{cnn_forward.4} parent=39 // loop_footer
                %s150 = sadd.s32 1, %s146
              $region46: #{cnn_forward.4} parent=39 // loop_footer_branch
                %145 = sbr.rel target = $region42
              $region47: #{cnn_forward.4} parent=39 // loop_exit
                _
            $region40: #{cnn_forward.4} parent=31 // pred_fallthru
              _
          $region32: #{cnn_forward.4} parent=27 // pred_fallthru
            _
          %652 = vnop
        $region28: #{cnn_forward.4} parent=23 // pred_fallthru
          _
      $region24: #{cnn_forward.4} parent=5 // pred_fallthru
        _
      %p653 = scmp.le.s32.totalorder 1, %s9
      %p654 = scmp.lt.s32.totalorder %s9, 3
      %p655 = pnand %p653, %p654
      %p656 = pneg %p655
      // Predicated region
      $region66: #{cnn_forward.4} parent=5 // pred_check
        _
      $region67: #{cnn_forward.4} parent=5 // pred_check_branch
        %658 = sbr.rel (%p655) target = $region69
      $region68: #{cnn_forward.4} parent=5 // pred_region
        %s659 = ssub.s32 %s9, 1
        %s660 = sand.u32 %s22, 1
        %s661 = sand.u32 %s22, 1
        %s662 = smul.addr %s661, 480
        %s663 = scalar_lea.vmem [#allocation2], %s662
        // Predicated region
        $region70: #{cnn_forward.4} parent=68 // pred_check
          %p664 = pneg %p35
        $region71: #{cnn_forward.4} parent=68 // pred_check_branch
          %666 = sbr.rel (%p664) target = $region73
        $region72: #{cnn_forward.4} parent=68 // pred_region
          _
        $region73: #{cnn_forward.4} parent=68 // pred_fallthru
          _
        %s667 = sand.u32 %s22, 1
        %s668 = sand.u32 %s22, 1
        %s669 = smul.addr %s668, 480
        %s670 = scalar_lea.vmem [#allocation2], %s669
        %p671 = pneg %p35
        %p672 = pneg %p32
        %p673 = pneg %p56
        %p674 = pneg %p53
        %p675 = pneg %p77
        %p676 = pneg %p74
        %p677 = pneg %p103
        %p678 = pneg %p100
        %s679 = smul.u32 30, %s14
        %p680 = scmp.lt.s32.totalorder %s679, 59
        %s681 = scalar_select %p680, %s679, 59
        %s682 = smul.addr %s681, 4
        %s683 = scalar_lea.vmem %s3, %s682
        %s684 = smul.u32 30, %s14
        %s685 = smul.u32 30, %s14
        %p686 = scmp.lt.s32.totalorder %s685, 59
        %s687 = scalar_select %p686, %s685, 59
        %s688 = smul.addr %s687, 4
        %s689 = scalar_lea.vmem %s3, %s688
        %s690 = smul.u32 30, %s14
        %v692 = vld [vmem:[%s663] sm:$0xf]
        %v693 = vld [vmem:[%s663 + $0x4] sm:$0xf]
        %v694 = vld [vmem:[%s663 + $0x8] sm:$0xf]
        %v695 = vld [vmem:[%s663 + $0xc] sm:$0xf]
        %v696 = vld [vmem:[%s663 + $0x10] sm:$0xf]
        %v697 = vld [vmem:[%s663 + $0x14] sm:$0xf]
        %v698 = vld [vmem:[%s663 + $0x18] sm:$0xf]
        %v699 = vld [vmem:[%s663 + $0x1c] sm:$0xf]
        %v700 = vld [vmem:[%s663 + $0x20] sm:$0xf]
        %v701 = vld [vmem:[%s663 + $0x24] sm:$0xf]
        %v702 = vld [vmem:[%s663 + $0x28] sm:$0xf]
        %v703 = vld [vmem:[%s663 + $0x2c] sm:$0xf]
        %v704 = vld [vmem:[%s663 + $0x30] sm:$0xf]
        %v705 = vld [vmem:[%s663 + $0x34] sm:$0xf]
        %v706 = vld [vmem:[%s663 + $0x38] sm:$0xf]
        %v707 = vld [vmem:[%s663 + $0x3c] sm:$0xf]
        %v708 = vld [vmem:[%s663 + $0x40] sm:$0xf]
        %v709 = vld [vmem:[%s663 + $0x44] sm:$0xf]
        %v710 = vld [vmem:[%s663 + $0x48] sm:$0xf]
        %v711 = vld [vmem:[%s663 + $0x4c] sm:$0xf]
        %v712 = vld [vmem:[%s663 + $0x50] sm:$0xf]
        %v713 = vld [vmem:[%s663 + $0x54] sm:$0xf]
        %v714 = vld [vmem:[%s663 + $0x58] sm:$0xf]
        %v715 = vld [vmem:[%s663 + $0x5c] sm:$0xf]
        %v716 = vld [vmem:[%s663 + $0x60] sm:$0xf]
        %v717 = vld [vmem:[%s663 + $0x64] sm:$0xf]
        %v718 = vld [vmem:[%s663 + $0x68] sm:$0xf]
        %v719 = vld [vmem:[%s663 + $0x6c] sm:$0xf]
        %v720 = vld [vmem:[%s663 + $0x70] sm:$0xf]
        %v721 = vld [vmem:[%s663 + $0x74] sm:$0xf]
        %v722 = vld [vmem:[%s663 + $0x78] sm:$0xf]
        %v723 = vld [vmem:[%s663 + $0x7c] sm:$0xf]
        %v724 = vld [vmem:[%s663 + $0x80] sm:$0xf]
        %v725 = vld [vmem:[%s663 + $0x84] sm:$0xf]
        %v726 = vld [vmem:[%s663 + $0x88] sm:$0xf]
        %v727 = vld [vmem:[%s663 + $0x8c] sm:$0xf]
        %v728 = vld [vmem:[%s663 + $0x90] sm:$0xf]
        %v729 = vld [vmem:[%s663 + $0x94] sm:$0xf]
        %v730 = vld [vmem:[%s663 + $0x98] sm:$0xf]
        %v731 = vld [vmem:[%s663 + $0x9c] sm:$0xf]
        %v732 = vld [vmem:[%s663 + $0xa0] sm:$0xf]
        %v733 = vld [vmem:[%s663 + $0xa4] sm:$0xf]
        %v734 = vld [vmem:[%s663 + $0xa8] sm:$0xf]
        %v735 = vld [vmem:[%s663 + $0xac] sm:$0xf]
        %v736 = vld [vmem:[%s663 + $0xb0] sm:$0xf]
        %v737 = vld [vmem:[%s663 + $0xb4] sm:$0xf]
        %v738 = vld [vmem:[%s663 + $0xb8] sm:$0xf]
        %v739 = vld [vmem:[%s663 + $0xbc] sm:$0xf]
        %v740 = vld [vmem:[%s663 + $0xc0] sm:$0xf]
        %v741 = vld [vmem:[%s663 + $0xc4] sm:$0xf]
        %v742 = vld [vmem:[%s663 + $0xc8] sm:$0xf]
        %v743 = vld [vmem:[%s663 + $0xcc] sm:$0xf]
        %v744 = vld [vmem:[%s663 + $0xd0] sm:$0xf]
        %v745 = vld [vmem:[%s663 + $0xd4] sm:$0xf]
        %v746 = vld [vmem:[%s663 + $0xd8] sm:$0xf]
        %v747 = vld [vmem:[%s663 + $0xdc] sm:$0xf]
        %v748 = vld [vmem:[%s663 + $0xe0] sm:$0xf]
        %v749 = vld [vmem:[%s663 + $0xe4] sm:$0xf]
        %v750 = vld [vmem:[%s663 + $0xe8] sm:$0xf]
        %v751 = vld [vmem:[%s663 + $0xec] sm:$0xf]
        %v752 = vld [vmem:[%s663 + $0xf0] sm:$0xf]
        %v753 = vld [vmem:[%s663 + $0xf4] sm:$0xf]
        %v754 = vld [vmem:[%s663 + $0xf8] sm:$0xf]
        %v755 = vld [vmem:[%s663 + $0xfc] sm:$0xf]
        %v756 = vld [vmem:[%s663 + $0x100] sm:$0xf]
        %v757 = vld [vmem:[%s663 + $0x104] sm:$0xf]
        %v758 = vld [vmem:[%s663 + $0x108] sm:$0xf]
        %v759 = vld [vmem:[%s663 + $0x10c] sm:$0xf]
        %v760 = vld [vmem:[%s663 + $0x110] sm:$0xf]
        %v761 = vld [vmem:[%s663 + $0x114] sm:$0xf]
        %v762 = vld [vmem:[%s663 + $0x118] sm:$0xf]
        %v763 = vld [vmem:[%s663 + $0x11c] sm:$0xf]
        %v764 = vld [vmem:[%s663 + $0x120] sm:$0xf]
        %v765 = vld [vmem:[%s663 + $0x124] sm:$0xf]
        %v766 = vld [vmem:[%s663 + $0x128] sm:$0xf]
        %v767 = vld [vmem:[%s663 + $0x12c] sm:$0xf]
        %v768 = vld [vmem:[%s663 + $0x130] sm:$0xf]
        %v769 = vld [vmem:[%s663 + $0x134] sm:$0xf]
        %v770 = vld [vmem:[%s663 + $0x138] sm:$0xf]
        %v771 = vld [vmem:[%s663 + $0x13c] sm:$0xf]
        %v772 = vld [vmem:[%s663 + $0x140] sm:$0xf]
        %v773 = vld [vmem:[%s663 + $0x144] sm:$0xf]
        %v774 = vld [vmem:[%s663 + $0x148] sm:$0xf]
        %v775 = vld [vmem:[%s663 + $0x14c] sm:$0xf]
        %v776 = vld [vmem:[%s663 + $0x150] sm:$0xf]
        %v777 = vld [vmem:[%s663 + $0x154] sm:$0xf]
        %v778 = vld [vmem:[%s663 + $0x158] sm:$0xf]
        %v779 = vld [vmem:[%s663 + $0x15c] sm:$0xf]
        %v780 = vld [vmem:[%s663 + $0x160] sm:$0xf]
        %v781 = vld [vmem:[%s663 + $0x164] sm:$0xf]
        %v782 = vld [vmem:[%s663 + $0x168] sm:$0xf]
        %v783 = vld [vmem:[%s663 + $0x16c] sm:$0xf]
        %v784 = vld [vmem:[%s663 + $0x170] sm:$0xf]
        %v785 = vld [vmem:[%s663 + $0x174] sm:$0xf]
        %v786 = vld [vmem:[%s663 + $0x178] sm:$0xf]
        %v787 = vld [vmem:[%s663 + $0x17c] sm:$0xf]
        %v788 = vld [vmem:[%s663 + $0x180] sm:$0xf]
        %v789 = vld [vmem:[%s663 + $0x184] sm:$0xf]
        %v790 = vld [vmem:[%s663 + $0x188] sm:$0xf]
        %v791 = vld [vmem:[%s663 + $0x18c] sm:$0xf]
        %v792 = vld [vmem:[%s663 + $0x190] sm:$0xf]
        %v793 = vld [vmem:[%s663 + $0x194] sm:$0xf]
        %v794 = vld [vmem:[%s663 + $0x198] sm:$0xf]
        %v795 = vld [vmem:[%s663 + $0x19c] sm:$0xf]
        %v796 = vld [vmem:[%s663 + $0x1a0] sm:$0xf]
        %v797 = vld [vmem:[%s663 + $0x1a4] sm:$0xf]
        %v798 = vld [vmem:[%s663 + $0x1a8] sm:$0xf]
        %v799 = vld [vmem:[%s663 + $0x1ac] sm:$0xf]
        %v800 = vld [vmem:[%s663 + $0x1b0] sm:$0xf]
        %v801 = vld [vmem:[%s663 + $0x1b4] sm:$0xf]
        %v802 = vld [vmem:[%s663 + $0x1b8] sm:$0xf]
        %v803 = vld [vmem:[%s663 + $0x1bc] sm:$0xf]
        %v804 = vld [vmem:[%s663 + $0x1c0] sm:$0xf]
        %v805 = vld [vmem:[%s663 + $0x1c4] sm:$0xf]
        %v806 = vld [vmem:[%s663 + $0x1c8] sm:$0xf]
        %v807 = vld [vmem:[%s663 + $0x1cc] sm:$0xf]
        %v808 = vld [vmem:[%s663 + $0x1d0] sm:$0xf]
        %v809 = vld [vmem:[%s663 + $0x1d4] sm:$0xf]
        %v810 = vld [vmem:[%s663 + $0x1d8] sm:$0xf]
        %v811 = vld [vmem:[%s663 + $0x1dc] sm:$0xf]
        %v812 = vld [vmem:[%s1] sm:$0xf]
        %v813 = vld [vmem:[%s1 + $0x4] sm:$0xf]
        %v814 = vld [vmem:[%s1 + $0x8] sm:$0xf]
        %v815 = vld [vmem:[%s1 + $0xc] sm:$0xf]
        %v816 = vld [vmem:[%s1 + $0x10] sm:$0xf]
        %v817 = vld [vmem:[%s1 + $0x14] sm:$0xf]
        %v818 = vld [vmem:[%s1 + $0x18] sm:$0xf]
        %v819 = vld [vmem:[%s1 + $0x1c] sm:$0xf]
        %v820 = vld [vmem:[%s1 + $0x20] sm:$0xf]
        %v821 = vld [vmem:[%s1 + $0x24] sm:$0xf]
        %v822 = vld [vmem:[%s1 + $0x28] sm:$0xf]
        %v823 = vld [vmem:[%s1 + $0x2c] sm:$0xf]
        %v824 = vld [vmem:[%s1 + $0x30] sm:$0xf]
        %v825 = vld [vmem:[%s1 + $0x34] sm:$0x3]
        %v946 = vunpack.c.l.b16 %v692
        %v947 = vunpack.c.l.b16 %v693
        %v948 = vunpack.c.l.b16 %v694
        %v949 = vunpack.c.l.b16 %v695
        %v950 = vunpack.c.l.b16 %v696
        %v951 = vunpack.c.l.b16 %v697
        %v952 = vunpack.c.l.b16 %v698
        %v953 = vunpack.c.l.b16 %v699
        %v954 = vunpack.c.l.b16 %v700
        %v955 = vunpack.c.l.b16 %v701
        %v956 = vunpack.c.l.b16 %v702
        %v957 = vunpack.c.l.b16 %v703
        %v958 = vunpack.c.l.b16 %v704
        %v959 = vunpack.c.l.b16 %v705
        %v960 = vunpack.c.l.b16 %v706
        %v961 = vunpack.c.l.b16 %v707
        %v962 = vunpack.c.l.b16 %v708
        %v963 = vunpack.c.l.b16 %v709
        %v964 = vunpack.c.l.b16 %v710
        %v965 = vunpack.c.l.b16 %v711
        %v966 = vunpack.c.l.b16 %v712
        %v967 = vunpack.c.l.b16 %v713
        %v968 = vunpack.c.l.b16 %v714
        %v969 = vunpack.c.l.b16 %v715
        %v970 = vunpack.c.l.b16 %v716
        %v971 = vunpack.c.l.b16 %v717
        %v972 = vunpack.c.l.b16 %v718
        %v973 = vunpack.c.l.b16 %v719
        %v974 = vunpack.c.l.b16 %v720
        %v975 = vunpack.c.l.b16 %v721
        %v976 = vunpack.c.l.b16 %v722
        %v977 = vunpack.c.l.b16 %v723
        %v978 = vunpack.c.l.b16 %v724
        %v979 = vunpack.c.l.b16 %v725
        %v980 = vunpack.c.l.b16 %v726
        %v981 = vunpack.c.l.b16 %v727
        %v982 = vunpack.c.l.b16 %v728
        %v983 = vunpack.c.l.b16 %v729
        %v984 = vunpack.c.l.b16 %v730
        %v985 = vunpack.c.l.b16 %v731
        %v986 = vunpack.c.l.b16 %v732
        %v987 = vunpack.c.l.b16 %v733
        %v988 = vunpack.c.l.b16 %v734
        %v989 = vunpack.c.l.b16 %v735
        %v990 = vunpack.c.l.b16 %v736
        %v991 = vunpack.c.l.b16 %v737
        %v992 = vunpack.c.l.b16 %v738
        %v993 = vunpack.c.l.b16 %v739
        %v994 = vunpack.c.l.b16 %v740
        %v995 = vunpack.c.l.b16 %v741
        %v996 = vunpack.c.l.b16 %v742
        %v997 = vunpack.c.l.b16 %v743
        %v998 = vunpack.c.l.b16 %v744
        %v999 = vunpack.c.l.b16 %v745
        %v1000 = vunpack.c.l.b16 %v746
        %v1001 = vunpack.c.l.b16 %v747
        %v1002 = vunpack.c.l.b16 %v748
        %v1003 = vunpack.c.l.b16 %v749
        %v1004 = vunpack.c.l.b16 %v750
        %v1005 = vunpack.c.l.b16 %v751
        %v1006 = vunpack.c.l.b16 %v752
        %v1007 = vunpack.c.l.b16 %v753
        %v1008 = vunpack.c.l.b16 %v754
        %v1009 = vunpack.c.l.b16 %v755
        %v1010 = vunpack.c.l.b16 %v756
        %v1011 = vunpack.c.l.b16 %v757
        %v1012 = vunpack.c.l.b16 %v758
        %v1013 = vunpack.c.l.b16 %v759
        %v1014 = vunpack.c.l.b16 %v760
        %v1015 = vunpack.c.l.b16 %v761
        %v1016 = vunpack.c.l.b16 %v762
        %v1017 = vunpack.c.l.b16 %v763
        %v1018 = vunpack.c.l.b16 %v764
        %v1019 = vunpack.c.l.b16 %v765
        %v1020 = vunpack.c.l.b16 %v766
        %v1021 = vunpack.c.l.b16 %v767
        %v1022 = vunpack.c.l.b16 %v768
        %v1023 = vunpack.c.l.b16 %v769
        %v1024 = vunpack.c.l.b16 %v770
        %v1025 = vunpack.c.l.b16 %v771
        %v1026 = vunpack.c.l.b16 %v772
        %v1027 = vunpack.c.l.b16 %v773
        %v1028 = vunpack.c.l.b16 %v774
        %v1029 = vunpack.c.l.b16 %v775
        %v1030 = vunpack.c.l.b16 %v776
        %v1031 = vunpack.c.l.b16 %v777
        %v1032 = vunpack.c.l.b16 %v778
        %v1033 = vunpack.c.l.b16 %v779
        %v1034 = vunpack.c.l.b16 %v780
        %v1035 = vunpack.c.l.b16 %v781
        %v1036 = vunpack.c.l.b16 %v782
        %v1037 = vunpack.c.l.b16 %v783
        %v1038 = vunpack.c.l.b16 %v784
        %v1039 = vunpack.c.l.b16 %v785
        %v1040 = vunpack.c.l.b16 %v786
        %v1041 = vunpack.c.l.b16 %v787
        %v1042 = vunpack.c.l.b16 %v788
        %v1043 = vunpack.c.l.b16 %v789
        %v1044 = vunpack.c.l.b16 %v790
        %v1045 = vunpack.c.l.b16 %v791
        %v1046 = vunpack.c.l.b16 %v792
        %v1047 = vunpack.c.l.b16 %v793
        %v1048 = vunpack.c.l.b16 %v794
        %v1049 = vunpack.c.l.b16 %v795
        %v1050 = vunpack.c.l.b16 %v796
        %v1051 = vunpack.c.l.b16 %v797
        %v1052 = vunpack.c.l.b16 %v798
        %v1053 = vunpack.c.l.b16 %v799
        %v1054 = vunpack.c.l.b16 %v800
        %v1055 = vunpack.c.l.b16 %v801
        %v1056 = vunpack.c.l.b16 %v802
        %v1057 = vunpack.c.l.b16 %v803
        %v1058 = vunpack.c.l.b16 %v804
        %v1059 = vunpack.c.l.b16 %v805
        %v1060 = vunpack.c.l.b16 %v806
        %v1061 = vunpack.c.l.b16 %v807
        %v1062 = vunpack.c.l.b16 %v808
        %v1063 = vunpack.c.l.b16 %v809
        %v1064 = vunpack.c.l.b16 %v810
        %v1065 = vunpack.c.l.b16 %v811
        %v1066 = vpack.c.b16 %v947, %v946
        %v1067 = vpack.c.b16 %v949, %v948
        %v1068 = vpack.c.b16 %v951, %v950
        %v1069 = vpack.c.b16 %v953, %v952
        %v1070 = vpack.c.b16 %v955, %v954
        %v1071 = vpack.c.b16 %v957, %v956
        %v1072 = vpack.c.b16 %v959, %v958
        %v1073 = vpack.c.b16 %v961, %v960
        %v1074 = vpack.c.b16 %v963, %v962
        %v1075 = vpack.c.b16 %v965, %v964
        %v1076 = vpack.c.b16 %v967, %v966
        %v1077 = vpack.c.b16 %v969, %v968
        %v1078 = vpack.c.b16 %v971, %v970
        %v1079 = vpack.c.b16 %v973, %v972
        %v1080 = vpack.c.b16 %v975, %v974
        %v1081 = vpack.c.b16 %v977, %v976
        %v1082 = vpack.c.b16 %v979, %v978
        %v1083 = vpack.c.b16 %v981, %v980
        %v1084 = vpack.c.b16 %v983, %v982
        %v1085 = vpack.c.b16 %v985, %v984
        %v1086 = vpack.c.b16 %v987, %v986
        %v1087 = vpack.c.b16 %v989, %v988
        %v1088 = vpack.c.b16 %v991, %v990
        %v1089 = vpack.c.b16 %v993, %v992
        %v1090 = vpack.c.b16 %v995, %v994
        %v1091 = vpack.c.b16 %v997, %v996
        %v1092 = vpack.c.b16 %v999, %v998
        %v1093 = vpack.c.b16 %v1001, %v1000
        %v1094 = vpack.c.b16 %v1003, %v1002
        %v1095 = vpack.c.b16 %v1005, %v1004
        %v1096 = vpack.c.b16 %v1007, %v1006
        %v1097 = vpack.c.b16 %v1009, %v1008
        %v1098 = vpack.c.b16 %v1011, %v1010
        %v1099 = vpack.c.b16 %v1013, %v1012
        %v1100 = vpack.c.b16 %v1015, %v1014
        %v1101 = vpack.c.b16 %v1017, %v1016
        %v1102 = vpack.c.b16 %v1019, %v1018
        %v1103 = vpack.c.b16 %v1021, %v1020
        %v1104 = vpack.c.b16 %v1023, %v1022
        %v1105 = vpack.c.b16 %v1025, %v1024
        %v1106 = vpack.c.b16 %v1027, %v1026
        %v1107 = vpack.c.b16 %v1029, %v1028
        %v1108 = vpack.c.b16 %v1031, %v1030
        %v1109 = vpack.c.b16 %v1033, %v1032
        %v1110 = vpack.c.b16 %v1035, %v1034
        %v1111 = vpack.c.b16 %v1037, %v1036
        %v1112 = vpack.c.b16 %v1039, %v1038
        %v1113 = vpack.c.b16 %v1041, %v1040
        %v1114 = vpack.c.b16 %v1043, %v1042
        %v1115 = vpack.c.b16 %v1045, %v1044
        %v1116 = vpack.c.b16 %v1047, %v1046
        %v1117 = vpack.c.b16 %v1049, %v1048
        %v1118 = vpack.c.b16 %v1051, %v1050
        %v1119 = vpack.c.b16 %v1053, %v1052
        %v1120 = vpack.c.b16 %v1055, %v1054
        %v1121 = vpack.c.b16 %v1057, %v1056
        %v1122 = vpack.c.b16 %v1059, %v1058
        %v1123 = vpack.c.b16 %v1061, %v1060
        %v1124 = vpack.c.b16 %v1063, %v1062
        %v1125 = vpack.c.b16 %v1065, %v1064
        %v1140 = vunpack.c.l.b16 %v812
        %v1141 = vunpack.c.l.b16 %v813
        %v1142 = vunpack.c.l.b16 %v814
        %v1143 = vunpack.c.l.b16 %v815
        %v1144 = vunpack.c.l.b16 %v816
        %v1145 = vunpack.c.l.b16 %v817
        %v1146 = vunpack.c.l.b16 %v818
        %v1147 = vunpack.c.l.b16 %v819
        %v1148 = vunpack.c.l.b16 %v820
        %v1149 = vunpack.c.l.b16 %v821
        %v1150 = vunpack.c.l.b16 %v822
        %v1151 = vunpack.c.l.b16 %v823
        %v1152 = vunpack.c.l.b16 %v824
        %v1153 = vunpack.c.l.b16 %v825
        %v1154 = vpack.c.b16 %v1141, %v1140
        %v1155 = vpack.c.b16 %v1143, %v1142
        %v1156 = vpack.c.b16 %v1145, %v1144
        %v1157 = vpack.c.b16 %v1147, %v1146
        %v1158 = vpack.c.b16 %v1149, %v1148
        %v1159 = vpack.c.b16 %v1151, %v1150
        %v1160 = vpack.c.b16 %v1153, %v1152
        %vm1167 = vcmask 883712
        %v1169 = vsel %vm1167, %v1066, 0
        %v1172 = vsel %vm1167, %v1067, 0
        %v1175 = vsel %vm1167, %v1068, 0
        %v1178 = vsel %vm1167, %v1069, 0
        %v1181 = vsel %vm1167, %v1070, 0
        %v1184 = vsel %vm1167, %v1071, 0
        %v1187 = vsel %vm1167, %v1072, 0
        %v1190 = vsel %vm1167, %v1073, 0
        %v1193 = vsel %vm1167, %v1074, 0
        %v1196 = vsel %vm1167, %v1075, 0
        %v1199 = vsel %vm1167, %v1076, 0
        %v1202 = vsel %vm1167, %v1077, 0
        %v1205 = vsel %vm1167, %v1078, 0
        %v1208 = vsel %vm1167, %v1079, 0
        %v1211 = vsel %vm1167, %v1080, 0
        %v1214 = vsel %vm1167, %v1081, 0
        %v1217 = vsel %vm1167, %v1082, 0
        %v1220 = vsel %vm1167, %v1083, 0
        %v1223 = vsel %vm1167, %v1084, 0
        %v1226 = vsel %vm1167, %v1085, 0
        %v1229 = vsel %vm1167, %v1086, 0
        %v1232 = vsel %vm1167, %v1087, 0
        %v1235 = vsel %vm1167, %v1088, 0
        %v1238 = vsel %vm1167, %v1089, 0
        %v1241 = vsel %vm1167, %v1090, 0
        %v1244 = vsel %vm1167, %v1091, 0
        %v1247 = vsel %vm1167, %v1092, 0
        %v1250 = vsel %vm1167, %v1093, 0
        %v1253 = vsel %vm1167, %v1094, 0
        %v1256 = vsel %vm1167, %v1095, 0
        %v1259 = vsel %vm1167, %v1096, 0
        %v1262 = vsel %vm1167, %v1097, 0
        %v1265 = vsel %vm1167, %v1098, 0
        %v1268 = vsel %vm1167, %v1099, 0
        %v1271 = vsel %vm1167, %v1100, 0
        %v1274 = vsel %vm1167, %v1101, 0
        %v1277 = vsel %vm1167, %v1102, 0
        %v1280 = vsel %vm1167, %v1103, 0
        %v1283 = vsel %vm1167, %v1104, 0
        %v1286 = vsel %vm1167, %v1105, 0
        %v1289 = vsel %vm1167, %v1106, 0
        %v1292 = vsel %vm1167, %v1107, 0
        %v1295 = vsel %vm1167, %v1108, 0
        %v1298 = vsel %vm1167, %v1109, 0
        %v1301 = vsel %vm1167, %v1110, 0
        %v1304 = vsel %vm1167, %v1111, 0
        %v1307 = vsel %vm1167, %v1112, 0
        %v1310 = vsel %vm1167, %v1113, 0
        %v1313 = vsel %vm1167, %v1114, 0
        %v1316 = vsel %vm1167, %v1115, 0
        %v1319 = vsel %vm1167, %v1116, 0
        %v1322 = vsel %vm1167, %v1117, 0
        %v1325 = vsel %vm1167, %v1118, 0
        %v1328 = vsel %vm1167, %v1119, 0
        %v1331 = vsel %vm1167, %v1120, 0
        %v1334 = vsel %vm1167, %v1121, 0
        %v1337 = vsel %vm1167, %v1122, 0
        %v1340 = vsel %vm1167, %v1123, 0
        %v1343 = vsel %vm1167, %v1124, 0
        %v1346 = vsel %vm1167, %v1125, 0
        %vm1348 = vcmask 1045504
        %v1350 = vsel %vm1348, %v1160, 0
        %1352 = vmatprep.subr.bf16.mxu0 0
        %1353 = vmatpush1.bf16.msra.mxu0 %v1154
        %1354 = vmatprep.subr.bf16.mxu0 0
        %1355 = vmatpush1.bf16.msra.mxu0 %v1155
        %1356 = vmatprep.subr.bf16.mxu0 0
        %1357 = vmatpush1.bf16.msra.mxu0 %v1156
        %1358 = vmatprep.subr.bf16.mxu0 0
        %1359 = vmatpush1.bf16.msra.mxu0 %v1157
        %1360 = vmatprep.subr.bf16.mxu0 0
        %1361 = vmatpush1.bf16.msra.mxu0 %v1158
        %1362 = vmatprep.subr.bf16.mxu0 0
        %1363 = vmatpush1.bf16.msra.mxu0 %v1159
        %1364 = vmatprep.subr.bf16.mxu0 0
        %1365 = vmatpush1.bf16.msra.mxu0 %v1350
        %1366 = vmatprep.subr.bf16.mxu0 0
        %1367 = vmatpush1.bf16.msra.mxu0 0
        %1368 = vmatprep.subr.bf16.mxu0 0
        %1369 = vmatpush1.bf16.msra.mxu0 0
        %1370 = vmatprep.subr.bf16.mxu0 0
        %1371 = vmatpush1.bf16.msra.mxu0 0
        %1372 = vmatprep.subr.bf16.mxu0 0
        %1373 = vmatpush1.bf16.msra.mxu0 0
        %1374 = vmatprep.subr.bf16.mxu0 0
        %1375 = vmatpush1.bf16.msra.mxu0 0
        %1376 = vmatprep.subr.bf16.mxu0 0
        %1377 = vmatpush1.bf16.msra.mxu0 0
        %1378 = vmatprep.subr.bf16.mxu0 0
        %1379 = vmatpush1.bf16.msra.mxu0 0
        %1380 = vmatprep.subr.bf16.mxu0 0
        %1381 = vmatpush1.bf16.msra.mxu0 0
        %1382 = vmatprep.subr.bf16.mxu0 0
        %1383 = vmatpush1.bf16.msra.mxu0 0
        %1384 = vmatprep.mubr.bf16.mxu0 0
        %1385 = vmatmul.mubr.bf16.gmra.mrb[0].mxu0 %v1169
        %v1386 = vpop.f32.mrb[0].mxu0
        %v1387 = vadd.f32 0.0, %v1386
        %v1388 = vpop.f32.mrb[0].mxu0
        %v1389 = vpop.f32.mrb[0].mxu0
        %v1390 = vadd.f32 0.0, %v1389
        %v1391 = vpop.f32.mrb[0].mxu0
        %1392 = vmatprep.mubr.bf16.mxu0 0
        %1393 = vmatmul.mubr.bf16.gmra.mrb[0].mxu0 %v1172
        %v1394 = vpop.f32.mrb[0].mxu0
        %v1395 = vadd.f32 0.0, %v1394
        %v1396 = vpop.f32.mrb[0].mxu0
        %v1397 = vpop.f32.mrb[0].mxu0
        %v1398 = vadd.f32 0.0, %v1397
        %v1399 = vpop.f32.mrb[0].mxu0
        %1400 = vmatprep.mubr.bf16.mxu0 0
        %1401 = vmatmul.mubr.bf16.gmra.mrb[0].mxu0 %v1175
        %v1402 = vpop.f32.mrb[0].mxu0
        %v1403 = vadd.f32 0.0, %v1402
        %v1404 = vpop.f32.mrb[0].mxu0
        %v1405 = vpop.f32.mrb[0].mxu0
        %v1406 = vadd.f32 0.0, %v1405
        %v1407 = vpop.f32.mrb[0].mxu0
        %1408 = vmatprep.mubr.bf16.mxu0 0
        %1409 = vmatmul.mubr.bf16.gmra.mrb[0].mxu0 %v1178
        %v1410 = vpop.f32.mrb[0].mxu0
        %v1411 = vadd.f32 0.0, %v1410
        %v1412 = vpop.f32.mrb[0].mxu0
        %v1413 = vpop.f32.mrb[0].mxu0
        %v1414 = vadd.f32 0.0, %v1413
        %v1415 = vpop.f32.mrb[0].mxu0
        %1416 = vmatprep.mubr.bf16.mxu0 0
        %1417 = vmatmul.mubr.bf16.gmra.mrb[0].mxu0 %v1181
        %v1418 = vpop.f32.mrb[0].mxu0
        %v1419 = vadd.f32 0.0, %v1418
        %v1420 = vpop.f32.mrb[0].mxu0
        %v1421 = vpop.f32.mrb[0].mxu0
        %v1422 = vadd.f32 0.0, %v1421
        %v1423 = vpop.f32.mrb[0].mxu0
        %1424 = vmatprep.mubr.bf16.mxu0 0
        %1425 = vmatmul.mubr.bf16.gmra.mrb[0].mxu0 %v1184
        %v1426 = vpop.f32.mrb[0].mxu0
        %v1427 = vadd.f32 0.0, %v1426
        %v1428 = vpop.f32.mrb[0].mxu0
        %v1429 = vpop.f32.mrb[0].mxu0
        %v1430 = vadd.f32 0.0, %v1429
        %v1431 = vpop.f32.mrb[0].mxu0
        %1432 = vmatprep.mubr.bf16.mxu0 0
        %1433 = vmatmul.mubr.bf16.gmra.mrb[0].mxu0 %v1187
        %v1434 = vpop.f32.mrb[0].mxu0
        %v1435 = vadd.f32 0.0, %v1434
        %v1436 = vpop.f32.mrb[0].mxu0
        %v1437 = vpop.f32.mrb[0].mxu0
        %v1438 = vadd.f32 0.0, %v1437
        %v1439 = vpop.f32.mrb[0].mxu0
        %1440 = vmatprep.mubr.bf16.mxu0 0
        %1441 = vmatmul.mubr.bf16.gmra.mrb[0].mxu0 %v1190
        %v1442 = vpop.f32.mrb[0].mxu0
        %v1443 = vadd.f32 0.0, %v1442
        %v1444 = vpop.f32.mrb[0].mxu0
        %v1445 = vpop.f32.mrb[0].mxu0
        %v1446 = vadd.f32 0.0, %v1445
        %v1447 = vpop.f32.mrb[0].mxu0
        %1448 = vmatprep.mubr.bf16.mxu0 0
        %1449 = vmatmul.mubr.bf16.gmra.mrb[0].mxu0 %v1193
        %v1450 = vpop.f32.mrb[0].mxu0
        %v1451 = vadd.f32 0.0, %v1450
        %v1452 = vpop.f32.mrb[0].mxu0
        %v1453 = vpop.f32.mrb[0].mxu0
        %v1454 = vadd.f32 0.0, %v1453
        %v1455 = vpop.f32.mrb[0].mxu0
        %1456 = vmatprep.mubr.bf16.mxu0 0
        %1457 = vmatmul.mubr.bf16.gmra.mrb[0].mxu0 %v1196
        %v1458 = vpop.f32.mrb[0].mxu0
        %v1459 = vadd.f32 0.0, %v1458
        %v1460 = vpop.f32.mrb[0].mxu0
        %v1461 = vpop.f32.mrb[0].mxu0
        %v1462 = vadd.f32 0.0, %v1461
        %v1463 = vpop.f32.mrb[0].mxu0
        %1464 = vmatprep.mubr.bf16.mxu0 0
        %1465 = vmatmul.mubr.bf16.gmra.mrb[0].mxu0 %v1199
        %v1466 = vpop.f32.mrb[0].mxu0
        %v1467 = vadd.f32 0.0, %v1466
        %v1468 = vpop.f32.mrb[0].mxu0
        %v1469 = vpop.f32.mrb[0].mxu0
        %v1470 = vadd.f32 0.0, %v1469
        %v1471 = vpop.f32.mrb[0].mxu0
        %1472 = vmatprep.mubr.bf16.mxu0 0
        %1473 = vmatmul.mubr.bf16.gmra.mrb[0].mxu0 %v1202
        %v1474 = vpop.f32.mrb[0].mxu0
        %v1475 = vadd.f32 0.0, %v1474
        %v1476 = vpop.f32.mrb[0].mxu0
        %v1477 = vpop.f32.mrb[0].mxu0
        %v1478 = vadd.f32 0.0, %v1477
        %v1479 = vpop.f32.mrb[0].mxu0
        %1480 = vmatprep.mubr.bf16.mxu0 0
        %1481 = vmatmul.mubr.bf16.gmra.mrb[0].mxu0 %v1205
        %v1482 = vpop.f32.mrb[0].mxu0
        %v1483 = vadd.f32 0.0, %v1482
        %v1484 = vpop.f32.mrb[0].mxu0
        %v1485 = vpop.f32.mrb[0].mxu0
        %v1486 = vadd.f32 0.0, %v1485
        %v1487 = vpop.f32.mrb[0].mxu0
        %1488 = vmatprep.mubr.bf16.mxu0 0
        %1489 = vmatmul.mubr.bf16.gmra.mrb[0].mxu0 %v1208
        %v1490 = vpop.f32.mrb[0].mxu0
        %v1491 = vadd.f32 0.0, %v1490
        %v1492 = vpop.f32.mrb[0].mxu0
        %v1493 = vpop.f32.mrb[0].mxu0
        %v1494 = vadd.f32 0.0, %v1493
        %v1495 = vpop.f32.mrb[0].mxu0
        %1496 = vmatprep.mubr.bf16.mxu0 0
        %1497 = vmatmul.mubr.bf16.gmra.mrb[0].mxu0 %v1211
        %v1498 = vpop.f32.mrb[0].mxu0
        %v1499 = vadd.f32 0.0, %v1498
        %v1500 = vpop.f32.mrb[0].mxu0
        %v1501 = vpop.f32.mrb[0].mxu0
        %v1502 = vadd.f32 0.0, %v1501
        %v1503 = vpop.f32.mrb[0].mxu0
        %1504 = vmatprep.mubr.bf16.mxu0 0
        %1505 = vmatmul.mubr.bf16.gmra.mrb[0].mxu0 %v1214
        %v1506 = vpop.f32.mrb[0].mxu0
        %v1507 = vadd.f32 0.0, %v1506
        %v1508 = vpop.f32.mrb[0].mxu0
        %v1509 = vpop.f32.mrb[0].mxu0
        %v1510 = vadd.f32 0.0, %v1509
        %v1511 = vpop.f32.mrb[0].mxu0
        %1512 = vmatprep.mubr.bf16.mxu0 0
        %1513 = vmatmul.mubr.bf16.gmra.mrb[0].mxu0 %v1217
        %v1514 = vpop.f32.mrb[0].mxu0
        %v1515 = vadd.f32 0.0, %v1514
        %v1516 = vpop.f32.mrb[0].mxu0
        %v1517 = vpop.f32.mrb[0].mxu0
        %v1518 = vadd.f32 0.0, %v1517
        %v1519 = vpop.f32.mrb[0].mxu0
        %1520 = vmatprep.mubr.bf16.mxu0 0
        %1521 = vmatmul.mubr.bf16.gmra.mrb[0].mxu0 %v1220
        %v1522 = vpop.f32.mrb[0].mxu0
        %v1523 = vadd.f32 0.0, %v1522
        %v1524 = vpop.f32.mrb[0].mxu0
        %v1525 = vpop.f32.mrb[0].mxu0
        %v1526 = vadd.f32 0.0, %v1525
        %v1527 = vpop.f32.mrb[0].mxu0
        %1528 = vmatprep.mubr.bf16.mxu0 0
        %1529 = vmatmul.mubr.bf16.gmra.mrb[0].mxu0 %v1223
        %v1530 = vpop.f32.mrb[0].mxu0
        %v1531 = vadd.f32 0.0, %v1530
        %v1532 = vpop.f32.mrb[0].mxu0
        %v1533 = vpop.f32.mrb[0].mxu0
        %v1534 = vadd.f32 0.0, %v1533
        %v1535 = vpop.f32.mrb[0].mxu0
        %1536 = vmatprep.mubr.bf16.mxu0 0
        %1537 = vmatmul.mubr.bf16.gmra.mrb[0].mxu0 %v1226
        %v1538 = vpop.f32.mrb[0].mxu0
        %v1539 = vadd.f32 0.0, %v1538
        %v1540 = vpop.f32.mrb[0].mxu0
        %v1541 = vpop.f32.mrb[0].mxu0
        %v1542 = vadd.f32 0.0, %v1541
        %v1543 = vpop.f32.mrb[0].mxu0
        %1544 = vmatprep.mubr.bf16.mxu0 0
        %1545 = vmatmul.mubr.bf16.gmra.mrb[0].mxu0 %v1229
        %v1546 = vpop.f32.mrb[0].mxu0
        %v1547 = vadd.f32 0.0, %v1546
        %v1548 = vpop.f32.mrb[0].mxu0
        %v1549 = vpop.f32.mrb[0].mxu0
        %v1550 = vadd.f32 0.0, %v1549
        %v1551 = vpop.f32.mrb[0].mxu0
        %1552 = vmatprep.mubr.bf16.mxu0 0
        %1553 = vmatmul.mubr.bf16.gmra.mrb[0].mxu0 %v1232
        %v1554 = vpop.f32.mrb[0].mxu0
        %v1555 = vadd.f32 0.0, %v1554
        %v1556 = vpop.f32.mrb[0].mxu0
        %v1557 = vpop.f32.mrb[0].mxu0
        %v1558 = vadd.f32 0.0, %v1557
        %v1559 = vpop.f32.mrb[0].mxu0
        %1560 = vmatprep.mubr.bf16.mxu0 0
        %1561 = vmatmul.mubr.bf16.gmra.mrb[0].mxu0 %v1235
        %v1562 = vpop.f32.mrb[0].mxu0
        %v1563 = vadd.f32 0.0, %v1562
        %v1564 = vpop.f32.mrb[0].mxu0
        %v1565 = vpop.f32.mrb[0].mxu0
        %v1566 = vadd.f32 0.0, %v1565
        %v1567 = vpop.f32.mrb[0].mxu0
        %1568 = vmatprep.mubr.bf16.mxu0 0
        %1569 = vmatmul.mubr.bf16.gmra.mrb[0].mxu0 %v1238
        %v1570 = vpop.f32.mrb[0].mxu0
        %v1571 = vadd.f32 0.0, %v1570
        %v1572 = vpop.f32.mrb[0].mxu0
        %v1573 = vpop.f32.mrb[0].mxu0
        %v1574 = vadd.f32 0.0, %v1573
        %v1575 = vpop.f32.mrb[0].mxu0
        %1576 = vmatprep.mubr.bf16.mxu0 0
        %1577 = vmatmul.mubr.bf16.gmra.mrb[0].mxu0 %v1241
        %v1578 = vpop.f32.mrb[0].mxu0
        %v1579 = vadd.f32 0.0, %v1578
        %v1580 = vpop.f32.mrb[0].mxu0
        %v1581 = vpop.f32.mrb[0].mxu0
        %v1582 = vadd.f32 0.0, %v1581
        %v1583 = vpop.f32.mrb[0].mxu0
        %1584 = vmatprep.mubr.bf16.mxu0 0
        %1585 = vmatmul.mubr.bf16.gmra.mrb[0].mxu0 %v1244
        %v1586 = vpop.f32.mrb[0].mxu0
        %v1587 = vadd.f32 0.0, %v1586
        %v1588 = vpop.f32.mrb[0].mxu0
        %v1589 = vpop.f32.mrb[0].mxu0
        %v1590 = vadd.f32 0.0, %v1589
        %v1591 = vpop.f32.mrb[0].mxu0
        %1592 = vmatprep.mubr.bf16.mxu0 0
        %1593 = vmatmul.mubr.bf16.gmra.mrb[0].mxu0 %v1247
        %v1594 = vpop.f32.mrb[0].mxu0
        %v1595 = vadd.f32 0.0, %v1594
        %v1596 = vpop.f32.mrb[0].mxu0
        %v1597 = vpop.f32.mrb[0].mxu0
        %v1598 = vadd.f32 0.0, %v1597
        %v1599 = vpop.f32.mrb[0].mxu0
        %1600 = vmatprep.mubr.bf16.mxu0 0
        %1601 = vmatmul.mubr.bf16.gmra.mrb[0].mxu0 %v1250
        %v1602 = vpop.f32.mrb[0].mxu0
        %v1603 = vadd.f32 0.0, %v1602
        %v1604 = vpop.f32.mrb[0].mxu0
        %v1605 = vpop.f32.mrb[0].mxu0
        %v1606 = vadd.f32 0.0, %v1605
        %v1607 = vpop.f32.mrb[0].mxu0
        %1608 = vmatprep.mubr.bf16.mxu0 0
        %1609 = vmatmul.mubr.bf16.gmra.mrb[0].mxu0 %v1253
        %v1610 = vpop.f32.mrb[0].mxu0
        %v1611 = vadd.f32 0.0, %v1610
        %v1612 = vpop.f32.mrb[0].mxu0
        %v1613 = vpop.f32.mrb[0].mxu0
        %v1614 = vadd.f32 0.0, %v1613
        %v1615 = vpop.f32.mrb[0].mxu0
        %1616 = vmatprep.mubr.bf16.mxu0 0
        %1617 = vmatmul.mubr.bf16.gmra.mrb[0].mxu0 %v1256
        %v1618 = vpop.f32.mrb[0].mxu0
        %v1619 = vadd.f32 0.0, %v1618
        %v1620 = vpop.f32.mrb[0].mxu0
        %v1621 = vpop.f32.mrb[0].mxu0
        %v1622 = vadd.f32 0.0, %v1621
        %v1623 = vpop.f32.mrb[0].mxu0
        %1624 = vmatprep.mubr.bf16.mxu0 0
        %1625 = vmatmul.mubr.bf16.gmra.mrb[0].mxu0 %v1259
        %v1626 = vpop.f32.mrb[0].mxu0
        %v1627 = vadd.f32 0.0, %v1626
        %v1628 = vpop.f32.mrb[0].mxu0
        %v1629 = vpop.f32.mrb[0].mxu0
        %v1630 = vadd.f32 0.0, %v1629
        %v1631 = vpop.f32.mrb[0].mxu0
        %1632 = vmatprep.mubr.bf16.mxu0 0
        %1633 = vmatmul.mubr.bf16.gmra.mrb[0].mxu0 %v1262
        %v1634 = vpop.f32.mrb[0].mxu0
        %v1635 = vadd.f32 0.0, %v1634
        %v1636 = vpop.f32.mrb[0].mxu0
        %v1637 = vpop.f32.mrb[0].mxu0
        %v1638 = vadd.f32 0.0, %v1637
        %v1639 = vpop.f32.mrb[0].mxu0
        %1640 = vmatprep.mubr.bf16.mxu0 0
        %1641 = vmatmul.mubr.bf16.gmra.mrb[0].mxu0 %v1265
        %v1642 = vpop.f32.mrb[0].mxu0
        %v1643 = vadd.f32 0.0, %v1642
        %v1644 = vpop.f32.mrb[0].mxu0
        %v1645 = vpop.f32.mrb[0].mxu0
        %v1646 = vadd.f32 0.0, %v1645
        %v1647 = vpop.f32.mrb[0].mxu0
        %1648 = vmatprep.mubr.bf16.mxu0 0
        %1649 = vmatmul.mubr.bf16.gmra.mrb[0].mxu0 %v1268
        %v1650 = vpop.f32.mrb[0].mxu0
        %v1651 = vadd.f32 0.0, %v1650
        %v1652 = vpop.f32.mrb[0].mxu0
        %v1653 = vpop.f32.mrb[0].mxu0
        %v1654 = vadd.f32 0.0, %v1653
        %v1655 = vpop.f32.mrb[0].mxu0
        %1656 = vmatprep.mubr.bf16.mxu0 0
        %1657 = vmatmul.mubr.bf16.gmra.mrb[0].mxu0 %v1271
        %v1658 = vpop.f32.mrb[0].mxu0
        %v1659 = vadd.f32 0.0, %v1658
        %v1660 = vpop.f32.mrb[0].mxu0
        %v1661 = vpop.f32.mrb[0].mxu0
        %v1662 = vadd.f32 0.0, %v1661
        %v1663 = vpop.f32.mrb[0].mxu0
        %1664 = vmatprep.mubr.bf16.mxu0 0
        %1665 = vmatmul.mubr.bf16.gmra.mrb[0].mxu0 %v1274
        %v1666 = vpop.f32.mrb[0].mxu0
        %v1667 = vadd.f32 0.0, %v1666
        %v1668 = vpop.f32.mrb[0].mxu0
        %v1669 = vpop.f32.mrb[0].mxu0
        %v1670 = vadd.f32 0.0, %v1669
        %v1671 = vpop.f32.mrb[0].mxu0
        %1672 = vmatprep.mubr.bf16.mxu0 0
        %1673 = vmatmul.mubr.bf16.gmra.mrb[0].mxu0 %v1277
        %v1674 = vpop.f32.mrb[0].mxu0
        %v1675 = vadd.f32 0.0, %v1674
        %v1676 = vpop.f32.mrb[0].mxu0
        %v1677 = vpop.f32.mrb[0].mxu0
        %v1678 = vadd.f32 0.0, %v1677
        %v1679 = vpop.f32.mrb[0].mxu0
        %1680 = vmatprep.mubr.bf16.mxu0 0
        %1681 = vmatmul.mubr.bf16.gmra.mrb[0].mxu0 %v1280
        %v1682 = vpop.f32.mrb[0].mxu0
        %v1683 = vadd.f32 0.0, %v1682
        %v1684 = vpop.f32.mrb[0].mxu0
        %v1685 = vpop.f32.mrb[0].mxu0
        %v1686 = vadd.f32 0.0, %v1685
        %v1687 = vpop.f32.mrb[0].mxu0
        %1688 = vmatprep.mubr.bf16.mxu0 0
        %1689 = vmatmul.mubr.bf16.gmra.mrb[0].mxu0 %v1283
        %v1690 = vpop.f32.mrb[0].mxu0
        %v1691 = vadd.f32 0.0, %v1690
        %v1692 = vpop.f32.mrb[0].mxu0
        %v1693 = vpop.f32.mrb[0].mxu0
        %v1694 = vadd.f32 0.0, %v1693
        %v1695 = vpop.f32.mrb[0].mxu0
        %1696 = vmatprep.mubr.bf16.mxu0 0
        %1697 = vmatmul.mubr.bf16.gmra.mrb[0].mxu0 %v1286
        %v1698 = vpop.f32.mrb[0].mxu0
        %v1699 = vadd.f32 0.0, %v1698
        %v1700 = vpop.f32.mrb[0].mxu0
        %v1701 = vpop.f32.mrb[0].mxu0
        %v1702 = vadd.f32 0.0, %v1701
        %v1703 = vpop.f32.mrb[0].mxu0
        %1704 = vmatprep.mubr.bf16.mxu0 0
        %1705 = vmatmul.mubr.bf16.gmra.mrb[0].mxu0 %v1289
        %v1706 = vpop.f32.mrb[0].mxu0
        %v1707 = vadd.f32 0.0, %v1706
        %v1708 = vpop.f32.mrb[0].mxu0
        %v1709 = vpop.f32.mrb[0].mxu0
        %v1710 = vadd.f32 0.0, %v1709
        %v1711 = vpop.f32.mrb[0].mxu0
        %1712 = vmatprep.mubr.bf16.mxu0 0
        %1713 = vmatmul.mubr.bf16.gmra.mrb[0].mxu0 %v1292
        %v1714 = vpop.f32.mrb[0].mxu0
        %v1715 = vadd.f32 0.0, %v1714
        %v1716 = vpop.f32.mrb[0].mxu0
        %v1717 = vpop.f32.mrb[0].mxu0
        %v1718 = vadd.f32 0.0, %v1717
        %v1719 = vpop.f32.mrb[0].mxu0
        %1720 = vmatprep.mubr.bf16.mxu0 0
        %1721 = vmatmul.mubr.bf16.gmra.mrb[0].mxu0 %v1295
        %v1722 = vpop.f32.mrb[0].mxu0
        %v1723 = vadd.f32 0.0, %v1722
        %v1724 = vpop.f32.mrb[0].mxu0
        %v1725 = vpop.f32.mrb[0].mxu0
        %v1726 = vadd.f32 0.0, %v1725
        %v1727 = vpop.f32.mrb[0].mxu0
        %1728 = vmatprep.mubr.bf16.mxu0 0
        %1729 = vmatmul.mubr.bf16.gmra.mrb[0].mxu0 %v1298
        %v1730 = vpop.f32.mrb[0].mxu0
        %v1731 = vadd.f32 0.0, %v1730
        %v1732 = vpop.f32.mrb[0].mxu0
        %v1733 = vpop.f32.mrb[0].mxu0
        %v1734 = vadd.f32 0.0, %v1733
        %v1735 = vpop.f32.mrb[0].mxu0
        %1736 = vmatprep.mubr.bf16.mxu0 0
        %1737 = vmatmul.mubr.bf16.gmra.mrb[0].mxu0 %v1301
        %v1738 = vpop.f32.mrb[0].mxu0
        %v1739 = vadd.f32 0.0, %v1738
        %v1740 = vpop.f32.mrb[0].mxu0
        %v1741 = vpop.f32.mrb[0].mxu0
        %v1742 = vadd.f32 0.0, %v1741
        %v1743 = vpop.f32.mrb[0].mxu0
        %1744 = vmatprep.mubr.bf16.mxu0 0
        %1745 = vmatmul.mubr.bf16.gmra.mrb[0].mxu0 %v1304
        %v1746 = vpop.f32.mrb[0].mxu0
        %v1747 = vadd.f32 0.0, %v1746
        %v1748 = vpop.f32.mrb[0].mxu0
        %v1749 = vpop.f32.mrb[0].mxu0
        %v1750 = vadd.f32 0.0, %v1749
        %v1751 = vpop.f32.mrb[0].mxu0
        %1752 = vmatprep.mubr.bf16.mxu0 0
        %1753 = vmatmul.mubr.bf16.gmra.mrb[0].mxu0 %v1307
        %v1754 = vpop.f32.mrb[0].mxu0
        %v1755 = vadd.f32 0.0, %v1754
        %v1756 = vpop.f32.mrb[0].mxu0
        %v1757 = vpop.f32.mrb[0].mxu0
        %v1758 = vadd.f32 0.0, %v1757
        %v1759 = vpop.f32.mrb[0].mxu0
        %1760 = vmatprep.mubr.bf16.mxu0 0
        %1761 = vmatmul.mubr.bf16.gmra.mrb[0].mxu0 %v1310
        %v1762 = vpop.f32.mrb[0].mxu0
        %v1763 = vadd.f32 0.0, %v1762
        %v1764 = vpop.f32.mrb[0].mxu0
        %v1765 = vpop.f32.mrb[0].mxu0
        %v1766 = vadd.f32 0.0, %v1765
        %v1767 = vpop.f32.mrb[0].mxu0
        %1768 = vmatprep.mubr.bf16.mxu0 0
        %1769 = vmatmul.mubr.bf16.gmra.mrb[0].mxu0 %v1313
        %v1770 = vpop.f32.mrb[0].mxu0
        %v1771 = vadd.f32 0.0, %v1770
        %v1772 = vpop.f32.mrb[0].mxu0
        %v1773 = vpop.f32.mrb[0].mxu0
        %v1774 = vadd.f32 0.0, %v1773
        %v1775 = vpop.f32.mrb[0].mxu0
        %1776 = vmatprep.mubr.bf16.mxu0 0
        %1777 = vmatmul.mubr.bf16.gmra.mrb[0].mxu0 %v1316
        %v1778 = vpop.f32.mrb[0].mxu0
        %v1779 = vadd.f32 0.0, %v1778
        %v1780 = vpop.f32.mrb[0].mxu0
        %v1781 = vpop.f32.mrb[0].mxu0
        %v1782 = vadd.f32 0.0, %v1781
        %v1783 = vpop.f32.mrb[0].mxu0
        %1784 = vmatprep.mubr.bf16.mxu0 0
        %1785 = vmatmul.mubr.bf16.gmra.mrb[0].mxu0 %v1319
        %v1786 = vpop.f32.mrb[0].mxu0
        %v1787 = vadd.f32 0.0, %v1786
        %v1788 = vpop.f32.mrb[0].mxu0
        %v1789 = vpop.f32.mrb[0].mxu0
        %v1790 = vadd.f32 0.0, %v1789
        %v1791 = vpop.f32.mrb[0].mxu0
        %1792 = vmatprep.mubr.bf16.mxu0 0
        %1793 = vmatmul.mubr.bf16.gmra.mrb[0].mxu0 %v1322
        %v1794 = vpop.f32.mrb[0].mxu0
        %v1795 = vadd.f32 0.0, %v1794
        %v1796 = vpop.f32.mrb[0].mxu0
        %v1797 = vpop.f32.mrb[0].mxu0
        %v1798 = vadd.f32 0.0, %v1797
        %v1799 = vpop.f32.mrb[0].mxu0
        %1800 = vmatprep.mubr.bf16.mxu0 0
        %1801 = vmatmul.mubr.bf16.gmra.mrb[0].mxu0 %v1325
        %v1802 = vpop.f32.mrb[0].mxu0
        %v1803 = vadd.f32 0.0, %v1802
        %v1804 = vpop.f32.mrb[0].mxu0
        %v1805 = vpop.f32.mrb[0].mxu0
        %v1806 = vadd.f32 0.0, %v1805
        %v1807 = vpop.f32.mrb[0].mxu0
        %1808 = vmatprep.mubr.bf16.mxu0 0
        %1809 = vmatmul.mubr.bf16.gmra.mrb[0].mxu0 %v1328
        %v1810 = vpop.f32.mrb[0].mxu0
        %v1811 = vadd.f32 0.0, %v1810
        %v1812 = vpop.f32.mrb[0].mxu0
        %v1813 = vpop.f32.mrb[0].mxu0
        %v1814 = vadd.f32 0.0, %v1813
        %v1815 = vpop.f32.mrb[0].mxu0
        %1816 = vmatprep.mubr.bf16.mxu0 0
        %1817 = vmatmul.mubr.bf16.gmra.mrb[0].mxu0 %v1331
        %v1818 = vpop.f32.mrb[0].mxu0
        %v1819 = vadd.f32 0.0, %v1818
        %v1820 = vpop.f32.mrb[0].mxu0
        %v1821 = vpop.f32.mrb[0].mxu0
        %v1822 = vadd.f32 0.0, %v1821
        %v1823 = vpop.f32.mrb[0].mxu0
        %1824 = vmatprep.mubr.bf16.mxu0 0
        %1825 = vmatmul.mubr.bf16.gmra.mrb[0].mxu0 %v1334
        %v1826 = vpop.f32.mrb[0].mxu0
        %v1827 = vadd.f32 0.0, %v1826
        %v1828 = vpop.f32.mrb[0].mxu0
        %v1829 = vpop.f32.mrb[0].mxu0
        %v1830 = vadd.f32 0.0, %v1829
        %v1831 = vpop.f32.mrb[0].mxu0
        %1832 = vmatprep.mubr.bf16.mxu0 0
        %1833 = vmatmul.mubr.bf16.gmra.mrb[0].mxu0 %v1337
        %v1834 = vpop.f32.mrb[0].mxu0
        %v1835 = vadd.f32 0.0, %v1834
        %v1836 = vpop.f32.mrb[0].mxu0
        %v1837 = vpop.f32.mrb[0].mxu0
        %v1838 = vadd.f32 0.0, %v1837
        %v1839 = vpop.f32.mrb[0].mxu0
        %1840 = vmatprep.mubr.bf16.mxu0 0
        %1841 = vmatmul.mubr.bf16.gmra.mrb[0].mxu0 %v1340
        %v1842 = vpop.f32.mrb[0].mxu0
        %v1843 = vadd.f32 0.0, %v1842
        %v1844 = vpop.f32.mrb[0].mxu0
        %v1845 = vpop.f32.mrb[0].mxu0
        %v1846 = vadd.f32 0.0, %v1845
        %v1847 = vpop.f32.mrb[0].mxu0
        %1848 = vmatprep.mubr.bf16.mxu0 0
        %1849 = vmatmul.mubr.bf16.gmra.mrb[0].mxu0 %v1343
        %v1850 = vpop.f32.mrb[0].mxu0
        %v1851 = vadd.f32 0.0, %v1850
        %v1852 = vpop.f32.mrb[0].mxu0
        %v1853 = vpop.f32.mrb[0].mxu0
        %v1854 = vadd.f32 0.0, %v1853
        %v1855 = vpop.f32.mrb[0].mxu0
        %1856 = vmatprep.mubr.bf16.mxu0 0
        %1857 = vmatmul.mubr.bf16.gmra.mrb[0].mxu0 %v1346
        %v1858 = vpop.f32.mrb[0].mxu0
        %v1859 = vadd.f32 0.0, %v1858
        %v1860 = vpop.f32.mrb[0].mxu0
        %v1861 = vpop.f32.mrb[0].mxu0
        %v1862 = vadd.f32 0.0, %v1861
        %v1863 = vpop.f32.mrb[0].mxu0
        %1864 = vdwg.mxu0
        %v1865 = vmax.f32 %v1387, %v1507
        %v1866 = vmax.f32 %v1865, %v1627
        %v1867 = vmax.f32 %v1866, %v1747
        %v1868 = vmax.f32 %v1390, %v1510
        %v1869 = vmax.f32 %v1868, %v1630
        %v1870 = vmax.f32 %v1869, %v1750
        %v1871 = vmax.f32 %v1395, %v1515
        %v1872 = vmax.f32 %v1871, %v1635
        %v1873 = vmax.f32 %v1872, %v1755
        %v1874 = vmax.f32 %v1398, %v1518
        %v1875 = vmax.f32 %v1874, %v1638
        %v1876 = vmax.f32 %v1875, %v1758
        %v1877 = vmax.f32 %v1403, %v1523
        %v1878 = vmax.f32 %v1877, %v1643
        %v1879 = vmax.f32 %v1878, %v1763
        %v1880 = vmax.f32 %v1406, %v1526
        %v1881 = vmax.f32 %v1880, %v1646
        %v1882 = vmax.f32 %v1881, %v1766
        %v1883 = vmax.f32 %v1411, %v1531
        %v1884 = vmax.f32 %v1883, %v1651
        %v1885 = vmax.f32 %v1884, %v1771
        %v1886 = vmax.f32 %v1414, %v1534
        %v1887 = vmax.f32 %v1886, %v1654
        %v1888 = vmax.f32 %v1887, %v1774
        %v1889 = vmax.f32 %v1419, %v1539
        %v1890 = vmax.f32 %v1889, %v1659
        %v1891 = vmax.f32 %v1890, %v1779
        %v1892 = vmax.f32 %v1422, %v1542
        %v1893 = vmax.f32 %v1892, %v1662
        %v1894 = vmax.f32 %v1893, %v1782
        %v1895 = vmax.f32 %v1427, %v1547
        %v1896 = vmax.f32 %v1895, %v1667
        %v1897 = vmax.f32 %v1896, %v1787
        %v1898 = vmax.f32 %v1430, %v1550
        %v1899 = vmax.f32 %v1898, %v1670
        %v1900 = vmax.f32 %v1899, %v1790
        %v1901 = vmax.f32 %v1435, %v1555
        %v1902 = vmax.f32 %v1901, %v1675
        %v1903 = vmax.f32 %v1902, %v1795
        %v1904 = vmax.f32 %v1438, %v1558
        %v1905 = vmax.f32 %v1904, %v1678
        %v1906 = vmax.f32 %v1905, %v1798
        %v1907 = vmax.f32 %v1443, %v1563
        %v1908 = vmax.f32 %v1907, %v1683
        %v1909 = vmax.f32 %v1908, %v1803
        %v1910 = vmax.f32 %v1446, %v1566
        %v1911 = vmax.f32 %v1910, %v1686
        %v1912 = vmax.f32 %v1911, %v1806
        %v1913 = vmax.f32 %v1451, %v1571
        %v1914 = vmax.f32 %v1913, %v1691
        %v1915 = vmax.f32 %v1914, %v1811
        %v1916 = vmax.f32 %v1454, %v1574
        %v1917 = vmax.f32 %v1916, %v1694
        %v1918 = vmax.f32 %v1917, %v1814
        %v1919 = vmax.f32 %v1459, %v1579
        %v1920 = vmax.f32 %v1919, %v1699
        %v1921 = vmax.f32 %v1920, %v1819
        %v1922 = vmax.f32 %v1462, %v1582
        %v1923 = vmax.f32 %v1922, %v1702
        %v1924 = vmax.f32 %v1923, %v1822
        %v1925 = vmax.f32 %v1467, %v1587
        %v1926 = vmax.f32 %v1925, %v1707
        %v1927 = vmax.f32 %v1926, %v1827
        %v1928 = vmax.f32 %v1470, %v1590
        %v1929 = vmax.f32 %v1928, %v1710
        %v1930 = vmax.f32 %v1929, %v1830
        %v1931 = vmax.f32 %v1475, %v1595
        %v1932 = vmax.f32 %v1931, %v1715
        %v1933 = vmax.f32 %v1932, %v1835
        %v1934 = vmax.f32 %v1478, %v1598
        %v1935 = vmax.f32 %v1934, %v1718
        %v1936 = vmax.f32 %v1935, %v1838
        %v1937 = vmax.f32 %v1483, %v1603
        %v1938 = vmax.f32 %v1937, %v1723
        %v1939 = vmax.f32 %v1938, %v1843
        %v1940 = vmax.f32 %v1486, %v1606
        %v1941 = vmax.f32 %v1940, %v1726
        %v1942 = vmax.f32 %v1941, %v1846
        %v1943 = vmax.f32 %v1491, %v1611
        %v1944 = vmax.f32 %v1943, %v1731
        %v1945 = vmax.f32 %v1944, %v1851
        %v1946 = vmax.f32 %v1494, %v1614
        %v1947 = vmax.f32 %v1946, %v1734
        %v1948 = vmax.f32 %v1947, %v1854
        %v1949 = vmax.f32 %v1499, %v1619
        %v1950 = vmax.f32 %v1949, %v1739
        %v1951 = vmax.f32 %v1950, %v1859
        %v1952 = vmax.f32 %v1502, %v1622
        %v1953 = vmax.f32 %v1952, %v1742
        %v1954 = vmax.f32 %v1953, %v1862
        %v1955 = vld [vmem:[%s2] sm:$0x1]
        %v1957 = vlaneseq
        %v1958 = vshrl.u32 %v1957, 7
        %v1959 = vsub.s32 0, %v1958
        %v1960 = vrot.slane %v1955, %v1959
        %v1962 = vadd.f32 %v1867, %v1960
        %v1963 = vadd.f32 %v1870, %v1960
        %v1964 = vadd.f32 %v1873, %v1960
        %v1965 = vadd.f32 %v1876, %v1960
        %v1966 = vadd.f32 %v1879, %v1960
        %v1967 = vadd.f32 %v1882, %v1960
        %v1968 = vadd.f32 %v1885, %v1960
        %v1969 = vadd.f32 %v1888, %v1960
        %v1970 = vadd.f32 %v1891, %v1960
        %v1971 = vadd.f32 %v1894, %v1960
        %v1972 = vadd.f32 %v1897, %v1960
        %v1973 = vadd.f32 %v1900, %v1960
        %v1974 = vadd.f32 %v1903, %v1960
        %v1975 = vadd.f32 %v1906, %v1960
        %v1976 = vadd.f32 %v1909, %v1960
        %v1977 = vadd.f32 %v1912, %v1960
        %v1978 = vadd.f32 %v1915, %v1960
        %v1979 = vadd.f32 %v1918, %v1960
        %v1980 = vadd.f32 %v1921, %v1960
        %v1981 = vadd.f32 %v1924, %v1960
        %v1982 = vadd.f32 %v1927, %v1960
        %v1983 = vadd.f32 %v1930, %v1960
        %v1984 = vadd.f32 %v1933, %v1960
        %v1985 = vadd.f32 %v1936, %v1960
        %v1986 = vadd.f32 %v1939, %v1960
        %v1987 = vadd.f32 %v1942, %v1960
        %v1988 = vadd.f32 %v1945, %v1960
        %v1989 = vadd.f32 %v1948, %v1960
        %v1990 = vadd.f32 %v1951, %v1960
        %v1991 = vadd.f32 %v1954, %v1960
        %v1992 = vmax.f32 %v1962, 0.0
        %v1993 = vmax.f32 %v1963, 0.0
        %v1994 = vmax.f32 %v1964, 0.0
        %v1995 = vmax.f32 %v1965, 0.0
        %v1996 = vmax.f32 %v1966, 0.0
        %v1997 = vmax.f32 %v1967, 0.0
        %v1998 = vmax.f32 %v1968, 0.0
        %v1999 = vmax.f32 %v1969, 0.0
        %v2000 = vmax.f32 %v1970, 0.0
        %v2001 = vmax.f32 %v1971, 0.0
        %v2002 = vmax.f32 %v1972, 0.0
        %v2003 = vmax.f32 %v1973, 0.0
        %v2004 = vmax.f32 %v1974, 0.0
        %v2005 = vmax.f32 %v1975, 0.0
        %v2006 = vmax.f32 %v1976, 0.0
        %v2007 = vmax.f32 %v1977, 0.0
        %v2008 = vmax.f32 %v1978, 0.0
        %v2009 = vmax.f32 %v1979, 0.0
        %v2010 = vmax.f32 %v1980, 0.0
        %v2011 = vmax.f32 %v1981, 0.0
        %v2012 = vmax.f32 %v1982, 0.0
        %v2013 = vmax.f32 %v1983, 0.0
        %v2014 = vmax.f32 %v1984, 0.0
        %v2015 = vmax.f32 %v1985, 0.0
        %v2016 = vmax.f32 %v1986, 0.0
        %v2017 = vmax.f32 %v1987, 0.0
        %v2018 = vmax.f32 %v1988, 0.0
        %v2019 = vmax.f32 %v1989, 0.0
        %v2020 = vmax.f32 %v1990, 0.0
        %v2021 = vmax.f32 %v1991, 0.0
        %v2022 = vpack.c.bf16 %v1993, %v1992
        %v2023 = vpack.c.bf16 %v1995, %v1994
        %v2024 = vpack.c.bf16 %v1997, %v1996
        %v2025 = vpack.c.bf16 %v1999, %v1998
        %v2026 = vpack.c.bf16 %v2001, %v2000
        %v2027 = vpack.c.bf16 %v2003, %v2002
        %v2028 = vpack.c.bf16 %v2005, %v2004
        %v2029 = vpack.c.bf16 %v2007, %v2006
        %v2030 = vpack.c.bf16 %v2009, %v2008
        %v2031 = vpack.c.bf16 %v2011, %v2010
        %v2032 = vpack.c.bf16 %v2013, %v2012
        %v2033 = vpack.c.bf16 %v2015, %v2014
        %v2034 = vpack.c.bf16 %v2017, %v2016
        %v2035 = vpack.c.bf16 %v2019, %v2018
        %v2036 = vpack.c.bf16 %v2021, %v2020
        %v2052 = vunpack.c.l.b16 %v2022
        %v2053 = vunpack.c.h.b16 %v2022
        %v2054 = vunpack.c.l.b16 %v2023
        %v2055 = vunpack.c.h.b16 %v2023
        %v2056 = vunpack.c.l.b16 %v2024
        %v2057 = vunpack.c.h.b16 %v2024
        %v2058 = vunpack.c.l.b16 %v2025
        %v2059 = vunpack.c.h.b16 %v2025
        %v2060 = vunpack.c.l.b16 %v2026
        %v2061 = vunpack.c.h.b16 %v2026
        %v2062 = vunpack.c.l.b16 %v2027
        %v2063 = vunpack.c.h.b16 %v2027
        %v2064 = vunpack.c.l.b16 %v2028
        %v2065 = vunpack.c.h.b16 %v2028
        %v2066 = vunpack.c.l.b16 %v2029
        %v2067 = vunpack.c.h.b16 %v2029
        %v2068 = vunpack.c.l.b16 %v2030
        %v2069 = vunpack.c.h.b16 %v2030
        %v2070 = vunpack.c.l.b16 %v2031
        %v2071 = vunpack.c.h.b16 %v2031
        %v2072 = vunpack.c.l.b16 %v2032
        %v2073 = vunpack.c.h.b16 %v2032
        %v2074 = vunpack.c.l.b16 %v2033
        %v2075 = vunpack.c.h.b16 %v2033
        %v2076 = vunpack.c.l.b16 %v2034
        %v2077 = vunpack.c.h.b16 %v2034
        %v2078 = vunpack.c.l.b16 %v2035
        %v2079 = vunpack.c.h.b16 %v2035
        %v2080 = vunpack.c.l.b16 %v2036
        %v2081 = vunpack.c.h.b16 %v2036
        %v2082 = vpack.c.b16 %v2052, %v2052
        %v2083 = vpack.c.b16 %v2053, %v2053
        %v2084 = vpack.c.b16 %v2054, %v2054
        %v2085 = vpack.c.b16 %v2055, %v2055
        %v2086 = vpack.c.b16 %v2056, %v2056
        %v2087 = vpack.c.b16 %v2057, %v2057
        %v2088 = vpack.c.b16 %v2058, %v2058
        %v2089 = vpack.c.b16 %v2059, %v2059
        %v2090 = vpack.c.b16 %v2060, %v2060
        %v2091 = vpack.c.b16 %v2061, %v2061
        %v2092 = vpack.c.b16 %v2062, %v2062
        %v2093 = vpack.c.b16 %v2063, %v2063
        %v2094 = vpack.c.b16 %v2064, %v2064
        %v2095 = vpack.c.b16 %v2065, %v2065
        %v2096 = vpack.c.b16 %v2066, %v2066
        %v2097 = vpack.c.b16 %v2067, %v2067
        %v2098 = vpack.c.b16 %v2068, %v2068
        %v2099 = vpack.c.b16 %v2069, %v2069
        %v2100 = vpack.c.b16 %v2070, %v2070
        %v2101 = vpack.c.b16 %v2071, %v2071
        %v2102 = vpack.c.b16 %v2072, %v2072
        %v2103 = vpack.c.b16 %v2073, %v2073
        %v2104 = vpack.c.b16 %v2074, %v2074
        %v2105 = vpack.c.b16 %v2075, %v2075
        %v2106 = vpack.c.b16 %v2076, %v2076
        %v2107 = vpack.c.b16 %v2077, %v2077
        %v2108 = vpack.c.b16 %v2078, %v2078
        %v2109 = vpack.c.b16 %v2079, %v2079
        %v2110 = vpack.c.b16 %v2080, %v2080
        %v2111 = vpack.c.b16 %v2081, %v2081
        %2142 = vst [vmem:[%s689] sm:$0xf] %v2082
        %2143 = vst [vmem:[%s689 + $0x4] sm:$0xf] %v2083
        %2144 = vst [vmem:[%s689 + $0x8] sm:$0xf] %v2084
        %2145 = vst [vmem:[%s689 + $0xc] sm:$0xf] %v2085
        %2146 = vst [vmem:[%s689 + $0x10] sm:$0xf] %v2086
        %2147 = vst [vmem:[%s689 + $0x14] sm:$0xf] %v2087
        %2148 = vst [vmem:[%s689 + $0x18] sm:$0xf] %v2088
        %2149 = vst [vmem:[%s689 + $0x1c] sm:$0xf] %v2089
        %2150 = vst [vmem:[%s689 + $0x20] sm:$0xf] %v2090
        %2151 = vst [vmem:[%s689 + $0x24] sm:$0xf] %v2091
        %2152 = vst [vmem:[%s689 + $0x28] sm:$0xf] %v2092
        %2153 = vst [vmem:[%s689 + $0x2c] sm:$0xf] %v2093
        %2154 = vst [vmem:[%s689 + $0x30] sm:$0xf] %v2094
        %2155 = vst [vmem:[%s689 + $0x34] sm:$0xf] %v2095
        %2156 = vst [vmem:[%s689 + $0x38] sm:$0xf] %v2096
        %2157 = vst [vmem:[%s689 + $0x3c] sm:$0xf] %v2097
        %2158 = vst [vmem:[%s689 + $0x40] sm:$0xf] %v2098
        %2159 = vst [vmem:[%s689 + $0x44] sm:$0xf] %v2099
        %2160 = vst [vmem:[%s689 + $0x48] sm:$0xf] %v2100
        %2161 = vst [vmem:[%s689 + $0x4c] sm:$0xf] %v2101
        %2162 = vst [vmem:[%s689 + $0x50] sm:$0xf] %v2102
        %2163 = vst [vmem:[%s689 + $0x54] sm:$0xf] %v2103
        %2164 = vst [vmem:[%s689 + $0x58] sm:$0xf] %v2104
        %2165 = vst [vmem:[%s689 + $0x5c] sm:$0xf] %v2105
        %2166 = vst [vmem:[%s689 + $0x60] sm:$0xf] %v2106
        %2167 = vst [vmem:[%s689 + $0x64] sm:$0xf] %v2107
        %2168 = vst [vmem:[%s689 + $0x68] sm:$0xf] %v2108
        %2169 = vst [vmem:[%s689 + $0x6c] sm:$0xf] %v2109
        %2170 = vst [vmem:[%s689 + $0x70] sm:$0xf] %v2110
        %2171 = vst [vmem:[%s689 + $0x74] sm:$0xf] %v2111
        %s2172 = smul.u32 30, %s14
        %p2173 = scmp.lt.s32.totalorder %s2172, 59
        %s2174 = scalar_select %p2173, %s2172, 59
        %s2175 = smul.addr %s2174, 4
        %s2176 = scalar_lea.vmem %s3, %s2175
        // Predicated region
        $region74: #{cnn_forward.4} parent=68 // pred_check
          %p2177 = pneg %p100
        $region75: #{cnn_forward.4} parent=68 // pred_check_branch
          %2179 = sbr.rel (%p2177) target = $region77
        $region76: #{cnn_forward.4} parent=68 // pred_region
          %s2180 = smul.u32 30, %s14
        $region77: #{cnn_forward.4} parent=68 // pred_fallthru
          _
      $region69: #{cnn_forward.4} parent=5 // pred_fallthru
        _
      %p2181 = scmp.le.s32.totalorder 2, %s9
      // Predicated region
      $region78: #{cnn_forward.4} parent=5 // pred_check
        %p2182 = pneg %p2181
      $region79: #{cnn_forward.4} parent=5 // pred_check_branch
        %2184 = sbr.rel (%p2182) target = $region81
      $region80: #{cnn_forward.4} parent=5 // pred_region
        %s2185 = ssub.s32 %s9, 2
        // Predicated region
        $region82: #{cnn_forward.4} parent=80 // pred_check
          %p2186 = pneg %p106
        $region83: #{cnn_forward.4} parent=80 // pred_check_branch
          %2188 = sbr.rel (%p2186) target = $region85
        $region84: #{cnn_forward.4} parent=80 // pred_region
          %s2189 = smul.u32 30, %s15
          %p2190 = scmp.lt.s32.totalorder %s2189, 59
          %s2191 = scalar_select %p2190, %s2189, 59
          %s2192 = smul.addr %s2191, 4
          %s2193 = scalar_lea.vmem %s3, %s2192
        $region85: #{cnn_forward.4} parent=80 // pred_fallthru
          _
      $region81: #{cnn_forward.4} parent=5 // pred_fallthru
        _
    $region6: #{cnn_forward.4} parent=1 // loop_footer
      %s13 = sadd.s32 1, %s9
    $region7: #{cnn_forward.4} parent=1 // loop_footer_branch
      %8 = sbr.rel target = $region3
    $region8: #{cnn_forward.4} parent=1 // loop_exit
      _

// kernel: cnn_forward.5
$region0: #{cnn_forward.5}
  #allocation0 [shape = 'u32[]', space=smem, size = 0x4, offset = 0x4, fixed_abs, tag = 'smem constant byte address 0x4 - core index']
  #allocation1 [shape = 'u32[144,128]{1,0:T(1,128)}', space=vmem, size = 0x12000, scoped, tag = 'internal scratch']
  %s0 = inlined_call_operand.vmem [shape: bf16[4,224,576], index: 0, kind: input, shape index: {}]
  %s1 = inlined_call_operand.vmem [shape: bf16[576,128], index: 1, kind: input, shape index: {}]
  %s2 = inlined_call_operand.vmem [shape: f32[1,128], index: 2, kind: input, shape index: {}]
  %s3 = inlined_call_operand.vmem [shape: bf16[224,128], index: 3, kind: output, shape index: {}]
  %s4 = sld [smem:[#allocation0]]
  $region71: #{cnn_forward.5} parent=0
    _
  %s6 = ssub.s32 1, %s4
  %s7 = scalar_select 0, %s6, %s4
  $region1: #{cnn_forward.5} parent=0
    #allocation2 [shape = 'u8[1146880]{0}', space=vmem, size = 0x118000, scoped, tag = 'input window, operand 0']
    loop: start=0, step=1, limit=4
    $region2: #{cnn_forward.5} parent=1 // loop_pre_header
      _
    $region3: #{cnn_forward.5} parent=1 // loop_header
      %s9 = sphi 0, %s13
      %p10 = scmp.ge.s32.totalorder %s9, 4
      %s19 = sphi 0, %s21
      %s22 = sphi 0, %s19
      %s23 = sphi 0, %s22
      %s39 = sphi 0, %s23
      %s43 = sphi 0, %s43
      %s45 = sphi 0, %s43
      %s46 = sphi 0, %s45
      %s60 = sphi 0, %s46
      %s64 = sphi 0, %s64
      %s66 = sphi 0, %s64
      %s67 = sphi 0, %s66
      %s81 = sphi 0, %s67
      %s87 = sphi 0, %s89
      %s90 = sphi 0, %s87
      %s91 = sphi 0, %s90
      %s107 = sphi 0, %s91
    $region4: #{cnn_forward.5} parent=1 // loop_header_branch
      %12 = sbr.rel (%p10) target = $region8
    $region5: #{cnn_forward.5} parent=1 // loop_body
      %s14 = ssub.s32 %s9, 1
      %s15 = ssub.s32 %s9, 2
      %s16 = sadd.s32 %s9, 1
      %s17 = ssub.s32 %s9, %s16
      %p18 = scmp.eq.s32.totalorder %s17, 0
      %s20 = sadd.s32 %s19, 1
      %s21 = scalar_select %p18, %s19, %s20
      %p24 = pneg %p18
      %p25 = scmp.eq.s32.totalorder %s9, 1
      %p26 = por %p24, %p25
      %p27 = scmp.ne.s32.totalorder %s19, %s22
      %p28 = scmp.eq.s32.totalorder %s9, 0
      %p29 = por %p27, %p28
      %p30 = scmp.ne.s32.totalorder %s19, %s22
      %p31 = scmp.eq.s32.totalorder %s14, 1
      %p32 = por %p30, %p31
      %p33 = scmp.ne.s32.totalorder %s22, %s23
      %p34 = scmp.eq.s32.totalorder %s14, 0
      %p35 = por %p33, %p34
      %p36 = scmp.ne.s32.totalorder %s22, %s23
      %p37 = scmp.eq.s32.totalorder %s15, 1
      %p38 = por %p36, %p37
      %p40 = scmp.ne.s32.totalorder %s23, %s39
      %p41 = scmp.eq.s32.totalorder %s15, 0
      %p42 = por %p40, %p41
      %s44 = sadd.s32 %s43, 1
      %p47 = scmp.eq.s32.totalorder %s9, 1
      %p48 = scmp.ne.s32.totalorder %s43, %s45
      %p49 = scmp.eq.s32.totalorder %s9, 0
      %p50 = por %p48, %p49
      %p51 = scmp.ne.s32.totalorder %s43, %s45
      %p52 = scmp.eq.s32.totalorder %s14, 1
      %p53 = por %p51, %p52
      %p54 = scmp.ne.s32.totalorder %s45, %s46
      %p55 = scmp.eq.s32.totalorder %s14, 0
      %p56 = por %p54, %p55
      %p57 = scmp.ne.s32.totalorder %s45, %s46
      %p58 = scmp.eq.s32.totalorder %s15, 1
      %p59 = por %p57, %p58
      %p61 = scmp.ne.s32.totalorder %s46, %s60
      %p62 = scmp.eq.s32.totalorder %s15, 0
      %p63 = por %p61, %p62
      %s65 = sadd.s32 %s64, 1
      %p68 = scmp.eq.s32.totalorder %s9, 1
      %p69 = scmp.ne.s32.totalorder %s64, %s66
      %p70 = scmp.eq.s32.totalorder %s9, 0
      %p71 = por %p69, %p70
      %p72 = scmp.ne.s32.totalorder %s64, %s66
      %p73 = scmp.eq.s32.totalorder %s14, 1
      %p74 = por %p72, %p73
      %p75 = scmp.ne.s32.totalorder %s66, %s67
      %p76 = scmp.eq.s32.totalorder %s14, 0
      %p77 = por %p75, %p76
      %p78 = scmp.ne.s32.totalorder %s66, %s67
      %p79 = scmp.eq.s32.totalorder %s15, 1
      %p80 = por %p78, %p79
      %p82 = scmp.ne.s32.totalorder %s67, %s81
      %p83 = scmp.eq.s32.totalorder %s15, 0
      %p84 = por %p82, %p83
      %s85 = ssub.s32 %s9, %s16
      %p86 = scmp.eq.s32.totalorder %s85, 0
      %s88 = sadd.s32 %s87, 1
      %s89 = scalar_select %p86, %s87, %s88
      %p92 = pneg %p86
      %p93 = scmp.eq.s32.totalorder %s9, 1
      %p94 = por %p92, %p93
      %p95 = scmp.ne.s32.totalorder %s87, %s90
      %p96 = scmp.eq.s32.totalorder %s9, 0
      %p97 = por %p95, %p96
      %p98 = scmp.ne.s32.totalorder %s87, %s90
      %p99 = scmp.eq.s32.totalorder %s14, 1
      %p100 = por %p98, %p99
      %p101 = scmp.ne.s32.totalorder %s90, %s91
      %p102 = scmp.eq.s32.totalorder %s14, 0
      %p103 = por %p101, %p102
      %p104 = scmp.ne.s32.totalorder %s90, %s91
      %p105 = scmp.eq.s32.totalorder %s15, 1
      %p106 = por %p104, %p105
      %p108 = scmp.ne.s32.totalorder %s91, %s107
      %p109 = scmp.eq.s32.totalorder %s15, 0
      %p110 = por %p108, %p109
      %p111 = scmp.le.s32.totalorder 1, %s9
      %p112 = scmp.lt.s32.totalorder %s9, 3
      %p113 = pnand %p111, %p112
      %p114 = pneg %p113
      // Predicated region
      $region9: #{cnn_forward.5} parent=5 // pred_check
        _
      $region10: #{cnn_forward.5} parent=5 // pred_check_branch
        %116 = sbr.rel (%p113) target = $region12
      $region11: #{cnn_forward.5} parent=5 // pred_region
        %s117 = ssub.s32 %s9, 1
        // Predicated region
        $region13: #{cnn_forward.5} parent=11 // pred_check
          %p118 = pneg %p56
        $region14: #{cnn_forward.5} parent=11 // pred_check_branch
          %120 = sbr.rel (%p118) target = $region16
        $region15: #{cnn_forward.5} parent=11 // pred_region
          _
        $region16: #{cnn_forward.5} parent=11 // pred_fallthru
          _
        // Predicated region
        $region17: #{cnn_forward.5} parent=11 // pred_check
          %p121 = pneg %p77
        $region18: #{cnn_forward.5} parent=11 // pred_check_branch
          %123 = sbr.rel (%p121) target = $region20
        $region19: #{cnn_forward.5} parent=11 // pred_region
          _
        $region20: #{cnn_forward.5} parent=11 // pred_fallthru
          _
      $region12: #{cnn_forward.5} parent=5 // pred_fallthru
        _
      %p124 = scmp.lt.s32.totalorder %s9, 2
      // Predicated region
      $region21: #{cnn_forward.5} parent=5 // pred_check
        %p125 = pneg %p124
      $region22: #{cnn_forward.5} parent=5 // pred_check_branch
        %127 = sbr.rel (%p125) target = $region24
      $region23: #{cnn_forward.5} parent=5 // pred_region
        // Predicated region
        $region25: #{cnn_forward.5} parent=23 // pred_check
          %p128 = pneg %p29
        $region26: #{cnn_forward.5} parent=23 // pred_check_branch
          %130 = sbr.rel (%p128) target = $region28
        $region27: #{cnn_forward.5} parent=23 // pred_region
          %s131 = sand.u32 %s19, 1
          %s132 = sand.u32 %s19, 1
          %s133 = smul.addr %s132, 1120
          %s134 = scalar_lea.vmem [#allocation2], %s133
          %s135 = smul.u32 14, %s9
          %s136 = smul.addr %s135, 5
          %s137 = smul.addr %s136, 4
          %s138 = scalar_lea.vmem %s0, %s137
          // Predicated region
          $region29: #{cnn_forward.5} parent=27 // pred_check
            _
          $region30: #{cnn_forward.5} parent=27 // pred_check_branch
            %140 = sbr.rel (0) target = $region32
          $region31: #{cnn_forward.5} parent=27 // pred_region
            // Predicated region
            $region33: #{cnn_forward.5} parent=31 // pred_check
              _
            $region34: #{cnn_forward.5} parent=31 // pred_check_branch
              %142 = sbr.rel (0) target = $region36
            $region35: #{cnn_forward.5} parent=31 // pred_region
              %s143 = scalar_lea.vmem %s138, 16
              %s144 = scalar_lea.vmem %s134, 16 [#allocation2]
              loop: start=0, step=1, limit=1
              $region37: #{cnn_forward.5} parent=35 // loop_pre_header
                _
              $region38: #{cnn_forward.5} parent=35 // loop_header
                %s146 = sphi 0, %s150
                %p147 = scmp.ge.s32.totalorder %s146, 1
                %s151 = sphi %s138, %s138
                %s152 = sphi %s134, %s134
              $region39: #{cnn_forward.5} parent=35 // loop_header_branch
                %149 = sbr.rel (%p147) target = $region43
              $region40: #{cnn_forward.5} parent=35 // loop_body
                %v153 = vld [vmem:[%s151] sm:$0xff]
                %154 = vst [vmem:[%s152] sm:$0xff] %v153
                %v155 = vld [vmem:[%s151 + $0x8] sm:$0xff]
                %156 = vst [vmem:[%s152 + $0x8] sm:$0xff] %v155
                %v157 = vld [vmem:[%s151 + $0x14] sm:$0xff]
                %158 = vst [vmem:[%s152 + $0x14] sm:$0xff] %v157
                %v159 = vld [vmem:[%s151 + $0x1c] sm:$0xff]
                %160 = vst [vmem:[%s152 + $0x1c] sm:$0xff] %v159
                %v161 = vld [vmem:[%s151 + $0x28] sm:$0xff]
                %162 = vst [vmem:[%s152 + $0x28] sm:$0xff] %v161
                %v163 = vld [vmem:[%s151 + $0x30] sm:$0xff]
                %164 = vst [vmem:[%s152 + $0x30] sm:$0xff] %v163
                %v165 = vld [vmem:[%s151 + $0x3c] sm:$0xff]
                %166 = vst [vmem:[%s152 + $0x3c] sm:$0xff] %v165
                %v167 = vld [vmem:[%s151 + $0x44] sm:$0xff]
                %168 = vst [vmem:[%s152 + $0x44] sm:$0xff] %v167
                %v169 = vld [vmem:[%s151 + $0x50] sm:$0xff]
                %170 = vst [vmem:[%s152 + $0x50] sm:$0xff] %v169
                %v171 = vld [vmem:[%s151 + $0x58] sm:$0xff]
                %172 = vst [vmem:[%s152 + $0x58] sm:$0xff] %v171
                %v173 = vld [vmem:[%s151 + $0x64] sm:$0xff]
                %174 = vst [vmem:[%s152 + $0x64] sm:$0xff] %v173
                %v175 = vld [vmem:[%s151 + $0x6c] sm:$0xff]
                %176 = vst [vmem:[%s152 + $0x6c] sm:$0xff] %v175
                %v177 = vld [vmem:[%s151 + $0x78] sm:$0xff]
                %178 = vst [vmem:[%s152 + $0x78] sm:$0xff] %v177
                %v179 = vld [vmem:[%s151 + $0x80] sm:$0xff]
                %180 = vst [vmem:[%s152 + $0x80] sm:$0xff] %v179
                %v181 = vld [vmem:[%s151 + $0x8c] sm:$0xff]
                %182 = vst [vmem:[%s152 + $0x8c] sm:$0xff] %v181
                %v183 = vld [vmem:[%s151 + $0x94] sm:$0xff]
                %184 = vst [vmem:[%s152 + $0x94] sm:$0xff] %v183
                %v185 = vld [vmem:[%s151 + $0xa0] sm:$0xff]
                %186 = vst [vmem:[%s152 + $0xa0] sm:$0xff] %v185
                %v187 = vld [vmem:[%s151 + $0xa8] sm:$0xff]
                %188 = vst [vmem:[%s152 + $0xa8] sm:$0xff] %v187
                %v189 = vld [vmem:[%s151 + $0xb4] sm:$0xff]
                %190 = vst [vmem:[%s152 + $0xb4] sm:$0xff] %v189
                %v191 = vld [vmem:[%s151 + $0xbc] sm:$0xff]
                %192 = vst [vmem:[%s152 + $0xbc] sm:$0xff] %v191
                %v193 = vld [vmem:[%s151 + $0xc8] sm:$0xff]
                %194 = vst [vmem:[%s152 + $0xc8] sm:$0xff] %v193
                %v195 = vld [vmem:[%s151 + $0xd0] sm:$0xff]
                %196 = vst [vmem:[%s152 + $0xd0] sm:$0xff] %v195
                %v197 = vld [vmem:[%s151 + $0xdc] sm:$0xff]
                %198 = vst [vmem:[%s152 + $0xdc] sm:$0xff] %v197
                %v199 = vld [vmem:[%s151 + $0xe4] sm:$0xff]
                %200 = vst [vmem:[%s152 + $0xe4] sm:$0xff] %v199
                %v201 = vld [vmem:[%s151 + $0xf0] sm:$0xff]
                %202 = vst [vmem:[%s152 + $0xf0] sm:$0xff] %v201
                %v203 = vld [vmem:[%s151 + $0xf8] sm:$0xff]
                %204 = vst [vmem:[%s152 + $0xf8] sm:$0xff] %v203
                %v205 = vld [vmem:[%s151 + $0x104] sm:$0xff]
                %206 = vst [vmem:[%s152 + $0x104] sm:$0xff] %v205
                %v207 = vld [vmem:[%s151 + $0x10c] sm:$0xff]
                %208 = vst [vmem:[%s152 + $0x10c] sm:$0xff] %v207
                %v209 = vld [vmem:[%s151 + $0x230] sm:$0xff]
                %210 = vst [vmem:[%s152 + $0x118] sm:$0xff] %v209
                %v211 = vld [vmem:[%s151 + $0x238] sm:$0xff]
                %212 = vst [vmem:[%s152 + $0x120] sm:$0xff] %v211
                %v213 = vld [vmem:[%s151 + $0x244] sm:$0xff]
                %214 = vst [vmem:[%s152 + $0x12c] sm:$0xff] %v213
                %v215 = vld [vmem:[%s151 + $0x24c] sm:$0xff]
                %216 = vst [vmem:[%s152 + $0x134] sm:$0xff] %v215
                %v217 = vld [vmem:[%s151 + $0x258] sm:$0xff]
                %218 = vst [vmem:[%s152 + $0x140] sm:$0xff] %v217
                %v219 = vld [vmem:[%s151 + $0x260] sm:$0xff]
                %220 = vst [vmem:[%s152 + $0x148] sm:$0xff] %v219
                %v221 = vld [vmem:[%s151 + $0x26c] sm:$0xff]
                %222 = vst [vmem:[%s152 + $0x154] sm:$0xff] %v221
                %v223 = vld [vmem:[%s151 + $0x274] sm:$0xff]
                %224 = vst [vmem:[%s152 + $0x15c] sm:$0xff] %v223
                %v225 = vld [vmem:[%s151 + $0x280] sm:$0xff]
                %226 = vst [vmem:[%s152 + $0x168] sm:$0xff] %v225
                %v227 = vld [vmem:[%s151 + $0x288] sm:$0xff]
                %228 = vst [vmem:[%s152 + $0x170] sm:$0xff] %v227
                %v229 = vld [vmem:[%s151 + $0x294] sm:$0xff]
                %230 = vst [vmem:[%s152 + $0x17c] sm:$0xff] %v229
                %v231 = vld [vmem:[%s151 + $0x29c] sm:$0xff]
                %232 = vst [vmem:[%s152 + $0x184] sm:$0xff] %v231
                %v233 = vld [vmem:[%s151 + $0x2a8] sm:$0xff]
                %234 = vst [vmem:[%s152 + $0x190] sm:$0xff] %v233
                %v235 = vld [vmem:[%s151 + $0x2b0] sm:$0xff]
                %236 = vst [vmem:[%s152 + $0x198] sm:$0xff] %v235
                %v237 = vld [vmem:[%s151 + $0x2bc] sm:$0xff]
                %238 = vst [vmem:[%s152 + $0x1a4] sm:$0xff] %v237
                %v239 = vld [vmem:[%s151 + $0x2c4] sm:$0xff]
                %240 = vst [vmem:[%s152 + $0x1ac] sm:$0xff] %v239
                %v241 = vld [vmem:[%s151 + $0x2d0] sm:$0xff]
                %242 = vst [vmem:[%s152 + $0x1b8] sm:$0xff] %v241
                %v243 = vld [vmem:[%s151 + $0x2d8] sm:$0xff]
                %244 = vst [vmem:[%s152 + $0x1c0] sm:$0xff] %v243
                %v245 = vld [vmem:[%s151 + $0x2e4] sm:$0xff]
                %246 = vst [vmem:[%s152 + $0x1cc] sm:$0xff] %v245
                %v247 = vld [vmem:[%s151 + $0x2ec] sm:$0xff]
                %248 = vst [vmem:[%s152 + $0x1d4] sm:$0xff] %v247
                %v249 = vld [vmem:[%s151 + $0x2f8] sm:$0xff]
                %250 = vst [vmem:[%s152 + $0x1e0] sm:$0xff] %v249
                %v251 = vld [vmem:[%s151 + $0x300] sm:$0xff]
                %252 = vst [vmem:[%s152 + $0x1e8] sm:$0xff] %v251
                %v253 = vld [vmem:[%s151 + $0x30c] sm:$0xff]
                %254 = vst [vmem:[%s152 + $0x1f4] sm:$0xff] %v253
                %v255 = vld [vmem:[%s151 + $0x314] sm:$0xff]
                %256 = vst [vmem:[%s152 + $0x1fc] sm:$0xff] %v255
                %v257 = vld [vmem:[%s151 + $0x320] sm:$0xff]
                %258 = vst [vmem:[%s152 + $0x208] sm:$0xff] %v257
                %v259 = vld [vmem:[%s151 + $0x328] sm:$0xff]
                %260 = vst [vmem:[%s152 + $0x210] sm:$0xff] %v259
                %v261 = vld [vmem:[%s151 + $0x334] sm:$0xff]
                %262 = vst [vmem:[%s152 + $0x21c] sm:$0xff] %v261
                %v263 = vld [vmem:[%s151 + $0x33c] sm:$0xff]
                %264 = vst [vmem:[%s152 + $0x224] sm:$0xff] %v263
                %v265 = vld [vmem:[%s151 + $0x460] sm:$0xff]
                %266 = vst [vmem:[%s152 + $0x230] sm:$0xff] %v265
                %v267 = vld [vmem:[%s151 + $0x468] sm:$0xff]
                %268 = vst [vmem:[%s152 + $0x238] sm:$0xff] %v267
                %v269 = vld [vmem:[%s151 + $0x474] sm:$0xff]
                %270 = vst [vmem:[%s152 + $0x244] sm:$0xff] %v269
                %v271 = vld [vmem:[%s151 + $0x47c] sm:$0xff]
                %272 = vst [vmem:[%s152 + $0x24c] sm:$0xff] %v271
                %v273 = vld [vmem:[%s151 + $0x488] sm:$0xff]
                %274 = vst [vmem:[%s152 + $0x258] sm:$0xff] %v273
                %v275 = vld [vmem:[%s151 + $0x490] sm:$0xff]
                %276 = vst [vmem:[%s152 + $0x260] sm:$0xff] %v275
                %v277 = vld [vmem:[%s151 + $0x49c] sm:$0xff]
                %278 = vst [vmem:[%s152 + $0x26c] sm:$0xff] %v277
                %v279 = vld [vmem:[%s151 + $0x4a4] sm:$0xff]
                %280 = vst [vmem:[%s152 + $0x274] sm:$0xff] %v279
                %v281 = vld [vmem:[%s151 + $0x4b0] sm:$0xff]
                %282 = vst [vmem:[%s152 + $0x280] sm:$0xff] %v281
                %v283 = vld [vmem:[%s151 + $0x4b8] sm:$0xff]
                %284 = vst [vmem:[%s152 + $0x288] sm:$0xff] %v283
                %v285 = vld [vmem:[%s151 + $0x4c4] sm:$0xff]
                %286 = vst [vmem:[%s152 + $0x294] sm:$0xff] %v285
                %v287 = vld [vmem:[%s151 + $0x4cc] sm:$0xff]
                %288 = vst [vmem:[%s152 + $0x29c] sm:$0xff] %v287
                %v289 = vld [vmem:[%s151 + $0x4d8] sm:$0xff]
                %290 = vst [vmem:[%s152 + $0x2a8] sm:$0xff] %v289
                %v291 = vld [vmem:[%s151 + $0x4e0] sm:$0xff]
                %292 = vst [vmem:[%s152 + $0x2b0] sm:$0xff] %v291
                %v293 = vld [vmem:[%s151 + $0x4ec] sm:$0xff]
                %294 = vst [vmem:[%s152 + $0x2bc] sm:$0xff] %v293
                %v295 = vld [vmem:[%s151 + $0x4f4] sm:$0xff]
                %296 = vst [vmem:[%s152 + $0x2c4] sm:$0xff] %v295
                %v297 = vld [vmem:[%s151 + $0x500] sm:$0xff]
                %298 = vst [vmem:[%s152 + $0x2d0] sm:$0xff] %v297
                %v299 = vld [vmem:[%s151 + $0x508] sm:$0xff]
                %300 = vst [vmem:[%s152 + $0x2d8] sm:$0xff] %v299
                %v301 = vld [vmem:[%s151 + $0x514] sm:$0xff]
                %302 = vst [vmem:[%s152 + $0x2e4] sm:$0xff] %v301
                %v303 = vld [vmem:[%s151 + $0x51c] sm:$0xff]
                %304 = vst [vmem:[%s152 + $0x2ec] sm:$0xff] %v303
                %v305 = vld [vmem:[%s151 + $0x528] sm:$0xff]
                %306 = vst [vmem:[%s152 + $0x2f8] sm:$0xff] %v305
                %v307 = vld [vmem:[%s151 + $0x530] sm:$0xff]
                %308 = vst [vmem:[%s152 + $0x300] sm:$0xff] %v307
                %v309 = vld [vmem:[%s151 + $0x53c] sm:$0xff]
                %310 = vst [vmem:[%s152 + $0x30c] sm:$0xff] %v309
                %v311 = vld [vmem:[%s151 + $0x544] sm:$0xff]
                %312 = vst [vmem:[%s152 + $0x314] sm:$0xff] %v311
                %v313 = vld [vmem:[%s151 + $0x550] sm:$0xff]
                %314 = vst [vmem:[%s152 + $0x320] sm:$0xff] %v313
                %v315 = vld [vmem:[%s151 + $0x558] sm:$0xff]
                %316 = vst [vmem:[%s152 + $0x328] sm:$0xff] %v315
                %v317 = vld [vmem:[%s151 + $0x564] sm:$0xff]
                %318 = vst [vmem:[%s152 + $0x334] sm:$0xff] %v317
                %v319 = vld [vmem:[%s151 + $0x56c] sm:$0xff]
                %320 = vst [vmem:[%s152 + $0x33c] sm:$0xff] %v319
                %v321 = vld [vmem:[%s151 + $0x690] sm:$0xff]
                %322 = vst [vmem:[%s152 + $0x348] sm:$0xff] %v321
                %v323 = vld [vmem:[%s151 + $0x698] sm:$0xff]
                %324 = vst [vmem:[%s152 + $0x350] sm:$0xff] %v323
                %v325 = vld [vmem:[%s151 + $0x6a4] sm:$0xff]
                %326 = vst [vmem:[%s152 + $0x35c] sm:$0xff] %v325
                %v327 = vld [vmem:[%s151 + $0x6ac] sm:$0xff]
                %328 = vst [vmem:[%s152 + $0x364] sm:$0xff] %v327
                %v329 = vld [vmem:[%s151 + $0x6b8] sm:$0xff]
                %330 = vst [vmem:[%s152 + $0x370] sm:$0xff] %v329
                %v331 = vld [vmem:[%s151 + $0x6c0] sm:$0xff]
                %332 = vst [vmem:[%s152 + $0x378] sm:$0xff] %v331
                %v333 = vld [vmem:[%s151 + $0x6cc] sm:$0xff]
                %334 = vst [vmem:[%s152 + $0x384] sm:$0xff] %v333
                %v335 = vld [vmem:[%s151 + $0x6d4] sm:$0xff]
                %336 = vst [vmem:[%s152 + $0x38c] sm:$0xff] %v335
                %v337 = vld [vmem:[%s151 + $0x6e0] sm:$0xff]
                %338 = vst [vmem:[%s152 + $0x398] sm:$0xff] %v337
                %v339 = vld [vmem:[%s151 + $0x6e8] sm:$0xff]
                %340 = vst [vmem:[%s152 + $0x3a0] sm:$0xff] %v339
                %v341 = vld [vmem:[%s151 + $0x6f4] sm:$0xff]
                %342 = vst [vmem:[%s152 + $0x3ac] sm:$0xff] %v341
                %v343 = vld [vmem:[%s151 + $0x6fc] sm:$0xff]
                %344 = vst [vmem:[%s152 + $0x3b4] sm:$0xff] %v343
                %v345 = vld [vmem:[%s151 + $0x708] sm:$0xff]
                %346 = vst [vmem:[%s152 + $0x3c0] sm:$0xff] %v345
                %v347 = vld [vmem:[%s151 + $0x710] sm:$0xff]
                %348 = vst [vmem:[%s152 + $0x3c8] sm:$0xff] %v347
                %v349 = vld [vmem:[%s151 + $0x71c] sm:$0xff]
                %350 = vst [vmem:[%s152 + $0x3d4] sm:$0xff] %v349
                %v351 = vld [vmem:[%s151 + $0x724] sm:$0xff]
                %352 = vst [vmem:[%s152 + $0x3dc] sm:$0xff] %v351
                %v353 = vld [vmem:[%s151 + $0x730] sm:$0xff]
                %354 = vst [vmem:[%s152 + $0x3e8] sm:$0xff] %v353
                %v355 = vld [vmem:[%s151 + $0x738] sm:$0xff]
                %356 = vst [vmem:[%s152 + $0x3f0] sm:$0xff] %v355
                %v357 = vld [vmem:[%s151 + $0x744] sm:$0xff]
                %358 = vst [vmem:[%s152 + $0x3fc] sm:$0xff] %v357
                %v359 = vld [vmem:[%s151 + $0x74c] sm:$0xff]
                %360 = vst [vmem:[%s152 + $0x404] sm:$0xff] %v359
                %v361 = vld [vmem:[%s151 + $0x758] sm:$0xff]
                %362 = vst [vmem:[%s152 + $0x410] sm:$0xff] %v361
                %v363 = vld [vmem:[%s151 + $0x760] sm:$0xff]
                %364 = vst [vmem:[%s152 + $0x418] sm:$0xff] %v363
                %v365 = vld [vmem:[%s151 + $0x76c] sm:$0xff]
                %366 = vst [vmem:[%s152 + $0x424] sm:$0xff] %v365
                %v367 = vld [vmem:[%s151 + $0x774] sm:$0xff]
                %368 = vst [vmem:[%s152 + $0x42c] sm:$0xff] %v367
                %v369 = vld [vmem:[%s151 + $0x780] sm:$0xff]
                %370 = vst [vmem:[%s152 + $0x438] sm:$0xff] %v369
                %v371 = vld [vmem:[%s151 + $0x788] sm:$0xff]
                %372 = vst [vmem:[%s152 + $0x440] sm:$0xff] %v371
                %v373 = vld [vmem:[%s151 + $0x794] sm:$0xff]
                %374 = vst [vmem:[%s152 + $0x44c] sm:$0xff] %v373
                %v375 = vld [vmem:[%s151 + $0x79c] sm:$0xff]
                %376 = vst [vmem:[%s152 + $0x454] sm:$0xff] %v375
              $region41: #{cnn_forward.5} parent=35 // loop_footer
                %s150 = sadd.s32 1, %s146
              $region42: #{cnn_forward.5} parent=35 // loop_footer_branch
                %145 = sbr.rel target = $region38
              $region43: #{cnn_forward.5} parent=35 // loop_exit
                _
              loop: start=0, step=1, limit=1
              $region44: #{cnn_forward.5} parent=35 // loop_pre_header
                _
              $region45: #{cnn_forward.5} parent=35 // loop_header
                %s379 = sphi 0, %s383
                %p380 = scmp.ge.s32.totalorder %s379, 1
                %s384 = sphi %s143, %s143
                %s385 = sphi %s144, %s144
              $region46: #{cnn_forward.5} parent=35 // loop_header_branch
                %382 = sbr.rel (%p380) target = $region50
              $region47: #{cnn_forward.5} parent=35 // loop_body
                %v386 = vld [vmem:[%s384] sm:$0xf]
                %387 = vst [vmem:[%s385] sm:$0xf] %v386
                %v388 = vld [vmem:[%s384 + $0x14] sm:$0xf]
                %389 = vst [vmem:[%s385 + $0x14] sm:$0xf] %v388
                %v390 = vld [vmem:[%s384 + $0x28] sm:$0xf]
                %391 = vst [vmem:[%s385 + $0x28] sm:$0xf] %v390
                %v392 = vld [vmem:[%s384 + $0x3c] sm:$0xf]
                %393 = vst [vmem:[%s385 + $0x3c] sm:$0xf] %v392
                %v394 = vld [vmem:[%s384 + $0x50] sm:$0xf]
                %395 = vst [vmem:[%s385 + $0x50] sm:$0xf] %v394
                %v396 = vld [vmem:[%s384 + $0x64] sm:$0xf]
                %397 = vst [vmem:[%s385 + $0x64] sm:$0xf] %v396
                %v398 = vld [vmem:[%s384 + $0x78] sm:$0xf]
                %399 = vst [vmem:[%s385 + $0x78] sm:$0xf] %v398
                %v400 = vld [vmem:[%s384 + $0x8c] sm:$0xf]
                %401 = vst [vmem:[%s385 + $0x8c] sm:$0xf] %v400
                %v402 = vld [vmem:[%s384 + $0xa0] sm:$0xf]
                %403 = vst [vmem:[%s385 + $0xa0] sm:$0xf] %v402
                %v404 = vld [vmem:[%s384 + $0xb4] sm:$0xf]
                %405 = vst [vmem:[%s385 + $0xb4] sm:$0xf] %v404
                %v406 = vld [vmem:[%s384 + $0xc8] sm:$0xf]
                %407 = vst [vmem:[%s385 + $0xc8] sm:$0xf] %v406
                %v408 = vld [vmem:[%s384 + $0xdc] sm:$0xf]
                %409 = vst [vmem:[%s385 + $0xdc] sm:$0xf] %v408
                %v410 = vld [vmem:[%s384 + $0xf0] sm:$0xf]
                %411 = vst [vmem:[%s385 + $0xf0] sm:$0xf] %v410
                %v412 = vld [vmem:[%s384 + $0x104] sm:$0xf]
                %413 = vst [vmem:[%s385 + $0x104] sm:$0xf] %v412
                %v414 = vld [vmem:[%s384 + $0x230] sm:$0xf]
                %415 = vst [vmem:[%s385 + $0x118] sm:$0xf] %v414
                %v416 = vld [vmem:[%s384 + $0x244] sm:$0xf]
                %417 = vst [vmem:[%s385 + $0x12c] sm:$0xf] %v416
                %v418 = vld [vmem:[%s384 + $0x258] sm:$0xf]
                %419 = vst [vmem:[%s385 + $0x140] sm:$0xf] %v418
                %v420 = vld [vmem:[%s384 + $0x26c] sm:$0xf]
                %421 = vst [vmem:[%s385 + $0x154] sm:$0xf] %v420
                %v422 = vld [vmem:[%s384 + $0x280] sm:$0xf]
                %423 = vst [vmem:[%s385 + $0x168] sm:$0xf] %v422
                %v424 = vld [vmem:[%s384 + $0x294] sm:$0xf]
                %425 = vst [vmem:[%s385 + $0x17c] sm:$0xf] %v424
                %v426 = vld [vmem:[%s384 + $0x2a8] sm:$0xf]
                %427 = vst [vmem:[%s385 + $0x190] sm:$0xf] %v426
                %v428 = vld [vmem:[%s384 + $0x2bc] sm:$0xf]
                %429 = vst [vmem:[%s385 + $0x1a4] sm:$0xf] %v428
                %v430 = vld [vmem:[%s384 + $0x2d0] sm:$0xf]
                %431 = vst [vmem:[%s385 + $0x1b8] sm:$0xf] %v430
                %v432 = vld [vmem:[%s384 + $0x2e4] sm:$0xf]
                %433 = vst [vmem:[%s385 + $0x1cc] sm:$0xf] %v432
                %v434 = vld [vmem:[%s384 + $0x2f8] sm:$0xf]
                %435 = vst [vmem:[%s385 + $0x1e0] sm:$0xf] %v434
                %v436 = vld [vmem:[%s384 + $0x30c] sm:$0xf]
                %437 = vst [vmem:[%s385 + $0x1f4] sm:$0xf] %v436
                %v438 = vld [vmem:[%s384 + $0x320] sm:$0xf]
                %439 = vst [vmem:[%s385 + $0x208] sm:$0xf] %v438
                %v440 = vld [vmem:[%s384 + $0x334] sm:$0xf]
                %441 = vst [vmem:[%s385 + $0x21c] sm:$0xf] %v440
                %v442 = vld [vmem:[%s384 + $0x460] sm:$0xf]
                %443 = vst [vmem:[%s385 + $0x230] sm:$0xf] %v442
                %v444 = vld [vmem:[%s384 + $0x474] sm:$0xf]
                %445 = vst [vmem:[%s385 + $0x244] sm:$0xf] %v444
                %v446 = vld [vmem:[%s384 + $0x488] sm:$0xf]
                %447 = vst [vmem:[%s385 + $0x258] sm:$0xf] %v446
                %v448 = vld [vmem:[%s384 + $0x49c] sm:$0xf]
                %449 = vst [vmem:[%s385 + $0x26c] sm:$0xf] %v448
                %v450 = vld [vmem:[%s384 + $0x4b0] sm:$0xf]
                %451 = vst [vmem:[%s385 + $0x280] sm:$0xf] %v450
                %v452 = vld [vmem:[%s384 + $0x4c4] sm:$0xf]
                %453 = vst [vmem:[%s385 + $0x294] sm:$0xf] %v452
                %v454 = vld [vmem:[%s384 + $0x4d8] sm:$0xf]
                %455 = vst [vmem:[%s385 + $0x2a8] sm:$0xf] %v454
                %v456 = vld [vmem:[%s384 + $0x4ec] sm:$0xf]
                %457 = vst [vmem:[%s385 + $0x2bc] sm:$0xf] %v456
                %v458 = vld [vmem:[%s384 + $0x500] sm:$0xf]
                %459 = vst [vmem:[%s385 + $0x2d0] sm:$0xf] %v458
                %v460 = vld [vmem:[%s384 + $0x514] sm:$0xf]
                %461 = vst [vmem:[%s385 + $0x2e4] sm:$0xf] %v460
                %v462 = vld [vmem:[%s384 + $0x528] sm:$0xf]
                %463 = vst [vmem:[%s385 + $0x2f8] sm:$0xf] %v462
                %v464 = vld [vmem:[%s384 + $0x53c] sm:$0xf]
                %465 = vst [vmem:[%s385 + $0x30c] sm:$0xf] %v464
                %v466 = vld [vmem:[%s384 + $0x550] sm:$0xf]
                %467 = vst [vmem:[%s385 + $0x320] sm:$0xf] %v466
                %v468 = vld [vmem:[%s384 + $0x564] sm:$0xf]
                %469 = vst [vmem:[%s385 + $0x334] sm:$0xf] %v468
                %v470 = vld [vmem:[%s384 + $0x690] sm:$0xf]
                %471 = vst [vmem:[%s385 + $0x348] sm:$0xf] %v470
                %v472 = vld [vmem:[%s384 + $0x6a4] sm:$0xf]
                %473 = vst [vmem:[%s385 + $0x35c] sm:$0xf] %v472
                %v474 = vld [vmem:[%s384 + $0x6b8] sm:$0xf]
                %475 = vst [vmem:[%s385 + $0x370] sm:$0xf] %v474
                %v476 = vld [vmem:[%s384 + $0x6cc] sm:$0xf]
                %477 = vst [vmem:[%s385 + $0x384] sm:$0xf] %v476
                %v478 = vld [vmem:[%s384 + $0x6e0] sm:$0xf]
                %479 = vst [vmem:[%s385 + $0x398] sm:$0xf] %v478
                %v480 = vld [vmem:[%s384 + $0x6f4] sm:$0xf]
                %481 = vst [vmem:[%s385 + $0x3ac] sm:$0xf] %v480
                %v482 = vld [vmem:[%s384 + $0x708] sm:$0xf]
                %483 = vst [vmem:[%s385 + $0x3c0] sm:$0xf] %v482
                %v484 = vld [vmem:[%s384 + $0x71c] sm:$0xf]
                %485 = vst [vmem:[%s385 + $0x3d4] sm:$0xf] %v484
                %v486 = vld [vmem:[%s384 + $0x730] sm:$0xf]
                %487 = vst [vmem:[%s385 + $0x3e8] sm:$0xf] %v486
                %v488 = vld [vmem:[%s384 + $0x744] sm:$0xf]
                %489 = vst [vmem:[%s385 + $0x3fc] sm:$0xf] %v488
                %v490 = vld [vmem:[%s384 + $0x758] sm:$0xf]
                %491 = vst [vmem:[%s385 + $0x410] sm:$0xf] %v490
                %v492 = vld [vmem:[%s384 + $0x76c] sm:$0xf]
                %493 = vst [vmem:[%s385 + $0x424] sm:$0xf] %v492
                %v494 = vld [vmem:[%s384 + $0x780] sm:$0xf]
                %495 = vst [vmem:[%s385 + $0x438] sm:$0xf] %v494
                %v496 = vld [vmem:[%s384 + $0x794] sm:$0xf]
                %497 = vst [vmem:[%s385 + $0x44c] sm:$0xf] %v496
              $region48: #{cnn_forward.5} parent=35 // loop_footer
                %s383 = sadd.s32 1, %s379
              $region49: #{cnn_forward.5} parent=35 // loop_footer_branch
                %378 = sbr.rel target = $region45
              $region50: #{cnn_forward.5} parent=35 // loop_exit
                _
            $region36: #{cnn_forward.5} parent=31 // pred_fallthru
              _
          $region32: #{cnn_forward.5} parent=27 // pred_fallthru
            _
          %498 = vnop
        $region28: #{cnn_forward.5} parent=23 // pred_fallthru
          _
      $region24: #{cnn_forward.5} parent=5 // pred_fallthru
        _
      %p499 = scmp.le.s32.totalorder 1, %s9
      %p500 = scmp.lt.s32.totalorder %s9, 3
      %p501 = pnand %p499, %p500
      %p502 = pneg %p501
      // Predicated region
      $region51: #{cnn_forward.5} parent=5 // pred_check
        _
      $region52: #{cnn_forward.5} parent=5 // pred_check_branch
        %504 = sbr.rel (%p501) target = $region54
      $region53: #{cnn_forward.5} parent=5 // pred_region
        %s505 = ssub.s32 %s9, 1
        %s506 = sand.u32 %s22, 1
        %s507 = sand.u32 %s22, 1
        %s508 = smul.addr %s507, 1120
        %s509 = scalar_lea.vmem [#allocation2], %s508
        // Predicated region
        $region55: #{cnn_forward.5} parent=53 // pred_check
          %p510 = pneg %p35
        $region56: #{cnn_forward.5} parent=53 // pred_check_branch
          %512 = sbr.rel (%p510) target = $region58
        $region57: #{cnn_forward.5} parent=53 // pred_region
          _
        $region58: #{cnn_forward.5} parent=53 // pred_fallthru
          _
        %s513 = sand.u32 %s22, 1
        %s514 = sand.u32 %s22, 1
        %s515 = smul.addr %s514, 1120
        %s516 = scalar_lea.vmem [#allocation2], %s515
        %p517 = pneg %p35
        %p518 = pneg %p32
        %p519 = pneg %p56
        %p520 = pneg %p53
        %p521 = pneg %p77
        %p522 = pneg %p74
        %p523 = pneg %p103
        %p524 = pneg %p100
        %s525 = smul.u32 14, %s14
        %p526 = scmp.lt.s32.totalorder %s525, 27
        %s527 = scalar_select %p526, %s525, 27
        %s528 = smul.addr %s527, 4
        %s529 = scalar_lea.vmem %s3, %s528
        %s530 = smul.u32 14, %s14
        %s531 = smul.u32 14, %s14
        %p532 = scmp.lt.s32.totalorder %s531, 27
        %s533 = scalar_select %p532, %s531, 27
        %s534 = smul.addr %s533, 4
        %s535 = scalar_lea.vmem %s3, %s534
        %s536 = smul.u32 14, %s14
        %v538 = vld [vmem:[%s509] sm:$0xff]
        %v539 = vld [vmem:[%s509 + $0x8] sm:$0xff]
        %v540 = vld [vmem:[%s509 + $0x10] sm:$0xf]
        %v541 = vld [vmem:[%s509 + $0x14] sm:$0xff]
        %v542 = vld [vmem:[%s509 + $0x1c] sm:$0xff]
        %v543 = vld [vmem:[%s509 + $0x24] sm:$0xf]
        %v544 = vld [vmem:[%s509 + $0x28] sm:$0xff]
        %v545 = vld [vmem:[%s509 + $0x30] sm:$0xff]
        %v546 = vld [vmem:[%s509 + $0x38] sm:$0xf]
        %v547 = vld [vmem:[%s509 + $0x3c] sm:$0xff]
        %v548 = vld [vmem:[%s509 + $0x44] sm:$0xff]
        %v549 = vld [vmem:[%s509 + $0x4c] sm:$0xf]
        %v550 = vld [vmem:[%s509 + $0x50] sm:$0xff]
        %v551 = vld [vmem:[%s509 + $0x58] sm:$0xff]
        %v552 = vld [vmem:[%s509 + $0x60] sm:$0xf]
        %v553 = vld [vmem:[%s509 + $0x64] sm:$0xff]
        %v554 = vld [vmem:[%s509 + $0x6c] sm:$0xff]
        %v555 = vld [vmem:[%s509 + $0x74] sm:$0xf]
        %v556 = vld [vmem:[%s509 + $0x78] sm:$0xff]
        %v557 = vld [vmem:[%s509 + $0x80] sm:$0xff]
        %v558 = vld [vmem:[%s509 + $0x88] sm:$0xf]
        %v559 = vld [vmem:[%s509 + $0x8c] sm:$0xff]
        %v560 = vld [vmem:[%s509 + $0x94] sm:$0xff]
        %v561 = vld [vmem:[%s509 + $0x9c] sm:$0xf]
        %v562 = vld [vmem:[%s509 + $0xa0] sm:$0xff]
        %v563 = vld [vmem:[%s509 + $0xa8] sm:$0xff]
        %v564 = vld [vmem:[%s509 + $0xb0] sm:$0xf]
        %v565 = vld [vmem:[%s509 + $0xb4] sm:$0xff]
        %v566 = vld [vmem:[%s509 + $0xbc] sm:$0xff]
        %v567 = vld [vmem:[%s509 + $0xc4] sm:$0xf]
        %v568 = vld [vmem:[%s509 + $0xc8] sm:$0xff]
        %v569 = vld [vmem:[%s509 + $0xd0] sm:$0xff]
        %v570 = vld [vmem:[%s509 + $0xd8] sm:$0xf]
        %v571 = vld [vmem:[%s509 + $0xdc] sm:$0xff]
        %v572 = vld [vmem:[%s509 + $0xe4] sm:$0xff]
        %v573 = vld [vmem:[%s509 + $0xec] sm:$0xf]
        %v574 = vld [vmem:[%s509 + $0xf0] sm:$0xff]
        %v575 = vld [vmem:[%s509 + $0xf8] sm:$0xff]
        %v576 = vld [vmem:[%s509 + $0x100] sm:$0xf]
        %v577 = vld [vmem:[%s509 + $0x104] sm:$0xff]
        %v578 = vld [vmem:[%s509 + $0x10c] sm:$0xff]
        %v579 = vld [vmem:[%s509 + $0x114] sm:$0xf]
        %v580 = vld [vmem:[%s509 + $0x118] sm:$0xff]
        %v581 = vld [vmem:[%s509 + $0x120] sm:$0xff]
        %v582 = vld [vmem:[%s509 + $0x128] sm:$0xf]
        %v583 = vld [vmem:[%s509 + $0x12c] sm:$0xff]
        %v584 = vld [vmem:[%s509 + $0x134] sm:$0xff]
        %v585 = vld [vmem:[%s509 + $0x13c] sm:$0xf]
        %v586 = vld [vmem:[%s509 + $0x140] sm:$0xff]
        %v587 = vld [vmem:[%s509 + $0x148] sm:$0xff]
        %v588 = vld [vmem:[%s509 + $0x150] sm:$0xf]
        %v589 = vld [vmem:[%s509 + $0x154] sm:$0xff]
        %v590 = vld [vmem:[%s509 + $0x15c] sm:$0xff]
        %v591 = vld [vmem:[%s509 + $0x164] sm:$0xf]
        %v592 = vld [vmem:[%s509 + $0x168] sm:$0xff]
        %v593 = vld [vmem:[%s509 + $0x170] sm:$0xff]
        %v594 = vld [vmem:[%s509 + $0x178] sm:$0xf]
        %v595 = vld [vmem:[%s509 + $0x17c] sm:$0xff]
        %v596 = vld [vmem:[%s509 + $0x184] sm:$0xff]
        %v597 = vld [vmem:[%s509 + $0x18c] sm:$0xf]
        %v598 = vld [vmem:[%s509 + $0x190] sm:$0xff]
        %v599 = vld [vmem:[%s509 + $0x198] sm:$0xff]
        %v600 = vld [vmem:[%s509 + $0x1a0] sm:$0xf]
        %v601 = vld [vmem:[%s509 + $0x1a4] sm:$0xff]
        %v602 = vld [vmem:[%s509 + $0x1ac] sm:$0xff]
        %v603 = vld [vmem:[%s509 + $0x1b4] sm:$0xf]
        %v604 = vld [vmem:[%s509 + $0x1b8] sm:$0xff]
        %v605 = vld [vmem:[%s509 + $0x1c0] sm:$0xff]
        %v606 = vld [vmem:[%s509 + $0x1c8] sm:$0xf]
        %v607 = vld [vmem:[%s509 + $0x1cc] sm:$0xff]
        %v608 = vld [vmem:[%s509 + $0x1d4] sm:$0xff]
        %v609 = vld [vmem:[%s509 + $0x1dc] sm:$0xf]
        %v610 = vld [vmem:[%s509 + $0x1e0] sm:$0xff]
        %v611 = vld [vmem:[%s509 + $0x1e8] sm:$0xff]
        %v612 = vld [vmem:[%s509 + $0x1f0] sm:$0xf]
        %v613 = vld [vmem:[%s509 + $0x1f4] sm:$0xff]
        %v614 = vld [vmem:[%s509 + $0x1fc] sm:$0xff]
        %v615 = vld [vmem:[%s509 + $0x204] sm:$0xf]
        %v616 = vld [vmem:[%s509 + $0x208] sm:$0xff]
        %v617 = vld [vmem:[%s509 + $0x210] sm:$0xff]
        %v618 = vld [vmem:[%s509 + $0x218] sm:$0xf]
        %v619 = vld [vmem:[%s509 + $0x21c] sm:$0xff]
        %v620 = vld [vmem:[%s509 + $0x224] sm:$0xff]
        %v621 = vld [vmem:[%s509 + $0x22c] sm:$0xf]
        %v622 = vld [vmem:[%s509 + $0x230] sm:$0xff]
        %v623 = vld [vmem:[%s509 + $0x238] sm:$0xff]
        %v624 = vld [vmem:[%s509 + $0x240] sm:$0xf]
        %v625 = vld [vmem:[%s509 + $0x244] sm:$0xff]
        %v626 = vld [vmem:[%s509 + $0x24c] sm:$0xff]
        %v627 = vld [vmem:[%s509 + $0x254] sm:$0xf]
        %v628 = vld [vmem:[%s509 + $0x258] sm:$0xff]
        %v629 = vld [vmem:[%s509 + $0x260] sm:$0xff]
        %v630 = vld [vmem:[%s509 + $0x268] sm:$0xf]
        %v631 = vld [vmem:[%s509 + $0x26c] sm:$0xff]
        %v632 = vld [vmem:[%s509 + $0x274] sm:$0xff]
        %v633 = vld [vmem:[%s509 + $0x27c] sm:$0xf]
        %v634 = vld [vmem:[%s509 + $0x280] sm:$0xff]
        %v635 = vld [vmem:[%s509 + $0x288] sm:$0xff]
        %v636 = vld [vmem:[%s509 + $0x290] sm:$0xf]
        %v637 = vld [vmem:[%s509 + $0x294] sm:$0xff]
        %v638 = vld [vmem:[%s509 + $0x29c] sm:$0xff]
        %v639 = vld [vmem:[%s509 + $0x2a4] sm:$0xf]
        %v640 = vld [vmem:[%s509 + $0x2a8] sm:$0xff]
        %v641 = vld [vmem:[%s509 + $0x2b0] sm:$0xff]
        %v642 = vld [vmem:[%s509 + $0x2b8] sm:$0xf]
        %v643 = vld [vmem:[%s509 + $0x2bc] sm:$0xff]
        %v644 = vld [vmem:[%s509 + $0x2c4] sm:$0xff]
        %v645 = vld [vmem:[%s509 + $0x2cc] sm:$0xf]
        %v646 = vld [vmem:[%s509 + $0x2d0] sm:$0xff]
        %v647 = vld [vmem:[%s509 + $0x2d8] sm:$0xff]
        %v648 = vld [vmem:[%s509 + $0x2e0] sm:$0xf]
        %v649 = vld [vmem:[%s509 + $0x2e4] sm:$0xff]
        %v650 = vld [vmem:[%s509 + $0x2ec] sm:$0xff]
        %v651 = vld [vmem:[%s509 + $0x2f4] sm:$0xf]
        %v652 = vld [vmem:[%s509 + $0x2f8] sm:$0xff]
        %v653 = vld [vmem:[%s509 + $0x300] sm:$0xff]
        %v654 = vld [vmem:[%s509 + $0x308] sm:$0xf]
        %v655 = vld [vmem:[%s509 + $0x30c] sm:$0xff]
        %v656 = vld [vmem:[%s509 + $0x314] sm:$0xff]
        %v657 = vld [vmem:[%s509 + $0x31c] sm:$0xf]
        %v658 = vld [vmem:[%s509 + $0x320] sm:$0xff]
        %v659 = vld [vmem:[%s509 + $0x328] sm:$0xff]
        %v660 = vld [vmem:[%s509 + $0x330] sm:$0xf]
        %v661 = vld [vmem:[%s509 + $0x334] sm:$0xff]
        %v662 = vld [vmem:[%s509 + $0x33c] sm:$0xff]
        %v663 = vld [vmem:[%s509 + $0x344] sm:$0xf]
        %v664 = vld [vmem:[%s509 + $0x348] sm:$0xff]
        %v665 = vld [vmem:[%s509 + $0x350] sm:$0xff]
        %v666 = vld [vmem:[%s509 + $0x358] sm:$0xf]
        %v667 = vld [vmem:[%s509 + $0x35c] sm:$0xff]
        %v668 = vld [vmem:[%s509 + $0x364] sm:$0xff]
        %v669 = vld [vmem:[%s509 + $0x36c] sm:$0xf]
        %v670 = vld [vmem:[%s509 + $0x370] sm:$0xff]
        %v671 = vld [vmem:[%s509 + $0x378] sm:$0xff]
        %v672 = vld [vmem:[%s509 + $0x380] sm:$0xf]
        %v673 = vld [vmem:[%s509 + $0x384] sm:$0xff]
        %v674 = vld [vmem:[%s509 + $0x38c] sm:$0xff]
        %v675 = vld [vmem:[%s509 + $0x394] sm:$0xf]
        %v676 = vld [vmem:[%s509 + $0x398] sm:$0xff]
        %v677 = vld [vmem:[%s509 + $0x3a0] sm:$0xff]
        %v678 = vld [vmem:[%s509 + $0x3a8] sm:$0xf]
        %v679 = vld [vmem:[%s509 + $0x3ac] sm:$0xff]
        %v680 = vld [vmem:[%s509 + $0x3b4] sm:$0xff]
        %v681 = vld [vmem:[%s509 + $0x3bc] sm:$0xf]
        %v682 = vld [vmem:[%s509 + $0x3c0] sm:$0xff]
        %v683 = vld [vmem:[%s509 + $0x3c8] sm:$0xff]
        %v684 = vld [vmem:[%s509 + $0x3d0] sm:$0xf]
        %v685 = vld [vmem:[%s509 + $0x3d4] sm:$0xff]
        %v686 = vld [vmem:[%s509 + $0x3dc] sm:$0xff]
        %v687 = vld [vmem:[%s509 + $0x3e4] sm:$0xf]
        %v688 = vld [vmem:[%s509 + $0x3e8] sm:$0xff]
        %v689 = vld [vmem:[%s509 + $0x3f0] sm:$0xff]
        %v690 = vld [vmem:[%s509 + $0x3f8] sm:$0xf]
        %v691 = vld [vmem:[%s509 + $0x3fc] sm:$0xff]
        %v692 = vld [vmem:[%s509 + $0x404] sm:$0xff]
        %v693 = vld [vmem:[%s509 + $0x40c] sm:$0xf]
        %v694 = vld [vmem:[%s509 + $0x410] sm:$0xff]
        %v695 = vld [vmem:[%s509 + $0x418] sm:$0xff]
        %v696 = vld [vmem:[%s509 + $0x420] sm:$0xf]
        %v697 = vld [vmem:[%s509 + $0x424] sm:$0xff]
        %v698 = vld [vmem:[%s509 + $0x42c] sm:$0xff]
        %v699 = vld [vmem:[%s509 + $0x434] sm:$0xf]
        %v700 = vld [vmem:[%s509 + $0x438] sm:$0xff]
        %v701 = vld [vmem:[%s509 + $0x440] sm:$0xff]
        %v702 = vld [vmem:[%s509 + $0x448] sm:$0xf]
        %v703 = vld [vmem:[%s509 + $0x44c] sm:$0xff]
        %v704 = vld [vmem:[%s509 + $0x454] sm:$0xff]
        %v705 = vld [vmem:[%s509 + $0x45c] sm:$0xf]
        %v706 = vld [vmem:[%s1] sm:$0xf]
        %v707 = vld [vmem:[%s1 + $0x4] sm:$0xf]
        %v708 = vld [vmem:[%s1 + $0x8] sm:$0xf]
        %v709 = vld [vmem:[%s1 + $0xc] sm:$0xf]
        %v710 = vld [vmem:[%s1 + $0x10] sm:$0xf]
        %v711 = vld [vmem:[%s1 + $0x14] sm:$0xf]
        %v712 = vld [vmem:[%s1 + $0x18] sm:$0xf]
        %v713 = vld [vmem:[%s1 + $0x1c] sm:$0xf]
        %v714 = vld [vmem:[%s1 + $0x20] sm:$0xf]
        %v715 = vld [vmem:[%s1 + $0x24] sm:$0xf]
        %v716 = vld [vmem:[%s1 + $0x28] sm:$0xf]
        %v717 = vld [vmem:[%s1 + $0x2c] sm:$0xf]
        %v718 = vld [vmem:[%s1 + $0x30] sm:$0xf]
        %v719 = vld [vmem:[%s1 + $0x34] sm:$0xf]
        %v720 = vld [vmem:[%s1 + $0x38] sm:$0xf]
        %v721 = vld [vmem:[%s1 + $0x3c] sm:$0xf]
        %v722 = vld [vmem:[%s1 + $0x40] sm:$0xf]
        %v723 = vld [vmem:[%s1 + $0x44] sm:$0xf]
        %v724 = vld [vmem:[%s1 + $0x48] sm:$0xf]
        %v725 = vld [vmem:[%s1 + $0x4c] sm:$0xf]
        %v726 = vld [vmem:[%s1 + $0x50] sm:$0xf]
        %v727 = vld [vmem:[%s1 + $0x54] sm:$0xf]
        %v728 = vld [vmem:[%s1 + $0x58] sm:$0xf]
        %v729 = vld [vmem:[%s1 + $0x5c] sm:$0xf]
        %v730 = vld [vmem:[%s1 + $0x60] sm:$0xf]
        %v731 = vld [vmem:[%s1 + $0x64] sm:$0xf]
        %v732 = vld [vmem:[%s1 + $0x68] sm:$0xf]
        %v733 = vld [vmem:[%s1 + $0x6c] sm:$0xf]
        %v734 = vld [vmem:[%s1 + $0x70] sm:$0xf]
        %v735 = vld [vmem:[%s1 + $0x74] sm:$0xf]
        %v736 = vld [vmem:[%s1 + $0x78] sm:$0xf]
        %v737 = vld [vmem:[%s1 + $0x7c] sm:$0xf]
        %v738 = vld [vmem:[%s1 + $0x80] sm:$0xf]
        %v739 = vld [vmem:[%s1 + $0x84] sm:$0xf]
        %v740 = vld [vmem:[%s1 + $0x88] sm:$0xf]
        %v741 = vld [vmem:[%s1 + $0x8c] sm:$0xf]
        %v742 = vld [vmem:[%s1 + $0x90] sm:$0xf]
        %v743 = vld [vmem:[%s1 + $0x94] sm:$0xf]
        %v744 = vld [vmem:[%s1 + $0x98] sm:$0xf]
        %v745 = vld [vmem:[%s1 + $0x9c] sm:$0xf]
        %v746 = vld [vmem:[%s1 + $0xa0] sm:$0xf]
        %v747 = vld [vmem:[%s1 + $0xa4] sm:$0xf]
        %v748 = vld [vmem:[%s1 + $0xa8] sm:$0xf]
        %v749 = vld [vmem:[%s1 + $0xac] sm:$0xf]
        %v750 = vld [vmem:[%s1 + $0xb0] sm:$0xf]
        %v751 = vld [vmem:[%s1 + $0xb4] sm:$0xf]
        %v752 = vld [vmem:[%s1 + $0xb8] sm:$0xf]
        %v753 = vld [vmem:[%s1 + $0xbc] sm:$0xf]
        %v754 = vld [vmem:[%s1 + $0xc0] sm:$0xf]
        %v755 = vld [vmem:[%s1 + $0xc4] sm:$0xf]
        %v756 = vld [vmem:[%s1 + $0xc8] sm:$0xf]
        %v757 = vld [vmem:[%s1 + $0xcc] sm:$0xf]
        %v758 = vld [vmem:[%s1 + $0xd0] sm:$0xf]
        %v759 = vld [vmem:[%s1 + $0xd4] sm:$0xf]
        %v760 = vld [vmem:[%s1 + $0xd8] sm:$0xf]
        %v761 = vld [vmem:[%s1 + $0xdc] sm:$0xf]
        %v762 = vld [vmem:[%s1 + $0xe0] sm:$0xf]
        %v763 = vld [vmem:[%s1 + $0xe4] sm:$0xf]
        %v764 = vld [vmem:[%s1 + $0xe8] sm:$0xf]
        %v765 = vld [vmem:[%s1 + $0xec] sm:$0xf]
        %v766 = vld [vmem:[%s1 + $0xf0] sm:$0xf]
        %v767 = vld [vmem:[%s1 + $0xf4] sm:$0xf]
        %v768 = vld [vmem:[%s1 + $0xf8] sm:$0xf]
        %v769 = vld [vmem:[%s1 + $0xfc] sm:$0xf]
        %v770 = vld [vmem:[%s1 + $0x100] sm:$0xf]
        %v771 = vld [vmem:[%s1 + $0x104] sm:$0xf]
        %v772 = vld [vmem:[%s1 + $0x108] sm:$0xf]
        %v773 = vld [vmem:[%s1 + $0x10c] sm:$0xf]
        %v774 = vld [vmem:[%s1 + $0x110] sm:$0xf]
        %v775 = vld [vmem:[%s1 + $0x114] sm:$0xf]
        %v776 = vld [vmem:[%s1 + $0x118] sm:$0xf]
        %v777 = vld [vmem:[%s1 + $0x11c] sm:$0xf]
        %v946 = vunpack.c.l.b16 %v538
        %v947 = vunpack.c.h.b16 %v538
        %v948 = vunpack.c.l.b16 %v539
        %v949 = vunpack.c.h.b16 %v539
        %v950 = vunpack.c.l.b16 %v540
        %v951 = vunpack.c.l.b16 %v541
        %v952 = vunpack.c.h.b16 %v541
        %v953 = vunpack.c.l.b16 %v542
        %v954 = vunpack.c.h.b16 %v542
        %v955 = vunpack.c.l.b16 %v543
        %v956 = vunpack.c.l.b16 %v544
        %v957 = vunpack.c.h.b16 %v544
        %v958 = vunpack.c.l.b16 %v545
        %v959 = vunpack.c.h.b16 %v545
        %v960 = vunpack.c.l.b16 %v546
        %v961 = vunpack.c.l.b16 %v547
        %v962 = vunpack.c.h.b16 %v547
        %v963 = vunpack.c.l.b16 %v548
        %v964 = vunpack.c.h.b16 %v548
        %v965 = vunpack.c.l.b16 %v549
        %v966 = vunpack.c.l.b16 %v550
        %v967 = vunpack.c.h.b16 %v550
        %v968 = vunpack.c.l.b16 %v551
        %v969 = vunpack.c.h.b16 %v551
        %v970 = vunpack.c.l.b16 %v552
        %v971 = vunpack.c.l.b16 %v553
        %v972 = vunpack.c.h.b16 %v553
        %v973 = vunpack.c.l.b16 %v554
        %v974 = vunpack.c.h.b16 %v554
        %v975 = vunpack.c.l.b16 %v555
        %v976 = vunpack.c.l.b16 %v556
        %v977 = vunpack.c.h.b16 %v556
        %v978 = vunpack.c.l.b16 %v557
        %v979 = vunpack.c.h.b16 %v557
        %v980 = vunpack.c.l.b16 %v558
        %v981 = vunpack.c.l.b16 %v559
        %v982 = vunpack.c.h.b16 %v559
        %v983 = vunpack.c.l.b16 %v560
        %v984 = vunpack.c.h.b16 %v560
        %v985 = vunpack.c.l.b16 %v561
        %v986 = vunpack.c.l.b16 %v562
        %v987 = vunpack.c.h.b16 %v562
        %v988 = vunpack.c.l.b16 %v563
        %v989 = vunpack.c.h.b16 %v563
        %v990 = vunpack.c.l.b16 %v564
        %v991 = vunpack.c.l.b16 %v565
        %v992 = vunpack.c.h.b16 %v565
        %v993 = vunpack.c.l.b16 %v566
        %v994 = vunpack.c.h.b16 %v566
        %v995 = vunpack.c.l.b16 %v567
        %v996 = vunpack.c.l.b16 %v568
        %v997 = vunpack.c.h.b16 %v568
        %v998 = vunpack.c.l.b16 %v569
        %v999 = vunpack.c.h.b16 %v569
        %v1000 = vunpack.c.l.b16 %v570
        %v1001 = vunpack.c.l.b16 %v571
        %v1002 = vunpack.c.h.b16 %v571
        %v1003 = vunpack.c.l.b16 %v572
        %v1004 = vunpack.c.h.b16 %v572
        %v1005 = vunpack.c.l.b16 %v573
        %v1006 = vunpack.c.l.b16 %v574
        %v1007 = vunpack.c.h.b16 %v574
        %v1008 = vunpack.c.l.b16 %v575
        %v1009 = vunpack.c.h.b16 %v575
        %v1010 = vunpack.c.l.b16 %v576
        %v1011 = vunpack.c.l.b16 %v577
        %v1012 = vunpack.c.h.b16 %v577
        %v1013 = vunpack.c.l.b16 %v578
        %v1014 = vunpack.c.h.b16 %v578
        %v1015 = vunpack.c.l.b16 %v579
        %v1016 = vunpack.c.l.b16 %v580
        %v1017 = vunpack.c.h.b16 %v580
        %v1018 = vunpack.c.l.b16 %v581
        %v1019 = vunpack.c.h.b16 %v581
        %v1020 = vunpack.c.l.b16 %v582
        %v1021 = vunpack.c.l.b16 %v583
        %v1022 = vunpack.c.h.b16 %v583
        %v1023 = vunpack.c.l.b16 %v584
        %v1024 = vunpack.c.h.b16 %v584
        %v1025 = vunpack.c.l.b16 %v585
        %v1026 = vunpack.c.l.b16 %v586
        %v1027 = vunpack.c.h.b16 %v586
        %v1028 = vunpack.c.l.b16 %v587
        %v1029 = vunpack.c.h.b16 %v587
        %v1030 = vunpack.c.l.b16 %v588
        %v1031 = vunpack.c.l.b16 %v589
        %v1032 = vunpack.c.h.b16 %v589
        %v1033 = vunpack.c.l.b16 %v590
        %v1034 = vunpack.c.h.b16 %v590
        %v1035 = vunpack.c.l.b16 %v591
        %v1036 = vunpack.c.l.b16 %v592
        %v1037 = vunpack.c.h.b16 %v592
        %v1038 = vunpack.c.l.b16 %v593
        %v1039 = vunpack.c.h.b16 %v593
        %v1040 = vunpack.c.l.b16 %v594
        %v1041 = vunpack.c.l.b16 %v595
        %v1042 = vunpack.c.h.b16 %v595
        %v1043 = vunpack.c.l.b16 %v596
        %v1044 = vunpack.c.h.b16 %v596
        %v1045 = vunpack.c.l.b16 %v597
        %v1046 = vunpack.c.l.b16 %v598
        %v1047 = vunpack.c.h.b16 %v598
        %v1048 = vunpack.c.l.b16 %v599
        %v1049 = vunpack.c.h.b16 %v599
        %v1050 = vunpack.c.l.b16 %v600
        %v1051 = vunpack.c.l.b16 %v601
        %v1052 = vunpack.c.h.b16 %v601
        %v1053 = vunpack.c.l.b16 %v602
        %v1054 = vunpack.c.h.b16 %v602
        %v1055 = vunpack.c.l.b16 %v603
        %v1056 = vunpack.c.l.b16 %v604
        %v1057 = vunpack.c.h.b16 %v604
        %v1058 = vunpack.c.l.b16 %v605
        %v1059 = vunpack.c.h.b16 %v605
        %v1060 = vunpack.c.l.b16 %v606
        %v1061 = vunpack.c.l.b16 %v607
        %v1062 = vunpack.c.h.b16 %v607
        %v1063 = vunpack.c.l.b16 %v608
        %v1064 = vunpack.c.h.b16 %v608
        %v1065 = vunpack.c.l.b16 %v609
        %v1066 = vunpack.c.l.b16 %v610
        %v1067 = vunpack.c.h.b16 %v610
        %v1068 = vunpack.c.l.b16 %v611
        %v1069 = vunpack.c.h.b16 %v611
        %v1070 = vunpack.c.l.b16 %v612
        %v1071 = vunpack.c.l.b16 %v613
        %v1072 = vunpack.c.h.b16 %v613
        %v1073 = vunpack.c.l.b16 %v614
        %v1074 = vunpack.c.h.b16 %v614
        %v1075 = vunpack.c.l.b16 %v615
        %v1076 = vunpack.c.l.b16 %v616
        %v1077 = vunpack.c.h.b16 %v616
        %v1078 = vunpack.c.l.b16 %v617
        %v1079 = vunpack.c.h.b16 %v617
        %v1080 = vunpack.c.l.b16 %v618
        %v1081 = vunpack.c.l.b16 %v619
        %v1082 = vunpack.c.h.b16 %v619
        %v1083 = vunpack.c.l.b16 %v620
        %v1084 = vunpack.c.h.b16 %v620
        %v1085 = vunpack.c.l.b16 %v621
        %v1086 = vunpack.c.l.b16 %v622
        %v1087 = vunpack.c.h.b16 %v622
        %v1088 = vunpack.c.l.b16 %v623
        %v1089 = vunpack.c.h.b16 %v623
        %v1090 = vunpack.c.l.b16 %v624
        %v1091 = vunpack.c.l.b16 %v625
        %v1092 = vunpack.c.h.b16 %v625
        %v1093 = vunpack.c.l.b16 %v626
        %v1094 = vunpack.c.h.b16 %v626
        %v1095 = vunpack.c.l.b16 %v627
        %v1096 = vunpack.c.l.b16 %v628
        %v1097 = vunpack.c.h.b16 %v628
        %v1098 = vunpack.c.l.b16 %v629
        %v1099 = vunpack.c.h.b16 %v629
        %v1100 = vunpack.c.l.b16 %v630
        %v1101 = vunpack.c.l.b16 %v631
        %v1102 = vunpack.c.h.b16 %v631
        %v1103 = vunpack.c.l.b16 %v632
        %v1104 = vunpack.c.h.b16 %v632
        %v1105 = vunpack.c.l.b16 %v633
        %v1106 = vunpack.c.l.b16 %v634
        %v1107 = vunpack.c.h.b16 %v634
        %v1108 = vunpack.c.l.b16 %v635
        %v1109 = vunpack.c.h.b16 %v635
        %v1110 = vunpack.c.l.b16 %v636
        %v1111 = vunpack.c.l.b16 %v637
        %v1112 = vunpack.c.h.b16 %v637
        %v1113 = vunpack.c.l.b16 %v638
        %v1114 = vunpack.c.h.b16 %v638
        %v1115 = vunpack.c.l.b16 %v639
        %v1116 = vunpack.c.l.b16 %v640
        %v1117 = vunpack.c.h.b16 %v640
        %v1118 = vunpack.c.l.b16 %v641
        %v1119 = vunpack.c.h.b16 %v641
        %v1120 = vunpack.c.l.b16 %v642
        %v1121 = vunpack.c.l.b16 %v643
        %v1122 = vunpack.c.h.b16 %v643
        %v1123 = vunpack.c.l.b16 %v644
        %v1124 = vunpack.c.h.b16 %v644
        %v1125 = vunpack.c.l.b16 %v645
        %v1126 = vunpack.c.l.b16 %v646
        %v1127 = vunpack.c.h.b16 %v646
        %v1128 = vunpack.c.l.b16 %v647
        %v1129 = vunpack.c.h.b16 %v647
        %v1130 = vunpack.c.l.b16 %v648
        %v1131 = vunpack.c.l.b16 %v649
        %v1132 = vunpack.c.h.b16 %v649
        %v1133 = vunpack.c.l.b16 %v650
        %v1134 = vunpack.c.h.b16 %v650
        %v1135 = vunpack.c.l.b16 %v651
        %v1136 = vunpack.c.l.b16 %v652
        %v1137 = vunpack.c.h.b16 %v652
        %v1138 = vunpack.c.l.b16 %v653
        %v1139 = vunpack.c.h.b16 %v653
        %v1140 = vunpack.c.l.b16 %v654
        %v1141 = vunpack.c.l.b16 %v655
        %v1142 = vunpack.c.h.b16 %v655
        %v1143 = vunpack.c.l.b16 %v656
        %v1144 = vunpack.c.h.b16 %v656
        %v1145 = vunpack.c.l.b16 %v657
        %v1146 = vunpack.c.l.b16 %v658
        %v1147 = vunpack.c.h.b16 %v658
        %v1148 = vunpack.c.l.b16 %v659
        %v1149 = vunpack.c.h.b16 %v659
        %v1150 = vunpack.c.l.b16 %v660
        %v1151 = vunpack.c.l.b16 %v661
        %v1152 = vunpack.c.h.b16 %v661
        %v1153 = vunpack.c.l.b16 %v662
        %v1154 = vunpack.c.h.b16 %v662
        %v1155 = vunpack.c.l.b16 %v663
        %v1156 = vunpack.c.l.b16 %v664
        %v1157 = vunpack.c.h.b16 %v664
        %v1158 = vunpack.c.l.b16 %v665
        %v1159 = vunpack.c.h.b16 %v665
        %v1160 = vunpack.c.l.b16 %v666
        %v1161 = vunpack.c.l.b16 %v667
        %v1162 = vunpack.c.h.b16 %v667
        %v1163 = vunpack.c.l.b16 %v668
        %v1164 = vunpack.c.h.b16 %v668
        %v1165 = vunpack.c.l.b16 %v669
        %v1166 = vunpack.c.l.b16 %v670
        %v1167 = vunpack.c.h.b16 %v670
        %v1168 = vunpack.c.l.b16 %v671
        %v1169 = vunpack.c.h.b16 %v671
        %v1170 = vunpack.c.l.b16 %v672
        %v1171 = vunpack.c.l.b16 %v673
        %v1172 = vunpack.c.h.b16 %v673
        %v1173 = vunpack.c.l.b16 %v674
        %v1174 = vunpack.c.h.b16 %v674
        %v1175 = vunpack.c.l.b16 %v675
        %v1176 = vunpack.c.l.b16 %v676
        %v1177 = vunpack.c.h.b16 %v676
        %v1178 = vunpack.c.l.b16 %v677
        %v1179 = vunpack.c.h.b16 %v677
        %v1180 = vunpack.c.l.b16 %v678
        %v1181 = vunpack.c.l.b16 %v679
        %v1182 = vunpack.c.h.b16 %v679
        %v1183 = vunpack.c.l.b16 %v680
        %v1184 = vunpack.c.h.b16 %v680
        %v1185 = vunpack.c.l.b16 %v681
        %v1186 = vunpack.c.l.b16 %v682
        %v1187 = vunpack.c.h.b16 %v682
        %v1188 = vunpack.c.l.b16 %v683
        %v1189 = vunpack.c.h.b16 %v683
        %v1190 = vunpack.c.l.b16 %v684
        %v1191 = vunpack.c.l.b16 %v685
        %v1192 = vunpack.c.h.b16 %v685
        %v1193 = vunpack.c.l.b16 %v686
        %v1194 = vunpack.c.h.b16 %v686
        %v1195 = vunpack.c.l.b16 %v687
        %v1196 = vunpack.c.l.b16 %v688
        %v1197 = vunpack.c.h.b16 %v688
        %v1198 = vunpack.c.l.b16 %v689
        %v1199 = vunpack.c.h.b16 %v689
        %v1200 = vunpack.c.l.b16 %v690
        %v1201 = vunpack.c.l.b16 %v691
        %v1202 = vunpack.c.h.b16 %v691
        %v1203 = vunpack.c.l.b16 %v692
        %v1204 = vunpack.c.h.b16 %v692
        %v1205 = vunpack.c.l.b16 %v693
        %v1206 = vunpack.c.l.b16 %v694
        %v1207 = vunpack.c.h.b16 %v694
        %v1208 = vunpack.c.l.b16 %v695
        %v1209 = vunpack.c.h.b16 %v695
        %v1210 = vunpack.c.l.b16 %v696
        %v1211 = vunpack.c.l.b16 %v697
        %v1212 = vunpack.c.h.b16 %v697
        %v1213 = vunpack.c.l.b16 %v698
        %v1214 = vunpack.c.h.b16 %v698
        %v1215 = vunpack.c.l.b16 %v699
        %v1216 = vunpack.c.l.b16 %v700
        %v1217 = vunpack.c.h.b16 %v700
        %v1218 = vunpack.c.l.b16 %v701
        %v1219 = vunpack.c.h.b16 %v701
        %v1220 = vunpack.c.l.b16 %v702
        %v1221 = vunpack.c.l.b16 %v703
        %v1222 = vunpack.c.h.b16 %v703
        %v1223 = vunpack.c.l.b16 %v704
        %v1224 = vunpack.c.h.b16 %v704
        %v1225 = vunpack.c.l.b16 %v705
        %v1226 = vpack.c.b16 %v951, %v946
        %v1227 = vpack.c.b16 %v952, %v947
        %v1228 = vpack.c.b16 %v953, %v948
        %v1229 = vpack.c.b16 %v954, %v949
        %v1230 = vpack.c.b16 %v955, %v950
        %v1231 = vpack.c.b16 %v961, %v956
        %v1232 = vpack.c.b16 %v962, %v957
        %v1233 = vpack.c.b16 %v963, %v958
        %v1234 = vpack.c.b16 %v964, %v959
        %v1235 = vpack.c.b16 %v965, %v960
        %v1236 = vpack.c.b16 %v971, %v966
        %v1237 = vpack.c.b16 %v972, %v967
        %v1238 = vpack.c.b16 %v973, %v968
        %v1239 = vpack.c.b16 %v974, %v969
        %v1240 = vpack.c.b16 %v975, %v970
        %v1241 = vpack.c.b16 %v981, %v976
        %v1242 = vpack.c.b16 %v982, %v977
        %v1243 = vpack.c.b16 %v983, %v978
        %v1244 = vpack.c.b16 %v984, %v979
        %v1245 = vpack.c.b16 %v985, %v980
        %v1246 = vpack.c.b16 %v991, %v986
        %v1247 = vpack.c.b16 %v992, %v987
        %v1248 = vpack.c.b16 %v993, %v988
        %v1249 = vpack.c.b16 %v994, %v989
        %v1250 = vpack.c.b16 %v995, %v990
        %v1251 = vpack.c.b16 %v1001, %v996
        %v1252 = vpack.c.b16 %v1002, %v997
        %v1253 = vpack.c.b16 %v1003, %v998
        %v1254 = vpack.c.b16 %v1004, %v999
        %v1255 = vpack.c.b16 %v1005, %v1000
        %v1256 = vpack.c.b16 %v1011, %v1006
        %v1257 = vpack.c.b16 %v1012, %v1007
        %v1258 = vpack.c.b16 %v1013, %v1008
        %v1259 = vpack.c.b16 %v1014, %v1009
        %v1260 = vpack.c.b16 %v1015, %v1010
        %v1261 = vpack.c.b16 %v1021, %v1016
        %v1262 = vpack.c.b16 %v1022, %v1017
        %v1263 = vpack.c.b16 %v1023, %v1018
        %v1264 = vpack.c.b16 %v1024, %v1019
        %v1265 = vpack.c.b16 %v1025, %v1020
        %v1266 = vpack.c.b16 %v1031, %v1026
        %v1267 = vpack.c.b16 %v1032, %v1027
        %v1268 = vpack.c.b16 %v1033, %v1028
        %v1269 = vpack.c.b16 %v1034, %v1029
        %v1270 = vpack.c.b16 %v1035, %v1030
        %v1271 = vpack.c.b16 %v1041, %v1036
        %v1272 = vpack.c.b16 %v1042, %v1037
        %v1273 = vpack.c.b16 %v1043, %v1038
        %v1274 = vpack.c.b16 %v1044, %v1039
        %v1275 = vpack.c.b16 %v1045, %v1040
        %v1276 = vpack.c.b16 %v1051, %v1046
        %v1277 = vpack.c.b16 %v1052, %v1047
        %v1278 = vpack.c.b16 %v1053, %v1048
        %v1279 = vpack.c.b16 %v1054, %v1049
        %v1280 = vpack.c.b16 %v1055, %v1050
        %v1281 = vpack.c.b16 %v1061, %v1056
        %v1282 = vpack.c.b16 %v1062, %v1057
        %v1283 = vpack.c.b16 %v1063, %v1058
        %v1284 = vpack.c.b16 %v1064, %v1059
        %v1285 = vpack.c.b16 %v1065, %v1060
        %v1286 = vpack.c.b16 %v1071, %v1066
        %v1287 = vpack.c.b16 %v1072, %v1067
        %v1288 = vpack.c.b16 %v1073, %v1068
        %v1289 = vpack.c.b16 %v1074, %v1069
        %v1290 = vpack.c.b16 %v1075, %v1070
        %v1291 = vpack.c.b16 %v1081, %v1076
        %v1292 = vpack.c.b16 %v1082, %v1077
        %v1293 = vpack.c.b16 %v1083, %v1078
        %v1294 = vpack.c.b16 %v1084, %v1079
        %v1295 = vpack.c.b16 %v1085, %v1080
        %v1296 = vpack.c.b16 %v1091, %v1086
        %v1297 = vpack.c.b16 %v1092, %v1087
        %v1298 = vpack.c.b16 %v1093, %v1088
        %v1299 = vpack.c.b16 %v1094, %v1089
        %v1300 = vpack.c.b16 %v1095, %v1090
        %v1301 = vpack.c.b16 %v1101, %v1096
        %v1302 = vpack.c.b16 %v1102, %v1097
        %v1303 = vpack.c.b16 %v1103, %v1098
        %v1304 = vpack.c.b16 %v1104, %v1099
        %v1305 = vpack.c.b16 %v1105, %v1100
        %v1306 = vpack.c.b16 %v1111, %v1106
        %v1307 = vpack.c.b16 %v1112, %v1107
        %v1308 = vpack.c.b16 %v1113, %v1108
        %v1309 = vpack.c.b16 %v1114, %v1109
        %v1310 = vpack.c.b16 %v1115, %v1110
        %v1311 = vpack.c.b16 %v1121, %v1116
        %v1312 = vpack.c.b16 %v1122, %v1117
        %v1313 = vpack.c.b16 %v1123, %v1118
        %v1314 = vpack.c.b16 %v1124, %v1119
        %v1315 = vpack.c.b16 %v1125, %v1120
        %v1316 = vpack.c.b16 %v1131, %v1126
        %v1317 = vpack.c.b16 %v1132, %v1127
        %v1318 = vpack.c.b16 %v1133, %v1128
        %v1319 = vpack.c.b16 %v1134, %v1129
        %v1320 = vpack.c.b16 %v1135, %v1130
        %v1321 = vpack.c.b16 %v1141, %v1136
        %v1322 = vpack.c.b16 %v1142, %v1137
        %v1323 = vpack.c.b16 %v1143, %v1138
        %v1324 = vpack.c.b16 %v1144, %v1139
        %v1325 = vpack.c.b16 %v1145, %v1140
        %v1326 = vpack.c.b16 %v1151, %v1146
        %v1327 = vpack.c.b16 %v1152, %v1147
        %v1328 = vpack.c.b16 %v1153, %v1148
        %v1329 = vpack.c.b16 %v1154, %v1149
        %v1330 = vpack.c.b16 %v1155, %v1150
        %v1331 = vpack.c.b16 %v1161, %v1156
        %v1332 = vpack.c.b16 %v1162, %v1157
        %v1333 = vpack.c.b16 %v1163, %v1158
        %v1334 = vpack.c.b16 %v1164, %v1159
        %v1335 = vpack.c.b16 %v1165, %v1160
        %v1336 = vpack.c.b16 %v1171, %v1166
        %v1337 = vpack.c.b16 %v1172, %v1167
        %v1338 = vpack.c.b16 %v1173, %v1168
        %v1339 = vpack.c.b16 %v1174, %v1169
        %v1340 = vpack.c.b16 %v1175, %v1170
        %v1341 = vpack.c.b16 %v1181, %v1176
        %v1342 = vpack.c.b16 %v1182, %v1177
        %v1343 = vpack.c.b16 %v1183, %v1178
        %v1344 = vpack.c.b16 %v1184, %v1179
        %v1345 = vpack.c.b16 %v1185, %v1180
        %v1346 = vpack.c.b16 %v1191, %v1186
        %v1347 = vpack.c.b16 %v1192, %v1187
        %v1348 = vpack.c.b16 %v1193, %v1188
        %v1349 = vpack.c.b16 %v1194, %v1189
        %v1350 = vpack.c.b16 %v1195, %v1190
        %v1351 = vpack.c.b16 %v1201, %v1196
        %v1352 = vpack.c.b16 %v1202, %v1197
        %v1353 = vpack.c.b16 %v1203, %v1198
        %v1354 = vpack.c.b16 %v1204, %v1199
        %v1355 = vpack.c.b16 %v1205, %v1200
        %v1356 = vpack.c.b16 %v1211, %v1206
        %v1357 = vpack.c.b16 %v1212, %v1207
        %v1358 = vpack.c.b16 %v1213, %v1208
        %v1359 = vpack.c.b16 %v1214, %v1209
        %v1360 = vpack.c.b16 %v1215, %v1210
        %v1361 = vpack.c.b16 %v1221, %v1216
        %v1362 = vpack.c.b16 %v1222, %v1217
        %v1363 = vpack.c.b16 %v1223, %v1218
        %v1364 = vpack.c.b16 %v1224, %v1219
        %v1365 = vpack.c.b16 %v1225, %v1220
        %v1550 = vunpack.c.l.b16 %v706
        %v1551 = vunpack.c.l.b16 %v707
        %v1552 = vunpack.c.l.b16 %v708
        %v1553 = vunpack.c.l.b16 %v709
        %v1554 = vunpack.c.l.b16 %v710
        %v1555 = vunpack.c.l.b16 %v711
        %v1556 = vunpack.c.l.b16 %v712
        %v1557 = vunpack.c.l.b16 %v713
        %v1558 = vunpack.c.l.b16 %v714
        %v1559 = vunpack.c.l.b16 %v715
        %v1560 = vunpack.c.l.b16 %v716
        %v1561 = vunpack.c.l.b16 %v717
        %v1562 = vunpack.c.l.b16 %v718
        %v1563 = vunpack.c.l.b16 %v719
        %v1564 = vunpack.c.l.b16 %v720
        %v1565 = vunpack.c.l.b16 %v721
        %v1566 = vunpack.c.l.b16 %v722
        %v1567 = vunpack.c.l.b16 %v723
        %v1568 = vunpack.c.l.b16 %v724
        %v1569 = vunpack.c.l.b16 %v725
        %v1570 = vunpack.c.l.b16 %v726
        %v1571 = vunpack.c.l.b16 %v727
        %v1572 = vunpack.c.l.b16 %v728
        %v1573 = vunpack.c.l.b16 %v729
        %v1574 = vunpack.c.l.b16 %v730
        %v1575 = vunpack.c.l.b16 %v731
        %v1576 = vunpack.c.l.b16 %v732
        %v1577 = vunpack.c.l.b16 %v733
        %v1578 = vunpack.c.l.b16 %v734
        %v1579 = vunpack.c.l.b16 %v735
        %v1580 = vunpack.c.l.b16 %v736
        %v1581 = vunpack.c.l.b16 %v737
        %v1582 = vunpack.c.l.b16 %v738
        %v1583 = vunpack.c.l.b16 %v739
        %v1584 = vunpack.c.l.b16 %v740
        %v1585 = vunpack.c.l.b16 %v741
        %v1586 = vunpack.c.l.b16 %v742
        %v1587 = vunpack.c.l.b16 %v743
        %v1588 = vunpack.c.l.b16 %v744
        %v1589 = vunpack.c.l.b16 %v745
        %v1590 = vunpack.c.l.b16 %v746
        %v1591 = vunpack.c.l.b16 %v747
        %v1592 = vunpack.c.l.b16 %v748
        %v1593 = vunpack.c.l.b16 %v749
        %v1594 = vunpack.c.l.b16 %v750
        %v1595 = vunpack.c.l.b16 %v751
        %v1596 = vunpack.c.l.b16 %v752
        %v1597 = vunpack.c.l.b16 %v753
        %v1598 = vunpack.c.l.b16 %v754
        %v1599 = vunpack.c.l.b16 %v755
        %v1600 = vunpack.c.l.b16 %v756
        %v1601 = vunpack.c.l.b16 %v757
        %v1602 = vunpack.c.l.b16 %v758
        %v1603 = vunpack.c.l.b16 %v759
        %v1604 = vunpack.c.l.b16 %v760
        %v1605 = vunpack.c.l.b16 %v761
        %v1606 = vunpack.c.l.b16 %v762
        %v1607 = vunpack.c.l.b16 %v763
        %v1608 = vunpack.c.l.b16 %v764
        %v1609 = vunpack.c.l.b16 %v765
        %v1610 = vunpack.c.l.b16 %v766
        %v1611 = vunpack.c.l.b16 %v767
        %v1612 = vunpack.c.l.b16 %v768
        %v1613 = vunpack.c.l.b16 %v769
        %v1614 = vunpack.c.l.b16 %v770
        %v1615 = vunpack.c.l.b16 %v771
        %v1616 = vunpack.c.l.b16 %v772
        %v1617 = vunpack.c.l.b16 %v773
        %v1618 = vunpack.c.l.b16 %v774
        %v1619 = vunpack.c.l.b16 %v775
        %v1620 = vunpack.c.l.b16 %v776
        %v1621 = vunpack.c.l.b16 %v777
        %v1622 = vpack.c.b16 %v1551, %v1550
        %v1623 = vpack.c.b16 %v1553, %v1552
        %v1624 = vpack.c.b16 %v1555, %v1554
        %v1625 = vpack.c.b16 %v1557, %v1556
        %v1626 = vpack.c.b16 %v1559, %v1558
        %v1627 = vpack.c.b16 %v1561, %v1560
        %v1628 = vpack.c.b16 %v1563, %v1562
        %v1629 = vpack.c.b16 %v1565, %v1564
        %v1630 = vpack.c.b16 %v1567, %v1566
        %v1631 = vpack.c.b16 %v1569, %v1568
        %v1632 = vpack.c.b16 %v1571, %v1570
        %v1633 = vpack.c.b16 %v1573, %v1572
        %v1634 = vpack.c.b16 %v1575, %v1574
        %v1635 = vpack.c.b16 %v1577, %v1576
        %v1636 = vpack.c.b16 %v1579, %v1578
        %v1637 = vpack.c.b16 %v1581, %v1580
        %v1638 = vpack.c.b16 %v1583, %v1582
        %v1639 = vpack.c.b16 %v1585, %v1584
        %v1640 = vpack.c.b16 %v1587, %v1586
        %v1641 = vpack.c.b16 %v1589, %v1588
        %v1642 = vpack.c.b16 %v1591, %v1590
        %v1643 = vpack.c.b16 %v1593, %v1592
        %v1644 = vpack.c.b16 %v1595, %v1594
        %v1645 = vpack.c.b16 %v1597, %v1596
        %v1646 = vpack.c.b16 %v1599, %v1598
        %v1647 = vpack.c.b16 %v1601, %v1600
        %v1648 = vpack.c.b16 %v1603, %v1602
        %v1649 = vpack.c.b16 %v1605, %v1604
        %v1650 = vpack.c.b16 %v1607, %v1606
        %v1651 = vpack.c.b16 %v1609, %v1608
        %v1652 = vpack.c.b16 %v1611, %v1610
        %v1653 = vpack.c.b16 %v1613, %v1612
        %v1654 = vpack.c.b16 %v1615, %v1614
        %v1655 = vpack.c.b16 %v1617, %v1616
        %v1656 = vpack.c.b16 %v1619, %v1618
        %v1657 = vpack.c.b16 %v1621, %v1620
        %vm1694 = vcmask 523264
        %v1696 = vsel %vm1694, %v1230, 0
        %v1699 = vsel %vm1694, %v1235, 0
        %v1702 = vsel %vm1694, %v1240, 0
        %v1705 = vsel %vm1694, %v1245, 0
        %v1708 = vsel %vm1694, %v1250, 0
        %v1711 = vsel %vm1694, %v1255, 0
        %v1714 = vsel %vm1694, %v1260, 0
        %v1717 = vsel %vm1694, %v1265, 0
        %v1720 = vsel %vm1694, %v1270, 0
        %v1723 = vsel %vm1694, %v1275, 0
        %v1726 = vsel %vm1694, %v1280, 0
        %v1729 = vsel %vm1694, %v1285, 0
        %v1732 = vsel %vm1694, %v1290, 0
        %v1735 = vsel %vm1694, %v1295, 0
        %v1738 = vsel %vm1694, %v1300, 0
        %v1741 = vsel %vm1694, %v1305, 0
        %v1744 = vsel %vm1694, %v1310, 0
        %v1747 = vsel %vm1694, %v1315, 0
        %v1750 = vsel %vm1694, %v1320, 0
        %v1753 = vsel %vm1694, %v1325, 0
        %v1756 = vsel %vm1694, %v1330, 0
        %v1759 = vsel %vm1694, %v1335, 0
        %v1762 = vsel %vm1694, %v1340, 0
        %v1765 = vsel %vm1694, %v1345, 0
        %v1768 = vsel %vm1694, %v1350, 0
        %v1771 = vsel %vm1694, %v1355, 0
        %v1774 = vsel %vm1694, %v1360, 0
        %v1777 = vsel %vm1694, %v1365, 0
        %1779 = vmatprep.subr.bf16.mxu0 0
        %1780 = vmatpush1.bf16.msra.mxu0 %v1622
        %1781 = vmatprep.subr.bf16.mxu0 0
        %1782 = vmatpush1.bf16.msra.mxu0 %v1623
        %1783 = vmatprep.subr.bf16.mxu0 0
        %1784 = vmatpush1.bf16.msra.mxu0 %v1624
        %1785 = vmatprep.subr.bf16.mxu0 0
        %1786 = vmatpush1.bf16.msra.mxu0 %v1625
        %1787 = vmatprep.subr.bf16.mxu0 0
        %1788 = vmatpush1.bf16.msra.mxu0 %v1626
        %1789 = vmatprep.subr.bf16.mxu0 0
        %1790 = vmatpush1.bf16.msra.mxu0 %v1627
        %1791 = vmatprep.subr.bf16.mxu0 0
        %1792 = vmatpush1.bf16.msra.mxu0 %v1628
        %1793 = vmatprep.subr.bf16.mxu0 0
        %1794 = vmatpush1.bf16.msra.mxu0 %v1629
        %1795 = vmatprep.subr.bf16.mxu0 0
        %1796 = vmatpush1.bf16.msra.mxu0 %v1630
        %1797 = vmatprep.subr.bf16.mxu0 0
        %1798 = vmatpush1.bf16.msra.mxu0 %v1631
        %1799 = vmatprep.subr.bf16.mxu0 0
        %1800 = vmatpush1.bf16.msra.mxu0 %v1632
        %1801 = vmatprep.subr.bf16.mxu0 0
        %1802 = vmatpush1.bf16.msra.mxu0 %v1633
        %1803 = vmatprep.subr.bf16.mxu0 0
        %1804 = vmatpush1.bf16.msra.mxu0 %v1634
        %1805 = vmatprep.subr.bf16.mxu0 0
        %1806 = vmatpush1.bf16.msra.mxu0 %v1635
        %1807 = vmatprep.subr.bf16.mxu0 0
        %1808 = vmatpush1.bf16.msra.mxu0 %v1636
        %1809 = vmatprep.subr.bf16.mxu0 0
        %1810 = vmatpush1.bf16.msra.mxu0 %v1637
        %1811 = vmatprep.mubr.bf16.mxu0 %v1227
        %1812 = vmatmul.mubr.bf16.gmra.mrb[0].mxu0 %v1226
        %v1813 = vpop.f32.mrb[0].mxu0
        %v1814 = vadd.f32 0.0, %v1813
        %v1815 = vpop.f32.mrb[0].mxu0
        %v1816 = vpop.f32.mrb[0].mxu0
        %v1817 = vadd.f32 0.0, %v1816
        %v1818 = vpop.f32.mrb[0].mxu0
        %1819 = vmatprep.mubr.bf16.mxu0 %v1232
        %1820 = vmatmul.mubr.bf16.gmra.mrb[0].mxu0 %v1231
        %v1821 = vpop.f32.mrb[0].mxu0
        %v1822 = vadd.f32 0.0, %v1821
        %v1823 = vpop.f32.mrb[0].mxu0
        %v1824 = vpop.f32.mrb[0].mxu0
        %v1825 = vadd.f32 0.0, %v1824
        %v1826 = vpop.f32.mrb[0].mxu0
        %1827 = vmatprep.mubr.bf16.mxu0 %v1237
        %1828 = vmatmul.mubr.bf16.gmra.mrb[0].mxu0 %v1236
        %v1829 = vpop.f32.mrb[0].mxu0
        %v1830 = vadd.f32 0.0, %v1829
        %v1831 = vpop.f32.mrb[0].mxu0
        %v1832 = vpop.f32.mrb[0].mxu0
        %v1833 = vadd.f32 0.0, %v1832
        %v1834 = vpop.f32.mrb[0].mxu0
        %1835 = vmatprep.mubr.bf16.mxu0 %v1242
        %1836 = vmatmul.mubr.bf16.gmra.mrb[0].mxu0 %v1241
        %v1837 = vpop.f32.mrb[0].mxu0
        %v1838 = vadd.f32 0.0, %v1837
        %v1839 = vpop.f32.mrb[0].mxu0
        %v1840 = vpop.f32.mrb[0].mxu0
        %v1841 = vadd.f32 0.0, %v1840
        %v1842 = vpop.f32.mrb[0].mxu0
        %1843 = vmatprep.mubr.bf16.mxu0 %v1247
        %1844 = vmatmul.mubr.bf16.gmra.mrb[0].mxu0 %v1246
        %v1845 = vpop.f32.mrb[0].mxu0
        %v1846 = vadd.f32 0.0, %v1845
        %v1847 = vpop.f32.mrb[0].mxu0
        %v1848 = vpop.f32.mrb[0].mxu0
        %v1849 = vadd.f32 0.0, %v1848
        %v1850 = vpop.f32.mrb[0].mxu0
        %1851 = vmatprep.mubr.bf16.mxu0 %v1252
        %1852 = vmatmul.mubr.bf16.gmra.mrb[0].mxu0 %v1251
        %v1853 = vpop.f32.mrb[0].mxu0
        %v1854 = vadd.f32 0.0, %v1853
        %v1855 = vpop.f32.mrb[0].mxu0
        %v1856 = vpop.f32.mrb[0].mxu0
        %v1857 = vadd.f32 0.0, %v1856
        %v1858 = vpop.f32.mrb[0].mxu0
        %1859 = vmatprep.mubr.bf16.mxu0 %v1257
        %1860 = vmatmul.mubr.bf16.gmra.mrb[0].mxu0 %v1256
        %v1861 = vpop.f32.mrb[0].mxu0
        %v1862 = vadd.f32 0.0, %v1861
        %v1863 = vpop.f32.mrb[0].mxu0
        %v1864 = vpop.f32.mrb[0].mxu0
        %v1865 = vadd.f32 0.0, %v1864
        %v1866 = vpop.f32.mrb[0].mxu0
        %1867 = vmatprep.mubr.bf16.mxu0 %v1262
        %1868 = vmatmul.mubr.bf16.gmra.mrb[0].mxu0 %v1261
        %v1869 = vpop.f32.mrb[0].mxu0
        %v1870 = vadd.f32 0.0, %v1869
        %v1871 = vpop.f32.mrb[0].mxu0
        %v1872 = vpop.f32.mrb[0].mxu0
        %v1873 = vadd.f32 0.0, %v1872
        %v1874 = vpop.f32.mrb[0].mxu0
        %1875 = vmatprep.mubr.bf16.mxu0 %v1267
        %1876 = vmatmul.mubr.bf16.gmra.mrb[0].mxu0 %v1266
        %v1877 = vpop.f32.mrb[0].mxu0
        %v1878 = vadd.f32 0.0, %v1877
        %v1879 = vpop.f32.mrb[0].mxu0
        %v1880 = vpop.f32.mrb[0].mxu0
        %v1881 = vadd.f32 0.0, %v1880
        %v1882 = vpop.f32.mrb[0].mxu0
        %1883 = vmatprep.mubr.bf16.mxu0 %v1272
        %1884 = vmatmul.mubr.bf16.gmra.mrb[0].mxu0 %v1271
        %v1885 = vpop.f32.mrb[0].mxu0
        %v1886 = vadd.f32 0.0, %v1885
        %v1887 = vpop.f32.mrb[0].mxu0
        %v1888 = vpop.f32.mrb[0].mxu0
        %v1889 = vadd.f32 0.0, %v1888
        %v1890 = vpop.f32.mrb[0].mxu0
        %1891 = vmatprep.mubr.bf16.mxu0 %v1277
        %1892 = vmatmul.mubr.bf16.gmra.mrb[0].mxu0 %v1276
        %v1893 = vpop.f32.mrb[0].mxu0
        %v1894 = vadd.f32 0.0, %v1893
        %v1895 = vpop.f32.mrb[0].mxu0
        %v1896 = vpop.f32.mrb[0].mxu0
        %v1897 = vadd.f32 0.0, %v1896
        %v1898 = vpop.f32.mrb[0].mxu0
        %1899 = vmatprep.mubr.bf16.mxu0 %v1282
        %1900 = vmatmul.mubr.bf16.gmra.mrb[0].mxu0 %v1281
        %v1901 = vpop.f32.mrb[0].mxu0
        %v1902 = vadd.f32 0.0, %v1901
        %v1903 = vpop.f32.mrb[0].mxu0
        %v1904 = vpop.f32.mrb[0].mxu0
        %v1905 = vadd.f32 0.0, %v1904
        %v1906 = vpop.f32.mrb[0].mxu0
        %1907 = vmatprep.mubr.bf16.mxu0 %v1287
        %1908 = vmatmul.mubr.bf16.gmra.mrb[0].mxu0 %v1286
        %v1909 = vpop.f32.mrb[0].mxu0
        %v1910 = vadd.f32 0.0, %v1909
        %v1911 = vpop.f32.mrb[0].mxu0
        %v1912 = vpop.f32.mrb[0].mxu0
        %v1913 = vadd.f32 0.0, %v1912
        %v1914 = vpop.f32.mrb[0].mxu0
        %1915 = vmatprep.mubr.bf16.mxu0 %v1292
        %1916 = vmatmul.mubr.bf16.gmra.mrb[0].mxu0 %v1291
        %v1917 = vpop.f32.mrb[0].mxu0
        %v1918 = vadd.f32 0.0, %v1917
        %v1919 = vpop.f32.mrb[0].mxu0
        %v1920 = vpop.f32.mrb[0].mxu0
        %v1921 = vadd.f32 0.0, %v1920
        %v1922 = vpop.f32.mrb[0].mxu0
        %1923 = vmatprep.mubr.bf16.mxu0 %v1297
        %1924 = vmatmul.mubr.bf16.gmra.mrb[0].mxu0 %v1296
        %v1925 = vpop.f32.mrb[0].mxu0
        %v1926 = vadd.f32 0.0, %v1925
        %v1927 = vpop.f32.mrb[0].mxu0
        %v1928 = vpop.f32.mrb[0].mxu0
        %v1929 = vadd.f32 0.0, %v1928
        %v1930 = vpop.f32.mrb[0].mxu0
        %1931 = vmatprep.mubr.bf16.mxu0 %v1302
        %1932 = vmatmul.mubr.bf16.gmra.mrb[0].mxu0 %v1301
        %v1933 = vpop.f32.mrb[0].mxu0
        %v1934 = vadd.f32 0.0, %v1933
        %v1935 = vpop.f32.mrb[0].mxu0
        %v1936 = vpop.f32.mrb[0].mxu0
        %v1937 = vadd.f32 0.0, %v1936
        %v1938 = vpop.f32.mrb[0].mxu0
        %1939 = vmatprep.mubr.bf16.mxu0 %v1307
        %1940 = vmatmul.mubr.bf16.gmra.mrb[0].mxu0 %v1306
        %v1941 = vpop.f32.mrb[0].mxu0
        %v1942 = vadd.f32 0.0, %v1941
        %v1943 = vpop.f32.mrb[0].mxu0
        %v1944 = vpop.f32.mrb[0].mxu0
        %v1945 = vadd.f32 0.0, %v1944
        %v1946 = vpop.f32.mrb[0].mxu0
        %1947 = vmatprep.mubr.bf16.mxu0 %v1312
        %1948 = vmatmul.mubr.bf16.gmra.mrb[0].mxu0 %v1311
        %v1949 = vpop.f32.mrb[0].mxu0
        %v1950 = vadd.f32 0.0, %v1949
        %v1951 = vpop.f32.mrb[0].mxu0
        %v1952 = vpop.f32.mrb[0].mxu0
        %v1953 = vadd.f32 0.0, %v1952
        %v1954 = vpop.f32.mrb[0].mxu0
        %1955 = vmatprep.mubr.bf16.mxu0 %v1317
        %1956 = vmatmul.mubr.bf16.gmra.mrb[0].mxu0 %v1316
        %v1957 = vpop.f32.mrb[0].mxu0
        %v1958 = vadd.f32 0.0, %v1957
        %v1959 = vpop.f32.mrb[0].mxu0
        %v1960 = vpop.f32.mrb[0].mxu0
        %v1961 = vadd.f32 0.0, %v1960
        %v1962 = vpop.f32.mrb[0].mxu0
        %1963 = vmatprep.mubr.bf16.mxu0 %v1322
        %1964 = vmatmul.mubr.bf16.gmra.mrb[0].mxu0 %v1321
        %v1965 = vpop.f32.mrb[0].mxu0
        %v1966 = vadd.f32 0.0, %v1965
        %v1967 = vpop.f32.mrb[0].mxu0
        %v1968 = vpop.f32.mrb[0].mxu0
        %v1969 = vadd.f32 0.0, %v1968
        %v1970 = vpop.f32.mrb[0].mxu0
        %1971 = vmatprep.mubr.bf16.mxu0 %v1327
        %1972 = vmatmul.mubr.bf16.gmra.mrb[0].mxu0 %v1326
        %v1973 = vpop.f32.mrb[0].mxu0
        %v1974 = vadd.f32 0.0, %v1973
        %v1975 = vpop.f32.mrb[0].mxu0
        %v1976 = vpop.f32.mrb[0].mxu0
        %v1977 = vadd.f32 0.0, %v1976
        %v1978 = vpop.f32.mrb[0].mxu0
        %1979 = vmatprep.mubr.bf16.mxu0 %v1332
        %1980 = vmatmul.mubr.bf16.gmra.mrb[0].mxu0 %v1331
        %v1981 = vpop.f32.mrb[0].mxu0
        %v1982 = vadd.f32 0.0, %v1981
        %v1983 = vpop.f32.mrb[0].mxu0
        %v1984 = vpop.f32.mrb[0].mxu0
        %v1985 = vadd.f32 0.0, %v1984
        %v1986 = vpop.f32.mrb[0].mxu0
        %1987 = vmatprep.mubr.bf16.mxu0 %v1337
        %1988 = vmatmul.mubr.bf16.gmra.mrb[0].mxu0 %v1336
        %v1989 = vpop.f32.mrb[0].mxu0
        %v1990 = vadd.f32 0.0, %v1989
        %v1991 = vpop.f32.mrb[0].mxu0
        %v1992 = vpop.f32.mrb[0].mxu0
        %v1993 = vadd.f32 0.0, %v1992
        %v1994 = vpop.f32.mrb[0].mxu0
        %1995 = vmatprep.mubr.bf16.mxu0 %v1342
        %1996 = vmatmul.mubr.bf16.gmra.mrb[0].mxu0 %v1341
        %v1997 = vpop.f32.mrb[0].mxu0
        %v1998 = vadd.f32 0.0, %v1997
        %v1999 = vpop.f32.mrb[0].mxu0
        %v2000 = vpop.f32.mrb[0].mxu0
        %v2001 = vadd.f32 0.0, %v2000
        %v2002 = vpop.f32.mrb[0].mxu0
        %2003 = vmatprep.mubr.bf16.mxu0 %v1347
        %2004 = vmatmul.mubr.bf16.gmra.mrb[0].mxu0 %v1346
        %v2005 = vpop.f32.mrb[0].mxu0
        %v2006 = vadd.f32 0.0, %v2005
        %v2007 = vpop.f32.mrb[0].mxu0
        %v2008 = vpop.f32.mrb[0].mxu0
        %v2009 = vadd.f32 0.0, %v2008
        %v2010 = vpop.f32.mrb[0].mxu0
        %2011 = vmatprep.mubr.bf16.mxu0 %v1352
        %2012 = vmatmul.mubr.bf16.gmra.mrb[0].mxu0 %v1351
        %v2013 = vpop.f32.mrb[0].mxu0
        %v2014 = vadd.f32 0.0, %v2013
        %v2015 = vpop.f32.mrb[0].mxu0
        %v2016 = vpop.f32.mrb[0].mxu0
        %v2017 = vadd.f32 0.0, %v2016
        %v2018 = vpop.f32.mrb[0].mxu0
        %2019 = vmatprep.mubr.bf16.mxu0 %v1357
        %2020 = vmatmul.mubr.bf16.gmra.mrb[0].mxu0 %v1356
        %v2021 = vpop.f32.mrb[0].mxu0
        %v2022 = vadd.f32 0.0, %v2021
        %v2023 = vpop.f32.mrb[0].mxu0
        %v2024 = vpop.f32.mrb[0].mxu0
        %v2025 = vadd.f32 0.0, %v2024
        %v2026 = vpop.f32.mrb[0].mxu0
        %2027 = vmatprep.mubr.bf16.mxu0 %v1362
        %2028 = vmatmul.mubr.bf16.gmra.mrb[0].mxu0 %v1361
        %v2029 = vpop.f32.mrb[0].mxu0
        %v2030 = vadd.f32 0.0, %v2029
        %v2031 = vpop.f32.mrb[0].mxu0
        %v2032 = vpop.f32.mrb[0].mxu0
        %v2033 = vadd.f32 0.0, %v2032
        %v2034 = vpop.f32.mrb[0].mxu0
        %2035 = vdwg.mxu0
        %2036 = vmatprep.subr.bf16.mxu0 0
        %2037 = vmatpush1.bf16.msra.mxu0 %v1638
        %2038 = vmatprep.subr.bf16.mxu0 0
        %2039 = vmatpush1.bf16.msra.mxu0 %v1639
        %2040 = vmatprep.subr.bf16.mxu0 0
        %2041 = vmatpush1.bf16.msra.mxu0 %v1640
        %2042 = vmatprep.subr.bf16.mxu0 0
        %2043 = vmatpush1.bf16.msra.mxu0 %v1641
        %2044 = vmatprep.subr.bf16.mxu0 0
        %2045 = vmatpush1.bf16.msra.mxu0 %v1642
        %2046 = vmatprep.subr.bf16.mxu0 0
        %2047 = vmatpush1.bf16.msra.mxu0 %v1643
        %2048 = vmatprep.subr.bf16.mxu0 0
        %2049 = vmatpush1.bf16.msra.mxu0 %v1644
        %2050 = vmatprep.subr.bf16.mxu0 0
        %2051 = vmatpush1.bf16.msra.mxu0 %v1645
        %2052 = vmatprep.subr.bf16.mxu0 0
        %2053 = vmatpush1.bf16.msra.mxu0 %v1646
        %2054 = vmatprep.subr.bf16.mxu0 0
        %2055 = vmatpush1.bf16.msra.mxu0 %v1647
        %2056 = vmatprep.subr.bf16.mxu0 0
        %2057 = vmatpush1.bf16.msra.mxu0 %v1648
        %2058 = vmatprep.subr.bf16.mxu0 0
        %2059 = vmatpush1.bf16.msra.mxu0 %v1649
        %2060 = vmatprep.subr.bf16.mxu0 0
        %2061 = vmatpush1.bf16.msra.mxu0 %v1650
        %2062 = vmatprep.subr.bf16.mxu0 0
        %2063 = vmatpush1.bf16.msra.mxu0 %v1651
        %2064 = vmatprep.subr.bf16.mxu0 0
        %2065 = vmatpush1.bf16.msra.mxu0 %v1652
        %2066 = vmatprep.subr.bf16.mxu0 0
        %2067 = vmatpush1.bf16.msra.mxu0 %v1653
        %2068 = vmatprep.mubr.bf16.mxu0 %v1229
        %2069 = vmatmul.mubr.bf16.gmra.mrb[0].mxu0 %v1228
        %v2070 = vpop.f32.mrb[0].mxu0
        %v2071 = vadd.f32 %v1814, %v2070
        %v2072 = vpop.f32.mrb[0].mxu0
        %v2073 = vpop.f32.mrb[0].mxu0
        %v2074 = vadd.f32 %v1817, %v2073
        %v2075 = vpop.f32.mrb[0].mxu0
        %2076 = vmatprep.mubr.bf16.mxu0 %v1234
        %2077 = vmatmul.mubr.bf16.gmra.mrb[0].mxu0 %v1233
        %v2078 = vpop.f32.mrb[0].mxu0
        %v2079 = vadd.f32 %v1822, %v2078
        %v2080 = vpop.f32.mrb[0].mxu0
        %v2081 = vpop.f32.mrb[0].mxu0
        %v2082 = vadd.f32 %v1825, %v2081
        %v2083 = vpop.f32.mrb[0].mxu0
        %2084 = vmatprep.mubr.bf16.mxu0 %v1239
        %2085 = vmatmul.mubr.bf16.gmra.mrb[0].mxu0 %v1238
        %v2086 = vpop.f32.mrb[0].mxu0
        %v2087 = vadd.f32 %v1830, %v2086
        %v2088 = vpop.f32.mrb[0].mxu0
        %v2089 = vpop.f32.mrb[0].mxu0
        %v2090 = vadd.f32 %v1833, %v2089
        %v2091 = vpop.f32.mrb[0].mxu0
        %2092 = vmatprep.mubr.bf16.mxu0 %v1244
        %2093 = vmatmul.mubr.bf16.gmra.mrb[0].mxu0 %v1243
        %v2094 = vpop.f32.mrb[0].mxu0
        %v2095 = vadd.f32 %v1838, %v2094
        %v2096 = vpop.f32.mrb[0].mxu0
        %v2097 = vpop.f32.mrb[0].mxu0
        %v2098 = vadd.f32 %v1841, %v2097
        %v2099 = vpop.f32.mrb[0].mxu0
        %2100 = vmatprep.mubr.bf16.mxu0 %v1249
        %2101 = vmatmul.mubr.bf16.gmra.mrb[0].mxu0 %v1248
        %v2102 = vpop.f32.mrb[0].mxu0
        %v2103 = vadd.f32 %v1846, %v2102
        %v2104 = vpop.f32.mrb[0].mxu0
        %v2105 = vpop.f32.mrb[0].mxu0
        %v2106 = vadd.f32 %v1849, %v2105
        %v2107 = vpop.f32.mrb[0].mxu0
        %2108 = vmatprep.mubr.bf16.mxu0 %v1254
        %2109 = vmatmul.mubr.bf16.gmra.mrb[0].mxu0 %v1253
        %v2110 = vpop.f32.mrb[0].mxu0
        %v2111 = vadd.f32 %v1854, %v2110
        %v2112 = vpop.f32.mrb[0].mxu0
        %v2113 = vpop.f32.mrb[0].mxu0
        %v2114 = vadd.f32 %v1857, %v2113
        %v2115 = vpop.f32.mrb[0].mxu0
        %2116 = vmatprep.mubr.bf16.mxu0 %v1259
        %2117 = vmatmul.mubr.bf16.gmra.mrb[0].mxu0 %v1258
        %v2118 = vpop.f32.mrb[0].mxu0
        %v2119 = vadd.f32 %v1862, %v2118
        %v2120 = vpop.f32.mrb[0].mxu0
        %v2121 = vpop.f32.mrb[0].mxu0
        %v2122 = vadd.f32 %v1865, %v2121
        %v2123 = vpop.f32.mrb[0].mxu0
        %2124 = vmatprep.mubr.bf16.mxu0 %v1264
        %2125 = vmatmul.mubr.bf16.gmra.mrb[0].mxu0 %v1263
        %v2126 = vpop.f32.mrb[0].mxu0
        %v2127 = vadd.f32 %v1870, %v2126
        %v2128 = vpop.f32.mrb[0].mxu0
        %v2129 = vpop.f32.mrb[0].mxu0
        %v2130 = vadd.f32 %v1873, %v2129
        %v2131 = vpop.f32.mrb[0].mxu0
        %2132 = vmatprep.mubr.bf16.mxu0 %v1269
        %2133 = vmatmul.mubr.bf16.gmra.mrb[0].mxu0 %v1268
        %v2134 = vpop.f32.mrb[0].mxu0
        %v2135 = vadd.f32 %v1878, %v2134
        %v2136 = vpop.f32.mrb[0].mxu0
        %v2137 = vpop.f32.mrb[0].mxu0
        %v2138 = vadd.f32 %v1881, %v2137
        %v2139 = vpop.f32.mrb[0].mxu0
        %2140 = vmatprep.mubr.bf16.mxu0 %v1274
        %2141 = vmatmul.mubr.bf16.gmra.mrb[0].mxu0 %v1273
        %v2142 = vpop.f32.mrb[0].mxu0
        %v2143 = vadd.f32 %v1886, %v2142
        %v2144 = vpop.f32.mrb[0].mxu0
        %v2145 = vpop.f32.mrb[0].mxu0
        %v2146 = vadd.f32 %v1889, %v2145
        %v2147 = vpop.f32.mrb[0].mxu0
        %2148 = vmatprep.mubr.bf16.mxu0 %v1279
        %2149 = vmatmul.mubr.bf16.gmra.mrb[0].mxu0 %v1278
        %v2150 = vpop.f32.mrb[0].mxu0
        %v2151 = vadd.f32 %v1894, %v2150
        %v2152 = vpop.f32.mrb[0].mxu0
        %v2153 = vpop.f32.mrb[0].mxu0
        %v2154 = vadd.f32 %v1897, %v2153
        %v2155 = vpop.f32.mrb[0].mxu0
        %2156 = vmatprep.mubr.bf16.mxu0 %v1284
        %2157 = vmatmul.mubr.bf16.gmra.mrb[0].mxu0 %v1283
        %v2158 = vpop.f32.mrb[0].mxu0
        %v2159 = vadd.f32 %v1902, %v2158
        %v2160 = vpop.f32.mrb[0].mxu0
        %v2161 = vpop.f32.mrb[0].mxu0
        %v2162 = vadd.f32 %v1905, %v2161
        %v2163 = vpop.f32.mrb[0].mxu0
        %2164 = vmatprep.mubr.bf16.mxu0 %v1289
        %2165 = vmatmul.mubr.bf16.gmra.mrb[0].mxu0 %v1288
        %v2166 = vpop.f32.mrb[0].mxu0
        %v2167 = vadd.f32 %v1910, %v2166
        %v2168 = vpop.f32.mrb[0].mxu0
        %v2169 = vpop.f32.mrb[0].mxu0
        %v2170 = vadd.f32 %v1913, %v2169
        %v2171 = vpop.f32.mrb[0].mxu0
        %2172 = vmatprep.mubr.bf16.mxu0 %v1294
        %2173 = vmatmul.mubr.bf16.gmra.mrb[0].mxu0 %v1293
        %v2174 = vpop.f32.mrb[0].mxu0
        %v2175 = vadd.f32 %v1918, %v2174
        %v2176 = vpop.f32.mrb[0].mxu0
        %v2177 = vpop.f32.mrb[0].mxu0
        %v2178 = vadd.f32 %v1921, %v2177
        %v2179 = vpop.f32.mrb[0].mxu0
        %2180 = vmatprep.mubr.bf16.mxu0 %v1299
        %2181 = vmatmul.mubr.bf16.gmra.mrb[0].mxu0 %v1298
        %v2182 = vpop.f32.mrb[0].mxu0
        %v2183 = vadd.f32 %v1926, %v2182
        %v2184 = vpop.f32.mrb[0].mxu0
        %v2185 = vpop.f32.mrb[0].mxu0
        %v2186 = vadd.f32 %v1929, %v2185
        %v2187 = vpop.f32.mrb[0].mxu0
        %2188 = vmatprep.mubr.bf16.mxu0 %v1304
        %2189 = vmatmul.mubr.bf16.gmra.mrb[0].mxu0 %v1303
        %v2190 = vpop.f32.mrb[0].mxu0
        %v2191 = vadd.f32 %v1934, %v2190
        %v2192 = vpop.f32.mrb[0].mxu0
        %v2193 = vpop.f32.mrb[0].mxu0
        %v2194 = vadd.f32 %v1937, %v2193
        %v2195 = vpop.f32.mrb[0].mxu0
        %2196 = vmatprep.mubr.bf16.mxu0 %v1309
        %2197 = vmatmul.mubr.bf16.gmra.mrb[0].mxu0 %v1308
        %v2198 = vpop.f32.mrb[0].mxu0
        %v2199 = vadd.f32 %v1942, %v2198
        %v2200 = vpop.f32.mrb[0].mxu0
        %v2201 = vpop.f32.mrb[0].mxu0
        %v2202 = vadd.f32 %v1945, %v2201
        %v2203 = vpop.f32.mrb[0].mxu0
        %2204 = vmatprep.mubr.bf16.mxu0 %v1314
        %2205 = vmatmul.mubr.bf16.gmra.mrb[0].mxu0 %v1313
        %v2206 = vpop.f32.mrb[0].mxu0
        %v2207 = vadd.f32 %v1950, %v2206
        %v2208 = vpop.f32.mrb[0].mxu0
        %v2209 = vpop.f32.mrb[0].mxu0
        %v2210 = vadd.f32 %v1953, %v2209
        %v2211 = vpop.f32.mrb[0].mxu0
        %2212 = vmatprep.mubr.bf16.mxu0 %v1319
        %2213 = vmatmul.mubr.bf16.gmra.mrb[0].mxu0 %v1318
        %v2214 = vpop.f32.mrb[0].mxu0
        %v2215 = vadd.f32 %v1958, %v2214
        %v2216 = vpop.f32.mrb[0].mxu0
        %v2217 = vpop.f32.mrb[0].mxu0
        %v2218 = vadd.f32 %v1961, %v2217
        %v2219 = vpop.f32.mrb[0].mxu0
        %2220 = vmatprep.mubr.bf16.mxu0 %v1324
        %2221 = vmatmul.mubr.bf16.gmra.mrb[0].mxu0 %v1323
        %v2222 = vpop.f32.mrb[0].mxu0
        %v2223 = vadd.f32 %v1966, %v2222
        %v2224 = vpop.f32.mrb[0].mxu0
        %v2225 = vpop.f32.mrb[0].mxu0
        %v2226 = vadd.f32 %v1969, %v2225
        %v2227 = vpop.f32.mrb[0].mxu0
        %2228 = vmatprep.mubr.bf16.mxu0 %v1329
        %2229 = vmatmul.mubr.bf16.gmra.mrb[0].mxu0 %v1328
        %v2230 = vpop.f32.mrb[0].mxu0
        %v2231 = vadd.f32 %v1974, %v2230
        %v2232 = vpop.f32.mrb[0].mxu0
        %v2233 = vpop.f32.mrb[0].mxu0
        %v2234 = vadd.f32 %v1977, %v2233
        %v2235 = vpop.f32.mrb[0].mxu0
        %2236 = vmatprep.mubr.bf16.mxu0 %v1334
        %2237 = vmatmul.mubr.bf16.gmra.mrb[0].mxu0 %v1333
        %v2238 = vpop.f32.mrb[0].mxu0
        %v2239 = vadd.f32 %v1982, %v2238
        %v2240 = vpop.f32.mrb[0].mxu0
        %v2241 = vpop.f32.mrb[0].mxu0
        %v2242 = vadd.f32 %v1985, %v2241
        %v2243 = vpop.f32.mrb[0].mxu0
        %2244 = vmatprep.mubr.bf16.mxu0 %v1339
        %2245 = vmatmul.mubr.bf16.gmra.mrb[0].mxu0 %v1338
        %v2246 = vpop.f32.mrb[0].mxu0
        %v2247 = vadd.f32 %v1990, %v2246
        %v2248 = vpop.f32.mrb[0].mxu0
        %v2249 = vpop.f32.mrb[0].mxu0
        %v2250 = vadd.f32 %v1993, %v2249
        %v2251 = vpop.f32.mrb[0].mxu0
        %2252 = vmatprep.mubr.bf16.mxu0 %v1344
        %2253 = vmatmul.mubr.bf16.gmra.mrb[0].mxu0 %v1343
        %v2254 = vpop.f32.mrb[0].mxu0
        %v2255 = vadd.f32 %v1998, %v2254
        %v2256 = vpop.f32.mrb[0].mxu0
        %v2257 = vpop.f32.mrb[0].mxu0
        %v2258 = vadd.f32 %v2001, %v2257
        %v2259 = vpop.f32.mrb[0].mxu0
        %2260 = vmatprep.mubr.bf16.mxu0 %v1349
        %2261 = vmatmul.mubr.bf16.gmra.mrb[0].mxu0 %v1348
        %v2262 = vpop.f32.mrb[0].mxu0
        %v2263 = vadd.f32 %v2006, %v2262
        %v2264 = vpop.f32.mrb[0].mxu0
        %v2265 = vpop.f32.mrb[0].mxu0
        %v2266 = vadd.f32 %v2009, %v2265
        %v2267 = vpop.f32.mrb[0].mxu0
        %2268 = vmatprep.mubr.bf16.mxu0 %v1354
        %2269 = vmatmul.mubr.bf16.gmra.mrb[0].mxu0 %v1353
        %v2270 = vpop.f32.mrb[0].mxu0
        %v2271 = vadd.f32 %v2014, %v2270
        %v2272 = vpop.f32.mrb[0].mxu0
        %v2273 = vpop.f32.mrb[0].mxu0
        %v2274 = vadd.f32 %v2017, %v2273
        %v2275 = vpop.f32.mrb[0].mxu0
        %2276 = vmatprep.mubr.bf16.mxu0 %v1359
        %2277 = vmatmul.mubr.bf16.gmra.mrb[0].mxu0 %v1358
        %v2278 = vpop.f32.mrb[0].mxu0
        %v2279 = vadd.f32 %v2022, %v2278
        %v2280 = vpop.f32.mrb[0].mxu0
        %v2281 = vpop.f32.mrb[0].mxu0
        %v2282 = vadd.f32 %v2025, %v2281
        %v2283 = vpop.f32.mrb[0].mxu0
        %2284 = vmatprep.mubr.bf16.mxu0 %v1364
        %2285 = vmatmul.mubr.bf16.gmra.mrb[0].mxu0 %v1363
        %v2286 = vpop.f32.mrb[0].mxu0
        %v2287 = vadd.f32 %v2030, %v2286
        %v2288 = vpop.f32.mrb[0].mxu0
        %v2289 = vpop.f32.mrb[0].mxu0
        %v2290 = vadd.f32 %v2033, %v2289
        %v2291 = vpop.f32.mrb[0].mxu0
        %2292 = vdwg.mxu0
        %2293 = vmatprep.subr.bf16.mxu0 0
        %2294 = vmatpush1.bf16.msra.mxu0 %v1654
        %2295 = vmatprep.subr.bf16.mxu0 0
        %2296 = vmatpush1.bf16.msra.mxu0 %v1655
        %2297 = vmatprep.subr.bf16.mxu0 0
        %2298 = vmatpush1.bf16.msra.mxu0 %v1656
        %2299 = vmatprep.subr.bf16.mxu0 0
        %2300 = vmatpush1.bf16.msra.mxu0 %v1657
        %2301 = vmatprep.subr.bf16.mxu0 0
        %2302 = vmatpush1.bf16.msra.mxu0 0
        %2303 = vmatprep.subr.bf16.mxu0 0
        %2304 = vmatpush1.bf16.msra.mxu0 0
        %2305 = vmatprep.subr.bf16.mxu0 0
        %2306 = vmatpush1.bf16.msra.mxu0 0
        %2307 = vmatprep.subr.bf16.mxu0 0
        %2308 = vmatpush1.bf16.msra.mxu0 0
        %2309 = vmatprep.subr.bf16.mxu0 0
        %2310 = vmatpush1.bf16.msra.mxu0 0
        %2311 = vmatprep.subr.bf16.mxu0 0
        %2312 = vmatpush1.bf16.msra.mxu0 0
        %2313 = vmatprep.subr.bf16.mxu0 0
        %2314 = vmatpush1.bf16.msra.mxu0 0
        %2315 = vmatprep.subr.bf16.mxu0 0
        %2316 = vmatpush1.bf16.msra.mxu0 0
        %2317 = vmatprep.subr.bf16.mxu0 0
        %2318 = vmatpush1.bf16.msra.mxu0 0
        %2319 = vmatprep.subr.bf16.mxu0 0
        %2320 = vmatpush1.bf16.msra.mxu0 0
        %2321 = vmatprep.subr.bf16.mxu0 0
        %2322 = vmatpush1.bf16.msra.mxu0 0
        %2323 = vmatprep.subr.bf16.mxu0 0
        %2324 = vmatpush1.bf16.msra.mxu0 0
        %2325 = vmatprep.mubr.bf16.mxu0 0
        %2326 = vmatmul.mubr.bf16.gmra.mrb[0].mxu0 %v1696
        %v2327 = vpop.f32.mrb[0].mxu0
        %v2328 = vadd.f32 %v2071, %v2327
        %v2329 = vpop.f32.mrb[0].mxu0
        %v2330 = vpop.f32.mrb[0].mxu0
        %v2331 = vadd.f32 %v2074, %v2330
        %v2332 = vpop.f32.mrb[0].mxu0
        %2333 = vmatprep.mubr.bf16.mxu0 0
        %2334 = vmatmul.mubr.bf16.gmra.mrb[0].mxu0 %v1699
        %v2335 = vpop.f32.mrb[0].mxu0
        %v2336 = vadd.f32 %v2079, %v2335
        %v2337 = vpop.f32.mrb[0].mxu0
        %v2338 = vpop.f32.mrb[0].mxu0
        %v2339 = vadd.f32 %v2082, %v2338
        %v2340 = vpop.f32.mrb[0].mxu0
        %2341 = vmatprep.mubr.bf16.mxu0 0
        %2342 = vmatmul.mubr.bf16.gmra.mrb[0].mxu0 %v1702
        %v2343 = vpop.f32.mrb[0].mxu0
        %v2344 = vadd.f32 %v2087, %v2343
        %v2345 = vpop.f32.mrb[0].mxu0
        %v2346 = vpop.f32.mrb[0].mxu0
        %v2347 = vadd.f32 %v2090, %v2346
        %v2348 = vpop.f32.mrb[0].mxu0
        %2349 = vmatprep.mubr.bf16.mxu0 0
        %2350 = vmatmul.mubr.bf16.gmra.mrb[0].mxu0 %v1705
        %v2351 = vpop.f32.mrb[0].mxu0
        %v2352 = vadd.f32 %v2095, %v2351
        %v2353 = vpop.f32.mrb[0].mxu0
        %v2354 = vpop.f32.mrb[0].mxu0
        %v2355 = vadd.f32 %v2098, %v2354
        %v2356 = vpop.f32.mrb[0].mxu0
        %2357 = vmatprep.mubr.bf16.mxu0 0
        %2358 = vmatmul.mubr.bf16.gmra.mrb[0].mxu0 %v1708
        %v2359 = vpop.f32.mrb[0].mxu0
        %v2360 = vadd.f32 %v2103, %v2359
        %v2361 = vpop.f32.mrb[0].mxu0
        %v2362 = vpop.f32.mrb[0].mxu0
        %v2363 = vadd.f32 %v2106, %v2362
        %v2364 = vpop.f32.mrb[0].mxu0
        %2365 = vmatprep.mubr.bf16.mxu0 0
        %2366 = vmatmul.mubr.bf16.gmra.mrb[0].mxu0 %v1711
        %v2367 = vpop.f32.mrb[0].mxu0
        %v2368 = vadd.f32 %v2111, %v2367
        %v2369 = vpop.f32.mrb[0].mxu0
        %v2370 = vpop.f32.mrb[0].mxu0
        %v2371 = vadd.f32 %v2114, %v2370
        %v2372 = vpop.f32.mrb[0].mxu0
        %2373 = vmatprep.mubr.bf16.mxu0 0
        %2374 = vmatmul.mubr.bf16.gmra.mrb[0].mxu0 %v1714
        %v2375 = vpop.f32.mrb[0].mxu0
        %v2376 = vadd.f32 %v2119, %v2375
        %v2377 = vpop.f32.mrb[0].mxu0
        %v2378 = vpop.f32.mrb[0].mxu0
        %v2379 = vadd.f32 %v2122, %v2378
        %v2380 = vpop.f32.mrb[0].mxu0
        %2381 = vmatprep.mubr.bf16.mxu0 0
        %2382 = vmatmul.mubr.bf16.gmra.mrb[0].mxu0 %v1717
        %v2383 = vpop.f32.mrb[0].mxu0
        %v2384 = vadd.f32 %v2127, %v2383
        %v2385 = vpop.f32.mrb[0].mxu0
        %v2386 = vpop.f32.mrb[0].mxu0
        %v2387 = vadd.f32 %v2130, %v2386
        %v2388 = vpop.f32.mrb[0].mxu0
        %2389 = vmatprep.mubr.bf16.mxu0 0
        %2390 = vmatmul.mubr.bf16.gmra.mrb[0].mxu0 %v1720
        %v2391 = vpop.f32.mrb[0].mxu0
        %v2392 = vadd.f32 %v2135, %v2391
        %v2393 = vpop.f32.mrb[0].mxu0
        %v2394 = vpop.f32.mrb[0].mxu0
        %v2395 = vadd.f32 %v2138, %v2394
        %v2396 = vpop.f32.mrb[0].mxu0
        %2397 = vmatprep.mubr.bf16.mxu0 0
        %2398 = vmatmul.mubr.bf16.gmra.mrb[0].mxu0 %v1723
        %v2399 = vpop.f32.mrb[0].mxu0
        %v2400 = vadd.f32 %v2143, %v2399
        %v2401 = vpop.f32.mrb[0].mxu0
        %v2402 = vpop.f32.mrb[0].mxu0
        %v2403 = vadd.f32 %v2146, %v2402
        %v2404 = vpop.f32.mrb[0].mxu0
        %2405 = vmatprep.mubr.bf16.mxu0 0
        %2406 = vmatmul.mubr.bf16.gmra.mrb[0].mxu0 %v1726
        %v2407 = vpop.f32.mrb[0].mxu0
        %v2408 = vadd.f32 %v2151, %v2407
        %v2409 = vpop.f32.mrb[0].mxu0
        %v2410 = vpop.f32.mrb[0].mxu0
        %v2411 = vadd.f32 %v2154, %v2410
        %v2412 = vpop.f32.mrb[0].mxu0
        %2413 = vmatprep.mubr.bf16.mxu0 0
        %2414 = vmatmul.mubr.bf16.gmra.mrb[0].mxu0 %v1729
        %v2415 = vpop.f32.mrb[0].mxu0
        %v2416 = vadd.f32 %v2159, %v2415
        %v2417 = vpop.f32.mrb[0].mxu0
        %v2418 = vpop.f32.mrb[0].mxu0
        %v2419 = vadd.f32 %v2162, %v2418
        %v2420 = vpop.f32.mrb[0].mxu0
        %2421 = vmatprep.mubr.bf16.mxu0 0
        %2422 = vmatmul.mubr.bf16.gmra.mrb[0].mxu0 %v1732
        %v2423 = vpop.f32.mrb[0].mxu0
        %v2424 = vadd.f32 %v2167, %v2423
        %v2425 = vpop.f32.mrb[0].mxu0
        %v2426 = vpop.f32.mrb[0].mxu0
        %v2427 = vadd.f32 %v2170, %v2426
        %v2428 = vpop.f32.mrb[0].mxu0
        %2429 = vmatprep.mubr.bf16.mxu0 0
        %2430 = vmatmul.mubr.bf16.gmra.mrb[0].mxu0 %v1735
        %v2431 = vpop.f32.mrb[0].mxu0
        %v2432 = vadd.f32 %v2175, %v2431
        %v2433 = vpop.f32.mrb[0].mxu0
        %v2434 = vpop.f32.mrb[0].mxu0
        %v2435 = vadd.f32 %v2178, %v2434
        %v2436 = vpop.f32.mrb[0].mxu0
        %2437 = vmatprep.mubr.bf16.mxu0 0
        %2438 = vmatmul.mubr.bf16.gmra.mrb[0].mxu0 %v1738
        %v2439 = vpop.f32.mrb[0].mxu0
        %v2440 = vadd.f32 %v2183, %v2439
        %v2441 = vpop.f32.mrb[0].mxu0
        %v2442 = vpop.f32.mrb[0].mxu0
        %v2443 = vadd.f32 %v2186, %v2442
        %v2444 = vpop.f32.mrb[0].mxu0
        %2445 = vmatprep.mubr.bf16.mxu0 0
        %2446 = vmatmul.mubr.bf16.gmra.mrb[0].mxu0 %v1741
        %v2447 = vpop.f32.mrb[0].mxu0
        %v2448 = vadd.f32 %v2191, %v2447
        %v2449 = vpop.f32.mrb[0].mxu0
        %v2450 = vpop.f32.mrb[0].mxu0
        %v2451 = vadd.f32 %v2194, %v2450
        %v2452 = vpop.f32.mrb[0].mxu0
        %2453 = vmatprep.mubr.bf16.mxu0 0
        %2454 = vmatmul.mubr.bf16.gmra.mrb[0].mxu0 %v1744
        %v2455 = vpop.f32.mrb[0].mxu0
        %v2456 = vadd.f32 %v2199, %v2455
        %v2457 = vpop.f32.mrb[0].mxu0
        %v2458 = vpop.f32.mrb[0].mxu0
        %v2459 = vadd.f32 %v2202, %v2458
        %v2460 = vpop.f32.mrb[0].mxu0
        %2461 = vmatprep.mubr.bf16.mxu0 0
        %2462 = vmatmul.mubr.bf16.gmra.mrb[0].mxu0 %v1747
        %v2463 = vpop.f32.mrb[0].mxu0
        %v2464 = vadd.f32 %v2207, %v2463
        %v2465 = vpop.f32.mrb[0].mxu0
        %v2466 = vpop.f32.mrb[0].mxu0
        %v2467 = vadd.f32 %v2210, %v2466
        %v2468 = vpop.f32.mrb[0].mxu0
        %2469 = vmatprep.mubr.bf16.mxu0 0
        %2470 = vmatmul.mubr.bf16.gmra.mrb[0].mxu0 %v1750
        %v2471 = vpop.f32.mrb[0].mxu0
        %v2472 = vadd.f32 %v2215, %v2471
        %v2473 = vpop.f32.mrb[0].mxu0
        %v2474 = vpop.f32.mrb[0].mxu0
        %v2475 = vadd.f32 %v2218, %v2474
        %v2476 = vpop.f32.mrb[0].mxu0
        %2477 = vmatprep.mubr.bf16.mxu0 0
        %2478 = vmatmul.mubr.bf16.gmra.mrb[0].mxu0 %v1753
        %v2479 = vpop.f32.mrb[0].mxu0
        %v2480 = vadd.f32 %v2223, %v2479
        %v2481 = vpop.f32.mrb[0].mxu0
        %v2482 = vpop.f32.mrb[0].mxu0
        %v2483 = vadd.f32 %v2226, %v2482
        %v2484 = vpop.f32.mrb[0].mxu0
        %2485 = vmatprep.mubr.bf16.mxu0 0
        %2486 = vmatmul.mubr.bf16.gmra.mrb[0].mxu0 %v1756
        %v2487 = vpop.f32.mrb[0].mxu0
        %v2488 = vadd.f32 %v2231, %v2487
        %v2489 = vpop.f32.mrb[0].mxu0
        %v2490 = vpop.f32.mrb[0].mxu0
        %v2491 = vadd.f32 %v2234, %v2490
        %v2492 = vpop.f32.mrb[0].mxu0
        %2493 = vmatprep.mubr.bf16.mxu0 0
        %2494 = vmatmul.mubr.bf16.gmra.mrb[0].mxu0 %v1759
        %v2495 = vpop.f32.mrb[0].mxu0
        %v2496 = vadd.f32 %v2239, %v2495
        %v2497 = vpop.f32.mrb[0].mxu0
        %v2498 = vpop.f32.mrb[0].mxu0
        %v2499 = vadd.f32 %v2242, %v2498
        %v2500 = vpop.f32.mrb[0].mxu0
        %2501 = vmatprep.mubr.bf16.mxu0 0
        %2502 = vmatmul.mubr.bf16.gmra.mrb[0].mxu0 %v1762
        %v2503 = vpop.f32.mrb[0].mxu0
        %v2504 = vadd.f32 %v2247, %v2503
        %v2505 = vpop.f32.mrb[0].mxu0
        %v2506 = vpop.f32.mrb[0].mxu0
        %v2507 = vadd.f32 %v2250, %v2506
        %v2508 = vpop.f32.mrb[0].mxu0
        %2509 = vmatprep.mubr.bf16.mxu0 0
        %2510 = vmatmul.mubr.bf16.gmra.mrb[0].mxu0 %v1765
        %v2511 = vpop.f32.mrb[0].mxu0
        %v2512 = vadd.f32 %v2255, %v2511
        %v2513 = vpop.f32.mrb[0].mxu0
        %v2514 = vpop.f32.mrb[0].mxu0
        %v2515 = vadd.f32 %v2258, %v2514
        %v2516 = vpop.f32.mrb[0].mxu0
        %2517 = vmatprep.mubr.bf16.mxu0 0
        %2518 = vmatmul.mubr.bf16.gmra.mrb[0].mxu0 %v1768
        %v2519 = vpop.f32.mrb[0].mxu0
        %v2520 = vadd.f32 %v2263, %v2519
        %v2521 = vpop.f32.mrb[0].mxu0
        %v2522 = vpop.f32.mrb[0].mxu0
        %v2523 = vadd.f32 %v2266, %v2522
        %v2524 = vpop.f32.mrb[0].mxu0
        %2525 = vmatprep.mubr.bf16.mxu0 0
        %2526 = vmatmul.mubr.bf16.gmra.mrb[0].mxu0 %v1771
        %v2527 = vpop.f32.mrb[0].mxu0
        %v2528 = vadd.f32 %v2271, %v2527
        %v2529 = vpop.f32.mrb[0].mxu0
        %v2530 = vpop.f32.mrb[0].mxu0
        %v2531 = vadd.f32 %v2274, %v2530
        %v2532 = vpop.f32.mrb[0].mxu0
        %2533 = vmatprep.mubr.bf16.mxu0 0
        %2534 = vmatmul.mubr.bf16.gmra.mrb[0].mxu0 %v1774
        %v2535 = vpop.f32.mrb[0].mxu0
        %v2536 = vadd.f32 %v2279, %v2535
        %v2537 = vpop.f32.mrb[0].mxu0
        %v2538 = vpop.f32.mrb[0].mxu0
        %v2539 = vadd.f32 %v2282, %v2538
        %v2540 = vpop.f32.mrb[0].mxu0
        %2541 = vmatprep.mubr.bf16.mxu0 0
        %2542 = vmatmul.mubr.bf16.gmra.mrb[0].mxu0 %v1777
        %v2543 = vpop.f32.mrb[0].mxu0
        %v2544 = vadd.f32 %v2287, %v2543
        %v2545 = vpop.f32.mrb[0].mxu0
        %v2546 = vpop.f32.mrb[0].mxu0
        %v2547 = vadd.f32 %v2290, %v2546
        %v2548 = vpop.f32.mrb[0].mxu0
        %2549 = vdwg.mxu0
        %v2550 = vmax.f32 %v2328, %v2384
        %v2551 = vmax.f32 %v2550, %v2440
        %v2552 = vmax.f32 %v2551, %v2496
        %v2553 = vmax.f32 %v2331, %v2387
        %v2554 = vmax.f32 %v2553, %v2443
        %v2555 = vmax.f32 %v2554, %v2499
        %v2556 = vmax.f32 %v2336, %v2392
        %v2557 = vmax.f32 %v2556, %v2448
        %v2558 = vmax.f32 %v2557, %v2504
        %v2559 = vmax.f32 %v2339, %v2395
        %v2560 = vmax.f32 %v2559, %v2451
        %v2561 = vmax.f32 %v2560, %v2507
        %v2562 = vmax.f32 %v2344, %v2400
        %v2563 = vmax.f32 %v2562, %v2456
        %v2564 = vmax.f32 %v2563, %v2512
        %v2565 = vmax.f32 %v2347, %v2403
        %v2566 = vmax.f32 %v2565, %v2459
        %v2567 = vmax.f32 %v2566, %v2515
        %v2568 = vmax.f32 %v2352, %v2408
        %v2569 = vmax.f32 %v2568, %v2464
        %v2570 = vmax.f32 %v2569, %v2520
        %v2571 = vmax.f32 %v2355, %v2411
        %v2572 = vmax.f32 %v2571, %v2467
        %v2573 = vmax.f32 %v2572, %v2523
        %v2574 = vmax.f32 %v2360, %v2416
        %v2575 = vmax.f32 %v2574, %v2472
        %v2576 = vmax.f32 %v2575, %v2528
        %v2577 = vmax.f32 %v2363, %v2419
        %v2578 = vmax.f32 %v2577, %v2475
        %v2579 = vmax.f32 %v2578, %v2531
        %v2580 = vmax.f32 %v2368, %v2424
        %v2581 = vmax.f32 %v2580, %v2480
        %v2582 = vmax.f32 %v2581, %v2536
        %v2583 = vmax.f32 %v2371, %v2427
        %v2584 = vmax.f32 %v2583, %v2483
        %v2585 = vmax.f32 %v2584, %v2539
        %v2586 = vmax.f32 %v2376, %v2432
        %v2587 = vmax.f32 %v2586, %v2488
        %v2588 = vmax.f32 %v2587, %v2544
        %v2589 = vmax.f32 %v2379, %v2435
        %v2590 = vmax.f32 %v2589, %v2491
        %v2591 = vmax.f32 %v2590, %v2547
        %v2592 = vld [vmem:[%s2] sm:$0x1]
        %v2594 = vlaneseq
        %v2595 = vshrl.u32 %v2594, 7
        %v2596 = vsub.s32 0, %v2595
        %v2597 = vrot.slane %v2592, %v2596
        %v2599 = vadd.f32 %v2552, %v2597
        %v2600 = vadd.f32 %v2555, %v2597
        %v2601 = vadd.f32 %v2558, %v2597
        %v2602 = vadd.f32 %v2561, %v2597
        %v2603 = vadd.f32 %v2564, %v2597
        %v2604 = vadd.f32 %v2567, %v2597
        %v2605 = vadd.f32 %v2570, %v2597
        %v2606 = vadd.f32 %v2573, %v2597
        %v2607 = vadd.f32 %v2576, %v2597
        %v2608 = vadd.f32 %v2579, %v2597
        %v2609 = vadd.f32 %v2582, %v2597
        %v2610 = vadd.f32 %v2585, %v2597
        %v2611 = vadd.f32 %v2588, %v2597
        %v2612 = vadd.f32 %v2591, %v2597
        %v2613 = vmax.f32 %v2599, 0.0
        %v2614 = vmax.f32 %v2600, 0.0
        %v2615 = vmax.f32 %v2601, 0.0
        %v2616 = vmax.f32 %v2602, 0.0
        %v2617 = vmax.f32 %v2603, 0.0
        %v2618 = vmax.f32 %v2604, 0.0
        %v2619 = vmax.f32 %v2605, 0.0
        %v2620 = vmax.f32 %v2606, 0.0
        %v2621 = vmax.f32 %v2607, 0.0
        %v2622 = vmax.f32 %v2608, 0.0
        %v2623 = vmax.f32 %v2609, 0.0
        %v2624 = vmax.f32 %v2610, 0.0
        %v2625 = vmax.f32 %v2611, 0.0
        %v2626 = vmax.f32 %v2612, 0.0
        %v2627 = vpack.c.bf16 %v2614, %v2613
        %v2628 = vpack.c.bf16 %v2616, %v2615
        %v2629 = vpack.c.bf16 %v2618, %v2617
        %v2630 = vpack.c.bf16 %v2620, %v2619
        %v2631 = vpack.c.bf16 %v2622, %v2621
        %v2632 = vpack.c.bf16 %v2624, %v2623
        %v2633 = vpack.c.bf16 %v2626, %v2625
        %v2641 = vunpack.c.l.b16 %v2627
        %v2642 = vunpack.c.h.b16 %v2627
        %v2643 = vunpack.c.l.b16 %v2628
        %v2644 = vunpack.c.h.b16 %v2628
        %v2645 = vunpack.c.l.b16 %v2629
        %v2646 = vunpack.c.h.b16 %v2629
        %v2647 = vunpack.c.l.b16 %v2630
        %v2648 = vunpack.c.h.b16 %v2630
        %v2649 = vunpack.c.l.b16 %v2631
        %v2650 = vunpack.c.h.b16 %v2631
        %v2651 = vunpack.c.l.b16 %v2632
        %v2652 = vunpack.c.h.b16 %v2632
        %v2653 = vunpack.c.l.b16 %v2633
        %v2654 = vunpack.c.h.b16 %v2633
        %v2655 = vpack.c.b16 %v2641, %v2641
        %v2656 = vpack.c.b16 %v2642, %v2642
        %v2657 = vpack.c.b16 %v2643, %v2643
        %v2658 = vpack.c.b16 %v2644, %v2644
        %v2659 = vpack.c.b16 %v2645, %v2645
        %v2660 = vpack.c.b16 %v2646, %v2646
        %v2661 = vpack.c.b16 %v2647, %v2647
        %v2662 = vpack.c.b16 %v2648, %v2648
        %v2663 = vpack.c.b16 %v2649, %v2649
        %v2664 = vpack.c.b16 %v2650, %v2650
        %v2665 = vpack.c.b16 %v2651, %v2651
        %v2666 = vpack.c.b16 %v2652, %v2652
        %v2667 = vpack.c.b16 %v2653, %v2653
        %v2668 = vpack.c.b16 %v2654, %v2654
        %2683 = vst [vmem:[%s535] sm:$0xf] %v2655
        %2684 = vst [vmem:[%s535 + $0x4] sm:$0xf] %v2656
        %2685 = vst [vmem:[%s535 + $0x8] sm:$0xf] %v2657
        %2686 = vst [vmem:[%s535 + $0xc] sm:$0xf] %v2658
        %2687 = vst [vmem:[%s535 + $0x10] sm:$0xf] %v2659
        %2688 = vst [vmem:[%s535 + $0x14] sm:$0xf] %v2660
        %2689 = vst [vmem:[%s535 + $0x18] sm:$0xf] %v2661
        %2690 = vst [vmem:[%s535 + $0x1c] sm:$0xf] %v2662
        %2691 = vst [vmem:[%s535 + $0x20] sm:$0xf] %v2663
        %2692 = vst [vmem:[%s535 + $0x24] sm:$0xf] %v2664
        %2693 = vst [vmem:[%s535 + $0x28] sm:$0xf] %v2665
        %2694 = vst [vmem:[%s535 + $0x2c] sm:$0xf] %v2666
        %2695 = vst [vmem:[%s535 + $0x30] sm:$0xf] %v2667
        %2696 = vst [vmem:[%s535 + $0x34] sm:$0xf] %v2668
        %s2697 = smul.u32 14, %s14
        %p2698 = scmp.lt.s32.totalorder %s2697, 27
        %s2699 = scalar_select %p2698, %s2697, 27
        %s2700 = smul.addr %s2699, 4
        %s2701 = scalar_lea.vmem %s3, %s2700
        // Predicated region
        $region59: #{cnn_forward.5} parent=53 // pred_check
          %p2702 = pneg %p100
        $region60: #{cnn_forward.5} parent=53 // pred_check_branch
          %2704 = sbr.rel (%p2702) target = $region62
        $region61: #{cnn_forward.5} parent=53 // pred_region
          %s2705 = smul.u32 14, %s14
        $region62: #{cnn_forward.5} parent=53 // pred_fallthru
          _
      $region54: #{cnn_forward.5} parent=5 // pred_fallthru
        _
      %p2706 = scmp.le.s32.totalorder 2, %s9
      // Predicated region
      $region63: #{cnn_forward.5} parent=5 // pred_check
        %p2707 = pneg %p2706
      $region64: #{cnn_forward.5} parent=5 // pred_check_branch
        %2709 = sbr.rel (%p2707) target = $region66
      $region65: #{cnn_forward.5} parent=5 // pred_region
        %s2710 = ssub.s32 %s9, 2
        // Predicated region
        $region67: #{cnn_forward.5} parent=65 // pred_check
          %p2711 = pneg %p106
        $region68: #{cnn_forward.5} parent=65 // pred_check_branch
          %2713 = sbr.rel (%p2711) target = $region70
        $region69: #{cnn_forward.5} parent=65 // pred_region
          %s2714 = smul.u32 14, %s15
          %p2715 = scmp.lt.s32.totalorder %s2714, 27
          %s2716 = scalar_select %p2715, %s2714, 27
          %s2717 = smul.addr %s2716, 4
          %s2718 = scalar_lea.vmem %s3, %s2717
        $region70: #{cnn_forward.5} parent=65 // pred_fallthru
          _
      $region66: #{cnn_forward.5} parent=5 // pred_fallthru
        _
    $region6: #{cnn_forward.5} parent=1 // loop_footer
      %s13 = sadd.s32 1, %s9
    $region7: #{cnn_forward.5} parent=1 // loop_footer_branch
      %8 = sbr.rel target = $region3
    $region8: #{cnn_forward.5} parent=1 // loop_exit
      _

// kernel: cnn_forward.6
$region0: #{cnn_forward.6}
  #allocation0 [shape = 'u32[]', space=smem, size = 0x4, offset = 0x4, fixed_abs, tag = 'smem constant byte address 0x4 - core index']
  #allocation1 [shape = 'u32[144,128]{1,0:T(1,128)}', space=vmem, size = 0x12000, scoped, tag = 'internal scratch']
  %s0 = inlined_call_operand.vmem [shape: bf16[4,48,1152], index: 0, kind: input, shape index: {}]
  %s1 = inlined_call_operand.vmem [shape: bf16[1152,128], index: 1, kind: input, shape index: {}]
  %s2 = inlined_call_operand.vmem [shape: f32[1,128], index: 2, kind: input, shape index: {}]
  %s3 = inlined_call_operand.vmem [shape: bf16[48,128], index: 3, kind: output, shape index: {}]
  %s4 = sld [smem:[#allocation0]]
  $region22: #{cnn_forward.6} parent=0
    _
  %s6 = ssub.s32 1, %s4
  %s7 = scalar_select 0, %s6, %s4
  // Predicated region
  $region2: #{cnn_forward.6} parent=0 // pred_check
    _
  $region3: #{cnn_forward.6} parent=0 // pred_check_branch
    %9 = sbr.rel (0) target = $region5
  $region4: #{cnn_forward.6} parent=0 // pred_region
    _
  $region5: #{cnn_forward.6} parent=0 // pred_fallthru
    _
  // Predicated region
  $region6: #{cnn_forward.6} parent=0 // pred_check
    _
  $region7: #{cnn_forward.6} parent=0 // pred_check_branch
    %11 = sbr.rel (0) target = $region9
  $region8: #{cnn_forward.6} parent=0 // pred_region
    _
  $region9: #{cnn_forward.6} parent=0 // pred_fallthru
    _
  // Predicated region
  $region10: #{cnn_forward.6} parent=0 // pred_check
    _
  $region11: #{cnn_forward.6} parent=0 // pred_check_branch
    %13 = sbr.rel (0) target = $region13
  $region12: #{cnn_forward.6} parent=0 // pred_region
    _
  $region13: #{cnn_forward.6} parent=0 // pred_fallthru
    _
  %v15 = vld [vmem:[%s0] sm:$0xff]
  %v16 = vld [vmem:[%s0 + $0x8] sm:$0xff]
  %v17 = vld [vmem:[%s0 + $0x10] sm:$0xff]
  %v18 = vld [vmem:[%s0 + $0x18] sm:$0xff]
  %v19 = vld [vmem:[%s0 + $0x20] sm:$0xf]
  %v20 = vld [vmem:[%s0 + $0x24] sm:$0xff]
  %v21 = vld [vmem:[%s0 + $0x2c] sm:$0xff]
  %v22 = vld [vmem:[%s0 + $0x34] sm:$0xff]
  %v23 = vld [vmem:[%s0 + $0x3c] sm:$0xff]
  %v24 = vld [vmem:[%s0 + $0x44] sm:$0xf]
  %v25 = vld [vmem:[%s0 + $0x48] sm:$0xff]
  %v26 = vld [vmem:[%s0 + $0x50] sm:$0xff]
  %v27 = vld [vmem:[%s0 + $0x58] sm:$0xff]
  %v28 = vld [vmem:[%s0 + $0x60] sm:$0xff]
  %v29 = vld [vmem:[%s0 + $0x68] sm:$0xf]
  %v30 = vld [vmem:[%s0 + $0x6c] sm:$0xff]
  %v31 = vld [vmem:[%s0 + $0x74] sm:$0xff]
  %v32 = vld [vmem:[%s0 + $0x7c] sm:$0xff]
  %v33 = vld [vmem:[%s0 + $0x84] sm:$0xff]
  %v34 = vld [vmem:[%s0 + $0x8c] sm:$0xf]
  %v35 = vld [vmem:[%s0 + $0x90] sm:$0xff]
  %v36 = vld [vmem:[%s0 + $0x98] sm:$0xff]
  %v37 = vld [vmem:[%s0 + $0xa0] sm:$0xff]
  %v38 = vld [vmem:[%s0 + $0xa8] sm:$0xff]
  %v39 = vld [vmem:[%s0 + $0xb0] sm:$0xf]
  %v40 = vld [vmem:[%s0 + $0xb4] sm:$0xff]
  %v41 = vld [vmem:[%s0 + $0xbc] sm:$0xff]
  %v42 = vld [vmem:[%s0 + $0xc4] sm:$0xff]
  %v43 = vld [vmem:[%s0 + $0xcc] sm:$0xff]
  %v44 = vld [vmem:[%s0 + $0xd4] sm:$0xf]
  %v45 = vld [vmem:[%s0 + $0xd8] sm:$0xff]
  %v46 = vld [vmem:[%s0 + $0xe0] sm:$0xff]
  %v47 = vld [vmem:[%s0 + $0xe8] sm:$0xff]
  %v48 = vld [vmem:[%s0 + $0xf0] sm:$0xff]
  %v49 = vld [vmem:[%s0 + $0xf8] sm:$0xf]
  %v50 = vld [vmem:[%s0 + $0xfc] sm:$0xff]
  %v51 = vld [vmem:[%s0 + $0x104] sm:$0xff]
  %v52 = vld [vmem:[%s0 + $0x10c] sm:$0xff]
  %v53 = vld [vmem:[%s0 + $0x114] sm:$0xff]
  %v54 = vld [vmem:[%s0 + $0x11c] sm:$0xf]
  %v55 = vld [vmem:[%s0 + $0x120] sm:$0xff]
  %v56 = vld [vmem:[%s0 + $0x128] sm:$0xff]
  %v57 = vld [vmem:[%s0 + $0x130] sm:$0xff]
  %v58 = vld [vmem:[%s0 + $0x138] sm:$0xff]
  %v59 = vld [vmem:[%s0 + $0x140] sm:$0xf]
  %v60 = vld [vmem:[%s0 + $0x144] sm:$0xff]
  %v61 = vld [vmem:[%s0 + $0x14c] sm:$0xff]
  %v62 = vld [vmem:[%s0 + $0x154] sm:$0xff]
  %v63 = vld [vmem:[%s0 + $0x15c] sm:$0xff]
  %v64 = vld [vmem:[%s0 + $0x164] sm:$0xf]
  %v65 = vld [vmem:[%s0 + $0x168] sm:$0xff]
  %v66 = vld [vmem:[%s0 + $0x170] sm:$0xff]
  %v67 = vld [vmem:[%s0 + $0x178] sm:$0xff]
  %v68 = vld [vmem:[%s0 + $0x180] sm:$0xff]
  %v69 = vld [vmem:[%s0 + $0x188] sm:$0xf]
  %v70 = vld [vmem:[%s0 + $0x18c] sm:$0xff]
  %v71 = vld [vmem:[%s0 + $0x194] sm:$0xff]
  %v72 = vld [vmem:[%s0 + $0x19c] sm:$0xff]
  %v73 = vld [vmem:[%s0 + $0x1a4] sm:$0xff]
  %v74 = vld [vmem:[%s0 + $0x1ac] sm:$0xf]
  %v75 = vld [vmem:[%s0 + $0x1b0] sm:$0xff]
  %v76 = vld [vmem:[%s0 + $0x1b8] sm:$0xff]
  %v77 = vld [vmem:[%s0 + $0x1c0] sm:$0xff]
  %v78 = vld [vmem:[%s0 + $0x1c8] sm:$0xff]
  %v79 = vld [vmem:[%s0 + $0x1d0] sm:$0xf]
  %v80 = vld [vmem:[%s0 + $0x1d4] sm:$0xff]
  %v81 = vld [vmem:[%s0 + $0x1dc] sm:$0xff]
  %v82 = vld [vmem:[%s0 + $0x1e4] sm:$0xff]
  %v83 = vld [vmem:[%s0 + $0x1ec] sm:$0xff]
  %v84 = vld [vmem:[%s0 + $0x1f4] sm:$0xf]
  %v85 = vld [vmem:[%s0 + $0x1f8] sm:$0xff]
  %v86 = vld [vmem:[%s0 + $0x200] sm:$0xff]
  %v87 = vld [vmem:[%s0 + $0x208] sm:$0xff]
  %v88 = vld [vmem:[%s0 + $0x210] sm:$0xff]
  %v89 = vld [vmem:[%s0 + $0x218] sm:$0xf]
  %v90 = vld [vmem:[%s0 + $0x21c] sm:$0xff]
  %v91 = vld [vmem:[%s0 + $0x224] sm:$0xff]
  %v92 = vld [vmem:[%s0 + $0x22c] sm:$0xff]
  %v93 = vld [vmem:[%s0 + $0x234] sm:$0xff]
  %v94 = vld [vmem:[%s0 + $0x23c] sm:$0xf]
  %v95 = vld [vmem:[%s0 + $0x240] sm:$0xff]
  %v96 = vld [vmem:[%s0 + $0x248] sm:$0xff]
  %v97 = vld [vmem:[%s0 + $0x250] sm:$0xff]
  %v98 = vld [vmem:[%s0 + $0x258] sm:$0xff]
  %v99 = vld [vmem:[%s0 + $0x260] sm:$0xf]
  %v100 = vld [vmem:[%s0 + $0x264] sm:$0xff]
  %v101 = vld [vmem:[%s0 + $0x26c] sm:$0xff]
  %v102 = vld [vmem:[%s0 + $0x274] sm:$0xff]
  %v103 = vld [vmem:[%s0 + $0x27c] sm:$0xff]
  %v104 = vld [vmem:[%s0 + $0x284] sm:$0xf]
  %v105 = vld [vmem:[%s0 + $0x288] sm:$0xff]
  %v106 = vld [vmem:[%s0 + $0x290] sm:$0xff]
  %v107 = vld [vmem:[%s0 + $0x298] sm:$0xff]
  %v108 = vld [vmem:[%s0 + $0x2a0] sm:$0xff]
  %v109 = vld [vmem:[%s0 + $0x2a8] sm:$0xf]
  %v110 = vld [vmem:[%s0 + $0x2ac] sm:$0xff]
  %v111 = vld [vmem:[%s0 + $0x2b4] sm:$0xff]
  %v112 = vld [vmem:[%s0 + $0x2bc] sm:$0xff]
  %v113 = vld [vmem:[%s0 + $0x2c4] sm:$0xff]
  %v114 = vld [vmem:[%s0 + $0x2cc] sm:$0xf]
  %v115 = vld [vmem:[%s0 + $0x2d0] sm:$0xff]
  %v116 = vld [vmem:[%s0 + $0x2d8] sm:$0xff]
  %v117 = vld [vmem:[%s0 + $0x2e0] sm:$0xff]
  %v118 = vld [vmem:[%s0 + $0x2e8] sm:$0xff]
  %v119 = vld [vmem:[%s0 + $0x2f0] sm:$0xf]
  %v120 = vld [vmem:[%s0 + $0x2f4] sm:$0xff]
  %v121 = vld [vmem:[%s0 + $0x2fc] sm:$0xff]
  %v122 = vld [vmem:[%s0 + $0x304] sm:$0xff]
  %v123 = vld [vmem:[%s0 + $0x30c] sm:$0xff]
  %v124 = vld [vmem:[%s0 + $0x314] sm:$0xf]
  %v125 = vld [vmem:[%s0 + $0x318] sm:$0xff]
  %v126 = vld [vmem:[%s0 + $0x320] sm:$0xff]
  %v127 = vld [vmem:[%s0 + $0x328] sm:$0xff]
  %v128 = vld [vmem:[%s0 + $0x330] sm:$0xff]
  %v129 = vld [vmem:[%s0 + $0x338] sm:$0xf]
  %v130 = vld [vmem:[%s0 + $0x33c] sm:$0xff]
  %v131 = vld [vmem:[%s0 + $0x344] sm:$0xff]
  %v132 = vld [vmem:[%s0 + $0x34c] sm:$0xff]
  %v133 = vld [vmem:[%s0 + $0x354] sm:$0xff]
  %v134 = vld [vmem:[%s0 + $0x35c] sm:$0xf]
  %v135 = vld [vmem:[%s1] sm:$0xf]
  %v136 = vld [vmem:[%s1 + $0x4] sm:$0xf]
  %v137 = vld [vmem:[%s1 + $0x8] sm:$0xf]
  %v138 = vld [vmem:[%s1 + $0xc] sm:$0xf]
  %v139 = vld [vmem:[%s1 + $0x10] sm:$0xf]
  %v140 = vld [vmem:[%s1 + $0x14] sm:$0xf]
  %v141 = vld [vmem:[%s1 + $0x18] sm:$0xf]
  %v142 = vld [vmem:[%s1 + $0x1c] sm:$0xf]
  %v143 = vld [vmem:[%s1 + $0x20] sm:$0xf]
  %v144 = vld [vmem:[%s1 + $0x24] sm:$0xf]
  %v145 = vld [vmem:[%s1 + $0x28] sm:$0xf]
  %v146 = vld [vmem:[%s1 + $0x2c] sm:$0xf]
  %v147 = vld [vmem:[%s1 + $0x30] sm:$0xf]
  %v148 = vld [vmem:[%s1 + $0x34] sm:$0xf]
  %v149 = vld [vmem:[%s1 + $0x38] sm:$0xf]
  %v150 = vld [vmem:[%s1 + $0x3c] sm:$0xf]
  %v151 = vld [vmem:[%s1 + $0x40] sm:$0xf]
  %v152 = vld [vmem:[%s1 + $0x44] sm:$0xf]
  %v153 = vld [vmem:[%s1 + $0x48] sm:$0xf]
  %v154 = vld [vmem:[%s1 + $0x4c] sm:$0xf]
  %v155 = vld [vmem:[%s1 + $0x50] sm:$0xf]
  %v156 = vld [vmem:[%s1 + $0x54] sm:$0xf]
  %v157 = vld [vmem:[%s1 + $0x58] sm:$0xf]
  %v158 = vld [vmem:[%s1 + $0x5c] sm:$0xf]
  %v159 = vld [vmem:[%s1 + $0x60] sm:$0xf]
  %v160 = vld [vmem:[%s1 + $0x64] sm:$0xf]
  %v161 = vld [vmem:[%s1 + $0x68] sm:$0xf]
  %v162 = vld [vmem:[%s1 + $0x6c] sm:$0xf]
  %v163 = vld [vmem:[%s1 + $0x70] sm:$0xf]
  %v164 = vld [vmem:[%s1 + $0x74] sm:$0xf]
  %v165 = vld [vmem:[%s1 + $0x78] sm:$0xf]
  %v166 = vld [vmem:[%s1 + $0x7c] sm:$0xf]
  %v167 = vld [vmem:[%s1 + $0x80] sm:$0xf]
  %v168 = vld [vmem:[%s1 + $0x84] sm:$0xf]
  %v169 = vld [vmem:[%s1 + $0x88] sm:$0xf]
  %v170 = vld [vmem:[%s1 + $0x8c] sm:$0xf]
  %v171 = vld [vmem:[%s1 + $0x90] sm:$0xf]
  %v172 = vld [vmem:[%s1 + $0x94] sm:$0xf]
  %v173 = vld [vmem:[%s1 + $0x98] sm:$0xf]
  %v174 = vld [vmem:[%s1 + $0x9c] sm:$0xf]
  %v175 = vld [vmem:[%s1 + $0xa0] sm:$0xf]
  %v176 = vld [vmem:[%s1 + $0xa4] sm:$0xf]
  %v177 = vld [vmem:[%s1 + $0xa8] sm:$0xf]
  %v178 = vld [vmem:[%s1 + $0xac] sm:$0xf]
  %v179 = vld [vmem:[%s1 + $0xb0] sm:$0xf]
  %v180 = vld [vmem:[%s1 + $0xb4] sm:$0xf]
  %v181 = vld [vmem:[%s1 + $0xb8] sm:$0xf]
  %v182 = vld [vmem:[%s1 + $0xbc] sm:$0xf]
  %v183 = vld [vmem:[%s1 + $0xc0] sm:$0xf]
  %v184 = vld [vmem:[%s1 + $0xc4] sm:$0xf]
  %v185 = vld [vmem:[%s1 + $0xc8] sm:$0xf]
  %v186 = vld [vmem:[%s1 + $0xcc] sm:$0xf]
  %v187 = vld [vmem:[%s1 + $0xd0] sm:$0xf]
  %v188 = vld [vmem:[%s1 + $0xd4] sm:$0xf]
  %v189 = vld [vmem:[%s1 + $0xd8] sm:$0xf]
  %v190 = vld [vmem:[%s1 + $0xdc] sm:$0xf]
  %v191 = vld [vmem:[%s1 + $0xe0] sm:$0xf]
  %v192 = vld [vmem:[%s1 + $0xe4] sm:$0xf]
  %v193 = vld [vmem:[%s1 + $0xe8] sm:$0xf]
  %v194 = vld [vmem:[%s1 + $0xec] sm:$0xf]
  %v195 = vld [vmem:[%s1 + $0xf0] sm:$0xf]
  %v196 = vld [vmem:[%s1 + $0xf4] sm:$0xf]
  %v197 = vld [vmem:[%s1 + $0xf8] sm:$0xf]
  %v198 = vld [vmem:[%s1 + $0xfc] sm:$0xf]
  %v199 = vld [vmem:[%s1 + $0x100] sm:$0xf]
  %v200 = vld [vmem:[%s1 + $0x104] sm:$0xf]
  %v201 = vld [vmem:[%s1 + $0x108] sm:$0xf]
  %v202 = vld [vmem:[%s1 + $0x10c] sm:$0xf]
  %v203 = vld [vmem:[%s1 + $0x110] sm:$0xf]
  %v204 = vld [vmem:[%s1 + $0x114] sm:$0xf]
  %v205 = vld [vmem:[%s1 + $0x118] sm:$0xf]
  %v206 = vld [vmem:[%s1 + $0x11c] sm:$0xf]
  %v207 = vld [vmem:[%s1 + $0x120] sm:$0xf]
  %v208 = vld [vmem:[%s1 + $0x124] sm:$0xf]
  %v209 = vld [vmem:[%s1 + $0x128] sm:$0xf]
  %v210 = vld [vmem:[%s1 + $0x12c] sm:$0xf]
  %v211 = vld [vmem:[%s1 + $0x130] sm:$0xf]
  %v212 = vld [vmem:[%s1 + $0x134] sm:$0xf]
  %v213 = vld [vmem:[%s1 + $0x138] sm:$0xf]
  %v214 = vld [vmem:[%s1 + $0x13c] sm:$0xf]
  %v215 = vld [vmem:[%s1 + $0x140] sm:$0xf]
  %v216 = vld [vmem:[%s1 + $0x144] sm:$0xf]
  %v217 = vld [vmem:[%s1 + $0x148] sm:$0xf]
  %v218 = vld [vmem:[%s1 + $0x14c] sm:$0xf]
  %v219 = vld [vmem:[%s1 + $0x150] sm:$0xf]
  %v220 = vld [vmem:[%s1 + $0x154] sm:$0xf]
  %v221 = vld [vmem:[%s1 + $0x158] sm:$0xf]
  %v222 = vld [vmem:[%s1 + $0x15c] sm:$0xf]
  %v223 = vld [vmem:[%s1 + $0x160] sm:$0xf]
  %v224 = vld [vmem:[%s1 + $0x164] sm:$0xf]
  %v225 = vld [vmem:[%s1 + $0x168] sm:$0xf]
  %v226 = vld [vmem:[%s1 + $0x16c] sm:$0xf]
  %v227 = vld [vmem:[%s1 + $0x170] sm:$0xf]
  %v228 = vld [vmem:[%s1 + $0x174] sm:$0xf]
  %v229 = vld [vmem:[%s1 + $0x178] sm:$0xf]
  %v230 = vld [vmem:[%s1 + $0x17c] sm:$0xf]
  %v231 = vld [vmem:[%s1 + $0x180] sm:$0xf]
  %v232 = vld [vmem:[%s1 + $0x184] sm:$0xf]
  %v233 = vld [vmem:[%s1 + $0x188] sm:$0xf]
  %v234 = vld [vmem:[%s1 + $0x18c] sm:$0xf]
  %v235 = vld [vmem:[%s1 + $0x190] sm:$0xf]
  %v236 = vld [vmem:[%s1 + $0x194] sm:$0xf]
  %v237 = vld [vmem:[%s1 + $0x198] sm:$0xf]
  %v238 = vld [vmem:[%s1 + $0x19c] sm:$0xf]
  %v239 = vld [vmem:[%s1 + $0x1a0] sm:$0xf]
  %v240 = vld [vmem:[%s1 + $0x1a4] sm:$0xf]
  %v241 = vld [vmem:[%s1 + $0x1a8] sm:$0xf]
  %v242 = vld [vmem:[%s1 + $0x1ac] sm:$0xf]
  %v243 = vld [vmem:[%s1 + $0x1b0] sm:$0xf]
  %v244 = vld [vmem:[%s1 + $0x1b4] sm:$0xf]
  %v245 = vld [vmem:[%s1 + $0x1b8] sm:$0xf]
  %v246 = vld [vmem:[%s1 + $0x1bc] sm:$0xf]
  %v247 = vld [vmem:[%s1 + $0x1c0] sm:$0xf]
  %v248 = vld [vmem:[%s1 + $0x1c4] sm:$0xf]
  %v249 = vld [vmem:[%s1 + $0x1c8] sm:$0xf]
  %v250 = vld [vmem:[%s1 + $0x1cc] sm:$0xf]
  %v251 = vld [vmem:[%s1 + $0x1d0] sm:$0xf]
  %v252 = vld [vmem:[%s1 + $0x1d4] sm:$0xf]
  %v253 = vld [vmem:[%s1 + $0x1d8] sm:$0xf]
  %v254 = vld [vmem:[%s1 + $0x1dc] sm:$0xf]
  %v255 = vld [vmem:[%s1 + $0x1e0] sm:$0xf]
  %v256 = vld [vmem:[%s1 + $0x1e4] sm:$0xf]
  %v257 = vld [vmem:[%s1 + $0x1e8] sm:$0xf]
  %v258 = vld [vmem:[%s1 + $0x1ec] sm:$0xf]
  %v259 = vld [vmem:[%s1 + $0x1f0] sm:$0xf]
  %v260 = vld [vmem:[%s1 + $0x1f4] sm:$0xf]
  %v261 = vld [vmem:[%s1 + $0x1f8] sm:$0xf]
  %v262 = vld [vmem:[%s1 + $0x1fc] sm:$0xf]
  %v263 = vld [vmem:[%s1 + $0x200] sm:$0xf]
  %v264 = vld [vmem:[%s1 + $0x204] sm:$0xf]
  %v265 = vld [vmem:[%s1 + $0x208] sm:$0xf]
  %v266 = vld [vmem:[%s1 + $0x20c] sm:$0xf]
  %v267 = vld [vmem:[%s1 + $0x210] sm:$0xf]
  %v268 = vld [vmem:[%s1 + $0x214] sm:$0xf]
  %v269 = vld [vmem:[%s1 + $0x218] sm:$0xf]
  %v270 = vld [vmem:[%s1 + $0x21c] sm:$0xf]
  %v271 = vld [vmem:[%s1 + $0x220] sm:$0xf]
  %v272 = vld [vmem:[%s1 + $0x224] sm:$0xf]
  %v273 = vld [vmem:[%s1 + $0x228] sm:$0xf]
  %v274 = vld [vmem:[%s1 + $0x22c] sm:$0xf]
  %v275 = vld [vmem:[%s1 + $0x230] sm:$0xf]
  %v276 = vld [vmem:[%s1 + $0x234] sm:$0xf]
  %v277 = vld [vmem:[%s1 + $0x238] sm:$0xf]
  %v278 = vld [vmem:[%s1 + $0x23c] sm:$0xf]
  %v399 = vunpack.c.l.b16 %v15
  %v400 = vunpack.c.h.b16 %v15
  %v401 = vunpack.c.l.b16 %v16
  %v402 = vunpack.c.h.b16 %v16
  %v403 = vunpack.c.l.b16 %v17
  %v404 = vunpack.c.h.b16 %v17
  %v405 = vunpack.c.l.b16 %v18
  %v406 = vunpack.c.h.b16 %v18
  %v407 = vunpack.c.l.b16 %v19
  %v408 = vunpack.c.l.b16 %v20
  %v409 = vunpack.c.h.b16 %v20
  %v410 = vunpack.c.l.b16 %v21
  %v411 = vunpack.c.h.b16 %v21
  %v412 = vunpack.c.l.b16 %v22
  %v413 = vunpack.c.h.b16 %v22
  %v414 = vunpack.c.l.b16 %v23
  %v415 = vunpack.c.h.b16 %v23
  %v416 = vunpack.c.l.b16 %v24
  %v417 = vunpack.c.l.b16 %v25
  %v418 = vunpack.c.h.b16 %v25
  %v419 = vunpack.c.l.b16 %v26
  %v420 = vunpack.c.h.b16 %v26
  %v421 = vunpack.c.l.b16 %v27
  %v422 = vunpack.c.h.b16 %v27
  %v423 = vunpack.c.l.b16 %v28
  %v424 = vunpack.c.h.b16 %v28
  %v425 = vunpack.c.l.b16 %v29
  %v426 = vunpack.c.l.b16 %v30
  %v427 = vunpack.c.h.b16 %v30
  %v428 = vunpack.c.l.b16 %v31
  %v429 = vunpack.c.h.b16 %v31
  %v430 = vunpack.c.l.b16 %v32
  %v431 = vunpack.c.h.b16 %v32
  %v432 = vunpack.c.l.b16 %v33
  %v433 = vunpack.c.h.b16 %v33
  %v434 = vunpack.c.l.b16 %v34
  %v435 = vunpack.c.l.b16 %v35
  %v436 = vunpack.c.h.b16 %v35
  %v437 = vunpack.c.l.b16 %v36
  %v438 = vunpack.c.h.b16 %v36
  %v439 = vunpack.c.l.b16 %v37
  %v440 = vunpack.c.h.b16 %v37
  %v441 = vunpack.c.l.b16 %v38
  %v442 = vunpack.c.h.b16 %v38
  %v443 = vunpack.c.l.b16 %v39
  %v444 = vunpack.c.l.b16 %v40
  %v445 = vunpack.c.h.b16 %v40
  %v446 = vunpack.c.l.b16 %v41
  %v447 = vunpack.c.h.b16 %v41
  %v448 = vunpack.c.l.b16 %v42
  %v449 = vunpack.c.h.b16 %v42
  %v450 = vunpack.c.l.b16 %v43
  %v451 = vunpack.c.h.b16 %v43
  %v452 = vunpack.c.l.b16 %v44
  %v453 = vunpack.c.l.b16 %v45
  %v454 = vunpack.c.h.b16 %v45
  %v455 = vunpack.c.l.b16 %v46
  %v456 = vunpack.c.h.b16 %v46
  %v457 = vunpack.c.l.b16 %v47
  %v458 = vunpack.c.h.b16 %v47
  %v459 = vunpack.c.l.b16 %v48
  %v460 = vunpack.c.h.b16 %v48
  %v461 = vunpack.c.l.b16 %v49
  %v462 = vunpack.c.l.b16 %v50
  %v463 = vunpack.c.h.b16 %v50
  %v464 = vunpack.c.l.b16 %v51
  %v465 = vunpack.c.h.b16 %v51
  %v466 = vunpack.c.l.b16 %v52
  %v467 = vunpack.c.h.b16 %v52
  %v468 = vunpack.c.l.b16 %v53
  %v469 = vunpack.c.h.b16 %v53
  %v470 = vunpack.c.l.b16 %v54
  %v471 = vunpack.c.l.b16 %v55
  %v472 = vunpack.c.h.b16 %v55
  %v473 = vunpack.c.l.b16 %v56
  %v474 = vunpack.c.h.b16 %v56
  %v475 = vunpack.c.l.b16 %v57
  %v476 = vunpack.c.h.b16 %v57
  %v477 = vunpack.c.l.b16 %v58
  %v478 = vunpack.c.h.b16 %v58
  %v479 = vunpack.c.l.b16 %v59
  %v480 = vunpack.c.l.b16 %v60
  %v481 = vunpack.c.h.b16 %v60
  %v482 = vunpack.c.l.b16 %v61
  %v483 = vunpack.c.h.b16 %v61
  %v484 = vunpack.c.l.b16 %v62
  %v485 = vunpack.c.h.b16 %v62
  %v486 = vunpack.c.l.b16 %v63
  %v487 = vunpack.c.h.b16 %v63
  %v488 = vunpack.c.l.b16 %v64
  %v489 = vunpack.c.l.b16 %v65
  %v490 = vunpack.c.h.b16 %v65
  %v491 = vunpack.c.l.b16 %v66
  %v492 = vunpack.c.h.b16 %v66
  %v493 = vunpack.c.l.b16 %v67
  %v494 = vunpack.c.h.b16 %v67
  %v495 = vunpack.c.l.b16 %v68
  %v496 = vunpack.c.h.b16 %v68
  %v497 = vunpack.c.l.b16 %v69
  %v498 = vunpack.c.l.b16 %v70
  %v499 = vunpack.c.h.b16 %v70
  %v500 = vunpack.c.l.b16 %v71
  %v501 = vunpack.c.h.b16 %v71
  %v502 = vunpack.c.l.b16 %v72
  %v503 = vunpack.c.h.b16 %v72
  %v504 = vunpack.c.l.b16 %v73
  %v505 = vunpack.c.h.b16 %v73
  %v506 = vunpack.c.l.b16 %v74
  %v507 = vunpack.c.l.b16 %v75
  %v508 = vunpack.c.h.b16 %v75
  %v509 = vunpack.c.l.b16 %v76
  %v510 = vunpack.c.h.b16 %v76
  %v511 = vunpack.c.l.b16 %v77
  %v512 = vunpack.c.h.b16 %v77
  %v513 = vunpack.c.l.b16 %v78
  %v514 = vunpack.c.h.b16 %v78
  %v515 = vunpack.c.l.b16 %v79
  %v516 = vunpack.c.l.b16 %v80
  %v517 = vunpack.c.h.b16 %v80
  %v518 = vunpack.c.l.b16 %v81
  %v519 = vunpack.c.h.b16 %v81
  %v520 = vunpack.c.l.b16 %v82
  %v521 = vunpack.c.h.b16 %v82
  %v522 = vunpack.c.l.b16 %v83
  %v523 = vunpack.c.h.b16 %v83
  %v524 = vunpack.c.l.b16 %v84
  %v525 = vunpack.c.l.b16 %v85
  %v526 = vunpack.c.h.b16 %v85
  %v527 = vunpack.c.l.b16 %v86
  %v528 = vunpack.c.h.b16 %v86
  %v529 = vunpack.c.l.b16 %v87
  %v530 = vunpack.c.h.b16 %v87
  %v531 = vunpack.c.l.b16 %v88
  %v532 = vunpack.c.h.b16 %v88
  %v533 = vunpack.c.l.b16 %v89
  %v534 = vunpack.c.l.b16 %v90
  %v535 = vunpack.c.h.b16 %v90
  %v536 = vunpack.c.l.b16 %v91
  %v537 = vunpack.c.h.b16 %v91
  %v538 = vunpack.c.l.b16 %v92
  %v539 = vunpack.c.h.b16 %v92
  %v540 = vunpack.c.l.b16 %v93
  %v541 = vunpack.c.h.b16 %v93
  %v542 = vunpack.c.l.b16 %v94
  %v543 = vunpack.c.l.b16 %v95
  %v544 = vunpack.c.h.b16 %v95
  %v545 = vunpack.c.l.b16 %v96
  %v546 = vunpack.c.h.b16 %v96
  %v547 = vunpack.c.l.b16 %v97
  %v548 = vunpack.c.h.b16 %v97
  %v549 = vunpack.c.l.b16 %v98
  %v550 = vunpack.c.h.b16 %v98
  %v551 = vunpack.c.l.b16 %v99
  %v552 = vunpack.c.l.b16 %v100
  %v553 = vunpack.c.h.b16 %v100
  %v554 = vunpack.c.l.b16 %v101
  %v555 = vunpack.c.h.b16 %v101
  %v556 = vunpack.c.l.b16 %v102
  %v557 = vunpack.c.h.b16 %v102
  %v558 = vunpack.c.l.b16 %v103
  %v559 = vunpack.c.h.b16 %v103
  %v560 = vunpack.c.l.b16 %v104
  %v561 = vunpack.c.l.b16 %v105
  %v562 = vunpack.c.h.b16 %v105
  %v563 = vunpack.c.l.b16 %v106
  %v564 = vunpack.c.h.b16 %v106
  %v565 = vunpack.c.l.b16 %v107
  %v566 = vunpack.c.h.b16 %v107
  %v567 = vunpack.c.l.b16 %v108
  %v568 = vunpack.c.h.b16 %v108
  %v569 = vunpack.c.l.b16 %v109
  %v570 = vunpack.c.l.b16 %v110
  %v571 = vunpack.c.h.b16 %v110
  %v572 = vunpack.c.l.b16 %v111
  %v573 = vunpack.c.h.b16 %v111
  %v574 = vunpack.c.l.b16 %v112
  %v575 = vunpack.c.h.b16 %v112
  %v576 = vunpack.c.l.b16 %v113
  %v577 = vunpack.c.h.b16 %v113
  %v578 = vunpack.c.l.b16 %v114
  %v579 = vunpack.c.l.b16 %v115
  %v580 = vunpack.c.h.b16 %v115
  %v581 = vunpack.c.l.b16 %v116
  %v582 = vunpack.c.h.b16 %v116
  %v583 = vunpack.c.l.b16 %v117
  %v584 = vunpack.c.h.b16 %v117
  %v585 = vunpack.c.l.b16 %v118
  %v586 = vunpack.c.h.b16 %v118
  %v587 = vunpack.c.l.b16 %v119
  %v588 = vunpack.c.l.b16 %v120
  %v589 = vunpack.c.h.b16 %v120
  %v590 = vunpack.c.l.b16 %v121
  %v591 = vunpack.c.h.b16 %v121
  %v592 = vunpack.c.l.b16 %v122
  %v593 = vunpack.c.h.b16 %v122
  %v594 = vunpack.c.l.b16 %v123
  %v595 = vunpack.c.h.b16 %v123
  %v596 = vunpack.c.l.b16 %v124
  %v597 = vunpack.c.l.b16 %v125
  %v598 = vunpack.c.h.b16 %v125
  %v599 = vunpack.c.l.b16 %v126
  %v600 = vunpack.c.h.b16 %v126
  %v601 = vunpack.c.l.b16 %v127
  %v602 = vunpack.c.h.b16 %v127
  %v603 = vunpack.c.l.b16 %v128
  %v604 = vunpack.c.h.b16 %v128
  %v605 = vunpack.c.l.b16 %v129
  %v606 = vunpack.c.l.b16 %v130
  %v607 = vunpack.c.h.b16 %v130
  %v608 = vunpack.c.l.b16 %v131
  %v609 = vunpack.c.h.b16 %v131
  %v610 = vunpack.c.l.b16 %v132
  %v611 = vunpack.c.h.b16 %v132
  %v612 = vunpack.c.l.b16 %v133
  %v613 = vunpack.c.h.b16 %v133
  %v614 = vunpack.c.l.b16 %v134
  %v615 = vpack.c.b16 %v408, %v399
  %v616 = vpack.c.b16 %v409, %v400
  %v617 = vpack.c.b16 %v410, %v401
  %v618 = vpack.c.b16 %v411, %v402
  %v619 = vpack.c.b16 %v412, %v403
  %v620 = vpack.c.b16 %v413, %v404
  %v621 = vpack.c.b16 %v414, %v405
  %v622 = vpack.c.b16 %v415, %v406
  %v623 = vpack.c.b16 %v416, %v407
  %v624 = vpack.c.b16 %v426, %v417
  %v625 = vpack.c.b16 %v427, %v418
  %v626 = vpack.c.b16 %v428, %v419
  %v627 = vpack.c.b16 %v429, %v420
  %v628 = vpack.c.b16 %v430, %v421
  %v629 = vpack.c.b16 %v431, %v422
  %v630 = vpack.c.b16 %v432, %v423
  %v631 = vpack.c.b16 %v433, %v424
  %v632 = vpack.c.b16 %v434, %v425
  %v633 = vpack.c.b16 %v444, %v435
  %v634 = vpack.c.b16 %v445, %v436
  %v635 = vpack.c.b16 %v446, %v437
  %v636 = vpack.c.b16 %v447, %v438
  %v637 = vpack.c.b16 %v448, %v439
  %v638 = vpack.c.b16 %v449, %v440
  %v639 = vpack.c.b16 %v450, %v441
  %v640 = vpack.c.b16 %v451, %v442
  %v641 = vpack.c.b16 %v452, %v443
  %v642 = vpack.c.b16 %v462, %v453
  %v643 = vpack.c.b16 %v463, %v454
  %v644 = vpack.c.b16 %v464, %v455
  %v645 = vpack.c.b16 %v465, %v456
  %v646 = vpack.c.b16 %v466, %v457
  %v647 = vpack.c.b16 %v467, %v458
  %v648 = vpack.c.b16 %v468, %v459
  %v649 = vpack.c.b16 %v469, %v460
  %v650 = vpack.c.b16 %v470, %v461
  %v651 = vpack.c.b16 %v480, %v471
  %v652 = vpack.c.b16 %v481, %v472
  %v653 = vpack.c.b16 %v482, %v473
  %v654 = vpack.c.b16 %v483, %v474
  %v655 = vpack.c.b16 %v484, %v475
  %v656 = vpack.c.b16 %v485, %v476
  %v657 = vpack.c.b16 %v486, %v477
  %v658 = vpack.c.b16 %v487, %v478
  %v659 = vpack.c.b16 %v488, %v479
  %v660 = vpack.c.b16 %v498, %v489
  %v661 = vpack.c.b16 %v499, %v490
  %v662 = vpack.c.b16 %v500, %v491
  %v663 = vpack.c.b16 %v501, %v492
  %v664 = vpack.c.b16 %v502, %v493
  %v665 = vpack.c.b16 %v503, %v494
  %v666 = vpack.c.b16 %v504, %v495
  %v667 = vpack.c.b16 %v505, %v496
  %v668 = vpack.c.b16 %v506, %v497
  %v669 = vpack.c.b16 %v516, %v507
  %v670 = vpack.c.b16 %v517, %v508
  %v671 = vpack.c.b16 %v518, %v509
  %v672 = vpack.c.b16 %v519, %v510
  %v673 = vpack.c.b16 %v520, %v511
  %v674 = vpack.c.b16 %v521, %v512
  %v675 = vpack.c.b16 %v522, %v513
  %v676 = vpack.c.b16 %v523, %v514
  %v677 = vpack.c.b16 %v524, %v515
  %v678 = vpack.c.b16 %v534, %v525
  %v679 = vpack.c.b16 %v535, %v526
  %v680 = vpack.c.b16 %v536, %v527
  %v681 = vpack.c.b16 %v537, %v528
  %v682 = vpack.c.b16 %v538, %v529
  %v683 = vpack.c.b16 %v539, %v530
  %v684 = vpack.c.b16 %v540, %v531
  %v685 = vpack.c.b16 %v541, %v532
  %v686 = vpack.c.b16 %v542, %v533
  %v687 = vpack.c.b16 %v552, %v543
  %v688 = vpack.c.b16 %v553, %v544
  %v689 = vpack.c.b16 %v554, %v545
  %v690 = vpack.c.b16 %v555, %v546
  %v691 = vpack.c.b16 %v556, %v547
  %v692 = vpack.c.b16 %v557, %v548
  %v693 = vpack.c.b16 %v558, %v549
  %v694 = vpack.c.b16 %v559, %v550
  %v695 = vpack.c.b16 %v560, %v551
  %v696 = vpack.c.b16 %v570, %v561
  %v697 = vpack.c.b16 %v571, %v562
  %v698 = vpack.c.b16 %v572, %v563
  %v699 = vpack.c.b16 %v573, %v564
  %v700 = vpack.c.b16 %v574, %v565
  %v701 = vpack.c.b16 %v575, %v566
  %v702 = vpack.c.b16 %v576, %v567
  %v703 = vpack.c.b16 %v577, %v568
  %v704 = vpack.c.b16 %v578, %v569
  %v705 = vpack.c.b16 %v588, %v579
  %v706 = vpack.c.b16 %v589, %v580
  %v707 = vpack.c.b16 %v590, %v581
  %v708 = vpack.c.b16 %v591, %v582
  %v709 = vpack.c.b16 %v592, %v583
  %v710 = vpack.c.b16 %v593, %v584
  %v711 = vpack.c.b16 %v594, %v585
  %v712 = vpack.c.b16 %v595, %v586
  %v713 = vpack.c.b16 %v596, %v587
  %v714 = vpack.c.b16 %v606, %v597
  %v715 = vpack.c.b16 %v607, %v598
  %v716 = vpack.c.b16 %v608, %v599
  %v717 = vpack.c.b16 %v609, %v600
  %v718 = vpack.c.b16 %v610, %v601
  %v719 = vpack.c.b16 %v611, %v602
  %v720 = vpack.c.b16 %v612, %v603
  %v721 = vpack.c.b16 %v613, %v604
  %v722 = vpack.c.b16 %v614, %v605
  %v975 = vunpack.c.l.b16 %v135
  %v976 = vunpack.c.l.b16 %v136
  %v977 = vunpack.c.l.b16 %v137
  %v978 = vunpack.c.l.b16 %v138
  %v979 = vunpack.c.l.b16 %v139
  %v980 = vunpack.c.l.b16 %v140
  %v981 = vunpack.c.l.b16 %v141
  %v982 = vunpack.c.l.b16 %v142
  %v983 = vunpack.c.l.b16 %v143
  %v984 = vunpack.c.l.b16 %v144
  %v985 = vunpack.c.l.b16 %v145
  %v986 = vunpack.c.l.b16 %v146
  %v987 = vunpack.c.l.b16 %v147
  %v988 = vunpack.c.l.b16 %v148
  %v989 = vunpack.c.l.b16 %v149
  %v990 = vunpack.c.l.b16 %v150
  %v991 = vunpack.c.l.b16 %v151
  %v992 = vunpack.c.l.b16 %v152
  %v993 = vunpack.c.l.b16 %v153
  %v994 = vunpack.c.l.b16 %v154
  %v995 = vunpack.c.l.b16 %v155
  %v996 = vunpack.c.l.b16 %v156
  %v997 = vunpack.c.l.b16 %v157
  %v998 = vunpack.c.l.b16 %v158
  %v999 = vunpack.c.l.b16 %v159
  %v1000 = vunpack.c.l.b16 %v160
  %v1001 = vunpack.c.l.b16 %v161
  %v1002 = vunpack.c.l.b16 %v162
  %v1003 = vunpack.c.l.b16 %v163
  %v1004 = vunpack.c.l.b16 %v164
  %v1005 = vunpack.c.l.b16 %v165
  %v1006 = vunpack.c.l.b16 %v166
  %v1007 = vunpack.c.l.b16 %v167
  %v1008 = vunpack.c.l.b16 %v168
  %v1009 = vunpack.c.l.b16 %v169
  %v1010 = vunpack.c.l.b16 %v170
  %v1011 = vunpack.c.l.b16 %v171
  %v1012 = vunpack.c.l.b16 %v172
  %v1013 = vunpack.c.l.b16 %v173
  %v1014 = vunpack.c.l.b16 %v174
  %v1015 = vunpack.c.l.b16 %v175
  %v1016 = vunpack.c.l.b16 %v176
  %v1017 = vunpack.c.l.b16 %v177
  %v1018 = vunpack.c.l.b16 %v178
  %v1019 = vunpack.c.l.b16 %v179
  %v1020 = vunpack.c.l.b16 %v180
  %v1021 = vunpack.c.l.b16 %v181
  %v1022 = vunpack.c.l.b16 %v182
  %v1023 = vunpack.c.l.b16 %v183
  %v1024 = vunpack.c.l.b16 %v184
  %v1025 = vunpack.c.l.b16 %v185
  %v1026 = vunpack.c.l.b16 %v186
  %v1027 = vunpack.c.l.b16 %v187
  %v1028 = vunpack.c.l.b16 %v188
  %v1029 = vunpack.c.l.b16 %v189
  %v1030 = vunpack.c.l.b16 %v190
  %v1031 = vunpack.c.l.b16 %v191
  %v1032 = vunpack.c.l.b16 %v192
  %v1033 = vunpack.c.l.b16 %v193
  %v1034 = vunpack.c.l.b16 %v194
  %v1035 = vunpack.c.l.b16 %v195
  %v1036 = vunpack.c.l.b16 %v196
  %v1037 = vunpack.c.l.b16 %v197
  %v1038 = vunpack.c.l.b16 %v198
  %v1039 = vunpack.c.l.b16 %v199
  %v1040 = vunpack.c.l.b16 %v200
  %v1041 = vunpack.c.l.b16 %v201
  %v1042 = vunpack.c.l.b16 %v202
  %v1043 = vunpack.c.l.b16 %v203
  %v1044 = vunpack.c.l.b16 %v204
  %v1045 = vunpack.c.l.b16 %v205
  %v1046 = vunpack.c.l.b16 %v206
  %v1047 = vunpack.c.l.b16 %v207
  %v1048 = vunpack.c.l.b16 %v208
  %v1049 = vunpack.c.l.b16 %v209
  %v1050 = vunpack.c.l.b16 %v210
  %v1051 = vunpack.c.l.b16 %v211
  %v1052 = vunpack.c.l.b16 %v212
  %v1053 = vunpack.c.l.b16 %v213
  %v1054 = vunpack.c.l.b16 %v214
  %v1055 = vunpack.c.l.b16 %v215
  %v1056 = vunpack.c.l.b16 %v216
  %v1057 = vunpack.c.l.b16 %v217
  %v1058 = vunpack.c.l.b16 %v218
  %v1059 = vunpack.c.l.b16 %v219
  %v1060 = vunpack.c.l.b16 %v220
  %v1061 = vunpack.c.l.b16 %v221
  %v1062 = vunpack.c.l.b16 %v222
  %v1063 = vunpack.c.l.b16 %v223
  %v1064 = vunpack.c.l.b16 %v224
  %v1065 = vunpack.c.l.b16 %v225
  %v1066 = vunpack.c.l.b16 %v226
  %v1067 = vunpack.c.l.b16 %v227
  %v1068 = vunpack.c.l.b16 %v228
  %v1069 = vunpack.c.l.b16 %v229
  %v1070 = vunpack.c.l.b16 %v230
  %v1071 = vunpack.c.l.b16 %v231
  %v1072 = vunpack.c.l.b16 %v232
  %v1073 = vunpack.c.l.b16 %v233
  %v1074 = vunpack.c.l.b16 %v234
  %v1075 = vunpack.c.l.b16 %v235
  %v1076 = vunpack.c.l.b16 %v236
  %v1077 = vunpack.c.l.b16 %v237
  %v1078 = vunpack.c.l.b16 %v238
  %v1079 = vunpack.c.l.b16 %v239
  %v1080 = vunpack.c.l.b16 %v240
  %v1081 = vunpack.c.l.b16 %v241
  %v1082 = vunpack.c.l.b16 %v242
  %v1083 = vunpack.c.l.b16 %v243
  %v1084 = vunpack.c.l.b16 %v244
  %v1085 = vunpack.c.l.b16 %v245
  %v1086 = vunpack.c.l.b16 %v246
  %v1087 = vunpack.c.l.b16 %v247
  %v1088 = vunpack.c.l.b16 %v248
  %v1089 = vunpack.c.l.b16 %v249
  %v1090 = vunpack.c.l.b16 %v250
  %v1091 = vunpack.c.l.b16 %v251
  %v1092 = vunpack.c.l.b16 %v252
  %v1093 = vunpack.c.l.b16 %v253
  %v1094 = vunpack.c.l.b16 %v254
  %v1095 = vunpack.c.l.b16 %v255
  %v1096 = vunpack.c.l.b16 %v256
  %v1097 = vunpack.c.l.b16 %v257
  %v1098 = vunpack.c.l.b16 %v258
  %v1099 = vunpack.c.l.b16 %v259
  %v1100 = vunpack.c.l.b16 %v260
  %v1101 = vunpack.c.l.b16 %v261
  %v1102 = vunpack.c.l.b16 %v262
  %v1103 = vunpack.c.l.b16 %v263
  %v1104 = vunpack.c.l.b16 %v264
  %v1105 = vunpack.c.l.b16 %v265
  %v1106 = vunpack.c.l.b16 %v266
  %v1107 = vunpack.c.l.b16 %v267
  %v1108 = vunpack.c.l.b16 %v268
  %v1109 = vunpack.c.l.b16 %v269
  %v1110 = vunpack.c.l.b16 %v270
  %v1111 = vunpack.c.l.b16 %v271
  %v1112 = vunpack.c.l.b16 %v272
  %v1113 = vunpack.c.l.b16 %v273
  %v1114 = vunpack.c.l.b16 %v274
  %v1115 = vunpack.c.l.b16 %v275
  %v1116 = vunpack.c.l.b16 %v276
  %v1117 = vunpack.c.l.b16 %v277
  %v1118 = vunpack.c.l.b16 %v278
  %v1119 = vpack.c.b16 %v976, %v975
  %v1120 = vpack.c.b16 %v978, %v977
  %v1121 = vpack.c.b16 %v980, %v979
  %v1122 = vpack.c.b16 %v982, %v981
  %v1123 = vpack.c.b16 %v984, %v983
  %v1124 = vpack.c.b16 %v986, %v985
  %v1125 = vpack.c.b16 %v988, %v987
  %v1126 = vpack.c.b16 %v990, %v989
  %v1127 = vpack.c.b16 %v992, %v991
  %v1128 = vpack.c.b16 %v994, %v993
  %v1129 = vpack.c.b16 %v996, %v995
  %v1130 = vpack.c.b16 %v998, %v997
  %v1131 = vpack.c.b16 %v1000, %v999
  %v1132 = vpack.c.b16 %v1002, %v1001
  %v1133 = vpack.c.b16 %v1004, %v1003
  %v1134 = vpack.c.b16 %v1006, %v1005
  %v1135 = vpack.c.b16 %v1008, %v1007
  %v1136 = vpack.c.b16 %v1010, %v1009
  %v1137 = vpack.c.b16 %v1012, %v1011
  %v1138 = vpack.c.b16 %v1014, %v1013
  %v1139 = vpack.c.b16 %v1016, %v1015
  %v1140 = vpack.c.b16 %v1018, %v1017
  %v1141 = vpack.c.b16 %v1020, %v1019
  %v1142 = vpack.c.b16 %v1022, %v1021
  %v1143 = vpack.c.b16 %v1024, %v1023
  %v1144 = vpack.c.b16 %v1026, %v1025
  %v1145 = vpack.c.b16 %v1028, %v1027
  %v1146 = vpack.c.b16 %v1030, %v1029
  %v1147 = vpack.c.b16 %v1032, %v1031
  %v1148 = vpack.c.b16 %v1034, %v1033
  %v1149 = vpack.c.b16 %v1036, %v1035
  %v1150 = vpack.c.b16 %v1038, %v1037
  %v1151 = vpack.c.b16 %v1040, %v1039
  %v1152 = vpack.c.b16 %v1042, %v1041
  %v1153 = vpack.c.b16 %v1044, %v1043
  %v1154 = vpack.c.b16 %v1046, %v1045
  %v1155 = vpack.c.b16 %v1048, %v1047
  %v1156 = vpack.c.b16 %v1050, %v1049
  %v1157 = vpack.c.b16 %v1052, %v1051
  %v1158 = vpack.c.b16 %v1054, %v1053
  %v1159 = vpack.c.b16 %v1056, %v1055
  %v1160 = vpack.c.b16 %v1058, %v1057
  %v1161 = vpack.c.b16 %v1060, %v1059
  %v1162 = vpack.c.b16 %v1062, %v1061
  %v1163 = vpack.c.b16 %v1064, %v1063
  %v1164 = vpack.c.b16 %v1066, %v1065
  %v1165 = vpack.c.b16 %v1068, %v1067
  %v1166 = vpack.c.b16 %v1070, %v1069
  %v1167 = vpack.c.b16 %v1072, %v1071
  %v1168 = vpack.c.b16 %v1074, %v1073
  %v1169 = vpack.c.b16 %v1076, %v1075
  %v1170 = vpack.c.b16 %v1078, %v1077
  %v1171 = vpack.c.b16 %v1080, %v1079
  %v1172 = vpack.c.b16 %v1082, %v1081
  %v1173 = vpack.c.b16 %v1084, %v1083
  %v1174 = vpack.c.b16 %v1086, %v1085
  %v1175 = vpack.c.b16 %v1088, %v1087
  %v1176 = vpack.c.b16 %v1090, %v1089
  %v1177 = vpack.c.b16 %v1092, %v1091
  %v1178 = vpack.c.b16 %v1094, %v1093
  %v1179 = vpack.c.b16 %v1096, %v1095
  %v1180 = vpack.c.b16 %v1098, %v1097
  %v1181 = vpack.c.b16 %v1100, %v1099
  %v1182 = vpack.c.b16 %v1102, %v1101
  %v1183 = vpack.c.b16 %v1104, %v1103
  %v1184 = vpack.c.b16 %v1106, %v1105
  %v1185 = vpack.c.b16 %v1108, %v1107
  %v1186 = vpack.c.b16 %v1110, %v1109
  %v1187 = vpack.c.b16 %v1112, %v1111
  %v1188 = vpack.c.b16 %v1114, %v1113
  %v1189 = vpack.c.b16 %v1116, %v1115
  %v1190 = vpack.c.b16 %v1118, %v1117
  %1263 = vmatprep.subr.bf16.mxu0 0
  %1264 = vmatpush1.bf16.msra.mxu0 %v1119
  %1265 = vmatprep.subr.bf16.mxu0 0
  %1266 = vmatpush1.bf16.msra.mxu0 %v1120
  %1267 = vmatprep.subr.bf16.mxu0 0
  %1268 = vmatpush1.bf16.msra.mxu0 %v1121
  %1269 = vmatprep.subr.bf16.mxu0 0
  %1270 = vmatpush1.bf16.msra.mxu0 %v1122
  %1271 = vmatprep.subr.bf16.mxu0 0
  %1272 = vmatpush1.bf16.msra.mxu0 %v1123
  %1273 = vmatprep.subr.bf16.mxu0 0
  %1274 = vmatpush1.bf16.msra.mxu0 %v1124
  %1275 = vmatprep.subr.bf16.mxu0 0
  %1276 = vmatpush1.bf16.msra.mxu0 %v1125
  %1277 = vmatprep.subr.bf16.mxu0 0
  %1278 = vmatpush1.bf16.msra.mxu0 %v1126
  %1279 = vmatprep.subr.bf16.mxu0 0
  %1280 = vmatpush1.bf16.msra.mxu0 %v1127
  %1281 = vmatprep.subr.bf16.mxu0 0
  %1282 = vmatpush1.bf16.msra.mxu0 %v1128
  %1283 = vmatprep.subr.bf16.mxu0 0
  %1284 = vmatpush1.bf16.msra.mxu0 %v1129
  %1285 = vmatprep.subr.bf16.mxu0 0
  %1286 = vmatpush1.bf16.msra.mxu0 %v1130
  %1287 = vmatprep.subr.bf16.mxu0 0
  %1288 = vmatpush1.bf16.msra.mxu0 %v1131
  %1289 = vmatprep.subr.bf16.mxu0 0
  %1290 = vmatpush1.bf16.msra.mxu0 %v1132
  %1291 = vmatprep.subr.bf16.mxu0 0
  %1292 = vmatpush1.bf16.msra.mxu0 %v1133
  %1293 = vmatprep.subr.bf16.mxu0 0
  %1294 = vmatpush1.bf16.msra.mxu0 %v1134
  %1295 = vmatprep.mubr.bf16.mxu0 %v616
  %1296 = vmatmul.mubr.bf16.gmra.mrb[0].mxu0 %v615
  %v1297 = vpop.f32.mrb[0].mxu0
  %v1298 = vadd.f32 0.0, %v1297
  %v1299 = vpop.f32.mrb[0].mxu0
  %v1300 = vpop.f32.mrb[0].mxu0
  %v1301 = vadd.f32 0.0, %v1300
  %v1302 = vpop.f32.mrb[0].mxu0
  %1303 = vmatprep.mubr.bf16.mxu0 %v625
  %1304 = vmatmul.mubr.bf16.gmra.mrb[0].mxu0 %v624
  %v1305 = vpop.f32.mrb[0].mxu0
  %v1306 = vadd.f32 0.0, %v1305
  %v1307 = vpop.f32.mrb[0].mxu0
  %v1308 = vpop.f32.mrb[0].mxu0
  %v1309 = vadd.f32 0.0, %v1308
  %v1310 = vpop.f32.mrb[0].mxu0
  %1311 = vmatprep.mubr.bf16.mxu0 %v634
  %1312 = vmatmul.mubr.bf16.gmra.mrb[0].mxu0 %v633
  %v1313 = vpop.f32.mrb[0].mxu0
  %v1314 = vadd.f32 0.0, %v1313
  %v1315 = vpop.f32.mrb[0].mxu0
  %v1316 = vpop.f32.mrb[0].mxu0
  %v1317 = vadd.f32 0.0, %v1316
  %v1318 = vpop.f32.mrb[0].mxu0
  %1319 = vmatprep.mubr.bf16.mxu0 %v643
  %1320 = vmatmul.mubr.bf16.gmra.mrb[0].mxu0 %v642
  %v1321 = vpop.f32.mrb[0].mxu0
  %v1322 = vadd.f32 0.0, %v1321
  %v1323 = vpop.f32.mrb[0].mxu0
  %v1324 = vpop.f32.mrb[0].mxu0
  %v1325 = vadd.f32 0.0, %v1324
  %v1326 = vpop.f32.mrb[0].mxu0
  %1327 = vmatprep.mubr.bf16.mxu0 %v652
  %1328 = vmatmul.mubr.bf16.gmra.mrb[0].mxu0 %v651
  %v1329 = vpop.f32.mrb[0].mxu0
  %v1330 = vadd.f32 0.0, %v1329
  %v1331 = vpop.f32.mrb[0].mxu0
  %v1332 = vpop.f32.mrb[0].mxu0
  %v1333 = vadd.f32 0.0, %v1332
  %v1334 = vpop.f32.mrb[0].mxu0
  %1335 = vmatprep.mubr.bf16.mxu0 %v661
  %1336 = vmatmul.mubr.bf16.gmra.mrb[0].mxu0 %v660
  %v1337 = vpop.f32.mrb[0].mxu0
  %v1338 = vadd.f32 0.0, %v1337
  %v1339 = vpop.f32.mrb[0].mxu0
  %v1340 = vpop.f32.mrb[0].mxu0
  %v1341 = vadd.f32 0.0, %v1340
  %v1342 = vpop.f32.mrb[0].mxu0
  %1343 = vmatprep.mubr.bf16.mxu0 %v670
  %1344 = vmatmul.mubr.bf16.gmra.mrb[0].mxu0 %v669
  %v1345 = vpop.f32.mrb[0].mxu0
  %v1346 = vadd.f32 0.0, %v1345
  %v1347 = vpop.f32.mrb[0].mxu0
  %v1348 = vpop.f32.mrb[0].mxu0
  %v1349 = vadd.f32 0.0, %v1348
  %v1350 = vpop.f32.mrb[0].mxu0
  %1351 = vmatprep.mubr.bf16.mxu0 %v679
  %1352 = vmatmul.mubr.bf16.gmra.mrb[0].mxu0 %v678
  %v1353 = vpop.f32.mrb[0].mxu0
  %v1354 = vadd.f32 0.0, %v1353
  %v1355 = vpop.f32.mrb[0].mxu0
  %v1356 = vpop.f32.mrb[0].mxu0
  %v1357 = vadd.f32 0.0, %v1356
  %v1358 = vpop.f32.mrb[0].mxu0
  %1359 = vmatprep.mubr.bf16.mxu0 %v688
  %1360 = vmatmul.mubr.bf16.gmra.mrb[0].mxu0 %v687
  %v1361 = vpop.f32.mrb[0].mxu0
  %v1362 = vadd.f32 0.0, %v1361
  %v1363 = vpop.f32.mrb[0].mxu0
  %v1364 = vpop.f32.mrb[0].mxu0
  %v1365 = vadd.f32 0.0, %v1364
  %v1366 = vpop.f32.mrb[0].mxu0
  %1367 = vmatprep.mubr.bf16.mxu0 %v697
  %1368 = vmatmul.mubr.bf16.gmra.mrb[0].mxu0 %v696
  %v1369 = vpop.f32.mrb[0].mxu0
  %v1370 = vadd.f32 0.0, %v1369
  %v1371 = vpop.f32.mrb[0].mxu0
  %v1372 = vpop.f32.mrb[0].mxu0
  %v1373 = vadd.f32 0.0, %v1372
  %v1374 = vpop.f32.mrb[0].mxu0
  %1375 = vmatprep.mubr.bf16.mxu0 %v706
  %1376 = vmatmul.mubr.bf16.gmra.mrb[0].mxu0 %v705
  %v1377 = vpop.f32.mrb[0].mxu0
  %v1378 = vadd.f32 0.0, %v1377
  %v1379 = vpop.f32.mrb[0].mxu0
  %v1380 = vpop.f32.mrb[0].mxu0
  %v1381 = vadd.f32 0.0, %v1380
  %v1382 = vpop.f32.mrb[0].mxu0
  %1383 = vmatprep.mubr.bf16.mxu0 %v715
  %1384 = vmatmul.mubr.bf16.gmra.mrb[0].mxu0 %v714
  %v1385 = vpop.f32.mrb[0].mxu0
  %v1386 = vadd.f32 0.0, %v1385
  %v1387 = vpop.f32.mrb[0].mxu0
  %v1388 = vpop.f32.mrb[0].mxu0
  %v1389 = vadd.f32 0.0, %v1388
  %v1390 = vpop.f32.mrb[0].mxu0
  %1391 = vdwg.mxu0
  %1392 = vmatprep.subr.bf16.mxu0 0
  %1393 = vmatpush1.bf16.msra.mxu0 %v1135
  %1394 = vmatprep.subr.bf16.mxu0 0
  %1395 = vmatpush1.bf16.msra.mxu0 %v1136
  %1396 = vmatprep.subr.bf16.mxu0 0
  %1397 = vmatpush1.bf16.msra.mxu0 %v1137
  %1398 = vmatprep.subr.bf16.mxu0 0
  %1399 = vmatpush1.bf16.msra.mxu0 %v1138
  %1400 = vmatprep.subr.bf16.mxu0 0
  %1401 = vmatpush1.bf16.msra.mxu0 %v1139
  %1402 = vmatprep.subr.bf16.mxu0 0
  %1403 = vmatpush1.bf16.msra.mxu0 %v1140
  %1404 = vmatprep.subr.bf16.mxu0 0
  %1405 = vmatpush1.bf16.msra.mxu0 %v1141
  %1406 = vmatprep.subr.bf16.mxu0 0
  %1407 = vmatpush1.bf16.msra.mxu0 %v1142
  %1408 = vmatprep.subr.bf16.mxu0 0
  %1409 = vmatpush1.bf16.msra.mxu0 %v1143
  %1410 = vmatprep.subr.bf16.mxu0 0
  %1411 = vmatpush1.bf16.msra.mxu0 %v1144
  %1412 = vmatprep.subr.bf16.mxu0 0
  %1413 = vmatpush1.bf16.msra.mxu0 %v1145
  %1414 = vmatprep.subr.bf16.mxu0 0
  %1415 = vmatpush1.bf16.msra.mxu0 %v1146
  %1416 = vmatprep.subr.bf16.mxu0 0
  %1417 = vmatpush1.bf16.msra.mxu0 %v1147
  %1418 = vmatprep.subr.bf16.mxu0 0
  %1419 = vmatpush1.bf16.msra.mxu0 %v1148
  %1420 = vmatprep.subr.bf16.mxu0 0
  %1421 = vmatpush1.bf16.msra.mxu0 %v1149
  %1422 = vmatprep.subr.bf16.mxu0 0
  %1423 = vmatpush1.bf16.msra.mxu0 %v1150
  %1424 = vmatprep.mubr.bf16.mxu0 %v618
  %1425 = vmatmul.mubr.bf16.gmra.mrb[0].mxu0 %v617
  %v1426 = vpop.f32.mrb[0].mxu0
  %v1427 = vadd.f32 %v1298, %v1426
  %v1428 = vpop.f32.mrb[0].mxu0
  %v1429 = vpop.f32.mrb[0].mxu0
  %v1430 = vadd.f32 %v1301, %v1429
  %v1431 = vpop.f32.mrb[0].mxu0
  %1432 = vmatprep.mubr.bf16.mxu0 %v627
  %1433 = vmatmul.mubr.bf16.gmra.mrb[0].mxu0 %v626
  %v1434 = vpop.f32.mrb[0].mxu0
  %v1435 = vadd.f32 %v1306, %v1434
  %v1436 = vpop.f32.mrb[0].mxu0
  %v1437 = vpop.f32.mrb[0].mxu0
  %v1438 = vadd.f32 %v1309, %v1437
  %v1439 = vpop.f32.mrb[0].mxu0
  %1440 = vmatprep.mubr.bf16.mxu0 %v636
  %1441 = vmatmul.mubr.bf16.gmra.mrb[0].mxu0 %v635
  %v1442 = vpop.f32.mrb[0].mxu0
  %v1443 = vadd.f32 %v1314, %v1442
  %v1444 = vpop.f32.mrb[0].mxu0
  %v1445 = vpop.f32.mrb[0].mxu0
  %v1446 = vadd.f32 %v1317, %v1445
  %v1447 = vpop.f32.mrb[0].mxu0
  %1448 = vmatprep.mubr.bf16.mxu0 %v645
  %1449 = vmatmul.mubr.bf16.gmra.mrb[0].mxu0 %v644
  %v1450 = vpop.f32.mrb[0].mxu0
  %v1451 = vadd.f32 %v1322, %v1450
  %v1452 = vpop.f32.mrb[0].mxu0
  %v1453 = vpop.f32.mrb[0].mxu0
  %v1454 = vadd.f32 %v1325, %v1453
  %v1455 = vpop.f32.mrb[0].mxu0
  %1456 = vmatprep.mubr.bf16.mxu0 %v654
  %1457 = vmatmul.mubr.bf16.gmra.mrb[0].mxu0 %v653
  %v1458 = vpop.f32.mrb[0].mxu0
  %v1459 = vadd.f32 %v1330, %v1458
  %v1460 = vpop.f32.mrb[0].mxu0
  %v1461 = vpop.f32.mrb[0].mxu0
  %v1462 = vadd.f32 %v1333, %v1461
  %v1463 = vpop.f32.mrb[0].mxu0
  %1464 = vmatprep.mubr.bf16.mxu0 %v663
  %1465 = vmatmul.mubr.bf16.gmra.mrb[0].mxu0 %v662
  %v1466 = vpop.f32.mrb[0].mxu0
  %v1467 = vadd.f32 %v1338, %v1466
  %v1468 = vpop.f32.mrb[0].mxu0
  %v1469 = vpop.f32.mrb[0].mxu0
  %v1470 = vadd.f32 %v1341, %v1469
  %v1471 = vpop.f32.mrb[0].mxu0
  %1472 = vmatprep.mubr.bf16.mxu0 %v672
  %1473 = vmatmul.mubr.bf16.gmra.mrb[0].mxu0 %v671
  %v1474 = vpop.f32.mrb[0].mxu0
  %v1475 = vadd.f32 %v1346, %v1474
  %v1476 = vpop.f32.mrb[0].mxu0
  %v1477 = vpop.f32.mrb[0].mxu0
  %v1478 = vadd.f32 %v1349, %v1477
  %v1479 = vpop.f32.mrb[0].mxu0
  %1480 = vmatprep.mubr.bf16.mxu0 %v681
  %1481 = vmatmul.mubr.bf16.gmra.mrb[0].mxu0 %v680
  %v1482 = vpop.f32.mrb[0].mxu0
  %v1483 = vadd.f32 %v1354, %v1482
  %v1484 = vpop.f32.mrb[0].mxu0
  %v1485 = vpop.f32.mrb[0].mxu0
  %v1486 = vadd.f32 %v1357, %v1485
  %v1487 = vpop.f32.mrb[0].mxu0
  %1488 = vmatprep.mubr.bf16.mxu0 %v690
  %1489 = vmatmul.mubr.bf16.gmra.mrb[0].mxu0 %v689
  %v1490 = vpop.f32.mrb[0].mxu0
  %v1491 = vadd.f32 %v1362, %v1490
  %v1492 = vpop.f32.mrb[0].mxu0
  %v1493 = vpop.f32.mrb[0].mxu0
  %v1494 = vadd.f32 %v1365, %v1493
  %v1495 = vpop.f32.mrb[0].mxu0
  %1496 = vmatprep.mubr.bf16.mxu0 %v699
  %1497 = vmatmul.mubr.bf16.gmra.mrb[0].mxu0 %v698
  %v1498 = vpop.f32.mrb[0].mxu0
  %v1499 = vadd.f32 %v1370, %v1498
  %v1500 = vpop.f32.mrb[0].mxu0
  %v1501 = vpop.f32.mrb[0].mxu0
  %v1502 = vadd.f32 %v1373, %v1501
  %v1503 = vpop.f32.mrb[0].mxu0
  %1504 = vmatprep.mubr.bf16.mxu0 %v708
  %1505 = vmatmul.mubr.bf16.gmra.mrb[0].mxu0 %v707
  %v1506 = vpop.f32.mrb[0].mxu0
  %v1507 = vadd.f32 %v1378, %v1506
  %v1508 = vpop.f32.mrb[0].mxu0
  %v1509 = vpop.f32.mrb[0].mxu0
  %v1510 = vadd.f32 %v1381, %v1509
  %v1511 = vpop.f32.mrb[0].mxu0
  %1512 = vmatprep.mubr.bf16.mxu0 %v717
  %1513 = vmatmul.mubr.bf16.gmra.mrb[0].mxu0 %v716
  %v1514 = vpop.f32.mrb[0].mxu0
  %v1515 = vadd.f32 %v1386, %v1514
  %v1516 = vpop.f32.mrb[0].mxu0
  %v1517 = vpop.f32.mrb[0].mxu0
  %v1518 = vadd.f32 %v1389, %v1517
  %v1519 = vpop.f32.mrb[0].mxu0
  %1520 = vdwg.mxu0
  %1521 = vmatprep.subr.bf16.mxu0 0
  %1522 = vmatpush1.bf16.msra.mxu0 %v1151
  %1523 = vmatprep.subr.bf16.mxu0 0
  %1524 = vmatpush1.bf16.msra.mxu0 %v1152
  %1525 = vmatprep.subr.bf16.mxu0 0
  %1526 = vmatpush1.bf16.msra.mxu0 %v1153
  %1527 = vmatprep.subr.bf16.mxu0 0
  %1528 = vmatpush1.bf16.msra.mxu0 %v1154
  %1529 = vmatprep.subr.bf16.mxu0 0
  %1530 = vmatpush1.bf16.msra.mxu0 %v1155
  %1531 = vmatprep.subr.bf16.mxu0 0
  %1532 = vmatpush1.bf16.msra.mxu0 %v1156
  %1533 = vmatprep.subr.bf16.mxu0 0
  %1534 = vmatpush1.bf16.msra.mxu0 %v1157
  %1535 = vmatprep.subr.bf16.mxu0 0
  %1536 = vmatpush1.bf16.msra.mxu0 %v1158
  %1537 = vmatprep.subr.bf16.mxu0 0
  %1538 = vmatpush1.bf16.msra.mxu0 %v1159
  %1539 = vmatprep.subr.bf16.mxu0 0
  %1540 = vmatpush1.bf16.msra.mxu0 %v1160
  %1541 = vmatprep.subr.bf16.mxu0 0
  %1542 = vmatpush1.bf16.msra.mxu0 %v1161
  %1543 = vmatprep.subr.bf16.mxu0 0
  %1544 = vmatpush1.bf16.msra.mxu0 %v1162
  %1545 = vmatprep.subr.bf16.mxu0 0
  %1546 = vmatpush1.bf16.msra.mxu0 %v1163
  %1547 = vmatprep.subr.bf16.mxu0 0
  %1548 = vmatpush1.bf16.msra.mxu0 %v1164
  %1549 = vmatprep.subr.bf16.mxu0 0
  %1550 = vmatpush1.bf16.msra.mxu0 %v1165
  %1551 = vmatprep.subr.bf16.mxu0 0
  %1552 = vmatpush1.bf16.msra.mxu0 %v1166
  %1553 = vmatprep.mubr.bf16.mxu0 %v620
  %1554 = vmatmul.mubr.bf16.gmra.mrb[0].mxu0 %v619
  %v1555 = vpop.f32.mrb[0].mxu0
  %v1556 = vadd.f32 %v1427, %v1555
  %v1557 = vpop.f32.mrb[0].mxu0
  %v1558 = vpop.f32.mrb[0].mxu0
  %v1559 = vadd.f32 %v1430, %v1558
  %v1560 = vpop.f32.mrb[0].mxu0
  %1561 = vmatprep.mubr.bf16.mxu0 %v629
  %1562 = vmatmul.mubr.bf16.gmra.mrb[0].mxu0 %v628
  %v1563 = vpop.f32.mrb[0].mxu0
  %v1564 = vadd.f32 %v1435, %v1563
  %v1565 = vpop.f32.mrb[0].mxu0
  %v1566 = vpop.f32.mrb[0].mxu0
  %v1567 = vadd.f32 %v1438, %v1566
  %v1568 = vpop.f32.mrb[0].mxu0
  %1569 = vmatprep.mubr.bf16.mxu0 %v638
  %1570 = vmatmul.mubr.bf16.gmra.mrb[0].mxu0 %v637
  %v1571 = vpop.f32.mrb[0].mxu0
  %v1572 = vadd.f32 %v1443, %v1571
  %v1573 = vpop.f32.mrb[0].mxu0
  %v1574 = vpop.f32.mrb[0].mxu0
  %v1575 = vadd.f32 %v1446, %v1574
  %v1576 = vpop.f32.mrb[0].mxu0
  %1577 = vmatprep.mubr.bf16.mxu0 %v647
  %1578 = vmatmul.mubr.bf16.gmra.mrb[0].mxu0 %v646
  %v1579 = vpop.f32.mrb[0].mxu0
  %v1580 = vadd.f32 %v1451, %v1579
  %v1581 = vpop.f32.mrb[0].mxu0
  %v1582 = vpop.f32.mrb[0].mxu0
  %v1583 = vadd.f32 %v1454, %v1582
  %v1584 = vpop.f32.mrb[0].mxu0
  %1585 = vmatprep.mubr.bf16.mxu0 %v656
  %1586 = vmatmul.mubr.bf16.gmra.mrb[0].mxu0 %v655
  %v1587 = vpop.f32.mrb[0].mxu0
  %v1588 = vadd.f32 %v1459, %v1587
  %v1589 = vpop.f32.mrb[0].mxu0
  %v1590 = vpop.f32.mrb[0].mxu0
  %v1591 = vadd.f32 %v1462, %v1590
  %v1592 = vpop.f32.mrb[0].mxu0
  %1593 = vmatprep.mubr.bf16.mxu0 %v665
  %1594 = vmatmul.mubr.bf16.gmra.mrb[0].mxu0 %v664
  %v1595 = vpop.f32.mrb[0].mxu0
  %v1596 = vadd.f32 %v1467, %v1595
  %v1597 = vpop.f32.mrb[0].mxu0
  %v1598 = vpop.f32.mrb[0].mxu0
  %v1599 = vadd.f32 %v1470, %v1598
  %v1600 = vpop.f32.mrb[0].mxu0
  %1601 = vmatprep.mubr.bf16.mxu0 %v674
  %1602 = vmatmul.mubr.bf16.gmra.mrb[0].mxu0 %v673
  %v1603 = vpop.f32.mrb[0].mxu0
  %v1604 = vadd.f32 %v1475, %v1603
  %v1605 = vpop.f32.mrb[0].mxu0
  %v1606 = vpop.f32.mrb[0].mxu0
  %v1607 = vadd.f32 %v1478, %v1606
  %v1608 = vpop.f32.mrb[0].mxu0
  %1609 = vmatprep.mubr.bf16.mxu0 %v683
  %1610 = vmatmul.mubr.bf16.gmra.mrb[0].mxu0 %v682
  %v1611 = vpop.f32.mrb[0].mxu0
  %v1612 = vadd.f32 %v1483, %v1611
  %v1613 = vpop.f32.mrb[0].mxu0
  %v1614 = vpop.f32.mrb[0].mxu0
  %v1615 = vadd.f32 %v1486, %v1614
  %v1616 = vpop.f32.mrb[0].mxu0
  %1617 = vmatprep.mubr.bf16.mxu0 %v692
  %1618 = vmatmul.mubr.bf16.gmra.mrb[0].mxu0 %v691
  %v1619 = vpop.f32.mrb[0].mxu0
  %v1620 = vadd.f32 %v1491, %v1619
  %v1621 = vpop.f32.mrb[0].mxu0
  %v1622 = vpop.f32.mrb[0].mxu0
  %v1623 = vadd.f32 %v1494, %v1622
  %v1624 = vpop.f32.mrb[0].mxu0
  %1625 = vmatprep.mubr.bf16.mxu0 %v701
  %1626 = vmatmul.mubr.bf16.gmra.mrb[0].mxu0 %v700
  %v1627 = vpop.f32.mrb[0].mxu0
  %v1628 = vadd.f32 %v1499, %v1627
  %v1629 = vpop.f32.mrb[0].mxu0
  %v1630 = vpop.f32.mrb[0].mxu0
  %v1631 = vadd.f32 %v1502, %v1630
  %v1632 = vpop.f32.mrb[0].mxu0
  %1633 = vmatprep.mubr.bf16.mxu0 %v710
  %1634 = vmatmul.mubr.bf16.gmra.mrb[0].mxu0 %v709
  %v1635 = vpop.f32.mrb[0].mxu0
  %v1636 = vadd.f32 %v1507, %v1635
  %v1637 = vpop.f32.mrb[0].mxu0
  %v1638 = vpop.f32.mrb[0].mxu0
  %v1639 = vadd.f32 %v1510, %v1638
  %v1640 = vpop.f32.mrb[0].mxu0
  %1641 = vmatprep.mubr.bf16.mxu0 %v719
  %1642 = vmatmul.mubr.bf16.gmra.mrb[0].mxu0 %v718
  %v1643 = vpop.f32.mrb[0].mxu0
  %v1644 = vadd.f32 %v1515, %v1643
  %v1645 = vpop.f32.mrb[0].mxu0
  %v1646 = vpop.f32.mrb[0].mxu0
  %v1647 = vadd.f32 %v1518, %v1646
  %v1648 = vpop.f32.mrb[0].mxu0
  %1649 = vdwg.mxu0
  %1650 = vmatprep.subr.bf16.mxu0 0
  %1651 = vmatpush1.bf16.msra.mxu0 %v1167
  %1652 = vmatprep.subr.bf16.mxu0 0
  %1653 = vmatpush1.bf16.msra.mxu0 %v1168
  %1654 = vmatprep.subr.bf16.mxu0 0
  %1655 = vmatpush1.bf16.msra.mxu0 %v1169
  %1656 = vmatprep.subr.bf16.mxu0 0
  %1657 = vmatpush1.bf16.msra.mxu0 %v1170
  %1658 = vmatprep.subr.bf16.mxu0 0
  %1659 = vmatpush1.bf16.msra.mxu0 %v1171
  %1660 = vmatprep.subr.bf16.mxu0 0
  %1661 = vmatpush1.bf16.msra.mxu0 %v1172
  %1662 = vmatprep.subr.bf16.mxu0 0
  %1663 = vmatpush1.bf16.msra.mxu0 %v1173
  %1664 = vmatprep.subr.bf16.mxu0 0
  %1665 = vmatpush1.bf16.msra.mxu0 %v1174
  %1666 = vmatprep.subr.bf16.mxu0 0
  %1667 = vmatpush1.bf16.msra.mxu0 %v1175
  %1668 = vmatprep.subr.bf16.mxu0 0
  %1669 = vmatpush1.bf16.msra.mxu0 %v1176
  %1670 = vmatprep.subr.bf16.mxu0 0
  %1671 = vmatpush1.bf16.msra.mxu0 %v1177
  %1672 = vmatprep.subr.bf16.mxu0 0
  %1673 = vmatpush1.bf16.msra.mxu0 %v1178
  %1674 = vmatprep.subr.bf16.mxu0 0
  %1675 = vmatpush1.bf16.msra.mxu0 %v1179
  %1676 = vmatprep.subr.bf16.mxu0 0
  %1677 = vmatpush1.bf16.msra.mxu0 %v1180
  %1678 = vmatprep.subr.bf16.mxu0 0
  %1679 = vmatpush1.bf16.msra.mxu0 %v1181
  %1680 = vmatprep.subr.bf16.mxu0 0
  %1681 = vmatpush1.bf16.msra.mxu0 %v1182
  %1682 = vmatprep.mubr.bf16.mxu0 %v622
  %1683 = vmatmul.mubr.bf16.gmra.mrb[0].mxu0 %v621
  %v1684 = vpop.f32.mrb[0].mxu0
  %v1685 = vadd.f32 %v1556, %v1684
  %v1686 = vpop.f32.mrb[0].mxu0
  %v1687 = vpop.f32.mrb[0].mxu0
  %v1688 = vadd.f32 %v1559, %v1687
  %v1689 = vpop.f32.mrb[0].mxu0
  %1690 = vmatprep.mubr.bf16.mxu0 %v631
  %1691 = vmatmul.mubr.bf16.gmra.mrb[0].mxu0 %v630
  %v1692 = vpop.f32.mrb[0].mxu0
  %v1693 = vadd.f32 %v1564, %v1692
  %v1694 = vpop.f32.mrb[0].mxu0
  %v1695 = vpop.f32.mrb[0].mxu0
  %v1696 = vadd.f32 %v1567, %v1695
  %v1697 = vpop.f32.mrb[0].mxu0
  %1698 = vmatprep.mubr.bf16.mxu0 %v640
  %1699 = vmatmul.mubr.bf16.gmra.mrb[0].mxu0 %v639
  %v1700 = vpop.f32.mrb[0].mxu0
  %v1701 = vadd.f32 %v1572, %v1700
  %v1702 = vpop.f32.mrb[0].mxu0
  %v1703 = vpop.f32.mrb[0].mxu0
  %v1704 = vadd.f32 %v1575, %v1703
  %v1705 = vpop.f32.mrb[0].mxu0
  %1706 = vmatprep.mubr.bf16.mxu0 %v649
  %1707 = vmatmul.mubr.bf16.gmra.mrb[0].mxu0 %v648
  %v1708 = vpop.f32.mrb[0].mxu0
  %v1709 = vadd.f32 %v1580, %v1708
  %v1710 = vpop.f32.mrb[0].mxu0
  %v1711 = vpop.f32.mrb[0].mxu0
  %v1712 = vadd.f32 %v1583, %v1711
  %v1713 = vpop.f32.mrb[0].mxu0
  %1714 = vmatprep.mubr.bf16.mxu0 %v658
  %1715 = vmatmul.mubr.bf16.gmra.mrb[0].mxu0 %v657
  %v1716 = vpop.f32.mrb[0].mxu0
  %v1717 = vadd.f32 %v1588, %v1716
  %v1718 = vpop.f32.mrb[0].mxu0
  %v1719 = vpop.f32.mrb[0].mxu0
  %v1720 = vadd.f32 %v1591, %v1719
  %v1721 = vpop.f32.mrb[0].mxu0
  %1722 = vmatprep.mubr.bf16.mxu0 %v667
  %1723 = vmatmul.mubr.bf16.gmra.mrb[0].mxu0 %v666
  %v1724 = vpop.f32.mrb[0].mxu0
  %v1725 = vadd.f32 %v1596, %v1724
  %v1726 = vpop.f32.mrb[0].mxu0
  %v1727 = vpop.f32.mrb[0].mxu0
  %v1728 = vadd.f32 %v1599, %v1727
  %v1729 = vpop.f32.mrb[0].mxu0
  %1730 = vmatprep.mubr.bf16.mxu0 %v676
  %1731 = vmatmul.mubr.bf16.gmra.mrb[0].mxu0 %v675
  %v1732 = vpop.f32.mrb[0].mxu0
  %v1733 = vadd.f32 %v1604, %v1732
  %v1734 = vpop.f32.mrb[0].mxu0
  %v1735 = vpop.f32.mrb[0].mxu0
  %v1736 = vadd.f32 %v1607, %v1735
  %v1737 = vpop.f32.mrb[0].mxu0
  %1738 = vmatprep.mubr.bf16.mxu0 %v685
  %1739 = vmatmul.mubr.bf16.gmra.mrb[0].mxu0 %v684
  %v1740 = vpop.f32.mrb[0].mxu0
  %v1741 = vadd.f32 %v1612, %v1740
  %v1742 = vpop.f32.mrb[0].mxu0
  %v1743 = vpop.f32.mrb[0].mxu0
  %v1744 = vadd.f32 %v1615, %v1743
  %v1745 = vpop.f32.mrb[0].mxu0
  %1746 = vmatprep.mubr.bf16.mxu0 %v694
  %1747 = vmatmul.mubr.bf16.gmra.mrb[0].mxu0 %v693
  %v1748 = vpop.f32.mrb[0].mxu0
  %v1749 = vadd.f32 %v1620, %v1748
  %v1750 = vpop.f32.mrb[0].mxu0
  %v1751 = vpop.f32.mrb[0].mxu0
  %v1752 = vadd.f32 %v1623, %v1751
  %v1753 = vpop.f32.mrb[0].mxu0
  %1754 = vmatprep.mubr.bf16.mxu0 %v703
  %1755 = vmatmul.mubr.bf16.gmra.mrb[0].mxu0 %v702
  %v1756 = vpop.f32.mrb[0].mxu0
  %v1757 = vadd.f32 %v1628, %v1756
  %v1758 = vpop.f32.mrb[0].mxu0
  %v1759 = vpop.f32.mrb[0].mxu0
  %v1760 = vadd.f32 %v1631, %v1759
  %v1761 = vpop.f32.mrb[0].mxu0
  %1762 = vmatprep.mubr.bf16.mxu0 %v712
  %1763 = vmatmul.mubr.bf16.gmra.mrb[0].mxu0 %v711
  %v1764 = vpop.f32.mrb[0].mxu0
  %v1765 = vadd.f32 %v1636, %v1764
  %v1766 = vpop.f32.mrb[0].mxu0
  %v1767 = vpop.f32.mrb[0].mxu0
  %v1768 = vadd.f32 %v1639, %v1767
  %v1769 = vpop.f32.mrb[0].mxu0
  %1770 = vmatprep.mubr.bf16.mxu0 %v721
  %1771 = vmatmul.mubr.bf16.gmra.mrb[0].mxu0 %v720
  %v1772 = vpop.f32.mrb[0].mxu0
  %v1773 = vadd.f32 %v1644, %v1772
  %v1774 = vpop.f32.mrb[0].mxu0
  %v1775 = vpop.f32.mrb[0].mxu0
  %v1776 = vadd.f32 %v1647, %v1775
  %v1777 = vpop.f32.mrb[0].mxu0
  %1778 = vdwg.mxu0
  %1779 = vmatprep.subr.bf16.mxu0 0
  %1780 = vmatpush1.bf16.msra.mxu0 %v1183
  %1781 = vmatprep.subr.bf16.mxu0 0
  %1782 = vmatpush1.bf16.msra.mxu0 %v1184
  %1783 = vmatprep.subr.bf16.mxu0 0
  %1784 = vmatpush1.bf16.msra.mxu0 %v1185
  %1785 = vmatprep.subr.bf16.mxu0 0
  %1786 = vmatpush1.bf16.msra.mxu0 %v1186
  %1787 = vmatprep.subr.bf16.mxu0 0
  %1788 = vmatpush1.bf16.msra.mxu0 %v1187
  %1789 = vmatprep.subr.bf16.mxu0 0
  %1790 = vmatpush1.bf16.msra.mxu0 %v1188
  %1791 = vmatprep.subr.bf16.mxu0 0
  %1792 = vmatpush1.bf16.msra.mxu0 %v1189
  %1793 = vmatprep.subr.bf16.mxu0 0
  %1794 = vmatpush1.bf16.msra.mxu0 %v1190
  %1795 = vmatprep.subr.bf16.mxu0 0
  %1796 = vmatpush1.bf16.msra.mxu0 0
  %1797 = vmatprep.subr.bf16.mxu0 0
  %1798 = vmatpush1.bf16.msra.mxu0 0
  %1799 = vmatprep.subr.bf16.mxu0 0
  %1800 = vmatpush1.bf16.msra.mxu0 0
  %1801 = vmatprep.subr.bf16.mxu0 0
  %1802 = vmatpush1.bf16.msra.mxu0 0
  %1803 = vmatprep.subr.bf16.mxu0 0
  %1804 = vmatpush1.bf16.msra.mxu0 0
  %1805 = vmatprep.subr.bf16.mxu0 0
  %1806 = vmatpush1.bf16.msra.mxu0 0
  %1807 = vmatprep.subr.bf16.mxu0 0
  %1808 = vmatpush1.bf16.msra.mxu0 0
  %1809 = vmatprep.subr.bf16.mxu0 0
  %1810 = vmatpush1.bf16.msra.mxu0 0
  %1811 = vmatprep.mubr.bf16.mxu0 0
  %1812 = vmatmul.mubr.bf16.gmra.mrb[0].mxu0 %v623
  %v1813 = vpop.f32.mrb[0].mxu0
  %v1814 = vadd.f32 %v1685, %v1813
  %v1815 = vpop.f32.mrb[0].mxu0
  %v1816 = vpop.f32.mrb[0].mxu0
  %v1817 = vadd.f32 %v1688, %v1816
  %v1818 = vpop.f32.mrb[0].mxu0
  %1819 = vmatprep.mubr.bf16.mxu0 0
  %1820 = vmatmul.mubr.bf16.gmra.mrb[0].mxu0 %v632
  %v1821 = vpop.f32.mrb[0].mxu0
  %v1822 = vadd.f32 %v1693, %v1821
  %v1823 = vpop.f32.mrb[0].mxu0
  %v1824 = vpop.f32.mrb[0].mxu0
  %v1825 = vadd.f32 %v1696, %v1824
  %v1826 = vpop.f32.mrb[0].mxu0
  %1827 = vmatprep.mubr.bf16.mxu0 0
  %1828 = vmatmul.mubr.bf16.gmra.mrb[0].mxu0 %v641
  %v1829 = vpop.f32.mrb[0].mxu0
  %v1830 = vadd.f32 %v1701, %v1829
  %v1831 = vpop.f32.mrb[0].mxu0
  %v1832 = vpop.f32.mrb[0].mxu0
  %v1833 = vadd.f32 %v1704, %v1832
  %v1834 = vpop.f32.mrb[0].mxu0
  %1835 = vmatprep.mubr.bf16.mxu0 0
  %1836 = vmatmul.mubr.bf16.gmra.mrb[0].mxu0 %v650
  %v1837 = vpop.f32.mrb[0].mxu0
  %v1838 = vadd.f32 %v1709, %v1837
  %v1839 = vpop.f32.mrb[0].mxu0
  %v1840 = vpop.f32.mrb[0].mxu0
  %v1841 = vadd.f32 %v1712, %v1840
  %v1842 = vpop.f32.mrb[0].mxu0
  %1843 = vmatprep.mubr.bf16.mxu0 0
  %1844 = vmatmul.mubr.bf16.gmra.mrb[0].mxu0 %v659
  %v1845 = vpop.f32.mrb[0].mxu0
  %v1846 = vadd.f32 %v1717, %v1845
  %v1847 = vpop.f32.mrb[0].mxu0
  %v1848 = vpop.f32.mrb[0].mxu0
  %v1849 = vadd.f32 %v1720, %v1848
  %v1850 = vpop.f32.mrb[0].mxu0
  %1851 = vmatprep.mubr.bf16.mxu0 0
  %1852 = vmatmul.mubr.bf16.gmra.mrb[0].mxu0 %v668
  %v1853 = vpop.f32.mrb[0].mxu0
  %v1854 = vadd.f32 %v1725, %v1853
  %v1855 = vpop.f32.mrb[0].mxu0
  %v1856 = vpop.f32.mrb[0].mxu0
  %v1857 = vadd.f32 %v1728, %v1856
  %v1858 = vpop.f32.mrb[0].mxu0
  %1859 = vmatprep.mubr.bf16.mxu0 0
  %1860 = vmatmul.mubr.bf16.gmra.mrb[0].mxu0 %v677
  %v1861 = vpop.f32.mrb[0].mxu0
  %v1862 = vadd.f32 %v1733, %v1861
  %v1863 = vpop.f32.mrb[0].mxu0
  %v1864 = vpop.f32.mrb[0].mxu0
  %v1865 = vadd.f32 %v1736, %v1864
  %v1866 = vpop.f32.mrb[0].mxu0
  %1867 = vmatprep.mubr.bf16.mxu0 0
  %1868 = vmatmul.mubr.bf16.gmra.mrb[0].mxu0 %v686
  %v1869 = vpop.f32.mrb[0].mxu0
  %v1870 = vadd.f32 %v1741, %v1869
  %v1871 = vpop.f32.mrb[0].mxu0
  %v1872 = vpop.f32.mrb[0].mxu0
  %v1873 = vadd.f32 %v1744, %v1872
  %v1874 = vpop.f32.mrb[0].mxu0
  %1875 = vmatprep.mubr.bf16.mxu0 0
  %1876 = vmatmul.mubr.bf16.gmra.mrb[0].mxu0 %v695
  %v1877 = vpop.f32.mrb[0].mxu0
  %v1878 = vadd.f32 %v1749, %v1877
  %v1879 = vpop.f32.mrb[0].mxu0
  %v1880 = vpop.f32.mrb[0].mxu0
  %v1881 = vadd.f32 %v1752, %v1880
  %v1882 = vpop.f32.mrb[0].mxu0
  %1883 = vmatprep.mubr.bf16.mxu0 0
  %1884 = vmatmul.mubr.bf16.gmra.mrb[0].mxu0 %v704
  %v1885 = vpop.f32.mrb[0].mxu0
  %v1886 = vadd.f32 %v1757, %v1885
  %v1887 = vpop.f32.mrb[0].mxu0
  %v1888 = vpop.f32.mrb[0].mxu0
  %v1889 = vadd.f32 %v1760, %v1888
  %v1890 = vpop.f32.mrb[0].mxu0
  %1891 = vmatprep.mubr.bf16.mxu0 0
  %1892 = vmatmul.mubr.bf16.gmra.mrb[0].mxu0 %v713
  %v1893 = vpop.f32.mrb[0].mxu0
  %v1894 = vadd.f32 %v1765, %v1893
  %v1895 = vpop.f32.mrb[0].mxu0
  %v1896 = vpop.f32.mrb[0].mxu0
  %v1897 = vadd.f32 %v1768, %v1896
  %v1898 = vpop.f32.mrb[0].mxu0
  %1899 = vmatprep.mubr.bf16.mxu0 0
  %1900 = vmatmul.mubr.bf16.gmra.mrb[0].mxu0 %v722
  %v1901 = vpop.f32.mrb[0].mxu0
  %v1902 = vadd.f32 %v1773, %v1901
  %v1903 = vpop.f32.mrb[0].mxu0
  %v1904 = vpop.f32.mrb[0].mxu0
  %v1905 = vadd.f32 %v1776, %v1904
  %v1906 = vpop.f32.mrb[0].mxu0
  %1907 = vdwg.mxu0
  %v1908 = vmax.f32 %v1814, %v1838
  %v1909 = vmax.f32 %v1908, %v1862
  %v1910 = vmax.f32 %v1909, %v1886
  %v1911 = vmax.f32 %v1817, %v1841
  %v1912 = vmax.f32 %v1911, %v1865
  %v1913 = vmax.f32 %v1912, %v1889
  %v1914 = vmax.f32 %v1822, %v1846
  %v1915 = vmax.f32 %v1914, %v1870
  %v1916 = vmax.f32 %v1915, %v1894
  %v1917 = vmax.f32 %v1825, %v1849
  %v1918 = vmax.f32 %v1917, %v1873
  %v1919 = vmax.f32 %v1918, %v1897
  %v1920 = vmax.f32 %v1830, %v1854
  %v1921 = vmax.f32 %v1920, %v1878
  %v1922 = vmax.f32 %v1921, %v1902
  %v1923 = vmax.f32 %v1833, %v1857
  %v1924 = vmax.f32 %v1923, %v1881
  %v1925 = vmax.f32 %v1924, %v1905
  %v1926 = vld [vmem:[%s2] sm:$0x1]
  %v1928 = vlaneseq
  %v1929 = vshrl.u32 %v1928, 7
  %v1930 = vsub.s32 0, %v1929
  %v1931 = vrot.slane %v1926, %v1930
  %v1933 = vadd.f32 %v1910, %v1931
  %v1934 = vadd.f32 %v1913, %v1931
  %v1935 = vadd.f32 %v1916, %v1931
  %v1936 = vadd.f32 %v1919, %v1931
  %v1937 = vadd.f32 %v1922, %v1931
  %v1938 = vadd.f32 %v1925, %v1931
  %v1939 = vmax.f32 %v1933, 0.0
  %v1940 = vmax.f32 %v1934, 0.0
  %v1941 = vmax.f32 %v1935, 0.0
  %v1942 = vmax.f32 %v1936, 0.0
  %v1943 = vmax.f32 %v1937, 0.0
  %v1944 = vmax.f32 %v1938, 0.0
  %v1945 = vpack.c.bf16 %v1940, %v1939
  %v1946 = vpack.c.bf16 %v1942, %v1941
  %v1947 = vpack.c.bf16 %v1944, %v1943
  %v1951 = vunpack.c.l.b16 %v1945
  %v1952 = vunpack.c.h.b16 %v1945
  %v1953 = vunpack.c.l.b16 %v1946
  %v1954 = vunpack.c.h.b16 %v1946
  %v1955 = vunpack.c.l.b16 %v1947
  %v1956 = vunpack.c.h.b16 %v1947
  %v1957 = vpack.c.b16 %v1951, %v1951
  %v1958 = vpack.c.b16 %v1952, %v1952
  %v1959 = vpack.c.b16 %v1953, %v1953
  %v1960 = vpack.c.b16 %v1954, %v1954
  %v1961 = vpack.c.b16 %v1955, %v1955
  %v1962 = vpack.c.b16 %v1956, %v1956
  %1969 = vst [vmem:[%s3] sm:$0xf] %v1957
  %1970 = vst [vmem:[%s3 + $0x4] sm:$0xf] %v1958
  %1971 = vst [vmem:[%s3 + $0x8] sm:$0xf] %v1959
  %1972 = vst [vmem:[%s3 + $0xc] sm:$0xf] %v1960
  %1973 = vst [vmem:[%s3 + $0x10] sm:$0xf] %v1961
  %1974 = vst [vmem:[%s3 + $0x14] sm:$0xf] %v1962
  // Predicated region
  $region14: #{cnn_forward.6} parent=0 // pred_check
    _
  $region15: #{cnn_forward.6} parent=0 // pred_check_branch
    %1976 = sbr.rel (0) target = $region17
  $region16: #{cnn_forward.6} parent=0 // pred_region
    _
  $region17: #{cnn_forward.6} parent=0 // pred_fallthru
    _
  // Predicated region
  $region18: #{cnn_forward.6} parent=0 // pred_check
    _
  $region19: #{cnn_forward.6} parent=0 // pred_check_branch
    %1978 = sbr.rel (0) target = $region21
  $region20: #{cnn_forward.6} parent=0 // pred_region
    _
  $region21: #{cnn_forward.6} parent=0 // pred_fallthru
    _

// kernel: cnn_forward.7
$region0: #{cnn_forward.7}
  #allocation0 [shape = 'u32[]', space=smem, size = 0x4, offset = 0x4, fixed_abs, tag = 'smem constant byte address 0x4 - core index']
  #allocation1 [shape = 'u32[144,128]{1,0:T(1,128)}', space=vmem, size = 0x12000, scoped, tag = 'internal scratch']
  %s0 = inlined_call_operand.vmem [shape: bf16[16,2304], index: 0, kind: input, shape index: {}]
  %s1 = inlined_call_operand.vmem [shape: bf16[2304,64], index: 1, kind: input, shape index: {}]
  %s2 = inlined_call_operand.vmem [shape: f32[1,64], index: 2, kind: input, shape index: {}]
  %s3 = inlined_call_operand.vmem [shape: bf16[64,128], index: 3, kind: input, shape index: {}]
  %s4 = inlined_call_operand.vmem [shape: f32[1,128], index: 4, kind: input, shape index: {}]
  %s5 = inlined_call_operand.vmem [shape: f32[16,128], index: 5, kind: output, shape index: {}]
  %s6 = sld [smem:[#allocation0]]
  $region30: #{cnn_forward.7} parent=0
    _
  %s8 = ssub.s32 1, %s6
  %s9 = scalar_select 0, %s8, %s6
  // Predicated region
  $region2: #{cnn_forward.7} parent=0 // pred_check
    _
  $region3: #{cnn_forward.7} parent=0 // pred_check_branch
    %11 = sbr.rel (0) target = $region5
  $region4: #{cnn_forward.7} parent=0 // pred_region
    _
  $region5: #{cnn_forward.7} parent=0 // pred_fallthru
    _
  // Predicated region
  $region6: #{cnn_forward.7} parent=0 // pred_check
    _
  $region7: #{cnn_forward.7} parent=0 // pred_check_branch
    %13 = sbr.rel (0) target = $region9
  $region8: #{cnn_forward.7} parent=0 // pred_region
    _
  $region9: #{cnn_forward.7} parent=0 // pred_fallthru
    _
  // Predicated region
  $region10: #{cnn_forward.7} parent=0 // pred_check
    _
  $region11: #{cnn_forward.7} parent=0 // pred_check_branch
    %15 = sbr.rel (0) target = $region13
  $region12: #{cnn_forward.7} parent=0 // pred_region
    _
  $region13: #{cnn_forward.7} parent=0 // pred_fallthru
    _
  // Predicated region
  $region14: #{cnn_forward.7} parent=0 // pred_check
    _
  $region15: #{cnn_forward.7} parent=0 // pred_check_branch
    %17 = sbr.rel (0) target = $region17
  $region16: #{cnn_forward.7} parent=0 // pred_region
    _
  $region17: #{cnn_forward.7} parent=0 // pred_fallthru
    _
  // Predicated region
  $region18: #{cnn_forward.7} parent=0 // pred_check
    _
  $region19: #{cnn_forward.7} parent=0 // pred_check_branch
    %19 = sbr.rel (0) target = $region21
  $region20: #{cnn_forward.7} parent=0 // pred_region
    _
  $region21: #{cnn_forward.7} parent=0 // pred_fallthru
    _
  %v21 = vld [vmem:[%s0] sm:$0xff]
  %v22 = vld [vmem:[%s0 + $0x8] sm:$0xff]
  %v23 = vld [vmem:[%s0 + $0x10] sm:$0xff]
  %v24 = vld [vmem:[%s0 + $0x18] sm:$0xff]
  %v25 = vld [vmem:[%s0 + $0x20] sm:$0xff]
  %v26 = vld [vmem:[%s0 + $0x28] sm:$0xff]
  %v27 = vld [vmem:[%s0 + $0x30] sm:$0xff]
  %v28 = vld [vmem:[%s0 + $0x38] sm:$0xff]
  %v29 = vld [vmem:[%s0 + $0x40] sm:$0xff]
  %v30 = vld [vmem:[%s0 + $0x48] sm:$0xff]
  %v31 = vld [vmem:[%s0 + $0x50] sm:$0xff]
  %v32 = vld [vmem:[%s0 + $0x58] sm:$0xff]
  %v33 = vld [vmem:[%s0 + $0x60] sm:$0xff]
  %v34 = vld [vmem:[%s0 + $0x68] sm:$0xff]
  %v35 = vld [vmem:[%s0 + $0x70] sm:$0xff]
  %v36 = vld [vmem:[%s0 + $0x78] sm:$0xff]
  %v37 = vld [vmem:[%s0 + $0x80] sm:$0xff]
  %v38 = vld [vmem:[%s0 + $0x88] sm:$0xff]
  %v39 = vld [vmem:[%s1] sm:$0xf]
  %v40 = vld [vmem:[%s1 + $0x4] sm:$0xf]
  %v41 = vld [vmem:[%s1 + $0x8] sm:$0xf]
  %v42 = vld [vmem:[%s1 + $0xc] sm:$0xf]
  %v43 = vld [vmem:[%s1 + $0x10] sm:$0xf]
  %v44 = vld [vmem:[%s1 + $0x14] sm:$0xf]
  %v45 = vld [vmem:[%s1 + $0x18] sm:$0xf]
  %v46 = vld [vmem:[%s1 + $0x1c] sm:$0xf]
  %v47 = vld [vmem:[%s1 + $0x20] sm:$0xf]
  %v48 = vld [vmem:[%s1 + $0x24] sm:$0xf]
  %v49 = vld [vmem:[%s1 + $0x28] sm:$0xf]
  %v50 = vld [vmem:[%s1 + $0x2c] sm:$0xf]
  %v51 = vld [vmem:[%s1 + $0x30] sm:$0xf]
  %v52 = vld [vmem:[%s1 + $0x34] sm:$0xf]
  %v53 = vld [vmem:[%s1 + $0x38] sm:$0xf]
  %v54 = vld [vmem:[%s1 + $0x3c] sm:$0xf]
  %v55 = vld [vmem:[%s1 + $0x40] sm:$0xf]
  %v56 = vld [vmem:[%s1 + $0x44] sm:$0xf]
  %v57 = vld [vmem:[%s1 + $0x48] sm:$0xf]
  %v58 = vld [vmem:[%s1 + $0x4c] sm:$0xf]
  %v59 = vld [vmem:[%s1 + $0x50] sm:$0xf]
  %v60 = vld [vmem:[%s1 + $0x54] sm:$0xf]
  %v61 = vld [vmem:[%s1 + $0x58] sm:$0xf]
  %v62 = vld [vmem:[%s1 + $0x5c] sm:$0xf]
  %v63 = vld [vmem:[%s1 + $0x60] sm:$0xf]
  %v64 = vld [vmem:[%s1 + $0x64] sm:$0xf]
  %v65 = vld [vmem:[%s1 + $0x68] sm:$0xf]
  %v66 = vld [vmem:[%s1 + $0x6c] sm:$0xf]
  %v67 = vld [vmem:[%s1 + $0x70] sm:$0xf]
  %v68 = vld [vmem:[%s1 + $0x74] sm:$0xf]
  %v69 = vld [vmem:[%s1 + $0x78] sm:$0xf]
  %v70 = vld [vmem:[%s1 + $0x7c] sm:$0xf]
  %v71 = vld [vmem:[%s1 + $0x80] sm:$0xf]
  %v72 = vld [vmem:[%s1 + $0x84] sm:$0xf]
  %v73 = vld [vmem:[%s1 + $0x88] sm:$0xf]
  %v74 = vld [vmem:[%s1 + $0x8c] sm:$0xf]
  %v75 = vld [vmem:[%s1 + $0x90] sm:$0xf]
  %v76 = vld [vmem:[%s1 + $0x94] sm:$0xf]
  %v77 = vld [vmem:[%s1 + $0x98] sm:$0xf]
  %v78 = vld [vmem:[%s1 + $0x9c] sm:$0xf]
  %v79 = vld [vmem:[%s1 + $0xa0] sm:$0xf]
  %v80 = vld [vmem:[%s1 + $0xa4] sm:$0xf]
  %v81 = vld [vmem:[%s1 + $0xa8] sm:$0xf]
  %v82 = vld [vmem:[%s1 + $0xac] sm:$0xf]
  %v83 = vld [vmem:[%s1 + $0xb0] sm:$0xf]
  %v84 = vld [vmem:[%s1 + $0xb4] sm:$0xf]
  %v85 = vld [vmem:[%s1 + $0xb8] sm:$0xf]
  %v86 = vld [vmem:[%s1 + $0xbc] sm:$0xf]
  %v87 = vld [vmem:[%s1 + $0xc0] sm:$0xf]
  %v88 = vld [vmem:[%s1 + $0xc4] sm:$0xf]
  %v89 = vld [vmem:[%s1 + $0xc8] sm:$0xf]
  %v90 = vld [vmem:[%s1 + $0xcc] sm:$0xf]
  %v91 = vld [vmem:[%s1 + $0xd0] sm:$0xf]
  %v92 = vld [vmem:[%s1 + $0xd4] sm:$0xf]
  %v93 = vld [vmem:[%s1 + $0xd8] sm:$0xf]
  %v94 = vld [vmem:[%s1 + $0xdc] sm:$0xf]
  %v95 = vld [vmem:[%s1 + $0xe0] sm:$0xf]
  %v96 = vld [vmem:[%s1 + $0xe4] sm:$0xf]
  %v97 = vld [vmem:[%s1 + $0xe8] sm:$0xf]
  %v98 = vld [vmem:[%s1 + $0xec] sm:$0xf]
  %v99 = vld [vmem:[%s1 + $0xf0] sm:$0xf]
  %v100 = vld [vmem:[%s1 + $0xf4] sm:$0xf]
  %v101 = vld [vmem:[%s1 + $0xf8] sm:$0xf]
  %v102 = vld [vmem:[%s1 + $0xfc] sm:$0xf]
  %v103 = vld [vmem:[%s1 + $0x100] sm:$0xf]
  %v104 = vld [vmem:[%s1 + $0x104] sm:$0xf]
  %v105 = vld [vmem:[%s1 + $0x108] sm:$0xf]
  %v106 = vld [vmem:[%s1 + $0x10c] sm:$0xf]
  %v107 = vld [vmem:[%s1 + $0x110] sm:$0xf]
  %v108 = vld [vmem:[%s1 + $0x114] sm:$0xf]
  %v109 = vld [vmem:[%s1 + $0x118] sm:$0xf]
  %v110 = vld [vmem:[%s1 + $0x11c] sm:$0xf]
  %v111 = vld [vmem:[%s1 + $0x120] sm:$0xf]
  %v112 = vld [vmem:[%s1 + $0x124] sm:$0xf]
  %v113 = vld [vmem:[%s1 + $0x128] sm:$0xf]
  %v114 = vld [vmem:[%s1 + $0x12c] sm:$0xf]
  %v115 = vld [vmem:[%s1 + $0x130] sm:$0xf]
  %v116 = vld [vmem:[%s1 + $0x134] sm:$0xf]
  %v117 = vld [vmem:[%s1 + $0x138] sm:$0xf]
  %v118 = vld [vmem:[%s1 + $0x13c] sm:$0xf]
  %v119 = vld [vmem:[%s1 + $0x140] sm:$0xf]
  %v120 = vld [vmem:[%s1 + $0x144] sm:$0xf]
  %v121 = vld [vmem:[%s1 + $0x148] sm:$0xf]
  %v122 = vld [vmem:[%s1 + $0x14c] sm:$0xf]
  %v123 = vld [vmem:[%s1 + $0x150] sm:$0xf]
  %v124 = vld [vmem:[%s1 + $0x154] sm:$0xf]
  %v125 = vld [vmem:[%s1 + $0x158] sm:$0xf]
  %v126 = vld [vmem:[%s1 + $0x15c] sm:$0xf]
  %v127 = vld [vmem:[%s1 + $0x160] sm:$0xf]
  %v128 = vld [vmem:[%s1 + $0x164] sm:$0xf]
  %v129 = vld [vmem:[%s1 + $0x168] sm:$0xf]
  %v130 = vld [vmem:[%s1 + $0x16c] sm:$0xf]
  %v131 = vld [vmem:[%s1 + $0x170] sm:$0xf]
  %v132 = vld [vmem:[%s1 + $0x174] sm:$0xf]
  %v133 = vld [vmem:[%s1 + $0x178] sm:$0xf]
  %v134 = vld [vmem:[%s1 + $0x17c] sm:$0xf]
  %v135 = vld [vmem:[%s1 + $0x180] sm:$0xf]
  %v136 = vld [vmem:[%s1 + $0x184] sm:$0xf]
  %v137 = vld [vmem:[%s1 + $0x188] sm:$0xf]
  %v138 = vld [vmem:[%s1 + $0x18c] sm:$0xf]
  %v139 = vld [vmem:[%s1 + $0x190] sm:$0xf]
  %v140 = vld [vmem:[%s1 + $0x194] sm:$0xf]
  %v141 = vld [vmem:[%s1 + $0x198] sm:$0xf]
  %v142 = vld [vmem:[%s1 + $0x19c] sm:$0xf]
  %v143 = vld [vmem:[%s1 + $0x1a0] sm:$0xf]
  %v144 = vld [vmem:[%s1 + $0x1a4] sm:$0xf]
  %v145 = vld [vmem:[%s1 + $0x1a8] sm:$0xf]
  %v146 = vld [vmem:[%s1 + $0x1ac] sm:$0xf]
  %v147 = vld [vmem:[%s1 + $0x1b0] sm:$0xf]
  %v148 = vld [vmem:[%s1 + $0x1b4] sm:$0xf]
  %v149 = vld [vmem:[%s1 + $0x1b8] sm:$0xf]
  %v150 = vld [vmem:[%s1 + $0x1bc] sm:$0xf]
  %v151 = vld [vmem:[%s1 + $0x1c0] sm:$0xf]
  %v152 = vld [vmem:[%s1 + $0x1c4] sm:$0xf]
  %v153 = vld [vmem:[%s1 + $0x1c8] sm:$0xf]
  %v154 = vld [vmem:[%s1 + $0x1cc] sm:$0xf]
  %v155 = vld [vmem:[%s1 + $0x1d0] sm:$0xf]
  %v156 = vld [vmem:[%s1 + $0x1d4] sm:$0xf]
  %v157 = vld [vmem:[%s1 + $0x1d8] sm:$0xf]
  %v158 = vld [vmem:[%s1 + $0x1dc] sm:$0xf]
  %v159 = vld [vmem:[%s1 + $0x1e0] sm:$0xf]
  %v160 = vld [vmem:[%s1 + $0x1e4] sm:$0xf]
  %v161 = vld [vmem:[%s1 + $0x1e8] sm:$0xf]
  %v162 = vld [vmem:[%s1 + $0x1ec] sm:$0xf]
  %v163 = vld [vmem:[%s1 + $0x1f0] sm:$0xf]
  %v164 = vld [vmem:[%s1 + $0x1f4] sm:$0xf]
  %v165 = vld [vmem:[%s1 + $0x1f8] sm:$0xf]
  %v166 = vld [vmem:[%s1 + $0x1fc] sm:$0xf]
  %v167 = vld [vmem:[%s1 + $0x200] sm:$0xf]
  %v168 = vld [vmem:[%s1 + $0x204] sm:$0xf]
  %v169 = vld [vmem:[%s1 + $0x208] sm:$0xf]
  %v170 = vld [vmem:[%s1 + $0x20c] sm:$0xf]
  %v171 = vld [vmem:[%s1 + $0x210] sm:$0xf]
  %v172 = vld [vmem:[%s1 + $0x214] sm:$0xf]
  %v173 = vld [vmem:[%s1 + $0x218] sm:$0xf]
  %v174 = vld [vmem:[%s1 + $0x21c] sm:$0xf]
  %v175 = vld [vmem:[%s1 + $0x220] sm:$0xf]
  %v176 = vld [vmem:[%s1 + $0x224] sm:$0xf]
  %v177 = vld [vmem:[%s1 + $0x228] sm:$0xf]
  %v178 = vld [vmem:[%s1 + $0x22c] sm:$0xf]
  %v179 = vld [vmem:[%s1 + $0x230] sm:$0xf]
  %v180 = vld [vmem:[%s1 + $0x234] sm:$0xf]
  %v181 = vld [vmem:[%s1 + $0x238] sm:$0xf]
  %v182 = vld [vmem:[%s1 + $0x23c] sm:$0xf]
  %v183 = vld [vmem:[%s1 + $0x240] sm:$0xf]
  %v184 = vld [vmem:[%s1 + $0x244] sm:$0xf]
  %v185 = vld [vmem:[%s1 + $0x248] sm:$0xf]
  %v186 = vld [vmem:[%s1 + $0x24c] sm:$0xf]
  %v187 = vld [vmem:[%s1 + $0x250] sm:$0xf]
  %v188 = vld [vmem:[%s1 + $0x254] sm:$0xf]
  %v189 = vld [vmem:[%s1 + $0x258] sm:$0xf]
  %v190 = vld [vmem:[%s1 + $0x25c] sm:$0xf]
  %v191 = vld [vmem:[%s1 + $0x260] sm:$0xf]
  %v192 = vld [vmem:[%s1 + $0x264] sm:$0xf]
  %v193 = vld [vmem:[%s1 + $0x268] sm:$0xf]
  %v194 = vld [vmem:[%s1 + $0x26c] sm:$0xf]
  %v195 = vld [vmem:[%s1 + $0x270] sm:$0xf]
  %v196 = vld [vmem:[%s1 + $0x274] sm:$0xf]
  %v197 = vld [vmem:[%s1 + $0x278] sm:$0xf]
  %v198 = vld [vmem:[%s1 + $0x27c] sm:$0xf]
  %v199 = vld [vmem:[%s1 + $0x280] sm:$0xf]
  %v200 = vld [vmem:[%s1 + $0x284] sm:$0xf]
  %v201 = vld [vmem:[%s1 + $0x288] sm:$0xf]
  %v202 = vld [vmem:[%s1 + $0x28c] sm:$0xf]
  %v203 = vld [vmem:[%s1 + $0x290] sm:$0xf]
  %v204 = vld [vmem:[%s1 + $0x294] sm:$0xf]
  %v205 = vld [vmem:[%s1 + $0x298] sm:$0xf]
  %v206 = vld [vmem:[%s1 + $0x29c] sm:$0xf]
  %v207 = vld [vmem:[%s1 + $0x2a0] sm:$0xf]
  %v208 = vld [vmem:[%s1 + $0x2a4] sm:$0xf]
  %v209 = vld [vmem:[%s1 + $0x2a8] sm:$0xf]
  %v210 = vld [vmem:[%s1 + $0x2ac] sm:$0xf]
  %v211 = vld [vmem:[%s1 + $0x2b0] sm:$0xf]
  %v212 = vld [vmem:[%s1 + $0x2b4] sm:$0xf]
  %v213 = vld [vmem:[%s1 + $0x2b8] sm:$0xf]
  %v214 = vld [vmem:[%s1 + $0x2bc] sm:$0xf]
  %v215 = vld [vmem:[%s1 + $0x2c0] sm:$0xf]
  %v216 = vld [vmem:[%s1 + $0x2c4] sm:$0xf]
  %v217 = vld [vmem:[%s1 + $0x2c8] sm:$0xf]
  %v218 = vld [vmem:[%s1 + $0x2cc] sm:$0xf]
  %v219 = vld [vmem:[%s1 + $0x2d0] sm:$0xf]
  %v220 = vld [vmem:[%s1 + $0x2d4] sm:$0xf]
  %v221 = vld [vmem:[%s1 + $0x2d8] sm:$0xf]
  %v222 = vld [vmem:[%s1 + $0x2dc] sm:$0xf]
  %v223 = vld [vmem:[%s1 + $0x2e0] sm:$0xf]
  %v224 = vld [vmem:[%s1 + $0x2e4] sm:$0xf]
  %v225 = vld [vmem:[%s1 + $0x2e8] sm:$0xf]
  %v226 = vld [vmem:[%s1 + $0x2ec] sm:$0xf]
  %v227 = vld [vmem:[%s1 + $0x2f0] sm:$0xf]
  %v228 = vld [vmem:[%s1 + $0x2f4] sm:$0xf]
  %v229 = vld [vmem:[%s1 + $0x2f8] sm:$0xf]
  %v230 = vld [vmem:[%s1 + $0x2fc] sm:$0xf]
  %v231 = vld [vmem:[%s1 + $0x300] sm:$0xf]
  %v232 = vld [vmem:[%s1 + $0x304] sm:$0xf]
  %v233 = vld [vmem:[%s1 + $0x308] sm:$0xf]
  %v234 = vld [vmem:[%s1 + $0x30c] sm:$0xf]
  %v235 = vld [vmem:[%s1 + $0x310] sm:$0xf]
  %v236 = vld [vmem:[%s1 + $0x314] sm:$0xf]
  %v237 = vld [vmem:[%s1 + $0x318] sm:$0xf]
  %v238 = vld [vmem:[%s1 + $0x31c] sm:$0xf]
  %v239 = vld [vmem:[%s1 + $0x320] sm:$0xf]
  %v240 = vld [vmem:[%s1 + $0x324] sm:$0xf]
  %v241 = vld [vmem:[%s1 + $0x328] sm:$0xf]
  %v242 = vld [vmem:[%s1 + $0x32c] sm:$0xf]
  %v243 = vld [vmem:[%s1 + $0x330] sm:$0xf]
  %v244 = vld [vmem:[%s1 + $0x334] sm:$0xf]
  %v245 = vld [vmem:[%s1 + $0x338] sm:$0xf]
  %v246 = vld [vmem:[%s1 + $0x33c] sm:$0xf]
  %v247 = vld [vmem:[%s1 + $0x340] sm:$0xf]
  %v248 = vld [vmem:[%s1 + $0x344] sm:$0xf]
  %v249 = vld [vmem:[%s1 + $0x348] sm:$0xf]
  %v250 = vld [vmem:[%s1 + $0x34c] sm:$0xf]
  %v251 = vld [vmem:[%s1 + $0x350] sm:$0xf]
  %v252 = vld [vmem:[%s1 + $0x354] sm:$0xf]
  %v253 = vld [vmem:[%s1 + $0x358] sm:$0xf]
  %v254 = vld [vmem:[%s1 + $0x35c] sm:$0xf]
  %v255 = vld [vmem:[%s1 + $0x360] sm:$0xf]
  %v256 = vld [vmem:[%s1 + $0x364] sm:$0xf]
  %v257 = vld [vmem:[%s1 + $0x368] sm:$0xf]
  %v258 = vld [vmem:[%s1 + $0x36c] sm:$0xf]
  %v259 = vld [vmem:[%s1 + $0x370] sm:$0xf]
  %v260 = vld [vmem:[%s1 + $0x374] sm:$0xf]
  %v261 = vld [vmem:[%s1 + $0x378] sm:$0xf]
  %v262 = vld [vmem:[%s1 + $0x37c] sm:$0xf]
  %v263 = vld [vmem:[%s1 + $0x380] sm:$0xf]
  %v264 = vld [vmem:[%s1 + $0x384] sm:$0xf]
  %v265 = vld [vmem:[%s1 + $0x388] sm:$0xf]
  %v266 = vld [vmem:[%s1 + $0x38c] sm:$0xf]
  %v267 = vld [vmem:[%s1 + $0x390] sm:$0xf]
  %v268 = vld [vmem:[%s1 + $0x394] sm:$0xf]
  %v269 = vld [vmem:[%s1 + $0x398] sm:$0xf]
  %v270 = vld [vmem:[%s1 + $0x39c] sm:$0xf]
  %v271 = vld [vmem:[%s1 + $0x3a0] sm:$0xf]
  %v272 = vld [vmem:[%s1 + $0x3a4] sm:$0xf]
  %v273 = vld [vmem:[%s1 + $0x3a8] sm:$0xf]
  %v274 = vld [vmem:[%s1 + $0x3ac] sm:$0xf]
  %v275 = vld [vmem:[%s1 + $0x3b0] sm:$0xf]
  %v276 = vld [vmem:[%s1 + $0x3b4] sm:$0xf]
  %v277 = vld [vmem:[%s1 + $0x3b8] sm:$0xf]
  %v278 = vld [vmem:[%s1 + $0x3bc] sm:$0xf]
  %v279 = vld [vmem:[%s1 + $0x3c0] sm:$0xf]
  %v280 = vld [vmem:[%s1 + $0x3c4] sm:$0xf]
  %v281 = vld [vmem:[%s1 + $0x3c8] sm:$0xf]
  %v282 = vld [vmem:[%s1 + $0x3cc] sm:$0xf]
  %v283 = vld [vmem:[%s1 + $0x3d0] sm:$0xf]
  %v284 = vld [vmem:[%s1 + $0x3d4] sm:$0xf]
  %v285 = vld [vmem:[%s1 + $0x3d8] sm:$0xf]
  %v286 = vld [vmem:[%s1 + $0x3dc] sm:$0xf]
  %v287 = vld [vmem:[%s1 + $0x3e0] sm:$0xf]
  %v288 = vld [vmem:[%s1 + $0x3e4] sm:$0xf]
  %v289 = vld [vmem:[%s1 + $0x3e8] sm:$0xf]
  %v290 = vld [vmem:[%s1 + $0x3ec] sm:$0xf]
  %v291 = vld [vmem:[%s1 + $0x3f0] sm:$0xf]
  %v292 = vld [vmem:[%s1 + $0x3f4] sm:$0xf]
  %v293 = vld [vmem:[%s1 + $0x3f8] sm:$0xf]
  %v294 = vld [vmem:[%s1 + $0x3fc] sm:$0xf]
  %v295 = vld [vmem:[%s1 + $0x400] sm:$0xf]
  %v296 = vld [vmem:[%s1 + $0x404] sm:$0xf]
  %v297 = vld [vmem:[%s1 + $0x408] sm:$0xf]
  %v298 = vld [vmem:[%s1 + $0x40c] sm:$0xf]
  %v299 = vld [vmem:[%s1 + $0x410] sm:$0xf]
  %v300 = vld [vmem:[%s1 + $0x414] sm:$0xf]
  %v301 = vld [vmem:[%s1 + $0x418] sm:$0xf]
  %v302 = vld [vmem:[%s1 + $0x41c] sm:$0xf]
  %v303 = vld [vmem:[%s1 + $0x420] sm:$0xf]
  %v304 = vld [vmem:[%s1 + $0x424] sm:$0xf]
  %v305 = vld [vmem:[%s1 + $0x428] sm:$0xf]
  %v306 = vld [vmem:[%s1 + $0x42c] sm:$0xf]
  %v307 = vld [vmem:[%s1 + $0x430] sm:$0xf]
  %v308 = vld [vmem:[%s1 + $0x434] sm:$0xf]
  %v309 = vld [vmem:[%s1 + $0x438] sm:$0xf]
  %v310 = vld [vmem:[%s1 + $0x43c] sm:$0xf]
  %v311 = vld [vmem:[%s1 + $0x440] sm:$0xf]
  %v312 = vld [vmem:[%s1 + $0x444] sm:$0xf]
  %v313 = vld [vmem:[%s1 + $0x448] sm:$0xf]
  %v314 = vld [vmem:[%s1 + $0x44c] sm:$0xf]
  %v315 = vld [vmem:[%s1 + $0x450] sm:$0xf]
  %v316 = vld [vmem:[%s1 + $0x454] sm:$0xf]
  %v317 = vld [vmem:[%s1 + $0x458] sm:$0xf]
  %v318 = vld [vmem:[%s1 + $0x45c] sm:$0xf]
  %v319 = vld [vmem:[%s1 + $0x460] sm:$0xf]
  %v320 = vld [vmem:[%s1 + $0x464] sm:$0xf]
  %v321 = vld [vmem:[%s1 + $0x468] sm:$0xf]
  %v322 = vld [vmem:[%s1 + $0x46c] sm:$0xf]
  %v323 = vld [vmem:[%s1 + $0x470] sm:$0xf]
  %v324 = vld [vmem:[%s1 + $0x474] sm:$0xf]
  %v325 = vld [vmem:[%s1 + $0x478] sm:$0xf]
  %v326 = vld [vmem:[%s1 + $0x47c] sm:$0xf]
  %v327 = vld [vmem:[%s2] sm:$0x1]
  %v329 = vlaneseq
  %v330 = vshrl.u32 %v329, 7
  %v331 = vsub.s32 0, %v330
  %v332 = vrot.slane %v327, %v331
  %v352 = vunpack.c.l.b16 %v21
  %v353 = vunpack.c.h.b16 %v21
  %v354 = vunpack.c.l.b16 %v22
  %v355 = vunpack.c.h.b16 %v22
  %v356 = vunpack.c.l.b16 %v23
  %v357 = vunpack.c.h.b16 %v23
  %v358 = vunpack.c.l.b16 %v24
  %v359 = vunpack.c.h.b16 %v24
  %v360 = vunpack.c.l.b16 %v25
  %v361 = vunpack.c.h.b16 %v25
  %v362 = vunpack.c.l.b16 %v26
  %v363 = vunpack.c.h.b16 %v26
  %v364 = vunpack.c.l.b16 %v27
  %v365 = vunpack.c.h.b16 %v27
  %v366 = vunpack.c.l.b16 %v28
  %v367 = vunpack.c.h.b16 %v28
  %v368 = vunpack.c.l.b16 %v29
  %v369 = vunpack.c.h.b16 %v29
  %v370 = vunpack.c.l.b16 %v30
  %v371 = vunpack.c.h.b16 %v30
  %v372 = vunpack.c.l.b16 %v31
  %v373 = vunpack.c.h.b16 %v31
  %v374 = vunpack.c.l.b16 %v32
  %v375 = vunpack.c.h.b16 %v32
  %v376 = vunpack.c.l.b16 %v33
  %v377 = vunpack.c.h.b16 %v33
  %v378 = vunpack.c.l.b16 %v34
  %v379 = vunpack.c.h.b16 %v34
  %v380 = vunpack.c.l.b16 %v35
  %v381 = vunpack.c.h.b16 %v35
  %v382 = vunpack.c.l.b16 %v36
  %v383 = vunpack.c.h.b16 %v36
  %v384 = vunpack.c.l.b16 %v37
  %v385 = vunpack.c.h.b16 %v37
  %v386 = vunpack.c.l.b16 %v38
  %v387 = vunpack.c.h.b16 %v38
  %v388 = vpack.c.b16 %v370, %v352
  %v389 = vpack.c.b16 %v371, %v353
  %v390 = vpack.c.b16 %v372, %v354
  %v391 = vpack.c.b16 %v373, %v355
  %v392 = vpack.c.b16 %v374, %v356
  %v393 = vpack.c.b16 %v375, %v357
  %v394 = vpack.c.b16 %v376, %v358
  %v395 = vpack.c.b16 %v377, %v359
  %v396 = vpack.c.b16 %v378, %v360
  %v397 = vpack.c.b16 %v379, %v361
  %v398 = vpack.c.b16 %v380, %v362
  %v399 = vpack.c.b16 %v381, %v363
  %v400 = vpack.c.b16 %v382, %v364
  %v401 = vpack.c.b16 %v383, %v365
  %v402 = vpack.c.b16 %v384, %v366
  %v403 = vpack.c.b16 %v385, %v367
  %v404 = vpack.c.b16 %v386, %v368
  %v405 = vpack.c.b16 %v387, %v369
  %v712 = vunpack.c.l.b16 %v39
  %v713 = vunpack.c.l.b16 %v40
  %v714 = vunpack.c.l.b16 %v41
  %v715 = vunpack.c.l.b16 %v42
  %v716 = vunpack.c.l.b16 %v43
  %v717 = vunpack.c.l.b16 %v44
  %v718 = vunpack.c.l.b16 %v45
  %v719 = vunpack.c.l.b16 %v46
  %v720 = vunpack.c.l.b16 %v47
  %v721 = vunpack.c.l.b16 %v48
  %v722 = vunpack.c.l.b16 %v49
  %v723 = vunpack.c.l.b16 %v50
  %v724 = vunpack.c.l.b16 %v51
  %v725 = vunpack.c.l.b16 %v52
  %v726 = vunpack.c.l.b16 %v53
  %v727 = vunpack.c.l.b16 %v54
  %v728 = vunpack.c.l.b16 %v55
  %v729 = vunpack.c.l.b16 %v56
  %v730 = vunpack.c.l.b16 %v57
  %v731 = vunpack.c.l.b16 %v58
  %v732 = vunpack.c.l.b16 %v59
  %v733 = vunpack.c.l.b16 %v60
  %v734 = vunpack.c.l.b16 %v61
  %v735 = vunpack.c.l.b16 %v62
  %v736 = vunpack.c.l.b16 %v63
  %v737 = vunpack.c.l.b16 %v64
  %v738 = vunpack.c.l.b16 %v65
  %v739 = vunpack.c.l.b16 %v66
  %v740 = vunpack.c.l.b16 %v67
  %v741 = vunpack.c.l.b16 %v68
  %v742 = vunpack.c.l.b16 %v69
  %v743 = vunpack.c.l.b16 %v70
  %v744 = vunpack.c.l.b16 %v71
  %v745 = vunpack.c.l.b16 %v72
  %v746 = vunpack.c.l.b16 %v73
  %v747 = vunpack.c.l.b16 %v74
  %v748 = vunpack.c.l.b16 %v75
  %v749 = vunpack.c.l.b16 %v76
  %v750 = vunpack.c.l.b16 %v77
  %v751 = vunpack.c.l.b16 %v78
  %v752 = vunpack.c.l.b16 %v79
  %v753 = vunpack.c.l.b16 %v80
  %v754 = vunpack.c.l.b16 %v81
  %v755 = vunpack.c.l.b16 %v82
  %v756 = vunpack.c.l.b16 %v83
  %v757 = vunpack.c.l.b16 %v84
  %v758 = vunpack.c.l.b16 %v85
  %v759 = vunpack.c.l.b16 %v86
  %v760 = vunpack.c.l.b16 %v87
  %v761 = vunpack.c.l.b16 %v88
  %v762 = vunpack.c.l.b16 %v89
  %v763 = vunpack.c.l.b16 %v90
  %v764 = vunpack.c.l.b16 %v91
  %v765 = vunpack.c.l.b16 %v92
  %v766 = vunpack.c.l.b16 %v93
  %v767 = vunpack.c.l.b16 %v94
  %v768 = vunpack.c.l.b16 %v95
  %v769 = vunpack.c.l.b16 %v96
  %v770 = vunpack.c.l.b16 %v97
  %v771 = vunpack.c.l.b16 %v98
  %v772 = vunpack.c.l.b16 %v99
  %v773 = vunpack.c.l.b16 %v100
  %v774 = vunpack.c.l.b16 %v101
  %v775 = vunpack.c.l.b16 %v102
  %v776 = vunpack.c.l.b16 %v103
  %v777 = vunpack.c.l.b16 %v104
  %v778 = vunpack.c.l.b16 %v105
  %v779 = vunpack.c.l.b16 %v106
  %v780 = vunpack.c.l.b16 %v107
  %v781 = vunpack.c.l.b16 %v108
  %v782 = vunpack.c.l.b16 %v109
  %v783 = vunpack.c.l.b16 %v110
  %v784 = vunpack.c.l.b16 %v111
  %v785 = vunpack.c.l.b16 %v112
  %v786 = vunpack.c.l.b16 %v113
  %v787 = vunpack.c.l.b16 %v114
  %v788 = vunpack.c.l.b16 %v115
  %v789 = vunpack.c.l.b16 %v116
  %v790 = vunpack.c.l.b16 %v117
  %v791 = vunpack.c.l.b16 %v118
  %v792 = vunpack.c.l.b16 %v119
  %v793 = vunpack.c.l.b16 %v120
  %v794 = vunpack.c.l.b16 %v121
  %v795 = vunpack.c.l.b16 %v122
  %v796 = vunpack.c.l.b16 %v123
  %v797 = vunpack.c.l.b16 %v124
  %v798 = vunpack.c.l.b16 %v125
  %v799 = vunpack.c.l.b16 %v126
  %v800 = vunpack.c.l.b16 %v127
  %v801 = vunpack.c.l.b16 %v128
  %v802 = vunpack.c.l.b16 %v129
  %v803 = vunpack.c.l.b16 %v130
  %v804 = vunpack.c.l.b16 %v131
  %v805 = vunpack.c.l.b16 %v132
  %v806 = vunpack.c.l.b16 %v133
  %v807 = vunpack.c.l.b16 %v134
  %v808 = vunpack.c.l.b16 %v135
  %v809 = vunpack.c.l.b16 %v136
  %v810 = vunpack.c.l.b16 %v137
  %v811 = vunpack.c.l.b16 %v138
  %v812 = vunpack.c.l.b16 %v139
  %v813 = vunpack.c.l.b16 %v140
  %v814 = vunpack.c.l.b16 %v141
  %v815 = vunpack.c.l.b16 %v142
  %v816 = vunpack.c.l.b16 %v143
  %v817 = vunpack.c.l.b16 %v144
  %v818 = vunpack.c.l.b16 %v145
  %v819 = vunpack.c.l.b16 %v146
  %v820 = vunpack.c.l.b16 %v147
  %v821 = vunpack.c.l.b16 %v148
  %v822 = vunpack.c.l.b16 %v149
  %v823 = vunpack.c.l.b16 %v150
  %v824 = vunpack.c.l.b16 %v151
  %v825 = vunpack.c.l.b16 %v152
  %v826 = vunpack.c.l.b16 %v153
  %v827 = vunpack.c.l.b16 %v154
  %v828 = vunpack.c.l.b16 %v155
  %v829 = vunpack.c.l.b16 %v156
  %v830 = vunpack.c.l.b16 %v157
  %v831 = vunpack.c.l.b16 %v158
  %v832 = vunpack.c.l.b16 %v159
  %v833 = vunpack.c.l.b16 %v160
  %v834 = vunpack.c.l.b16 %v161
  %v835 = vunpack.c.l.b16 %v162
  %v836 = vunpack.c.l.b16 %v163
  %v837 = vunpack.c.l.b16 %v164
  %v838 = vunpack.c.l.b16 %v165
  %v839 = vunpack.c.l.b16 %v166
  %v840 = vunpack.c.l.b16 %v167
  %v841 = vunpack.c.l.b16 %v168
  %v842 = vunpack.c.l.b16 %v169
  %v843 = vunpack.c.l.b16 %v170
  %v844 = vunpack.c.l.b16 %v171
  %v845 = vunpack.c.l.b16 %v172
  %v846 = vunpack.c.l.b16 %v173
  %v847 = vunpack.c.l.b16 %v174
  %v848 = vunpack.c.l.b16 %v175
  %v849 = vunpack.c.l.b16 %v176
  %v850 = vunpack.c.l.b16 %v177
  %v851 = vunpack.c.l.b16 %v178
  %v852 = vunpack.c.l.b16 %v179
  %v853 = vunpack.c.l.b16 %v180
  %v854 = vunpack.c.l.b16 %v181
  %v855 = vunpack.c.l.b16 %v182
  %v856 = vunpack.c.l.b16 %v183
  %v857 = vunpack.c.l.b16 %v184
  %v858 = vunpack.c.l.b16 %v185
  %v859 = vunpack.c.l.b16 %v186
  %v860 = vunpack.c.l.b16 %v187
  %v861 = vunpack.c.l.b16 %v188
  %v862 = vunpack.c.l.b16 %v189
  %v863 = vunpack.c.l.b16 %v190
  %v864 = vunpack.c.l.b16 %v191
  %v865 = vunpack.c.l.b16 %v192
  %v866 = vunpack.c.l.b16 %v193
  %v867 = vunpack.c.l.b16 %v194
  %v868 = vunpack.c.l.b16 %v195
  %v869 = vunpack.c.l.b16 %v196
  %v870 = vunpack.c.l.b16 %v197
  %v871 = vunpack.c.l.b16 %v198
  %v872 = vunpack.c.l.b16 %v199
  %v873 = vunpack.c.l.b16 %v200
  %v874 = vunpack.c.l.b16 %v201
  %v875 = vunpack.c.l.b16 %v202
  %v876 = vunpack.c.l.b16 %v203
  %v877 = vunpack.c.l.b16 %v204
  %v878 = vunpack.c.l.b16 %v205
  %v879 = vunpack.c.l.b16 %v206
  %v880 = vunpack.c.l.b16 %v207
  %v881 = vunpack.c.l.b16 %v208
  %v882 = vunpack.c.l.b16 %v209
  %v883 = vunpack.c.l.b16 %v210
  %v884 = vunpack.c.l.b16 %v211
  %v885 = vunpack.c.l.b16 %v212
  %v886 = vunpack.c.l.b16 %v213
  %v887 = vunpack.c.l.b16 %v214
  %v888 = vunpack.c.l.b16 %v215
  %v889 = vunpack.c.l.b16 %v216
  %v890 = vunpack.c.l.b16 %v217
  %v891 = vunpack.c.l.b16 %v218
  %v892 = vunpack.c.l.b16 %v219
  %v893 = vunpack.c.l.b16 %v220
  %v894 = vunpack.c.l.b16 %v221
  %v895 = vunpack.c.l.b16 %v222
  %v896 = vunpack.c.l.b16 %v223
  %v897 = vunpack.c.l.b16 %v224
  %v898 = vunpack.c.l.b16 %v225
  %v899 = vunpack.c.l.b16 %v226
  %v900 = vunpack.c.l.b16 %v227
  %v901 = vunpack.c.l.b16 %v228
  %v902 = vunpack.c.l.b16 %v229
  %v903 = vunpack.c.l.b16 %v230
  %v904 = vunpack.c.l.b16 %v231
  %v905 = vunpack.c.l.b16 %v232
  %v906 = vunpack.c.l.b16 %v233
  %v907 = vunpack.c.l.b16 %v234
  %v908 = vunpack.c.l.b16 %v235
  %v909 = vunpack.c.l.b16 %v236
  %v910 = vunpack.c.l.b16 %v237
  %v911 = vunpack.c.l.b16 %v238
  %v912 = vunpack.c.l.b16 %v239
  %v913 = vunpack.c.l.b16 %v240
  %v914 = vunpack.c.l.b16 %v241
  %v915 = vunpack.c.l.b16 %v242
  %v916 = vunpack.c.l.b16 %v243
  %v917 = vunpack.c.l.b16 %v244
  %v918 = vunpack.c.l.b16 %v245
  %v919 = vunpack.c.l.b16 %v246
  %v920 = vunpack.c.l.b16 %v247
  %v921 = vunpack.c.l.b16 %v248
  %v922 = vunpack.c.l.b16 %v249
  %v923 = vunpack.c.l.b16 %v250
  %v924 = vunpack.c.l.b16 %v251
  %v925 = vunpack.c.l.b16 %v252
  %v926 = vunpack.c.l.b16 %v253
  %v927 = vunpack.c.l.b16 %v254
  %v928 = vunpack.c.l.b16 %v255
  %v929 = vunpack.c.l.b16 %v256
  %v930 = vunpack.c.l.b16 %v257
  %v931 = vunpack.c.l.b16 %v258
  %v932 = vunpack.c.l.b16 %v259
  %v933 = vunpack.c.l.b16 %v260
  %v934 = vunpack.c.l.b16 %v261
  %v935 = vunpack.c.l.b16 %v262
  %v936 = vunpack.c.l.b16 %v263
  %v937 = vunpack.c.l.b16 %v264
  %v938 = vunpack.c.l.b16 %v265
  %v939 = vunpack.c.l.b16 %v266
  %v940 = vunpack.c.l.b16 %v267
  %v941 = vunpack.c.l.b16 %v268
  %v942 = vunpack.c.l.b16 %v269
  %v943 = vunpack.c.l.b16 %v270
  %v944 = vunpack.c.l.b16 %v271
  %v945 = vunpack.c.l.b16 %v272
  %v946 = vunpack.c.l.b16 %v273
  %v947 = vunpack.c.l.b16 %v274
  %v948 = vunpack.c.l.b16 %v275
  %v949 = vunpack.c.l.b16 %v276
  %v950 = vunpack.c.l.b16 %v277
  %v951 = vunpack.c.l.b16 %v278
  %v952 = vunpack.c.l.b16 %v279
  %v953 = vunpack.c.l.b16 %v280
  %v954 = vunpack.c.l.b16 %v281
  %v955 = vunpack.c.l.b16 %v282
  %v956 = vunpack.c.l.b16 %v283
  %v957 = vunpack.c.l.b16 %v284
  %v958 = vunpack.c.l.b16 %v285
  %v959 = vunpack.c.l.b16 %v286
  %v960 = vunpack.c.l.b16 %v287
  %v961 = vunpack.c.l.b16 %v288
  %v962 = vunpack.c.l.b16 %v289
  %v963 = vunpack.c.l.b16 %v290
  %v964 = vunpack.c.l.b16 %v291
  %v965 = vunpack.c.l.b16 %v292
  %v966 = vunpack.c.l.b16 %v293
  %v967 = vunpack.c.l.b16 %v294
  %v968 = vunpack.c.l.b16 %v295
  %v969 = vunpack.c.l.b16 %v296
  %v970 = vunpack.c.l.b16 %v297
  %v971 = vunpack.c.l.b16 %v298
  %v972 = vunpack.c.l.b16 %v299
  %v973 = vunpack.c.l.b16 %v300
  %v974 = vunpack.c.l.b16 %v301
  %v975 = vunpack.c.l.b16 %v302
  %v976 = vunpack.c.l.b16 %v303
  %v977 = vunpack.c.l.b16 %v304
  %v978 = vunpack.c.l.b16 %v305
  %v979 = vunpack.c.l.b16 %v306
  %v980 = vunpack.c.l.b16 %v307
  %v981 = vunpack.c.l.b16 %v308
  %v982 = vunpack.c.l.b16 %v309
  %v983 = vunpack.c.l.b16 %v310
  %v984 = vunpack.c.l.b16 %v311
  %v985 = vunpack.c.l.b16 %v312
  %v986 = vunpack.c.l.b16 %v313
  %v987 = vunpack.c.l.b16 %v314
  %v988 = vunpack.c.l.b16 %v315
  %v989 = vunpack.c.l.b16 %v316
  %v990 = vunpack.c.l.b16 %v317
  %v991 = vunpack.c.l.b16 %v318
  %v992 = vunpack.c.l.b16 %v319
  %v993 = vunpack.c.l.b16 %v320
  %v994 = vunpack.c.l.b16 %v321
  %v995 = vunpack.c.l.b16 %v322
  %v996 = vunpack.c.l.b16 %v323
  %v997 = vunpack.c.l.b16 %v324
  %v998 = vunpack.c.l.b16 %v325
  %v999 = vunpack.c.l.b16 %v326
  %v1000 = vpack.c.b16 %v713, %v712
  %v1001 = vpack.c.b16 %v715, %v714
  %v1002 = vpack.c.b16 %v717, %v716
  %v1003 = vpack.c.b16 %v719, %v718
  %v1004 = vpack.c.b16 %v721, %v720
  %v1005 = vpack.c.b16 %v723, %v722
  %v1006 = vpack.c.b16 %v725, %v724
  %v1007 = vpack.c.b16 %v727, %v726
  %v1008 = vpack.c.b16 %v729, %v728
  %v1009 = vpack.c.b16 %v731, %v730
  %v1010 = vpack.c.b16 %v733, %v732
  %v1011 = vpack.c.b16 %v735, %v734
  %v1012 = vpack.c.b16 %v737, %v736
  %v1013 = vpack.c.b16 %v739, %v738
  %v1014 = vpack.c.b16 %v741, %v740
  %v1015 = vpack.c.b16 %v743, %v742
  %v1016 = vpack.c.b16 %v745, %v744
  %v1017 = vpack.c.b16 %v747, %v746
  %v1018 = vpack.c.b16 %v749, %v748
  %v1019 = vpack.c.b16 %v751, %v750
  %v1020 = vpack.c.b16 %v753, %v752
  %v1021 = vpack.c.b16 %v755, %v754
  %v1022 = vpack.c.b16 %v757, %v756
  %v1023 = vpack.c.b16 %v759, %v758
  %v1024 = vpack.c.b16 %v761, %v760
  %v1025 = vpack.c.b16 %v763, %v762
  %v1026 = vpack.c.b16 %v765, %v764
  %v1027 = vpack.c.b16 %v767, %v766
  %v1028 = vpack.c.b16 %v769, %v768
  %v1029 = vpack.c.b16 %v771, %v770
  %v1030 = vpack.c.b16 %v773, %v772
  %v1031 = vpack.c.b16 %v775, %v774
  %v1032 = vpack.c.b16 %v777, %v776
  %v1033 = vpack.c.b16 %v779, %v778
  %v1034 = vpack.c.b16 %v781, %v780
  %v1035 = vpack.c.b16 %v783, %v782
  %v1036 = vpack.c.b16 %v785, %v784
  %v1037 = vpack.c.b16 %v787, %v786
  %v1038 = vpack.c.b16 %v789, %v788
  %v1039 = vpack.c.b16 %v791, %v790
  %v1040 = vpack.c.b16 %v793, %v792
  %v1041 = vpack.c.b16 %v795, %v794
  %v1042 = vpack.c.b16 %v797, %v796
  %v1043 = vpack.c.b16 %v799, %v798
  %v1044 = vpack.c.b16 %v801, %v800
  %v1045 = vpack.c.b16 %v803, %v802
  %v1046 = vpack.c.b16 %v805, %v804
  %v1047 = vpack.c.b16 %v807, %v806
  %v1048 = vpack.c.b16 %v809, %v808
  %v1049 = vpack.c.b16 %v811, %v810
  %v1050 = vpack.c.b16 %v813, %v812
  %v1051 = vpack.c.b16 %v815, %v814
  %v1052 = vpack.c.b16 %v817, %v816
  %v1053 = vpack.c.b16 %v819, %v818
  %v1054 = vpack.c.b16 %v821, %v820
  %v1055 = vpack.c.b16 %v823, %v822
  %v1056 = vpack.c.b16 %v825, %v824
  %v1057 = vpack.c.b16 %v827, %v826
  %v1058 = vpack.c.b16 %v829, %v828
  %v1059 = vpack.c.b16 %v831, %v830
  %v1060 = vpack.c.b16 %v833, %v832
  %v1061 = vpack.c.b16 %v835, %v834
  %v1062 = vpack.c.b16 %v837, %v836
  %v1063 = vpack.c.b16 %v839, %v838
  %v1064 = vpack.c.b16 %v841, %v840
  %v1065 = vpack.c.b16 %v843, %v842
  %v1066 = vpack.c.b16 %v845, %v844
  %v1067 = vpack.c.b16 %v847, %v846
  %v1068 = vpack.c.b16 %v849, %v848
  %v1069 = vpack.c.b16 %v851, %v850
  %v1070 = vpack.c.b16 %v853, %v852
  %v1071 = vpack.c.b16 %v855, %v854
  %v1072 = vpack.c.b16 %v857, %v856
  %v1073 = vpack.c.b16 %v859, %v858
  %v1074 = vpack.c.b16 %v861, %v860
  %v1075 = vpack.c.b16 %v863, %v862
  %v1076 = vpack.c.b16 %v865, %v864
  %v1077 = vpack.c.b16 %v867, %v866
  %v1078 = vpack.c.b16 %v869, %v868
  %v1079 = vpack.c.b16 %v871, %v870
  %v1080 = vpack.c.b16 %v873, %v872
  %v1081 = vpack.c.b16 %v875, %v874
  %v1082 = vpack.c.b16 %v877, %v876
  %v1083 = vpack.c.b16 %v879, %v878
  %v1084 = vpack.c.b16 %v881, %v880
  %v1085 = vpack.c.b16 %v883, %v882
  %v1086 = vpack.c.b16 %v885, %v884
  %v1087 = vpack.c.b16 %v887, %v886
  %v1088 = vpack.c.b16 %v889, %v888
  %v1089 = vpack.c.b16 %v891, %v890
  %v1090 = vpack.c.b16 %v893, %v892
  %v1091 = vpack.c.b16 %v895, %v894
  %v1092 = vpack.c.b16 %v897, %v896
  %v1093 = vpack.c.b16 %v899, %v898
  %v1094 = vpack.c.b16 %v901, %v900
  %v1095 = vpack.c.b16 %v903, %v902
  %v1096 = vpack.c.b16 %v905, %v904
  %v1097 = vpack.c.b16 %v907, %v906
  %v1098 = vpack.c.b16 %v909, %v908
  %v1099 = vpack.c.b16 %v911, %v910
  %v1100 = vpack.c.b16 %v913, %v912
  %v1101 = vpack.c.b16 %v915, %v914
  %v1102 = vpack.c.b16 %v917, %v916
  %v1103 = vpack.c.b16 %v919, %v918
  %v1104 = vpack.c.b16 %v921, %v920
  %v1105 = vpack.c.b16 %v923, %v922
  %v1106 = vpack.c.b16 %v925, %v924
  %v1107 = vpack.c.b16 %v927, %v926
  %v1108 = vpack.c.b16 %v929, %v928
  %v1109 = vpack.c.b16 %v931, %v930
  %v1110 = vpack.c.b16 %v933, %v932
  %v1111 = vpack.c.b16 %v935, %v934
  %v1112 = vpack.c.b16 %v937, %v936
  %v1113 = vpack.c.b16 %v939, %v938
  %v1114 = vpack.c.b16 %v941, %v940
  %v1115 = vpack.c.b16 %v943, %v942
  %v1116 = vpack.c.b16 %v945, %v944
  %v1117 = vpack.c.b16 %v947, %v946
  %v1118 = vpack.c.b16 %v949, %v948
  %v1119 = vpack.c.b16 %v951, %v950
  %v1120 = vpack.c.b16 %v953, %v952
  %v1121 = vpack.c.b16 %v955, %v954
  %v1122 = vpack.c.b16 %v957, %v956
  %v1123 = vpack.c.b16 %v959, %v958
  %v1124 = vpack.c.b16 %v961, %v960
  %v1125 = vpack.c.b16 %v963, %v962
  %v1126 = vpack.c.b16 %v965, %v964
  %v1127 = vpack.c.b16 %v967, %v966
  %v1128 = vpack.c.b16 %v969, %v968
  %v1129 = vpack.c.b16 %v971, %v970
  %v1130 = vpack.c.b16 %v973, %v972
  %v1131 = vpack.c.b16 %v975, %v974
  %v1132 = vpack.c.b16 %v977, %v976
  %v1133 = vpack.c.b16 %v979, %v978
  %v1134 = vpack.c.b16 %v981, %v980
  %v1135 = vpack.c.b16 %v983, %v982
  %v1136 = vpack.c.b16 %v985, %v984
  %v1137 = vpack.c.b16 %v987, %v986
  %v1138 = vpack.c.b16 %v989, %v988
  %v1139 = vpack.c.b16 %v991, %v990
  %v1140 = vpack.c.b16 %v993, %v992
  %v1141 = vpack.c.b16 %v995, %v994
  %v1142 = vpack.c.b16 %v997, %v996
  %v1143 = vpack.c.b16 %v999, %v998
  %1288 = vmatprep.subr.bf16.mxu0 0
  %1289 = vmatpush1.bf16.msra.mxu0 %v1000
  %1290 = vmatprep.subr.bf16.mxu0 0
  %1291 = vmatpush1.bf16.msra.mxu0 %v1001
  %1292 = vmatprep.subr.bf16.mxu0 0
  %1293 = vmatpush1.bf16.msra.mxu0 %v1002
  %1294 = vmatprep.subr.bf16.mxu0 0
  %1295 = vmatpush1.bf16.msra.mxu0 %v1003
  %1296 = vmatprep.subr.bf16.mxu0 0
  %1297 = vmatpush1.bf16.msra.mxu0 %v1004
  %1298 = vmatprep.subr.bf16.mxu0 0
  %1299 = vmatpush1.bf16.msra.mxu0 %v1005
  %1300 = vmatprep.subr.bf16.mxu0 0
  %1301 = vmatpush1.bf16.msra.mxu0 %v1006
  %1302 = vmatprep.subr.bf16.mxu0 0
  %1303 = vmatpush1.bf16.msra.mxu0 %v1007
  %1304 = vmatprep.subr.bf16.mxu0 0
  %1305 = vmatpush1.bf16.msra.mxu0 %v1008
  %1306 = vmatprep.subr.bf16.mxu0 0
  %1307 = vmatpush1.bf16.msra.mxu0 %v1009
  %1308 = vmatprep.subr.bf16.mxu0 0
  %1309 = vmatpush1.bf16.msra.mxu0 %v1010
  %1310 = vmatprep.subr.bf16.mxu0 0
  %1311 = vmatpush1.bf16.msra.mxu0 %v1011
  %1312 = vmatprep.subr.bf16.mxu0 0
  %1313 = vmatpush1.bf16.msra.mxu0 %v1012
  %1314 = vmatprep.subr.bf16.mxu0 0
  %1315 = vmatpush1.bf16.msra.mxu0 %v1013
  %1316 = vmatprep.subr.bf16.mxu0 0
  %1317 = vmatpush1.bf16.msra.mxu0 %v1014
  %1318 = vmatprep.subr.bf16.mxu0 0
  %1319 = vmatpush1.bf16.msra.mxu0 %v1015
  %1320 = vmatprep.mubr.bf16.mxu0 %v389
  %1321 = vmatmul.mubr.bf16.gmra.mrb[0].mxu0 %v388
  %v1322 = vpop.f32.mrb[0].mxu0
  %v1323 = vadd.f32 %v332, %v1322
  %v1324 = vpop.f32.mrb[0].mxu0
  %v1325 = vpop.f32.mrb[0].mxu0
  %v1326 = vadd.f32 %v332, %v1325
  %v1327 = vpop.f32.mrb[0].mxu0
  %1328 = vdwg.mxu0
  %1329 = vmatprep.subr.bf16.mxu0 0
  %1330 = vmatpush1.bf16.msra.mxu0 %v1016
  %1331 = vmatprep.subr.bf16.mxu0 0
  %1332 = vmatpush1.bf16.msra.mxu0 %v1017
  %1333 = vmatprep.subr.bf16.mxu0 0
  %1334 = vmatpush1.bf16.msra.mxu0 %v1018
  %1335 = vmatprep.subr.bf16.mxu0 0
  %1336 = vmatpush1.bf16.msra.mxu0 %v1019
  %1337 = vmatprep.subr.bf16.mxu0 0
  %1338 = vmatpush1.bf16.msra.mxu0 %v1020
  %1339 = vmatprep.subr.bf16.mxu0 0
  %1340 = vmatpush1.bf16.msra.mxu0 %v1021
  %1341 = vmatprep.subr.bf16.mxu0 0
  %1342 = vmatpush1.bf16.msra.mxu0 %v1022
  %1343 = vmatprep.subr.bf16.mxu0 0
  %1344 = vmatpush1.bf16.msra.mxu0 %v1023
  %1345 = vmatprep.subr.bf16.mxu0 0
  %1346 = vmatpush1.bf16.msra.mxu0 %v1024
  %1347 = vmatprep.subr.bf16.mxu0 0
  %1348 = vmatpush1.bf16.msra.mxu0 %v1025
  %1349 = vmatprep.subr.bf16.mxu0 0
  %1350 = vmatpush1.bf16.msra.mxu0 %v1026
  %1351 = vmatprep.subr.bf16.mxu0 0
  %1352 = vmatpush1.bf16.msra.mxu0 %v1027
  %1353 = vmatprep.subr.bf16.mxu0 0
  %1354 = vmatpush1.bf16.msra.mxu0 %v1028
  %1355 = vmatprep.subr.bf16.mxu0 0
  %1356 = vmatpush1.bf16.msra.mxu0 %v1029
  %1357 = vmatprep.subr.bf16.mxu0 0
  %1358 = vmatpush1.bf16.msra.mxu0 %v1030
  %1359 = vmatprep.subr.bf16.mxu0 0
  %1360 = vmatpush1.bf16.msra.mxu0 %v1031
  %1361 = vmatprep.mubr.bf16.mxu0 %v391
  %1362 = vmatmul.mubr.bf16.gmra.mrb[0].mxu0 %v390
  %v1363 = vpop.f32.mrb[0].mxu0
  %v1364 = vadd.f32 %v1323, %v1363
  %v1365 = vpop.f32.mrb[0].mxu0
  %v1366 = vpop.f32.mrb[0].mxu0
  %v1367 = vadd.f32 %v1326, %v1366
  %v1368 = vpop.f32.mrb[0].mxu0
  %1369 = vdwg.mxu0
  %1370 = vmatprep.subr.bf16.mxu0 0
  %1371 = vmatpush1.bf16.msra.mxu0 %v1032
  %1372 = vmatprep.subr.bf16.mxu0 0
  %1373 = vmatpush1.bf16.msra.mxu0 %v1033
  %1374 = vmatprep.subr.bf16.mxu0 0
  %1375 = vmatpush1.bf16.msra.mxu0 %v1034
  %1376 = vmatprep.subr.bf16.mxu0 0
  %1377 = vmatpush1.bf16.msra.mxu0 %v1035
  %1378 = vmatprep.subr.bf16.mxu0 0
  %1379 = vmatpush1.bf16.msra.mxu0 %v1036
  %1380 = vmatprep.subr.bf16.mxu0 0
  %1381 = vmatpush1.bf16.msra.mxu0 %v1037
  %1382 = vmatprep.subr.bf16.mxu0 0
  %1383 = vmatpush1.bf16.msra.mxu0 %v1038
  %1384 = vmatprep.subr.bf16.mxu0 0
  %1385 = vmatpush1.bf16.msra.mxu0 %v1039
  %1386 = vmatprep.subr.bf16.mxu0 0
  %1387 = vmatpush1.bf16.msra.mxu0 %v1040
  %1388 = vmatprep.subr.bf16.mxu0 0
  %1389 = vmatpush1.bf16.msra.mxu0 %v1041
  %1390 = vmatprep.subr.bf16.mxu0 0
  %1391 = vmatpush1.bf16.msra.mxu0 %v1042
  %1392 = vmatprep.subr.bf16.mxu0 0
  %1393 = vmatpush1.bf16.msra.mxu0 %v1043
  %1394 = vmatprep.subr.bf16.mxu0 0
  %1395 = vmatpush1.bf16.msra.mxu0 %v1044
  %1396 = vmatprep.subr.bf16.mxu0 0
  %1397 = vmatpush1.bf16.msra.mxu0 %v1045
  %1398 = vmatprep.subr.bf16.mxu0 0
  %1399 = vmatpush1.bf16.msra.mxu0 %v1046
  %1400 = vmatprep.subr.bf16.mxu0 0
  %1401 = vmatpush1.bf16.msra.mxu0 %v1047
  %1402 = vmatprep.mubr.bf16.mxu0 %v393
  %1403 = vmatmul.mubr.bf16.gmra.mrb[0].mxu0 %v392
  %v1404 = vpop.f32.mrb[0].mxu0
  %v1405 = vadd.f32 %v1364, %v1404
  %v1406 = vpop.f32.mrb[0].mxu0
  %v1407 = vpop.f32.mrb[0].mxu0
  %v1408 = vadd.f32 %v1367, %v1407
  %v1409 = vpop.f32.mrb[0].mxu0
  %1410 = vdwg.mxu0
  %1411 = vmatprep.subr.bf16.mxu0 0
  %1412 = vmatpush1.bf16.msra.mxu0 %v1048
  %1413 = vmatprep.subr.bf16.mxu0 0
  %1414 = vmatpush1.bf16.msra.mxu0 %v1049
  %1415 = vmatprep.subr.bf16.mxu0 0
  %1416 = vmatpush1.bf16.msra.mxu0 %v1050
  %1417 = vmatprep.subr.bf16.mxu0 0
  %1418 = vmatpush1.bf16.msra.mxu0 %v1051
  %1419 = vmatprep.subr.bf16.mxu0 0
  %1420 = vmatpush1.bf16.msra.mxu0 %v1052
  %1421 = vmatprep.subr.bf16.mxu0 0
  %1422 = vmatpush1.bf16.msra.mxu0 %v1053
  %1423 = vmatprep.subr.bf16.mxu0 0
  %1424 = vmatpush1.bf16.msra.mxu0 %v1054
  %1425 = vmatprep.subr.bf16.mxu0 0
  %1426 = vmatpush1.bf16.msra.mxu0 %v1055
  %1427 = vmatprep.subr.bf16.mxu0 0
  %1428 = vmatpush1.bf16.msra.mxu0 %v1056
  %1429 = vmatprep.subr.bf16.mxu0 0
  %1430 = vmatpush1.bf16.msra.mxu0 %v1057
  %1431 = vmatprep.subr.bf16.mxu0 0
  %1432 = vmatpush1.bf16.msra.mxu0 %v1058
  %1433 = vmatprep.subr.bf16.mxu0 0
  %1434 = vmatpush1.bf16.msra.mxu0 %v1059
  %1435 = vmatprep.subr.bf16.mxu0 0
  %1436 = vmatpush1.bf16.msra.mxu0 %v1060
  %1437 = vmatprep.subr.bf16.mxu0 0
  %1438 = vmatpush1.bf16.msra.mxu0 %v1061
  %1439 = vmatprep.subr.bf16.mxu0 0
  %1440 = vmatpush1.bf16.msra.mxu0 %v1062
  %1441 = vmatprep.subr.bf16.mxu0 0
  %1442 = vmatpush1.bf16.msra.mxu0 %v1063
  %1443 = vmatprep.mubr.bf16.mxu0 %v395
  %1444 = vmatmul.mubr.bf16.gmra.mrb[0].mxu0 %v394
  %v1445 = vpop.f32.mrb[0].mxu0
  %v1446 = vadd.f32 %v1405, %v1445
  %v1447 = vpop.f32.mrb[0].mxu0
  %v1448 = vpop.f32.mrb[0].mxu0
  %v1449 = vadd.f32 %v1408, %v1448
  %v1450 = vpop.f32.mrb[0].mxu0
  %1451 = vdwg.mxu0
  %1452 = vmatprep.subr.bf16.mxu0 0
  %1453 = vmatpush1.bf16.msra.mxu0 %v1064
  %1454 = vmatprep.subr.bf16.mxu0 0
  %1455 = vmatpush1.bf16.msra.mxu0 %v1065
  %1456 = vmatprep.subr.bf16.mxu0 0
  %1457 = vmatpush1.bf16.msra.mxu0 %v1066
  %1458 = vmatprep.subr.bf16.mxu0 0
  %1459 = vmatpush1.bf16.msra.mxu0 %v1067
  %1460 = vmatprep.subr.bf16.mxu0 0
  %1461 = vmatpush1.bf16.msra.mxu0 %v1068
  %1462 = vmatprep.subr.bf16.mxu0 0
  %1463 = vmatpush1.bf16.msra.mxu0 %v1069
  %1464 = vmatprep.subr.bf16.mxu0 0
  %1465 = vmatpush1.bf16.msra.mxu0 %v1070
  %1466 = vmatprep.subr.bf16.mxu0 0
  %1467 = vmatpush1.bf16.msra.mxu0 %v1071
  %1468 = vmatprep.subr.bf16.mxu0 0
  %1469 = vmatpush1.bf16.msra.mxu0 %v1072
  %1470 = vmatprep.subr.bf16.mxu0 0
  %1471 = vmatpush1.bf16.msra.mxu0 %v1073
  %1472 = vmatprep.subr.bf16.mxu0 0
  %1473 = vmatpush1.bf16.msra.mxu0 %v1074
  %1474 = vmatprep.subr.bf16.mxu0 0
  %1475 = vmatpush1.bf16.msra.mxu0 %v1075
  %1476 = vmatprep.subr.bf16.mxu0 0
  %1477 = vmatpush1.bf16.msra.mxu0 %v1076
  %1478 = vmatprep.subr.bf16.mxu0 0
  %1479 = vmatpush1.bf16.msra.mxu0 %v1077
  %1480 = vmatprep.subr.bf16.mxu0 0
  %1481 = vmatpush1.bf16.msra.mxu0 %v1078
  %1482 = vmatprep.subr.bf16.mxu0 0
  %1483 = vmatpush1.bf16.msra.mxu0 %v1079
  %1484 = vmatprep.mubr.bf16.mxu0 %v397
  %1485 = vmatmul.mubr.bf16.gmra.mrb[0].mxu0 %v396
  %v1486 = vpop.f32.mrb[0].mxu0
  %v1487 = vadd.f32 %v1446, %v1486
  %v1488 = vpop.f32.mrb[0].mxu0
  %v1489 = vpop.f32.mrb[0].mxu0
  %v1490 = vadd.f32 %v1449, %v1489
  %v1491 = vpop.f32.mrb[0].mxu0
  %1492 = vdwg.mxu0
  %1493 = vmatprep.subr.bf16.mxu0 0
  %1494 = vmatpush1.bf16.msra.mxu0 %v1080
  %1495 = vmatprep.subr.bf16.mxu0 0
  %1496 = vmatpush1.bf16.msra.mxu0 %v1081
  %1497 = vmatprep.subr.bf16.mxu0 0
  %1498 = vmatpush1.bf16.msra.mxu0 %v1082
  %1499 = vmatprep.subr.bf16.mxu0 0
  %1500 = vmatpush1.bf16.msra.mxu0 %v1083
  %1501 = vmatprep.subr.bf16.mxu0 0
  %1502 = vmatpush1.bf16.msra.mxu0 %v1084
  %1503 = vmatprep.subr.bf16.mxu0 0
  %1504 = vmatpush1.bf16.msra.mxu0 %v1085
  %1505 = vmatprep.subr.bf16.mxu0 0
  %1506 = vmatpush1.bf16.msra.mxu0 %v1086
  %1507 = vmatprep.subr.bf16.mxu0 0
  %1508 = vmatpush1.bf16.msra.mxu0 %v1087
  %1509 = vmatprep.subr.bf16.mxu0 0
  %1510 = vmatpush1.bf16.msra.mxu0 %v1088
  %1511 = vmatprep.subr.bf16.mxu0 0
  %1512 = vmatpush1.bf16.msra.mxu0 %v1089
  %1513 = vmatprep.subr.bf16.mxu0 0
  %1514 = vmatpush1.bf16.msra.mxu0 %v1090
  %1515 = vmatprep.subr.bf16.mxu0 0
  %1516 = vmatpush1.bf16.msra.mxu0 %v1091
  %1517 = vmatprep.subr.bf16.mxu0 0
  %1518 = vmatpush1.bf16.msra.mxu0 %v1092
  %1519 = vmatprep.subr.bf16.mxu0 0
  %1520 = vmatpush1.bf16.msra.mxu0 %v1093
  %1521 = vmatprep.subr.bf16.mxu0 0
  %1522 = vmatpush1.bf16.msra.mxu0 %v1094
  %1523 = vmatprep.subr.bf16.mxu0 0
  %1524 = vmatpush1.bf16.msra.mxu0 %v1095
  %1525 = vmatprep.mubr.bf16.mxu0 %v399
  %1526 = vmatmul.mubr.bf16.gmra.mrb[0].mxu0 %v398
  %v1527 = vpop.f32.mrb[0].mxu0
  %v1528 = vadd.f32 %v1487, %v1527
  %v1529 = vpop.f32.mrb[0].mxu0
  %v1530 = vpop.f32.mrb[0].mxu0
  %v1531 = vadd.f32 %v1490, %v1530
  %v1532 = vpop.f32.mrb[0].mxu0
  %1533 = vdwg.mxu0
  %1534 = vmatprep.subr.bf16.mxu0 0
  %1535 = vmatpush1.bf16.msra.mxu0 %v1096
  %1536 = vmatprep.subr.bf16.mxu0 0
  %1537 = vmatpush1.bf16.msra.mxu0 %v1097
  %1538 = vmatprep.subr.bf16.mxu0 0
  %1539 = vmatpush1.bf16.msra.mxu0 %v1098
  %1540 = vmatprep.subr.bf16.mxu0 0
  %1541 = vmatpush1.bf16.msra.mxu0 %v1099
  %1542 = vmatprep.subr.bf16.mxu0 0
  %1543 = vmatpush1.bf16.msra.mxu0 %v1100
  %1544 = vmatprep.subr.bf16.mxu0 0
  %1545 = vmatpush1.bf16.msra.mxu0 %v1101
  %1546 = vmatprep.subr.bf16.mxu0 0
  %1547 = vmatpush1.bf16.msra.mxu0 %v1102
  %1548 = vmatprep.subr.bf16.mxu0 0
  %1549 = vmatpush1.bf16.msra.mxu0 %v1103
  %1550 = vmatprep.subr.bf16.mxu0 0
  %1551 = vmatpush1.bf16.msra.mxu0 %v1104
  %1552 = vmatprep.subr.bf16.mxu0 0
  %1553 = vmatpush1.bf16.msra.mxu0 %v1105
  %1554 = vmatprep.subr.bf16.mxu0 0
  %1555 = vmatpush1.bf16.msra.mxu0 %v1106
  %1556 = vmatprep.subr.bf16.mxu0 0
  %1557 = vmatpush1.bf16.msra.mxu0 %v1107
  %1558 = vmatprep.subr.bf16.mxu0 0
  %1559 = vmatpush1.bf16.msra.mxu0 %v1108
  %1560 = vmatprep.subr.bf16.mxu0 0
  %1561 = vmatpush1.bf16.msra.mxu0 %v1109
  %1562 = vmatprep.subr.bf16.mxu0 0
  %1563 = vmatpush1.bf16.msra.mxu0 %v1110
  %1564 = vmatprep.subr.bf16.mxu0 0
  %1565 = vmatpush1.bf16.msra.mxu0 %v1111
  %1566 = vmatprep.mubr.bf16.mxu0 %v401
  %1567 = vmatmul.mubr.bf16.gmra.mrb[0].mxu0 %v400
  %v1568 = vpop.f32.mrb[0].mxu0
  %v1569 = vadd.f32 %v1528, %v1568
  %v1570 = vpop.f32.mrb[0].mxu0
  %v1571 = vpop.f32.mrb[0].mxu0
  %v1572 = vadd.f32 %v1531, %v1571
  %v1573 = vpop.f32.mrb[0].mxu0
  %1574 = vdwg.mxu0
  %1575 = vmatprep.subr.bf16.mxu0 0
  %1576 = vmatpush1.bf16.msra.mxu0 %v1112
  %1577 = vmatprep.subr.bf16.mxu0 0
  %1578 = vmatpush1.bf16.msra.mxu0 %v1113
  %1579 = vmatprep.subr.bf16.mxu0 0
  %1580 = vmatpush1.bf16.msra.mxu0 %v1114
  %1581 = vmatprep.subr.bf16.mxu0 0
  %1582 = vmatpush1.bf16.msra.mxu0 %v1115
  %1583 = vmatprep.subr.bf16.mxu0 0
  %1584 = vmatpush1.bf16.msra.mxu0 %v1116
  %1585 = vmatprep.subr.bf16.mxu0 0
  %1586 = vmatpush1.bf16.msra.mxu0 %v1117
  %1587 = vmatprep.subr.bf16.mxu0 0
  %1588 = vmatpush1.bf16.msra.mxu0 %v1118
  %1589 = vmatprep.subr.bf16.mxu0 0
  %1590 = vmatpush1.bf16.msra.mxu0 %v1119
  %1591 = vmatprep.subr.bf16.mxu0 0
  %1592 = vmatpush1.bf16.msra.mxu0 %v1120
  %1593 = vmatprep.subr.bf16.mxu0 0
  %1594 = vmatpush1.bf16.msra.mxu0 %v1121
  %1595 = vmatprep.subr.bf16.mxu0 0
  %1596 = vmatpush1.bf16.msra.mxu0 %v1122
  %1597 = vmatprep.subr.bf16.mxu0 0
  %1598 = vmatpush1.bf16.msra.mxu0 %v1123
  %1599 = vmatprep.subr.bf16.mxu0 0
  %1600 = vmatpush1.bf16.msra.mxu0 %v1124
  %1601 = vmatprep.subr.bf16.mxu0 0
  %1602 = vmatpush1.bf16.msra.mxu0 %v1125
  %1603 = vmatprep.subr.bf16.mxu0 0
  %1604 = vmatpush1.bf16.msra.mxu0 %v1126
  %1605 = vmatprep.subr.bf16.mxu0 0
  %1606 = vmatpush1.bf16.msra.mxu0 %v1127
  %1607 = vmatprep.mubr.bf16.mxu0 %v403
  %1608 = vmatmul.mubr.bf16.gmra.mrb[0].mxu0 %v402
  %v1609 = vpop.f32.mrb[0].mxu0
  %v1610 = vadd.f32 %v1569, %v1609
  %v1611 = vpop.f32.mrb[0].mxu0
  %v1612 = vpop.f32.mrb[0].mxu0
  %v1613 = vadd.f32 %v1572, %v1612
  %v1614 = vpop.f32.mrb[0].mxu0
  %1615 = vdwg.mxu0
  %1616 = vmatprep.subr.bf16.mxu0 0
  %1617 = vmatpush1.bf16.msra.mxu0 %v1128
  %1618 = vmatprep.subr.bf16.mxu0 0
  %1619 = vmatpush1.bf16.msra.mxu0 %v1129
  %1620 = vmatprep.subr.bf16.mxu0 0
  %1621 = vmatpush1.bf16.msra.mxu0 %v1130
  %1622 = vmatprep.subr.bf16.mxu0 0
  %1623 = vmatpush1.bf16.msra.mxu0 %v1131
  %1624 = vmatprep.subr.bf16.mxu0 0
  %1625 = vmatpush1.bf16.msra.mxu0 %v1132
  %1626 = vmatprep.subr.bf16.mxu0 0
  %1627 = vmatpush1.bf16.msra.mxu0 %v1133
  %1628 = vmatprep.subr.bf16.mxu0 0
  %1629 = vmatpush1.bf16.msra.mxu0 %v1134
  %1630 = vmatprep.subr.bf16.mxu0 0
  %1631 = vmatpush1.bf16.msra.mxu0 %v1135
  %1632 = vmatprep.subr.bf16.mxu0 0
  %1633 = vmatpush1.bf16.msra.mxu0 %v1136
  %1634 = vmatprep.subr.bf16.mxu0 0
  %1635 = vmatpush1.bf16.msra.mxu0 %v1137
  %1636 = vmatprep.subr.bf16.mxu0 0
  %1637 = vmatpush1.bf16.msra.mxu0 %v1138
  %1638 = vmatprep.subr.bf16.mxu0 0
  %1639 = vmatpush1.bf16.msra.mxu0 %v1139
  %1640 = vmatprep.subr.bf16.mxu0 0
  %1641 = vmatpush1.bf16.msra.mxu0 %v1140
  %1642 = vmatprep.subr.bf16.mxu0 0
  %1643 = vmatpush1.bf16.msra.mxu0 %v1141
  %1644 = vmatprep.subr.bf16.mxu0 0
  %1645 = vmatpush1.bf16.msra.mxu0 %v1142
  %1646 = vmatprep.subr.bf16.mxu0 0
  %1647 = vmatpush1.bf16.msra.mxu0 %v1143
  %1648 = vmatprep.mubr.bf16.mxu0 %v405
  %1649 = vmatmul.mubr.bf16.gmra.mrb[0].mxu0 %v404
  %v1650 = vpop.f32.mrb[0].mxu0
  %v1651 = vadd.f32 %v1610, %v1650
  %v1652 = vpop.f32.mrb[0].mxu0
  %v1653 = vpop.f32.mrb[0].mxu0
  %v1654 = vadd.f32 %v1613, %v1653
  %v1655 = vpop.f32.mrb[0].mxu0
  %1656 = vdwg.mxu0
  %v1657 = vmax.f32 %v1651, 0.0
  %v1658 = vmax.f32 %v1654, 0.0
  %v1659 = vpack.c.bf16 %v1658, %v1657
  %v1660 = vld [vmem:[%s3] sm:$0xf]
  %v1661 = vld [vmem:[%s3 + $0x4] sm:$0xf]
  %v1662 = vld [vmem:[%s3 + $0x8] sm:$0xf]
  %v1663 = vld [vmem:[%s3 + $0xc] sm:$0xf]
  %v1664 = vld [vmem:[%s3 + $0x10] sm:$0xf]
  %v1665 = vld [vmem:[%s3 + $0x14] sm:$0xf]
  %v1666 = vld [vmem:[%s3 + $0x18] sm:$0xf]
  %v1667 = vld [vmem:[%s3 + $0x1c] sm:$0xf]
  %v1668 = vld [vmem:[%s4] sm:$0x1]
  %v1670 = vlaneseq
  %v1671 = vshrl.u32 %v1670, 7
  %v1672 = vsub.s32 0, %v1671
  %v1673 = vrot.slane %v1668, %v1672
  %v1683 = vunpack.c.l.b16 %v1660
  %v1684 = vunpack.c.l.b16 %v1661
  %v1685 = vunpack.c.l.b16 %v1662
  %v1686 = vunpack.c.l.b16 %v1663
  %v1687 = vunpack.c.l.b16 %v1664
  %v1688 = vunpack.c.l.b16 %v1665
  %v1689 = vunpack.c.l.b16 %v1666
  %v1690 = vunpack.c.l.b16 %v1667
  %v1691 = vpack.c.b16 %v1684, %v1683
  %v1692 = vpack.c.b16 %v1686, %v1685
  %v1693 = vpack.c.b16 %v1688, %v1687
  %v1694 = vpack.c.b16 %v1690, %v1689
  %vm1699 = vcmask 523264
  %v1701 = vsel %vm1699, %v1659, 0
  %1703 = vmatprep.subr.bf16.mxu0 0
  %1704 = vmatpush1.bf16.msra.mxu0 %v1691
  %1705 = vmatprep.subr.bf16.mxu0 0
  %1706 = vmatpush1.bf16.msra.mxu0 %v1692
  %1707 = vmatprep.subr.bf16.mxu0 0
  %1708 = vmatpush1.bf16.msra.mxu0 %v1693
  %1709 = vmatprep.subr.bf16.mxu0 0
  %1710 = vmatpush1.bf16.msra.mxu0 %v1694
  %1711 = vmatprep.subr.bf16.mxu0 0
  %1712 = vmatpush1.bf16.msra.mxu0 0
  %1713 = vmatprep.subr.bf16.mxu0 0
  %1714 = vmatpush1.bf16.msra.mxu0 0
  %1715 = vmatprep.subr.bf16.mxu0 0
  %1716 = vmatpush1.bf16.msra.mxu0 0
  %1717 = vmatprep.subr.bf16.mxu0 0
  %1718 = vmatpush1.bf16.msra.mxu0 0
  %1719 = vmatprep.subr.bf16.mxu0 0
  %1720 = vmatpush1.bf16.msra.mxu0 0
  %1721 = vmatprep.subr.bf16.mxu0 0
  %1722 = vmatpush1.bf16.msra.mxu0 0
  %1723 = vmatprep.subr.bf16.mxu0 0
  %1724 = vmatpush1.bf16.msra.mxu0 0
  %1725 = vmatprep.subr.bf16.mxu0 0
  %1726 = vmatpush1.bf16.msra.mxu0 0
  %1727 = vmatprep.subr.bf16.mxu0 0
  %1728 = vmatpush1.bf16.msra.mxu0 0
  %1729 = vmatprep.subr.bf16.mxu0 0
  %1730 = vmatpush1.bf16.msra.mxu0 0
  %1731 = vmatprep.subr.bf16.mxu0 0
  %1732 = vmatpush1.bf16.msra.mxu0 0
  %1733 = vmatprep.subr.bf16.mxu0 0
  %1734 = vmatpush1.bf16.msra.mxu0 0
  %1735 = vmatprep.mubr.bf16.mxu0 0
  %1736 = vmatmul.mubr.bf16.gmra.mrb[0].mxu0 %v1701
  %v1737 = vpop.f32.mrb[0].mxu0
  %v1738 = vadd.f32 %v1673, %v1737
  %v1739 = vpop.f32.mrb[0].mxu0
  %v1740 = vpop.f32.mrb[0].mxu0
  %v1741 = vadd.f32 %v1673, %v1740
  %v1742 = vpop.f32.mrb[0].mxu0
  %1743 = vdwg.mxu0
  %1744 = vst [vmem:[%s5] sm:$0xff] %v1738
  %1745 = vst [vmem:[%s5 + $0x8] sm:$0xff] %v1741
  // Predicated region
  $region22: #{cnn_forward.7} parent=0 // pred_check
    _
  $region23: #{cnn_forward.7} parent=0 // pred_check_branch
    %1747 = sbr.rel (0) target = $region25
  $region24: #{cnn_forward.7} parent=0 // pred_region
    _
  $region25: #{cnn_forward.7} parent=0 // pred_fallthru
    _
  // Predicated region
  $region26: #{cnn_forward.7} parent=0 // pred_check
    _
  $region27: #{cnn_forward.7} parent=0 // pred_check_branch
    %1749 = sbr.rel (0) target = $region29
  $region28: #{cnn_forward.7} parent=0 // pred_region
    _
  $region29: #{cnn_forward.7} parent=0 // pred_fallthru
    _

</llo_original>
